<compile_context>
chip_gen: v7x
topology: tpu7x:2x2x1
jax: 0.10.0
libtpu: 0.0.40
codegen_flags: <defaults>
</compile_context>

<pallas_src>
import math

import jax
import jax.numpy as jnp
from jax import lax
from jax.experimental import pallas as pl
from jax.experimental.pallas import tpu as pltpu

# ---- Hyperparameters (small but consistent with the PatchTST module) ----
SEQ_LEN = 64
PATCH_LEN = 16
STRIDE = 8
PADDING = STRIDE                                    # padding = stride in the module
D_MODEL = 64
N_HEADS = 4
D_HEAD = D_MODEL // N_HEADS
D_FF = 128
E_LAYERS = 2
NUM_PATCH = (SEQ_LEN + PADDING - PATCH_LEN) // STRIDE + 1      # = 8
N_BLOCKS = (SEQ_LEN + PADDING) // STRIDE                        # = 9 stride blocks
R_SUB = PATCH_LEN // STRIDE                                     # = 2 blocks per patch
FLAT = D_MODEL * NUM_PATCH                                      # = 512 (lane-dense out)
LN_EPS = 1e-5

# MXU input dtype (accumulation is always f32).  bf16 is the recommended setting for
# v6e/v7x; use jnp.float32 for closest-to-torch numerics (e.g. on v5e).
MM_DTYPE = jnp.bfloat16

assert PATCH_LEN % STRIDE == 0 and (SEQ_LEN + PADDING) % STRIDE == 0


# --------------------------- in-kernel helpers ---------------------------
def _erf(x):
    # Abramowitz & Stegun 7.1.26 polynomial (|err| < 1.5e-7); matches torch's exact
    # (erf-based) GELU to f32 precision without relying on an erf lowering in Mosaic.
    a1, a2, a3, a4, a5 = 0.254829592, -0.284496736, 1.421413741, -1.453152027, 1.061405429
    p = 0.3275911
    sgn = jnp.where(x >= 0.0, 1.0, -1.0)
    ax = jnp.abs(x)
    t = 1.0 / (1.0 + p * ax)
    poly = ((((a5 * t + a4) * t + a3) * t + a2) * t + a1) * t
    return sgn * (1.0 - poly * jnp.exp(-ax * ax))


def _gelu(x):
    # torch.nn.functional.gelu default ("none" / exact erf-based GELU)
    return 0.5 * x * (1.0 + _erf(x * (1.0 / math.sqrt(2.0))))


def _layer_norm(x, g, b):
    mu = jnp.mean(x, axis=-1, keepdims=True)
    xc = x - mu
    var = jnp.mean(xc * xc, axis=-1, keepdims=True)
    return xc * lax.rsqrt(var + LN_EPS) * g + b       # rsqrt -> EUP slot


# ------------------------------ fused kernel ------------------------------
def _fused_kernel(xb_ref, w_emb_ref, pe_ref, w_qkv_ref, b_qkv_ref, w_o_ref,
                  w_ff1_ref, b_ff1_ref, w_ff2_ref, vec_ref, fin_ref, o_ref):
    tb = xb_ref.shape[0]                              # rows of the fused B*C axis
    m = tb * NUM_PATCH
    f32 = jnp.float32

    # ---- patch embedding: unfold absorbed as R_SUB shifted stride-block matmuls ----
    xb = xb_ref[...]                                  # (tb, N_BLOCKS, STRIDE) f32
    w_emb = w_emb_ref[...]                            # (PATCH_LEN, D_MODEL)
    emb = jnp.zeros((m, D_MODEL), f32)
    for r in range(R_SUB):
        blk = xb[:, r:r + NUM_PATCH, :].reshape(m, STRIDE).astype(w_emb.dtype)
        emb = emb + jnp.dot(blk, w_emb[r * STRIDE:(r + 1) * STRIDE, :],
                            preferred_element_type=f32)
    x = (emb.reshape(tb, NUM_PATCH, D_MODEL) + pe_ref[...][None, :, :]).reshape(m, D_MODEL)

    scale = 1.0 / math.sqrt(D_HEAD)
    for l in range(E_LAYERS):                         # static layer loop, weights in VMEM
        w_qkv = w_qkv_ref[l]                          # (D_MODEL, 3*D_MODEL)
        w_o = w_o_ref[l]                              # (D_MODEL, D_MODEL)
        vec = vec_ref[l]                              # (6, D_MODEL) packed f32 vectors
        bo, g1, be1, b2, g2, be2 = (vec[i:i + 1, :] for i in range(6))

        # fused QKV projection: one (m, D) @ (D, 3D) MXU push
        qkv = jnp.dot(x.astype(w_qkv.dtype), w_qkv,
                      preferred_element_type=f32) + b_qkv_ref[l]
        q = qkv[:, 0:D_MODEL]
        k = qkv[:, D_MODEL:2 * D_MODEL]
        v = qkv[:, 2 * D_MODEL:3 * D_MODEL]

        # multi-head attention: per-head matmuls batched over tb (3-D einsums); no
        # lane-axis concat — W_o is consumed row-block-wise and accumulated.
        attn = jnp.zeros((m, D_MODEL), f32)
        for h in range(N_HEADS):
            sl = slice(h * D_HEAD, (h + 1) * D_HEAD)
            qh = q[:, sl].reshape(tb, NUM_PATCH, D_HEAD)
            kh = k[:, sl].reshape(tb, NUM_PATCH, D_HEAD)
            vh = v[:, sl].reshape(tb, NUM_PATCH, D_HEAD)
            s = jnp.einsum('bqd,bkd->bqk', qh.astype(w_qkv.dtype),
                           kh.astype(w_qkv.dtype),
                           preferred_element_type=f32) * scale
            s = s - jnp.max(s, axis=-1, keepdims=True)
            e = jnp.exp(s)
            p = e * pl.reciprocal(jnp.sum(e, axis=-1, keepdims=True), approx=True)
            ctx = jnp.einsum('bqk,bkd->bqd', p.astype(w_qkv.dtype),
                             vh.astype(w_qkv.dtype),
                             preferred_element_type=f32).reshape(m, D_HEAD)
            attn = attn + jnp.dot(ctx.astype(w_o.dtype), w_o[sl, :],
                                  preferred_element_type=f32)
        attn = attn + bo

        x = _layer_norm(x + attn, g1, be1)            # x = norm1(x + attn)
        w1 = w_ff1_ref[l]
        w2 = w_ff2_ref[l]
        y = _gelu(jnp.dot(x.astype(w1.dtype), w1, preferred_element_type=f32)
                  + b_ff1_ref[l])
        y = jnp.dot(y.astype(w2.dtype), w2, preferred_element_type=f32) + b2
        x = _layer_norm(x + y, g2, be2)               # norm2(x + y)

    fin = fin_ref[...]
    x = _layer_norm(x, fin[0:1, :], fin[1:2, :])      # encoder final LayerNorm

    # lane-dense output: per (b,c) row emit the flattened [d_model, num_patch] slab
    # (512 lanes) -> unmasked full-width stores, and the XLA-side transpose disappears.
    out = jnp.transpose(x.reshape(tb, NUM_PATCH, D_MODEL), (0, 2, 1))
    o_ref[...] = out.reshape(tb, 1, FLAT)


# ------------------------------- wrapper ----------------------------------
def _pick_tb(bn, target_rows=64):
    # Largest divisor of bn <= target_rows, preferring >=2 grid steps when possible
    # so dimension_semantics=("parallel",) can shard across v7x's two TensorCores.
    divs = [d for d in range(1, bn + 1) if bn % d == 0]
    cands = [d for d in divs if d <= target_rows] or [divs[0]]
    tb = max(cands)
    if bn // tb < 2:
        smaller = [d for d in cands if bn // d >= 2]
        if smaller:
            tb = max(smaller)
    return tb


def fused_forward(xb, params):
    bn = xb.shape[0]
    tb = _pick_tb(bn)
    mm = MM_DTYPE
    args = (
        xb,
        params["w_emb"].astype(mm),
        params["pos_emb"],
        params["w_qkv"].astype(mm),
        params["b_qkv"],
        params["w_o"].astype(mm),
        params["w_ff1"].astype(mm),
        params["b_ff1"],
        params["w_ff2"].astype(mm),
        params["vecs"],
        params["fin"],
    )
    in_specs = [pl.BlockSpec((tb, N_BLOCKS, STRIDE), lambda i: (i, 0, 0))]
    # parameters: full-array blocks, constant index_map -> fetched once, VMEM-resident
    in_specs += [pl.BlockSpec(a.shape, lambda i, nd=a.ndim: (0,) * nd) for a in args[1:]]

    return pl.pallas_call(
        _fused_kernel,
        out_shape=jax.ShapeDtypeStruct((bn, 1, FLAT), jnp.float32),
        grid=(bn // tb,),
        in_specs=in_specs,
        out_specs=pl.BlockSpec((tb, 1, FLAT), lambda i: (i, 0, 0)),
        compiler_params=pltpu.CompilerParams(dimension_semantics=("parallel",)),
    )(*args)


# ----------------------------- parameters ---------------------------------
def positional_embedding(num_pos, d_model):
    position = jnp.arange(num_pos, dtype=jnp.float32)[:, None]
    div_term = jnp.exp(jnp.arange(0, d_model, 2, dtype=jnp.float32)
                       * (-math.log(10000.0) / d_model))
    pe = jnp.zeros((num_pos, d_model), jnp.float32)
    pe = pe.at[:, 0::2].set(jnp.sin(position * div_term))
    pe = pe.at[:, 1::2].set(jnp.cos(position * div_term))
    return pe


def init_params(key):
    keys = iter(jax.random.split(key, 8 + E_LAYERS * 16))

    def nrm(shape, scale=0.02):
        return (scale * jax.random.normal(next(keys), shape)).astype(jnp.float32)

    w_qkv, b_qkv, w_o, w_ff1, b_ff1, w_ff2, vecs = [], [], [], [], [], [], []
    ones = jnp.ones((D_MODEL,), jnp.float32)
    zeros = jnp.zeros((D_MODEL,), jnp.float32)
    for _ in range(E_LAYERS):
        wq, wk, wv = nrm((D_MODEL, D_MODEL)), nrm((D_MODEL, D_MODEL)), nrm((D_MODEL, D_MODEL))
        bq, bk, bv = nrm((D_MODEL,)), nrm((D_MODEL,)), nrm((D_MODEL,))
        w_qkv.append(jnp.concatenate([wq, wk, wv], axis=1))          # (D, 3D) fused QKV
        b_qkv.append(jnp.concatenate([bq, bk, bv])[None, :])         # (1, 3D)
        w_o.append(nrm((D_MODEL, D_MODEL)))
        bo = nrm((D_MODEL,))
        w_ff1.append(nrm((D_MODEL, D_FF)))                           # Conv1d(d_model,d_ff,1)
        b_ff1.append(nrm((D_FF,))[None, :])
        w_ff2.append(nrm((D_FF, D_MODEL)))                           # Conv1d(d_ff,d_model,1)
        b2 = nrm((D_MODEL,))
        # packed per-layer vectors: bo, norm1(g,b), conv2 bias, norm2(g,b)
        vecs.append(jnp.stack([bo, ones, zeros, b2, ones, zeros], axis=0))

    return {
        "w_emb": nrm((PATCH_LEN, D_MODEL)),      # Linear(patch_len, d_model, bias=False)
        "pos_emb": positional_embedding(NUM_PATCH, D_MODEL),
        "w_qkv": jnp.stack(w_qkv),               # (E, D, 3D)
        "b_qkv": jnp.stack(b_qkv),               # (E, 1, 3D)
        "w_o": jnp.stack(w_o),                   # (E, D, D)
        "w_ff1": jnp.stack(w_ff1),               # (E, D, D_FF)
        "b_ff1": jnp.stack(b_ff1),               # (E, 1, D_FF)
        "w_ff2": jnp.stack(w_ff2),               # (E, D_FF, D)
        "vecs": jnp.stack(vecs),                 # (E, 6, D)
        "fin": jnp.stack([ones, zeros]),         # encoder final LayerNorm (g, b)
    }


# ------------------------------- forward ----------------------------------
def patch_tst_forward(x_enc, params):
    B, L, C = x_enc.shape
    # instance normalization over the time axis (unbiased=False matches jnp.var default)
    means = jnp.mean(x_enc, axis=1, keepdims=True)
    x = x_enc - means
    stdev = jnp.sqrt(jnp.var(x, axis=1, keepdims=True) + 1e-5)
    x = x / stdev
    x = jnp.transpose(x, (0, 2, 1)).reshape(B * C, L)                # [B*C, L]

    # ReplicationPad1d((0, padding)) on the time axis
    x = jnp.concatenate([x, jnp.repeat(x[:, -1:], PADDING, axis=-1)], axis=-1)

    # Stride blocks: the overlapping-patch unfold is reconstructed inside the kernel
    # (patch p = blocks p .. p+R_SUB-1), so no 2x-duplicated gather is materialized.
    xb = x.reshape(B * C, N_BLOCKS, STRIDE).astype(jnp.float32)
    # TODO(synk): the instance-norm / pad itself stays in XLA (tiny elementwise pre-pass).

    out = fused_forward(xb, params)                                  # [B*C, 1, D_MODEL*NUM_PATCH]
    return out.reshape(B, C * FLAT)                                  # [B, C*D_MODEL*NUM_PATCH]


if __name__ == "__main__":
    key = jax.random.PRNGKey(0)
    pkey, xkey = jax.random.split(key)
    params = init_params(pkey)

    B, N_VARS = 2, 4
    x_enc = jax.random.normal(xkey, (B, SEQ_LEN, N_VARS), dtype=jnp.float32)

    out = jax.jit(lambda x: patch_tst_forward(x, params))(x_enc)
    jax.block_until_ready(out)
    assert out.shape == (B, N_VARS * D_MODEL * NUM_PATCH), out.shape
    assert bool(jnp.all(jnp.isfinite(out)))
    print("KERNEL_OK")
</pallas_src>

<mosaic_0001>
module attributes {stable_mosaic.version = 11 : i64} {
  func.func @_fused_kernel(%arg0: i32, %arg1: memref<4x9x8xf32, #tpu.memory_space<vmem>>, %arg2: memref<16x64xbf16, #tpu.memory_space<vmem>>, %arg3: memref<8x64xf32, #tpu.memory_space<vmem>>, %arg4: memref<2x64x192xbf16, #tpu.memory_space<vmem>>, %arg5: memref<2x1x192xf32, #tpu.memory_space<vmem>>, %arg6: memref<2x64x64xbf16, #tpu.memory_space<vmem>>, %arg7: memref<2x64x128xbf16, #tpu.memory_space<vmem>>, %arg8: memref<2x1x128xf32, #tpu.memory_space<vmem>>, %arg9: memref<2x128x64xbf16, #tpu.memory_space<vmem>>, %arg10: memref<2x6x64xf32, #tpu.memory_space<vmem>>, %arg11: memref<2x64xf32, #tpu.memory_space<vmem>>, %arg12: memref<4x1x512xf32, #tpu.memory_space<vmem>>) attributes {dimension_semantics = [#tpu.dimension_semantics<parallel>], iteration_bounds = array<i64: 2>, scalar_prefetch = 0 : i64, scratch_operands = 0 : i64, tpu.core_type = #tpu.core_type<tc>, window_params = [{transform_indices = @transform_0, window_bounds = array<i64: 4, 9, 8>}, {pipeline_mode = #tpu.pipeline_mode<synchronous>, transform_indices = @transform_1, window_bounds = array<i64: 16, 64>}, {pipeline_mode = #tpu.pipeline_mode<synchronous>, transform_indices = @transform_2, window_bounds = array<i64: 8, 64>}, {pipeline_mode = #tpu.pipeline_mode<synchronous>, transform_indices = @transform_3, window_bounds = array<i64: 2, 64, 192>}, {pipeline_mode = #tpu.pipeline_mode<synchronous>, transform_indices = @transform_4, window_bounds = array<i64: 2, 1, 192>}, {pipeline_mode = #tpu.pipeline_mode<synchronous>, transform_indices = @transform_5, window_bounds = array<i64: 2, 64, 64>}, {pipeline_mode = #tpu.pipeline_mode<synchronous>, transform_indices = @transform_6, window_bounds = array<i64: 2, 64, 128>}, {pipeline_mode = #tpu.pipeline_mode<synchronous>, transform_indices = @transform_7, window_bounds = array<i64: 2, 1, 128>}, {pipeline_mode = #tpu.pipeline_mode<synchronous>, transform_indices = @transform_8, window_bounds = array<i64: 2, 128, 64>}, {pipeline_mode = #tpu.pipeline_mode<synchronous>, transform_indices = @transform_9, window_bounds = array<i64: 2, 6, 64>}, {pipeline_mode = #tpu.pipeline_mode<synchronous>, transform_indices = @transform_10, window_bounds = array<i64: 2, 64>}, {transform_indices = @transform_11, window_bounds = array<i64: 4, 1, 512>}]} {
    %c0 = arith.constant 0 : index
    %c0_0 = arith.constant 0 : index
    %c0_1 = arith.constant 0 : index
    %0 = vector.load %arg1[%c0, %c0_0, %c0_1] : memref<4x9x8xf32, #tpu.memory_space<vmem>>, vector<4x9x8xf32>
    %c0_2 = arith.constant 0 : index
    %c0_3 = arith.constant 0 : index
    %1 = vector.load %arg2[%c0_2, %c0_3] : memref<16x64xbf16, #tpu.memory_space<vmem>>, vector<16x64xbf16>
    %cst = arith.constant 0.000000e+00 : f32
    %2 = vector.broadcast %cst : f32 to vector<32x64xf32>
    %3 = vector.extract_strided_slice %0 {offsets = [0, 0, 0], sizes = [4, 8, 8], strides = [1, 1, 1]} : vector<4x9x8xf32> to vector<4x8x8xf32>
    %4 = vector.shape_cast %3 : vector<4x8x8xf32> to vector<32x8xf32>
    %5 = arith.truncf %4 : vector<32x8xf32> to vector<32x8xbf16>
    %6 = vector.extract_strided_slice %1 {offsets = [0, 0], sizes = [8, 64], strides = [1, 1]} : vector<16x64xbf16> to vector<8x64xbf16>
    %cst_4 = arith.constant dense<0.000000e+00> : vector<32x64xf32>
    %7 = tpu.matmul %5, %6, %cst_4 {dimension_numbers = #tpu.dot_dimension_numbers<[1], [0], [0], [1], [0, 0, 1, 1], [], []>} : vector<32x8xbf16>, vector<8x64xbf16>, vector<32x64xf32> -> vector<32x64xf32>
    %8 = arith.addf %2, %7 : vector<32x64xf32>
    %9 = vector.extract_strided_slice %0 {offsets = [0, 1, 0], sizes = [4, 8, 8], strides = [1, 1, 1]} : vector<4x9x8xf32> to vector<4x8x8xf32>
    %10 = vector.shape_cast %9 : vector<4x8x8xf32> to vector<32x8xf32>
    %11 = arith.truncf %10 : vector<32x8xf32> to vector<32x8xbf16>
    %12 = vector.extract_strided_slice %1 {offsets = [8, 0], sizes = [8, 64], strides = [1, 1]} : vector<16x64xbf16> to vector<8x64xbf16>
    %cst_5 = arith.constant dense<0.000000e+00> : vector<32x64xf32>
    %13 = tpu.matmul %11, %12, %cst_5 {dimension_numbers = #tpu.dot_dimension_numbers<[1], [0], [0], [1], [0, 0, 1, 1], [], []>} : vector<32x8xbf16>, vector<8x64xbf16>, vector<32x64xf32> -> vector<32x64xf32>
    %14 = arith.addf %8, %13 : vector<32x64xf32>
    %15 = vector.shape_cast %14 : vector<32x64xf32> to vector<4x8x64xf32>
    %c0_6 = arith.constant 0 : index
    %c0_7 = arith.constant 0 : index
    %16 = vector.load %arg3[%c0_6, %c0_7] : memref<8x64xf32, #tpu.memory_space<vmem>>, vector<8x64xf32>
    %17 = vector.shape_cast %16 : vector<8x64xf32> to vector<1x8x64xf32>
    %18 = vector.broadcast %17 : vector<1x8x64xf32> to vector<4x8x64xf32>
    %19 = arith.addf %15, %18 : vector<4x8x64xf32>
    %20 = vector.shape_cast %19 : vector<4x8x64xf32> to vector<32x64xf32>
    %c0_8 = arith.constant 0 : index
    %c0_9 = arith.constant 0 : index
    %c0_10 = arith.constant 0 : index
    %21 = vector.load %arg4[%c0_8, %c0_9, %c0_10] : memref<2x64x192xbf16, #tpu.memory_space<vmem>>, vector<1x64x192xbf16>
    %22 = vector.shape_cast %21 : vector<1x64x192xbf16> to vector<64x192xbf16>
    %c0_11 = arith.constant 0 : index
    %c0_12 = arith.constant 0 : index
    %c0_13 = arith.constant 0 : index
    %23 = vector.load %arg6[%c0_11, %c0_12, %c0_13] : memref<2x64x64xbf16, #tpu.memory_space<vmem>>, vector<1x64x64xbf16>
    %24 = vector.shape_cast %23 : vector<1x64x64xbf16> to vector<64x64xbf16>
    %c0_14 = arith.constant 0 : index
    %c0_15 = arith.constant 0 : index
    %c0_16 = arith.constant 0 : index
    %25 = vector.load %arg10[%c0_14, %c0_15, %c0_16] : memref<2x6x64xf32, #tpu.memory_space<vmem>>, vector<1x6x64xf32>
    %26 = vector.shape_cast %25 : vector<1x6x64xf32> to vector<6x64xf32>
    %27 = vector.extract_strided_slice %26 {offsets = [0, 0], sizes = [1, 64], strides = [1, 1]} : vector<6x64xf32> to vector<1x64xf32>
    %28 = vector.extract_strided_slice %26 {offsets = [1, 0], sizes = [1, 64], strides = [1, 1]} : vector<6x64xf32> to vector<1x64xf32>
    %29 = vector.extract_strided_slice %26 {offsets = [2, 0], sizes = [1, 64], strides = [1, 1]} : vector<6x64xf32> to vector<1x64xf32>
    %30 = vector.extract_strided_slice %26 {offsets = [3, 0], sizes = [1, 64], strides = [1, 1]} : vector<6x64xf32> to vector<1x64xf32>
    %31 = vector.extract_strided_slice %26 {offsets = [4, 0], sizes = [1, 64], strides = [1, 1]} : vector<6x64xf32> to vector<1x64xf32>
    %32 = vector.extract_strided_slice %26 {offsets = [5, 0], sizes = [1, 64], strides = [1, 1]} : vector<6x64xf32> to vector<1x64xf32>
    %33 = arith.truncf %20 : vector<32x64xf32> to vector<32x64xbf16>
    %cst_17 = arith.constant dense<0.000000e+00> : vector<32x192xf32>
    %34 = tpu.matmul %33, %22, %cst_17 {dimension_numbers = #tpu.dot_dimension_numbers<[1], [0], [0], [1], [0, 0, 1, 1], [], []>} : vector<32x64xbf16>, vector<64x192xbf16>, vector<32x192xf32> -> vector<32x192xf32>
    %c0_18 = arith.constant 0 : index
    %c0_19 = arith.constant 0 : index
    %c0_20 = arith.constant 0 : index
    %35 = vector.load %arg5[%c0_18, %c0_19, %c0_20] : memref<2x1x192xf32, #tpu.memory_space<vmem>>, vector<1x1x192xf32>
    %36 = vector.shape_cast %35 : vector<1x1x192xf32> to vector<1x192xf32>
    %37 = vector.broadcast %36 : vector<1x192xf32> to vector<32x192xf32>
    %38 = arith.addf %34, %37 : vector<32x192xf32>
    %39 = vector.extract_strided_slice %38 {offsets = [0, 0], sizes = [32, 64], strides = [1, 1]} : vector<32x192xf32> to vector<32x64xf32>
    %40 = vector.extract_strided_slice %38 {offsets = [0, 64], sizes = [32, 64], strides = [1, 1]} : vector<32x192xf32> to vector<32x64xf32>
    %41 = vector.extract_strided_slice %38 {offsets = [0, 128], sizes = [32, 64], strides = [1, 1]} : vector<32x192xf32> to vector<32x64xf32>
    %cst_21 = arith.constant 0.000000e+00 : f32
    %42 = vector.broadcast %cst_21 : f32 to vector<32x64xf32>
    %43 = vector.extract_strided_slice %39 {offsets = [0, 0], sizes = [32, 16], strides = [1, 1]} : vector<32x64xf32> to vector<32x16xf32>
    %44 = vector.shape_cast %43 : vector<32x16xf32> to vector<4x8x16xf32>
    %45 = vector.extract_strided_slice %40 {offsets = [0, 0], sizes = [32, 16], strides = [1, 1]} : vector<32x64xf32> to vector<32x16xf32>
    %46 = vector.shape_cast %45 : vector<32x16xf32> to vector<4x8x16xf32>
    %47 = vector.extract_strided_slice %41 {offsets = [0, 0], sizes = [32, 16], strides = [1, 1]} : vector<32x64xf32> to vector<32x16xf32>
    %48 = vector.shape_cast %47 : vector<32x16xf32> to vector<4x8x16xf32>
    %49 = arith.truncf %44 : vector<4x8x16xf32> to vector<4x8x16xbf16>
    %50 = arith.truncf %46 : vector<4x8x16xf32> to vector<4x8x16xbf16>
    "tpu.trace_start"() <{level = 10 : i32, message = "bqd,bkd->bqk"}> : () -> ()
    %cst_22 = arith.constant dense<0.000000e+00> : vector<4x8x8xf32>
    %51 = tpu.matmul %49, %50, %cst_22 {dimension_numbers = #tpu.dot_dimension_numbers<[2], [2], [1], [1], [0, 0, 0, 1, 1, 1], [0], [0]>} : vector<4x8x16xbf16>, vector<4x8x16xbf16>, vector<4x8x8xf32> -> vector<4x8x8xf32>
    "tpu.trace_stop"() : () -> ()
    %cst_23 = arith.constant 2.500000e-01 : f32
    %52 = vector.broadcast %cst_23 : f32 to vector<4x8x8xf32>
    %53 = arith.mulf %51, %52 : vector<4x8x8xf32>
    %cst_24 = arith.constant dense<0xFF800000> : vector<4x8xf32>
    %54 = vector.multi_reduction <maximumf>, %53, %cst_24 [2] : vector<4x8x8xf32> to vector<4x8xf32>
    %55 = vector.shape_cast %54 : vector<4x8xf32> to vector<4x8x1xf32>
    %56 = vector.broadcast %55 : vector<4x8x1xf32> to vector<4x8x8xf32>
    %57 = arith.subf %53, %56 : vector<4x8x8xf32>
    %58 = math.exp %57 : vector<4x8x8xf32>
    %cst_25 = arith.constant dense<0.000000e+00> : vector<4x8xf32>
    %59 = vector.multi_reduction <add>, %58, %cst_25 [2] : vector<4x8x8xf32> to vector<4x8xf32>
    %60 = vector.shape_cast %59 : vector<4x8xf32> to vector<4x8x1xf32>
    %61 = tpu.reciprocal %60 {approx = true} : vector<4x8x1xf32> -> vector<4x8x1xf32>
    %62 = vector.broadcast %61 : vector<4x8x1xf32> to vector<4x8x8xf32>
    %63 = arith.mulf %58, %62 : vector<4x8x8xf32>
    %64 = arith.truncf %63 : vector<4x8x8xf32> to vector<4x8x8xbf16>
    %65 = arith.truncf %48 : vector<4x8x16xf32> to vector<4x8x16xbf16>
    "tpu.trace_start"() <{level = 10 : i32, message = "bqk,bkd->bqd"}> : () -> ()
    %cst_26 = arith.constant dense<0.000000e+00> : vector<4x8x16xf32>
    %66 = tpu.matmul %64, %65, %cst_26 {dimension_numbers = #tpu.dot_dimension_numbers<[2], [1], [1], [2], [0, 0, 0, 1, 1, 2], [0], [0]>} : vector<4x8x8xbf16>, vector<4x8x16xbf16>, vector<4x8x16xf32> -> vector<4x8x16xf32>
    "tpu.trace_stop"() : () -> ()
    %67 = vector.shape_cast %66 : vector<4x8x16xf32> to vector<32x16xf32>
    %68 = arith.truncf %67 : vector<32x16xf32> to vector<32x16xbf16>
    %69 = vector.extract_strided_slice %24 {offsets = [0, 0], sizes = [16, 64], strides = [1, 1]} : vector<64x64xbf16> to vector<16x64xbf16>
    %cst_27 = arith.constant dense<0.000000e+00> : vector<32x64xf32>
    %70 = tpu.matmul %68, %69, %cst_27 {dimension_numbers = #tpu.dot_dimension_numbers<[1], [0], [0], [1], [0, 0, 1, 1], [], []>} : vector<32x16xbf16>, vector<16x64xbf16>, vector<32x64xf32> -> vector<32x64xf32>
    %71 = arith.addf %42, %70 : vector<32x64xf32>
    %72 = vector.extract_strided_slice %39 {offsets = [0, 16], sizes = [32, 16], strides = [1, 1]} : vector<32x64xf32> to vector<32x16xf32>
    %73 = vector.shape_cast %72 : vector<32x16xf32> to vector<4x8x16xf32>
    %74 = vector.extract_strided_slice %40 {offsets = [0, 16], sizes = [32, 16], strides = [1, 1]} : vector<32x64xf32> to vector<32x16xf32>
    %75 = vector.shape_cast %74 : vector<32x16xf32> to vector<4x8x16xf32>
    %76 = vector.extract_strided_slice %41 {offsets = [0, 16], sizes = [32, 16], strides = [1, 1]} : vector<32x64xf32> to vector<32x16xf32>
    %77 = vector.shape_cast %76 : vector<32x16xf32> to vector<4x8x16xf32>
    %78 = arith.truncf %73 : vector<4x8x16xf32> to vector<4x8x16xbf16>
    %79 = arith.truncf %75 : vector<4x8x16xf32> to vector<4x8x16xbf16>
    "tpu.trace_start"() <{level = 10 : i32, message = "bqd,bkd->bqk"}> : () -> ()
    %cst_28 = arith.constant dense<0.000000e+00> : vector<4x8x8xf32>
    %80 = tpu.matmul %78, %79, %cst_28 {dimension_numbers = #tpu.dot_dimension_numbers<[2], [2], [1], [1], [0, 0, 0, 1, 1, 1], [0], [0]>} : vector<4x8x16xbf16>, vector<4x8x16xbf16>, vector<4x8x8xf32> -> vector<4x8x8xf32>
    "tpu.trace_stop"() : () -> ()
    %cst_29 = arith.constant 2.500000e-01 : f32
    %81 = vector.broadcast %cst_29 : f32 to vector<4x8x8xf32>
    %82 = arith.mulf %80, %81 : vector<4x8x8xf32>
    %cst_30 = arith.constant dense<0xFF800000> : vector<4x8xf32>
    %83 = vector.multi_reduction <maximumf>, %82, %cst_30 [2] : vector<4x8x8xf32> to vector<4x8xf32>
    %84 = vector.shape_cast %83 : vector<4x8xf32> to vector<4x8x1xf32>
    %85 = vector.broadcast %84 : vector<4x8x1xf32> to vector<4x8x8xf32>
    %86 = arith.subf %82, %85 : vector<4x8x8xf32>
    %87 = math.exp %86 : vector<4x8x8xf32>
    %cst_31 = arith.constant dense<0.000000e+00> : vector<4x8xf32>
    %88 = vector.multi_reduction <add>, %87, %cst_31 [2] : vector<4x8x8xf32> to vector<4x8xf32>
    %89 = vector.shape_cast %88 : vector<4x8xf32> to vector<4x8x1xf32>
    %90 = tpu.reciprocal %89 {approx = true} : vector<4x8x1xf32> -> vector<4x8x1xf32>
    %91 = vector.broadcast %90 : vector<4x8x1xf32> to vector<4x8x8xf32>
    %92 = arith.mulf %87, %91 : vector<4x8x8xf32>
    %93 = arith.truncf %92 : vector<4x8x8xf32> to vector<4x8x8xbf16>
    %94 = arith.truncf %77 : vector<4x8x16xf32> to vector<4x8x16xbf16>
    "tpu.trace_start"() <{level = 10 : i32, message = "bqk,bkd->bqd"}> : () -> ()
    %cst_32 = arith.constant dense<0.000000e+00> : vector<4x8x16xf32>
    %95 = tpu.matmul %93, %94, %cst_32 {dimension_numbers = #tpu.dot_dimension_numbers<[2], [1], [1], [2], [0, 0, 0, 1, 1, 2], [0], [0]>} : vector<4x8x8xbf16>, vector<4x8x16xbf16>, vector<4x8x16xf32> -> vector<4x8x16xf32>
    "tpu.trace_stop"() : () -> ()
    %96 = vector.shape_cast %95 : vector<4x8x16xf32> to vector<32x16xf32>
    %97 = arith.truncf %96 : vector<32x16xf32> to vector<32x16xbf16>
    %98 = vector.extract_strided_slice %24 {offsets = [16, 0], sizes = [16, 64], strides = [1, 1]} : vector<64x64xbf16> to vector<16x64xbf16>
    %cst_33 = arith.constant dense<0.000000e+00> : vector<32x64xf32>
    %99 = tpu.matmul %97, %98, %cst_33 {dimension_numbers = #tpu.dot_dimension_numbers<[1], [0], [0], [1], [0, 0, 1, 1], [], []>} : vector<32x16xbf16>, vector<16x64xbf16>, vector<32x64xf32> -> vector<32x64xf32>
    %100 = arith.addf %71, %99 : vector<32x64xf32>
    %101 = vector.extract_strided_slice %39 {offsets = [0, 32], sizes = [32, 16], strides = [1, 1]} : vector<32x64xf32> to vector<32x16xf32>
    %102 = vector.shape_cast %101 : vector<32x16xf32> to vector<4x8x16xf32>
    %103 = vector.extract_strided_slice %40 {offsets = [0, 32], sizes = [32, 16], strides = [1, 1]} : vector<32x64xf32> to vector<32x16xf32>
    %104 = vector.shape_cast %103 : vector<32x16xf32> to vector<4x8x16xf32>
    %105 = vector.extract_strided_slice %41 {offsets = [0, 32], sizes = [32, 16], strides = [1, 1]} : vector<32x64xf32> to vector<32x16xf32>
    %106 = vector.shape_cast %105 : vector<32x16xf32> to vector<4x8x16xf32>
    %107 = arith.truncf %102 : vector<4x8x16xf32> to vector<4x8x16xbf16>
    %108 = arith.truncf %104 : vector<4x8x16xf32> to vector<4x8x16xbf16>
    "tpu.trace_start"() <{level = 10 : i32, message = "bqd,bkd->bqk"}> : () -> ()
    %cst_34 = arith.constant dense<0.000000e+00> : vector<4x8x8xf32>
    %109 = tpu.matmul %107, %108, %cst_34 {dimension_numbers = #tpu.dot_dimension_numbers<[2], [2], [1], [1], [0, 0, 0, 1, 1, 1], [0], [0]>} : vector<4x8x16xbf16>, vector<4x8x16xbf16>, vector<4x8x8xf32> -> vector<4x8x8xf32>
    "tpu.trace_stop"() : () -> ()
    %cst_35 = arith.constant 2.500000e-01 : f32
    %110 = vector.broadcast %cst_35 : f32 to vector<4x8x8xf32>
    %111 = arith.mulf %109, %110 : vector<4x8x8xf32>
    %cst_36 = arith.constant dense<0xFF800000> : vector<4x8xf32>
    %112 = vector.multi_reduction <maximumf>, %111, %cst_36 [2] : vector<4x8x8xf32> to vector<4x8xf32>
    %113 = vector.shape_cast %112 : vector<4x8xf32> to vector<4x8x1xf32>
    %114 = vector.broadcast %113 : vector<4x8x1xf32> to vector<4x8x8xf32>
    %115 = arith.subf %111, %114 : vector<4x8x8xf32>
    %116 = math.exp %115 : vector<4x8x8xf32>
    %cst_37 = arith.constant dense<0.000000e+00> : vector<4x8xf32>
    %117 = vector.multi_reduction <add>, %116, %cst_37 [2] : vector<4x8x8xf32> to vector<4x8xf32>
    %118 = vector.shape_cast %117 : vector<4x8xf32> to vector<4x8x1xf32>
    %119 = tpu.reciprocal %118 {approx = true} : vector<4x8x1xf32> -> vector<4x8x1xf32>
    %120 = vector.broadcast %119 : vector<4x8x1xf32> to vector<4x8x8xf32>
    %121 = arith.mulf %116, %120 : vector<4x8x8xf32>
    %122 = arith.truncf %121 : vector<4x8x8xf32> to vector<4x8x8xbf16>
    %123 = arith.truncf %106 : vector<4x8x16xf32> to vector<4x8x16xbf16>
    "tpu.trace_start"() <{level = 10 : i32, message = "bqk,bkd->bqd"}> : () -> ()
    %cst_38 = arith.constant dense<0.000000e+00> : vector<4x8x16xf32>
    %124 = tpu.matmul %122, %123, %cst_38 {dimension_numbers = #tpu.dot_dimension_numbers<[2], [1], [1], [2], [0, 0, 0, 1, 1, 2], [0], [0]>} : vector<4x8x8xbf16>, vector<4x8x16xbf16>, vector<4x8x16xf32> -> vector<4x8x16xf32>
    "tpu.trace_stop"() : () -> ()
    %125 = vector.shape_cast %124 : vector<4x8x16xf32> to vector<32x16xf32>
    %126 = arith.truncf %125 : vector<32x16xf32> to vector<32x16xbf16>
    %127 = vector.extract_strided_slice %24 {offsets = [32, 0], sizes = [16, 64], strides = [1, 1]} : vector<64x64xbf16> to vector<16x64xbf16>
    %cst_39 = arith.constant dense<0.000000e+00> : vector<32x64xf32>
    %128 = tpu.matmul %126, %127, %cst_39 {dimension_numbers = #tpu.dot_dimension_numbers<[1], [0], [0], [1], [0, 0, 1, 1], [], []>} : vector<32x16xbf16>, vector<16x64xbf16>, vector<32x64xf32> -> vector<32x64xf32>
    %129 = arith.addf %100, %128 : vector<32x64xf32>
    %130 = vector.extract_strided_slice %39 {offsets = [0, 48], sizes = [32, 16], strides = [1, 1]} : vector<32x64xf32> to vector<32x16xf32>
    %131 = vector.shape_cast %130 : vector<32x16xf32> to vector<4x8x16xf32>
    %132 = vector.extract_strided_slice %40 {offsets = [0, 48], sizes = [32, 16], strides = [1, 1]} : vector<32x64xf32> to vector<32x16xf32>
    %133 = vector.shape_cast %132 : vector<32x16xf32> to vector<4x8x16xf32>
    %134 = vector.extract_strided_slice %41 {offsets = [0, 48], sizes = [32, 16], strides = [1, 1]} : vector<32x64xf32> to vector<32x16xf32>
    %135 = vector.shape_cast %134 : vector<32x16xf32> to vector<4x8x16xf32>
    %136 = arith.truncf %131 : vector<4x8x16xf32> to vector<4x8x16xbf16>
    %137 = arith.truncf %133 : vector<4x8x16xf32> to vector<4x8x16xbf16>
    "tpu.trace_start"() <{level = 10 : i32, message = "bqd,bkd->bqk"}> : () -> ()
    %cst_40 = arith.constant dense<0.000000e+00> : vector<4x8x8xf32>
    %138 = tpu.matmul %136, %137, %cst_40 {dimension_numbers = #tpu.dot_dimension_numbers<[2], [2], [1], [1], [0, 0, 0, 1, 1, 1], [0], [0]>} : vector<4x8x16xbf16>, vector<4x8x16xbf16>, vector<4x8x8xf32> -> vector<4x8x8xf32>
    "tpu.trace_stop"() : () -> ()
    %cst_41 = arith.constant 2.500000e-01 : f32
    %139 = vector.broadcast %cst_41 : f32 to vector<4x8x8xf32>
    %140 = arith.mulf %138, %139 : vector<4x8x8xf32>
    %cst_42 = arith.constant dense<0xFF800000> : vector<4x8xf32>
    %141 = vector.multi_reduction <maximumf>, %140, %cst_42 [2] : vector<4x8x8xf32> to vector<4x8xf32>
    %142 = vector.shape_cast %141 : vector<4x8xf32> to vector<4x8x1xf32>
    %143 = vector.broadcast %142 : vector<4x8x1xf32> to vector<4x8x8xf32>
    %144 = arith.subf %140, %143 : vector<4x8x8xf32>
    %145 = math.exp %144 : vector<4x8x8xf32>
    %cst_43 = arith.constant dense<0.000000e+00> : vector<4x8xf32>
    %146 = vector.multi_reduction <add>, %145, %cst_43 [2] : vector<4x8x8xf32> to vector<4x8xf32>
    %147 = vector.shape_cast %146 : vector<4x8xf32> to vector<4x8x1xf32>
    %148 = tpu.reciprocal %147 {approx = true} : vector<4x8x1xf32> -> vector<4x8x1xf32>
    %149 = vector.broadcast %148 : vector<4x8x1xf32> to vector<4x8x8xf32>
    %150 = arith.mulf %145, %149 : vector<4x8x8xf32>
    %151 = arith.truncf %150 : vector<4x8x8xf32> to vector<4x8x8xbf16>
    %152 = arith.truncf %135 : vector<4x8x16xf32> to vector<4x8x16xbf16>
    "tpu.trace_start"() <{level = 10 : i32, message = "bqk,bkd->bqd"}> : () -> ()
    %cst_44 = arith.constant dense<0.000000e+00> : vector<4x8x16xf32>
    %153 = tpu.matmul %151, %152, %cst_44 {dimension_numbers = #tpu.dot_dimension_numbers<[2], [1], [1], [2], [0, 0, 0, 1, 1, 2], [0], [0]>} : vector<4x8x8xbf16>, vector<4x8x16xbf16>, vector<4x8x16xf32> -> vector<4x8x16xf32>
    "tpu.trace_stop"() : () -> ()
    %154 = vector.shape_cast %153 : vector<4x8x16xf32> to vector<32x16xf32>
    %155 = arith.truncf %154 : vector<32x16xf32> to vector<32x16xbf16>
    %156 = vector.extract_strided_slice %24 {offsets = [48, 0], sizes = [16, 64], strides = [1, 1]} : vector<64x64xbf16> to vector<16x64xbf16>
    %cst_45 = arith.constant dense<0.000000e+00> : vector<32x64xf32>
    %157 = tpu.matmul %155, %156, %cst_45 {dimension_numbers = #tpu.dot_dimension_numbers<[1], [0], [0], [1], [0, 0, 1, 1], [], []>} : vector<32x16xbf16>, vector<16x64xbf16>, vector<32x64xf32> -> vector<32x64xf32>
    %158 = arith.addf %129, %157 : vector<32x64xf32>
    %159 = vector.broadcast %27 : vector<1x64xf32> to vector<32x64xf32>
    %160 = arith.addf %158, %159 : vector<32x64xf32>
    %161 = arith.addf %20, %160 : vector<32x64xf32>
    %cst_46 = arith.constant dense<0.000000e+00> : vector<32xf32>
    %162 = vector.multi_reduction <add>, %161, %cst_46 [1] : vector<32x64xf32> to vector<32xf32>
    %163 = vector.shape_cast %162 : vector<32xf32> to vector<32x1xf32>
    %cst_47 = arith.constant 6.400000e+01 : f32
    %164 = vector.broadcast %cst_47 : f32 to vector<32x1xf32>
    %165 = arith.divf %163, %164 : vector<32x1xf32>
    %166 = vector.broadcast %165 : vector<32x1xf32> to vector<32x64xf32>
    %167 = arith.subf %161, %166 : vector<32x64xf32>
    %168 = arith.mulf %167, %167 : vector<32x64xf32>
    %cst_48 = arith.constant dense<0.000000e+00> : vector<32xf32>
    %169 = vector.multi_reduction <add>, %168, %cst_48 [1] : vector<32x64xf32> to vector<32xf32>
    %170 = vector.shape_cast %169 : vector<32xf32> to vector<32x1xf32>
    %cst_49 = arith.constant 6.400000e+01 : f32
    %171 = vector.broadcast %cst_49 : f32 to vector<32x1xf32>
    %172 = arith.divf %170, %171 : vector<32x1xf32>
    %cst_50 = arith.constant 9.99999974E-6 : f32
    %173 = vector.broadcast %cst_50 : f32 to vector<32x1xf32>
    %174 = arith.addf %172, %173 : vector<32x1xf32>
    %175 = math.rsqrt %174 : vector<32x1xf32>
    %176 = vector.broadcast %175 : vector<32x1xf32> to vector<32x64xf32>
    %177 = arith.mulf %167, %176 : vector<32x64xf32>
    %178 = vector.broadcast %28 : vector<1x64xf32> to vector<32x64xf32>
    %179 = arith.mulf %177, %178 : vector<32x64xf32>
    %180 = vector.broadcast %29 : vector<1x64xf32> to vector<32x64xf32>
    %181 = arith.addf %179, %180 : vector<32x64xf32>
    %c0_51 = arith.constant 0 : index
    %c0_52 = arith.constant 0 : index
    %c0_53 = arith.constant 0 : index
    %182 = vector.load %arg7[%c0_51, %c0_52, %c0_53] : memref<2x64x128xbf16, #tpu.memory_space<vmem>>, vector<1x64x128xbf16>
    %183 = vector.shape_cast %182 : vector<1x64x128xbf16> to vector<64x128xbf16>
    %c0_54 = arith.constant 0 : index
    %c0_55 = arith.constant 0 : index
    %c0_56 = arith.constant 0 : index
    %184 = vector.load %arg9[%c0_54, %c0_55, %c0_56] : memref<2x128x64xbf16, #tpu.memory_space<vmem>>, vector<1x128x64xbf16>
    %185 = vector.shape_cast %184 : vector<1x128x64xbf16> to vector<128x64xbf16>
    %186 = arith.truncf %181 : vector<32x64xf32> to vector<32x64xbf16>
    %cst_57 = arith.constant dense<0.000000e+00> : vector<32x128xf32>
    %187 = tpu.matmul %186, %183, %cst_57 {dimension_numbers = #tpu.dot_dimension_numbers<[1], [0], [0], [1], [0, 0, 1, 1], [], []>} : vector<32x64xbf16>, vector<64x128xbf16>, vector<32x128xf32> -> vector<32x128xf32>
    %c0_58 = arith.constant 0 : index
    %c0_59 = arith.constant 0 : index
    %c0_60 = arith.constant 0 : index
    %188 = vector.load %arg8[%c0_58, %c0_59, %c0_60] : memref<2x1x128xf32, #tpu.memory_space<vmem>>, vector<1x1x128xf32>
    %189 = vector.shape_cast %188 : vector<1x1x128xf32> to vector<1x128xf32>
    %190 = vector.broadcast %189 : vector<1x128xf32> to vector<32x128xf32>
    %191 = arith.addf %187, %190 : vector<32x128xf32>
    %cst_61 = arith.constant 5.000000e-01 : f32
    %192 = vector.broadcast %cst_61 : f32 to vector<32x128xf32>
    %193 = arith.mulf %192, %191 : vector<32x128xf32>
    %cst_62 = arith.constant 0.707106769 : f32
    %194 = vector.broadcast %cst_62 : f32 to vector<32x128xf32>
    %195 = arith.mulf %191, %194 : vector<32x128xf32>
    %cst_63 = arith.constant 0.000000e+00 : f32
    %196 = vector.broadcast %cst_63 : f32 to vector<32x128xf32>
    %197 = arith.cmpf oge, %195, %196 : vector<32x128xf32>
    %cst_64 = arith.constant 1.000000e+00 : f32
    %cst_65 = arith.constant -1.000000e+00 : f32
    %198 = vector.broadcast %cst_64 : f32 to vector<32x128xf32>
    %199 = vector.broadcast %cst_65 : f32 to vector<32x128xf32>
    %200 = arith.select %197, %198, %199 : vector<32x128xi1>, vector<32x128xf32>
    %201 = math.absf %195 : vector<32x128xf32>
    %cst_66 = arith.constant 0.327591091 : f32
    %202 = vector.broadcast %cst_66 : f32 to vector<32x128xf32>
    %203 = arith.mulf %202, %201 : vector<32x128xf32>
    %cst_67 = arith.constant 1.000000e+00 : f32
    %204 = vector.broadcast %cst_67 : f32 to vector<32x128xf32>
    %205 = arith.addf %204, %203 : vector<32x128xf32>
    %cst_68 = arith.constant 1.000000e+00 : f32
    %206 = vector.broadcast %cst_68 : f32 to vector<32x128xf32>
    %207 = arith.divf %206, %205 : vector<32x128xf32>
    %cst_69 = arith.constant 1.06140542 : f32
    %208 = vector.broadcast %cst_69 : f32 to vector<32x128xf32>
    %209 = arith.mulf %208, %207 : vector<32x128xf32>
    %cst_70 = arith.constant -1.45315206 : f32
    %210 = vector.broadcast %cst_70 : f32 to vector<32x128xf32>
    %211 = arith.addf %209, %210 : vector<32x128xf32>
    %212 = arith.mulf %211, %207 : vector<32x128xf32>
    %cst_71 = arith.constant 1.42141378 : f32
    %213 = vector.broadcast %cst_71 : f32 to vector<32x128xf32>
    %214 = arith.addf %212, %213 : vector<32x128xf32>
    %215 = arith.mulf %214, %207 : vector<32x128xf32>
    %cst_72 = arith.constant -0.284496725 : f32
    %216 = vector.broadcast %cst_72 : f32 to vector<32x128xf32>
    %217 = arith.addf %215, %216 : vector<32x128xf32>
    %218 = arith.mulf %217, %207 : vector<32x128xf32>
    %cst_73 = arith.constant 0.254829586 : f32
    %219 = vector.broadcast %cst_73 : f32 to vector<32x128xf32>
    %220 = arith.addf %218, %219 : vector<32x128xf32>
    %221 = arith.mulf %220, %207 : vector<32x128xf32>
    %cst_74 = arith.constant 0.000000e+00 : f32
    %222 = vector.broadcast %cst_74 : f32 to vector<32x128xf32>
    %223 = arith.subf %222, %201 : vector<32x128xf32>
    %224 = arith.mulf %223, %201 : vector<32x128xf32>
    %225 = math.exp %224 : vector<32x128xf32>
    %226 = arith.mulf %221, %225 : vector<32x128xf32>
    %cst_75 = arith.constant 1.000000e+00 : f32
    %227 = vector.broadcast %cst_75 : f32 to vector<32x128xf32>
    %228 = arith.subf %227, %226 : vector<32x128xf32>
    %229 = arith.mulf %200, %228 : vector<32x128xf32>
    %cst_76 = arith.constant 1.000000e+00 : f32
    %230 = vector.broadcast %cst_76 : f32 to vector<32x128xf32>
    %231 = arith.addf %230, %229 : vector<32x128xf32>
    %232 = arith.mulf %193, %231 : vector<32x128xf32>
    %233 = arith.truncf %232 : vector<32x128xf32> to vector<32x128xbf16>
    %cst_77 = arith.constant dense<0.000000e+00> : vector<32x64xf32>
    %234 = tpu.matmul %233, %185, %cst_77 {dimension_numbers = #tpu.dot_dimension_numbers<[1], [0], [0], [1], [0, 0, 1, 1], [], []>} : vector<32x128xbf16>, vector<128x64xbf16>, vector<32x64xf32> -> vector<32x64xf32>
    %235 = vector.broadcast %30 : vector<1x64xf32> to vector<32x64xf32>
    %236 = arith.addf %234, %235 : vector<32x64xf32>
    %237 = arith.addf %181, %236 : vector<32x64xf32>
    %cst_78 = arith.constant dense<0.000000e+00> : vector<32xf32>
    %238 = vector.multi_reduction <add>, %237, %cst_78 [1] : vector<32x64xf32> to vector<32xf32>
    %239 = vector.shape_cast %238 : vector<32xf32> to vector<32x1xf32>
    %cst_79 = arith.constant 6.400000e+01 : f32
    %240 = vector.broadcast %cst_79 : f32 to vector<32x1xf32>
    %241 = arith.divf %239, %240 : vector<32x1xf32>
    %242 = vector.broadcast %241 : vector<32x1xf32> to vector<32x64xf32>
    %243 = arith.subf %237, %242 : vector<32x64xf32>
    %244 = arith.mulf %243, %243 : vector<32x64xf32>
    %cst_80 = arith.constant dense<0.000000e+00> : vector<32xf32>
    %245 = vector.multi_reduction <add>, %244, %cst_80 [1] : vector<32x64xf32> to vector<32xf32>
    %246 = vector.shape_cast %245 : vector<32xf32> to vector<32x1xf32>
    %cst_81 = arith.constant 6.400000e+01 : f32
    %247 = vector.broadcast %cst_81 : f32 to vector<32x1xf32>
    %248 = arith.divf %246, %247 : vector<32x1xf32>
    %cst_82 = arith.constant 9.99999974E-6 : f32
    %249 = vector.broadcast %cst_82 : f32 to vector<32x1xf32>
    %250 = arith.addf %248, %249 : vector<32x1xf32>
    %251 = math.rsqrt %250 : vector<32x1xf32>
    %252 = vector.broadcast %251 : vector<32x1xf32> to vector<32x64xf32>
    %253 = arith.mulf %243, %252 : vector<32x64xf32>
    %254 = vector.broadcast %31 : vector<1x64xf32> to vector<32x64xf32>
    %255 = arith.mulf %253, %254 : vector<32x64xf32>
    %256 = vector.broadcast %32 : vector<1x64xf32> to vector<32x64xf32>
    %257 = arith.addf %255, %256 : vector<32x64xf32>
    %c1 = arith.constant 1 : index
    %c0_83 = arith.constant 0 : index
    %c0_84 = arith.constant 0 : index
    %258 = vector.load %arg4[%c1, %c0_83, %c0_84] : memref<2x64x192xbf16, #tpu.memory_space<vmem>>, vector<1x64x192xbf16>
    %259 = vector.shape_cast %258 : vector<1x64x192xbf16> to vector<64x192xbf16>
    %c1_85 = arith.constant 1 : index
    %c0_86 = arith.constant 0 : index
    %c0_87 = arith.constant 0 : index
    %260 = vector.load %arg6[%c1_85, %c0_86, %c0_87] : memref<2x64x64xbf16, #tpu.memory_space<vmem>>, vector<1x64x64xbf16>
    %261 = vector.shape_cast %260 : vector<1x64x64xbf16> to vector<64x64xbf16>
    %c1_88 = arith.constant 1 : index
    %c0_89 = arith.constant 0 : index
    %c0_90 = arith.constant 0 : index
    %262 = vector.load %arg10[%c1_88, %c0_89, %c0_90] : memref<2x6x64xf32, #tpu.memory_space<vmem>>, vector<1x6x64xf32>
    %263 = vector.shape_cast %262 : vector<1x6x64xf32> to vector<6x64xf32>
    %264 = vector.extract_strided_slice %263 {offsets = [0, 0], sizes = [1, 64], strides = [1, 1]} : vector<6x64xf32> to vector<1x64xf32>
    %265 = vector.extract_strided_slice %263 {offsets = [1, 0], sizes = [1, 64], strides = [1, 1]} : vector<6x64xf32> to vector<1x64xf32>
    %266 = vector.extract_strided_slice %263 {offsets = [2, 0], sizes = [1, 64], strides = [1, 1]} : vector<6x64xf32> to vector<1x64xf32>
    %267 = vector.extract_strided_slice %263 {offsets = [3, 0], sizes = [1, 64], strides = [1, 1]} : vector<6x64xf32> to vector<1x64xf32>
    %268 = vector.extract_strided_slice %263 {offsets = [4, 0], sizes = [1, 64], strides = [1, 1]} : vector<6x64xf32> to vector<1x64xf32>
    %269 = vector.extract_strided_slice %263 {offsets = [5, 0], sizes = [1, 64], strides = [1, 1]} : vector<6x64xf32> to vector<1x64xf32>
    %270 = arith.truncf %257 : vector<32x64xf32> to vector<32x64xbf16>
    %cst_91 = arith.constant dense<0.000000e+00> : vector<32x192xf32>
    %271 = tpu.matmul %270, %259, %cst_91 {dimension_numbers = #tpu.dot_dimension_numbers<[1], [0], [0], [1], [0, 0, 1, 1], [], []>} : vector<32x64xbf16>, vector<64x192xbf16>, vector<32x192xf32> -> vector<32x192xf32>
    %c1_92 = arith.constant 1 : index
    %c0_93 = arith.constant 0 : index
    %c0_94 = arith.constant 0 : index
    %272 = vector.load %arg5[%c1_92, %c0_93, %c0_94] : memref<2x1x192xf32, #tpu.memory_space<vmem>>, vector<1x1x192xf32>
    %273 = vector.shape_cast %272 : vector<1x1x192xf32> to vector<1x192xf32>
    %274 = vector.broadcast %273 : vector<1x192xf32> to vector<32x192xf32>
    %275 = arith.addf %271, %274 : vector<32x192xf32>
    %276 = vector.extract_strided_slice %275 {offsets = [0, 0], sizes = [32, 64], strides = [1, 1]} : vector<32x192xf32> to vector<32x64xf32>
    %277 = vector.extract_strided_slice %275 {offsets = [0, 64], sizes = [32, 64], strides = [1, 1]} : vector<32x192xf32> to vector<32x64xf32>
    %278 = vector.extract_strided_slice %275 {offsets = [0, 128], sizes = [32, 64], strides = [1, 1]} : vector<32x192xf32> to vector<32x64xf32>
    %cst_95 = arith.constant 0.000000e+00 : f32
    %279 = vector.broadcast %cst_95 : f32 to vector<32x64xf32>
    %280 = vector.extract_strided_slice %276 {offsets = [0, 0], sizes = [32, 16], strides = [1, 1]} : vector<32x64xf32> to vector<32x16xf32>
    %281 = vector.shape_cast %280 : vector<32x16xf32> to vector<4x8x16xf32>
    %282 = vector.extract_strided_slice %277 {offsets = [0, 0], sizes = [32, 16], strides = [1, 1]} : vector<32x64xf32> to vector<32x16xf32>
    %283 = vector.shape_cast %282 : vector<32x16xf32> to vector<4x8x16xf32>
    %284 = vector.extract_strided_slice %278 {offsets = [0, 0], sizes = [32, 16], strides = [1, 1]} : vector<32x64xf32> to vector<32x16xf32>
    %285 = vector.shape_cast %284 : vector<32x16xf32> to vector<4x8x16xf32>
    %286 = arith.truncf %281 : vector<4x8x16xf32> to vector<4x8x16xbf16>
    %287 = arith.truncf %283 : vector<4x8x16xf32> to vector<4x8x16xbf16>
    "tpu.trace_start"() <{level = 10 : i32, message = "bqd,bkd->bqk"}> : () -> ()
    %cst_96 = arith.constant dense<0.000000e+00> : vector<4x8x8xf32>
    %288 = tpu.matmul %286, %287, %cst_96 {dimension_numbers = #tpu.dot_dimension_numbers<[2], [2], [1], [1], [0, 0, 0, 1, 1, 1], [0], [0]>} : vector<4x8x16xbf16>, vector<4x8x16xbf16>, vector<4x8x8xf32> -> vector<4x8x8xf32>
    "tpu.trace_stop"() : () -> ()
    %cst_97 = arith.constant 2.500000e-01 : f32
    %289 = vector.broadcast %cst_97 : f32 to vector<4x8x8xf32>
    %290 = arith.mulf %288, %289 : vector<4x8x8xf32>
    %cst_98 = arith.constant dense<0xFF800000> : vector<4x8xf32>
    %291 = vector.multi_reduction <maximumf>, %290, %cst_98 [2] : vector<4x8x8xf32> to vector<4x8xf32>
    %292 = vector.shape_cast %291 : vector<4x8xf32> to vector<4x8x1xf32>
    %293 = vector.broadcast %292 : vector<4x8x1xf32> to vector<4x8x8xf32>
    %294 = arith.subf %290, %293 : vector<4x8x8xf32>
    %295 = math.exp %294 : vector<4x8x8xf32>
    %cst_99 = arith.constant dense<0.000000e+00> : vector<4x8xf32>
    %296 = vector.multi_reduction <add>, %295, %cst_99 [2] : vector<4x8x8xf32> to vector<4x8xf32>
    %297 = vector.shape_cast %296 : vector<4x8xf32> to vector<4x8x1xf32>
    %298 = tpu.reciprocal %297 {approx = true} : vector<4x8x1xf32> -> vector<4x8x1xf32>
    %299 = vector.broadcast %298 : vector<4x8x1xf32> to vector<4x8x8xf32>
    %300 = arith.mulf %295, %299 : vector<4x8x8xf32>
    %301 = arith.truncf %300 : vector<4x8x8xf32> to vector<4x8x8xbf16>
    %302 = arith.truncf %285 : vector<4x8x16xf32> to vector<4x8x16xbf16>
    "tpu.trace_start"() <{level = 10 : i32, message = "bqk,bkd->bqd"}> : () -> ()
    %cst_100 = arith.constant dense<0.000000e+00> : vector<4x8x16xf32>
    %303 = tpu.matmul %301, %302, %cst_100 {dimension_numbers = #tpu.dot_dimension_numbers<[2], [1], [1], [2], [0, 0, 0, 1, 1, 2], [0], [0]>} : vector<4x8x8xbf16>, vector<4x8x16xbf16>, vector<4x8x16xf32> -> vector<4x8x16xf32>
    "tpu.trace_stop"() : () -> ()
    %304 = vector.shape_cast %303 : vector<4x8x16xf32> to vector<32x16xf32>
    %305 = arith.truncf %304 : vector<32x16xf32> to vector<32x16xbf16>
    %306 = vector.extract_strided_slice %261 {offsets = [0, 0], sizes = [16, 64], strides = [1, 1]} : vector<64x64xbf16> to vector<16x64xbf16>
    %cst_101 = arith.constant dense<0.000000e+00> : vector<32x64xf32>
    %307 = tpu.matmul %305, %306, %cst_101 {dimension_numbers = #tpu.dot_dimension_numbers<[1], [0], [0], [1], [0, 0, 1, 1], [], []>} : vector<32x16xbf16>, vector<16x64xbf16>, vector<32x64xf32> -> vector<32x64xf32>
    %308 = arith.addf %279, %307 : vector<32x64xf32>
    %309 = vector.extract_strided_slice %276 {offsets = [0, 16], sizes = [32, 16], strides = [1, 1]} : vector<32x64xf32> to vector<32x16xf32>
    %310 = vector.shape_cast %309 : vector<32x16xf32> to vector<4x8x16xf32>
    %311 = vector.extract_strided_slice %277 {offsets = [0, 16], sizes = [32, 16], strides = [1, 1]} : vector<32x64xf32> to vector<32x16xf32>
    %312 = vector.shape_cast %311 : vector<32x16xf32> to vector<4x8x16xf32>
    %313 = vector.extract_strided_slice %278 {offsets = [0, 16], sizes = [32, 16], strides = [1, 1]} : vector<32x64xf32> to vector<32x16xf32>
    %314 = vector.shape_cast %313 : vector<32x16xf32> to vector<4x8x16xf32>
    %315 = arith.truncf %310 : vector<4x8x16xf32> to vector<4x8x16xbf16>
    %316 = arith.truncf %312 : vector<4x8x16xf32> to vector<4x8x16xbf16>
    "tpu.trace_start"() <{level = 10 : i32, message = "bqd,bkd->bqk"}> : () -> ()
    %cst_102 = arith.constant dense<0.000000e+00> : vector<4x8x8xf32>
    %317 = tpu.matmul %315, %316, %cst_102 {dimension_numbers = #tpu.dot_dimension_numbers<[2], [2], [1], [1], [0, 0, 0, 1, 1, 1], [0], [0]>} : vector<4x8x16xbf16>, vector<4x8x16xbf16>, vector<4x8x8xf32> -> vector<4x8x8xf32>
    "tpu.trace_stop"() : () -> ()
    %cst_103 = arith.constant 2.500000e-01 : f32
    %318 = vector.broadcast %cst_103 : f32 to vector<4x8x8xf32>
    %319 = arith.mulf %317, %318 : vector<4x8x8xf32>
    %cst_104 = arith.constant dense<0xFF800000> : vector<4x8xf32>
    %320 = vector.multi_reduction <maximumf>, %319, %cst_104 [2] : vector<4x8x8xf32> to vector<4x8xf32>
    %321 = vector.shape_cast %320 : vector<4x8xf32> to vector<4x8x1xf32>
    %322 = vector.broadcast %321 : vector<4x8x1xf32> to vector<4x8x8xf32>
    %323 = arith.subf %319, %322 : vector<4x8x8xf32>
    %324 = math.exp %323 : vector<4x8x8xf32>
    %cst_105 = arith.constant dense<0.000000e+00> : vector<4x8xf32>
    %325 = vector.multi_reduction <add>, %324, %cst_105 [2] : vector<4x8x8xf32> to vector<4x8xf32>
    %326 = vector.shape_cast %325 : vector<4x8xf32> to vector<4x8x1xf32>
    %327 = tpu.reciprocal %326 {approx = true} : vector<4x8x1xf32> -> vector<4x8x1xf32>
    %328 = vector.broadcast %327 : vector<4x8x1xf32> to vector<4x8x8xf32>
    %329 = arith.mulf %324, %328 : vector<4x8x8xf32>
    %330 = arith.truncf %329 : vector<4x8x8xf32> to vector<4x8x8xbf16>
    %331 = arith.truncf %314 : vector<4x8x16xf32> to vector<4x8x16xbf16>
    "tpu.trace_start"() <{level = 10 : i32, message = "bqk,bkd->bqd"}> : () -> ()
    %cst_106 = arith.constant dense<0.000000e+00> : vector<4x8x16xf32>
    %332 = tpu.matmul %330, %331, %cst_106 {dimension_numbers = #tpu.dot_dimension_numbers<[2], [1], [1], [2], [0, 0, 0, 1, 1, 2], [0], [0]>} : vector<4x8x8xbf16>, vector<4x8x16xbf16>, vector<4x8x16xf32> -> vector<4x8x16xf32>
    "tpu.trace_stop"() : () -> ()
    %333 = vector.shape_cast %332 : vector<4x8x16xf32> to vector<32x16xf32>
    %334 = arith.truncf %333 : vector<32x16xf32> to vector<32x16xbf16>
    %335 = vector.extract_strided_slice %261 {offsets = [16, 0], sizes = [16, 64], strides = [1, 1]} : vector<64x64xbf16> to vector<16x64xbf16>
    %cst_107 = arith.constant dense<0.000000e+00> : vector<32x64xf32>
    %336 = tpu.matmul %334, %335, %cst_107 {dimension_numbers = #tpu.dot_dimension_numbers<[1], [0], [0], [1], [0, 0, 1, 1], [], []>} : vector<32x16xbf16>, vector<16x64xbf16>, vector<32x64xf32> -> vector<32x64xf32>
    %337 = arith.addf %308, %336 : vector<32x64xf32>
    %338 = vector.extract_strided_slice %276 {offsets = [0, 32], sizes = [32, 16], strides = [1, 1]} : vector<32x64xf32> to vector<32x16xf32>
    %339 = vector.shape_cast %338 : vector<32x16xf32> to vector<4x8x16xf32>
    %340 = vector.extract_strided_slice %277 {offsets = [0, 32], sizes = [32, 16], strides = [1, 1]} : vector<32x64xf32> to vector<32x16xf32>
    %341 = vector.shape_cast %340 : vector<32x16xf32> to vector<4x8x16xf32>
    %342 = vector.extract_strided_slice %278 {offsets = [0, 32], sizes = [32, 16], strides = [1, 1]} : vector<32x64xf32> to vector<32x16xf32>
    %343 = vector.shape_cast %342 : vector<32x16xf32> to vector<4x8x16xf32>
    %344 = arith.truncf %339 : vector<4x8x16xf32> to vector<4x8x16xbf16>
    %345 = arith.truncf %341 : vector<4x8x16xf32> to vector<4x8x16xbf16>
    "tpu.trace_start"() <{level = 10 : i32, message = "bqd,bkd->bqk"}> : () -> ()
    %cst_108 = arith.constant dense<0.000000e+00> : vector<4x8x8xf32>
    %346 = tpu.matmul %344, %345, %cst_108 {dimension_numbers = #tpu.dot_dimension_numbers<[2], [2], [1], [1], [0, 0, 0, 1, 1, 1], [0], [0]>} : vector<4x8x16xbf16>, vector<4x8x16xbf16>, vector<4x8x8xf32> -> vector<4x8x8xf32>
    "tpu.trace_stop"() : () -> ()
    %cst_109 = arith.constant 2.500000e-01 : f32
    %347 = vector.broadcast %cst_109 : f32 to vector<4x8x8xf32>
    %348 = arith.mulf %346, %347 : vector<4x8x8xf32>
    %cst_110 = arith.constant dense<0xFF800000> : vector<4x8xf32>
    %349 = vector.multi_reduction <maximumf>, %348, %cst_110 [2] : vector<4x8x8xf32> to vector<4x8xf32>
    %350 = vector.shape_cast %349 : vector<4x8xf32> to vector<4x8x1xf32>
    %351 = vector.broadcast %350 : vector<4x8x1xf32> to vector<4x8x8xf32>
    %352 = arith.subf %348, %351 : vector<4x8x8xf32>
    %353 = math.exp %352 : vector<4x8x8xf32>
    %cst_111 = arith.constant dense<0.000000e+00> : vector<4x8xf32>
    %354 = vector.multi_reduction <add>, %353, %cst_111 [2] : vector<4x8x8xf32> to vector<4x8xf32>
    %355 = vector.shape_cast %354 : vector<4x8xf32> to vector<4x8x1xf32>
    %356 = tpu.reciprocal %355 {approx = true} : vector<4x8x1xf32> -> vector<4x8x1xf32>
    %357 = vector.broadcast %356 : vector<4x8x1xf32> to vector<4x8x8xf32>
    %358 = arith.mulf %353, %357 : vector<4x8x8xf32>
    %359 = arith.truncf %358 : vector<4x8x8xf32> to vector<4x8x8xbf16>
    %360 = arith.truncf %343 : vector<4x8x16xf32> to vector<4x8x16xbf16>
    "tpu.trace_start"() <{level = 10 : i32, message = "bqk,bkd->bqd"}> : () -> ()
    %cst_112 = arith.constant dense<0.000000e+00> : vector<4x8x16xf32>
    %361 = tpu.matmul %359, %360, %cst_112 {dimension_numbers = #tpu.dot_dimension_numbers<[2], [1], [1], [2], [0, 0, 0, 1, 1, 2], [0], [0]>} : vector<4x8x8xbf16>, vector<4x8x16xbf16>, vector<4x8x16xf32> -> vector<4x8x16xf32>
    "tpu.trace_stop"() : () -> ()
    %362 = vector.shape_cast %361 : vector<4x8x16xf32> to vector<32x16xf32>
    %363 = arith.truncf %362 : vector<32x16xf32> to vector<32x16xbf16>
    %364 = vector.extract_strided_slice %261 {offsets = [32, 0], sizes = [16, 64], strides = [1, 1]} : vector<64x64xbf16> to vector<16x64xbf16>
    %cst_113 = arith.constant dense<0.000000e+00> : vector<32x64xf32>
    %365 = tpu.matmul %363, %364, %cst_113 {dimension_numbers = #tpu.dot_dimension_numbers<[1], [0], [0], [1], [0, 0, 1, 1], [], []>} : vector<32x16xbf16>, vector<16x64xbf16>, vector<32x64xf32> -> vector<32x64xf32>
    %366 = arith.addf %337, %365 : vector<32x64xf32>
    %367 = vector.extract_strided_slice %276 {offsets = [0, 48], sizes = [32, 16], strides = [1, 1]} : vector<32x64xf32> to vector<32x16xf32>
    %368 = vector.shape_cast %367 : vector<32x16xf32> to vector<4x8x16xf32>
    %369 = vector.extract_strided_slice %277 {offsets = [0, 48], sizes = [32, 16], strides = [1, 1]} : vector<32x64xf32> to vector<32x16xf32>
    %370 = vector.shape_cast %369 : vector<32x16xf32> to vector<4x8x16xf32>
    %371 = vector.extract_strided_slice %278 {offsets = [0, 48], sizes = [32, 16], strides = [1, 1]} : vector<32x64xf32> to vector<32x16xf32>
    %372 = vector.shape_cast %371 : vector<32x16xf32> to vector<4x8x16xf32>
    %373 = arith.truncf %368 : vector<4x8x16xf32> to vector<4x8x16xbf16>
    %374 = arith.truncf %370 : vector<4x8x16xf32> to vector<4x8x16xbf16>
    "tpu.trace_start"() <{level = 10 : i32, message = "bqd,bkd->bqk"}> : () -> ()
    %cst_114 = arith.constant dense<0.000000e+00> : vector<4x8x8xf32>
    %375 = tpu.matmul %373, %374, %cst_114 {dimension_numbers = #tpu.dot_dimension_numbers<[2], [2], [1], [1], [0, 0, 0, 1, 1, 1], [0], [0]>} : vector<4x8x16xbf16>, vector<4x8x16xbf16>, vector<4x8x8xf32> -> vector<4x8x8xf32>
    "tpu.trace_stop"() : () -> ()
    %cst_115 = arith.constant 2.500000e-01 : f32
    %376 = vector.broadcast %cst_115 : f32 to vector<4x8x8xf32>
    %377 = arith.mulf %375, %376 : vector<4x8x8xf32>
    %cst_116 = arith.constant dense<0xFF800000> : vector<4x8xf32>
    %378 = vector.multi_reduction <maximumf>, %377, %cst_116 [2] : vector<4x8x8xf32> to vector<4x8xf32>
    %379 = vector.shape_cast %378 : vector<4x8xf32> to vector<4x8x1xf32>
    %380 = vector.broadcast %379 : vector<4x8x1xf32> to vector<4x8x8xf32>
    %381 = arith.subf %377, %380 : vector<4x8x8xf32>
    %382 = math.exp %381 : vector<4x8x8xf32>
    %cst_117 = arith.constant dense<0.000000e+00> : vector<4x8xf32>
    %383 = vector.multi_reduction <add>, %382, %cst_117 [2] : vector<4x8x8xf32> to vector<4x8xf32>
    %384 = vector.shape_cast %383 : vector<4x8xf32> to vector<4x8x1xf32>
    %385 = tpu.reciprocal %384 {approx = true} : vector<4x8x1xf32> -> vector<4x8x1xf32>
    %386 = vector.broadcast %385 : vector<4x8x1xf32> to vector<4x8x8xf32>
    %387 = arith.mulf %382, %386 : vector<4x8x8xf32>
    %388 = arith.truncf %387 : vector<4x8x8xf32> to vector<4x8x8xbf16>
    %389 = arith.truncf %372 : vector<4x8x16xf32> to vector<4x8x16xbf16>
    "tpu.trace_start"() <{level = 10 : i32, message = "bqk,bkd->bqd"}> : () -> ()
    %cst_118 = arith.constant dense<0.000000e+00> : vector<4x8x16xf32>
    %390 = tpu.matmul %388, %389, %cst_118 {dimension_numbers = #tpu.dot_dimension_numbers<[2], [1], [1], [2], [0, 0, 0, 1, 1, 2], [0], [0]>} : vector<4x8x8xbf16>, vector<4x8x16xbf16>, vector<4x8x16xf32> -> vector<4x8x16xf32>
    "tpu.trace_stop"() : () -> ()
    %391 = vector.shape_cast %390 : vector<4x8x16xf32> to vector<32x16xf32>
    %392 = arith.truncf %391 : vector<32x16xf32> to vector<32x16xbf16>
    %393 = vector.extract_strided_slice %261 {offsets = [48, 0], sizes = [16, 64], strides = [1, 1]} : vector<64x64xbf16> to vector<16x64xbf16>
    %cst_119 = arith.constant dense<0.000000e+00> : vector<32x64xf32>
    %394 = tpu.matmul %392, %393, %cst_119 {dimension_numbers = #tpu.dot_dimension_numbers<[1], [0], [0], [1], [0, 0, 1, 1], [], []>} : vector<32x16xbf16>, vector<16x64xbf16>, vector<32x64xf32> -> vector<32x64xf32>
    %395 = arith.addf %366, %394 : vector<32x64xf32>
    %396 = vector.broadcast %264 : vector<1x64xf32> to vector<32x64xf32>
    %397 = arith.addf %395, %396 : vector<32x64xf32>
    %398 = arith.addf %257, %397 : vector<32x64xf32>
    %cst_120 = arith.constant dense<0.000000e+00> : vector<32xf32>
    %399 = vector.multi_reduction <add>, %398, %cst_120 [1] : vector<32x64xf32> to vector<32xf32>
    %400 = vector.shape_cast %399 : vector<32xf32> to vector<32x1xf32>
    %cst_121 = arith.constant 6.400000e+01 : f32
    %401 = vector.broadcast %cst_121 : f32 to vector<32x1xf32>
    %402 = arith.divf %400, %401 : vector<32x1xf32>
    %403 = vector.broadcast %402 : vector<32x1xf32> to vector<32x64xf32>
    %404 = arith.subf %398, %403 : vector<32x64xf32>
    %405 = arith.mulf %404, %404 : vector<32x64xf32>
    %cst_122 = arith.constant dense<0.000000e+00> : vector<32xf32>
    %406 = vector.multi_reduction <add>, %405, %cst_122 [1] : vector<32x64xf32> to vector<32xf32>
    %407 = vector.shape_cast %406 : vector<32xf32> to vector<32x1xf32>
    %cst_123 = arith.constant 6.400000e+01 : f32
    %408 = vector.broadcast %cst_123 : f32 to vector<32x1xf32>
    %409 = arith.divf %407, %408 : vector<32x1xf32>
    %cst_124 = arith.constant 9.99999974E-6 : f32
    %410 = vector.broadcast %cst_124 : f32 to vector<32x1xf32>
    %411 = arith.addf %409, %410 : vector<32x1xf32>
    %412 = math.rsqrt %411 : vector<32x1xf32>
    %413 = vector.broadcast %412 : vector<32x1xf32> to vector<32x64xf32>
    %414 = arith.mulf %404, %413 : vector<32x64xf32>
    %415 = vector.broadcast %265 : vector<1x64xf32> to vector<32x64xf32>
    %416 = arith.mulf %414, %415 : vector<32x64xf32>
    %417 = vector.broadcast %266 : vector<1x64xf32> to vector<32x64xf32>
    %418 = arith.addf %416, %417 : vector<32x64xf32>
    %c1_125 = arith.constant 1 : index
    %c0_126 = arith.constant 0 : index
    %c0_127 = arith.constant 0 : index
    %419 = vector.load %arg7[%c1_125, %c0_126, %c0_127] : memref<2x64x128xbf16, #tpu.memory_space<vmem>>, vector<1x64x128xbf16>
    %420 = vector.shape_cast %419 : vector<1x64x128xbf16> to vector<64x128xbf16>
    %c1_128 = arith.constant 1 : index
    %c0_129 = arith.constant 0 : index
    %c0_130 = arith.constant 0 : index
    %421 = vector.load %arg9[%c1_128, %c0_129, %c0_130] : memref<2x128x64xbf16, #tpu.memory_space<vmem>>, vector<1x128x64xbf16>
    %422 = vector.shape_cast %421 : vector<1x128x64xbf16> to vector<128x64xbf16>
    %423 = arith.truncf %418 : vector<32x64xf32> to vector<32x64xbf16>
    %cst_131 = arith.constant dense<0.000000e+00> : vector<32x128xf32>
    %424 = tpu.matmul %423, %420, %cst_131 {dimension_numbers = #tpu.dot_dimension_numbers<[1], [0], [0], [1], [0, 0, 1, 1], [], []>} : vector<32x64xbf16>, vector<64x128xbf16>, vector<32x128xf32> -> vector<32x128xf32>
    %c1_132 = arith.constant 1 : index
    %c0_133 = arith.constant 0 : index
    %c0_134 = arith.constant 0 : index
    %425 = vector.load %arg8[%c1_132, %c0_133, %c0_134] : memref<2x1x128xf32, #tpu.memory_space<vmem>>, vector<1x1x128xf32>
    %426 = vector.shape_cast %425 : vector<1x1x128xf32> to vector<1x128xf32>
    %427 = vector.broadcast %426 : vector<1x128xf32> to vector<32x128xf32>
    %428 = arith.addf %424, %427 : vector<32x128xf32>
    %cst_135 = arith.constant 5.000000e-01 : f32
    %429 = vector.broadcast %cst_135 : f32 to vector<32x128xf32>
    %430 = arith.mulf %429, %428 : vector<32x128xf32>
    %cst_136 = arith.constant 0.707106769 : f32
    %431 = vector.broadcast %cst_136 : f32 to vector<32x128xf32>
    %432 = arith.mulf %428, %431 : vector<32x128xf32>
    %cst_137 = arith.constant 0.000000e+00 : f32
    %433 = vector.broadcast %cst_137 : f32 to vector<32x128xf32>
    %434 = arith.cmpf oge, %432, %433 : vector<32x128xf32>
    %cst_138 = arith.constant 1.000000e+00 : f32
    %cst_139 = arith.constant -1.000000e+00 : f32
    %435 = vector.broadcast %cst_138 : f32 to vector<32x128xf32>
    %436 = vector.broadcast %cst_139 : f32 to vector<32x128xf32>
    %437 = arith.select %434, %435, %436 : vector<32x128xi1>, vector<32x128xf32>
    %438 = math.absf %432 : vector<32x128xf32>
    %cst_140 = arith.constant 0.327591091 : f32
    %439 = vector.broadcast %cst_140 : f32 to vector<32x128xf32>
    %440 = arith.mulf %439, %438 : vector<32x128xf32>
    %cst_141 = arith.constant 1.000000e+00 : f32
    %441 = vector.broadcast %cst_141 : f32 to vector<32x128xf32>
    %442 = arith.addf %441, %440 : vector<32x128xf32>
    %cst_142 = arith.constant 1.000000e+00 : f32
    %443 = vector.broadcast %cst_142 : f32 to vector<32x128xf32>
    %444 = arith.divf %443, %442 : vector<32x128xf32>
    %cst_143 = arith.constant 1.06140542 : f32
    %445 = vector.broadcast %cst_143 : f32 to vector<32x128xf32>
    %446 = arith.mulf %445, %444 : vector<32x128xf32>
    %cst_144 = arith.constant -1.45315206 : f32
    %447 = vector.broadcast %cst_144 : f32 to vector<32x128xf32>
    %448 = arith.addf %446, %447 : vector<32x128xf32>
    %449 = arith.mulf %448, %444 : vector<32x128xf32>
    %cst_145 = arith.constant 1.42141378 : f32
    %450 = vector.broadcast %cst_145 : f32 to vector<32x128xf32>
    %451 = arith.addf %449, %450 : vector<32x128xf32>
    %452 = arith.mulf %451, %444 : vector<32x128xf32>
    %cst_146 = arith.constant -0.284496725 : f32
    %453 = vector.broadcast %cst_146 : f32 to vector<32x128xf32>
    %454 = arith.addf %452, %453 : vector<32x128xf32>
    %455 = arith.mulf %454, %444 : vector<32x128xf32>
    %cst_147 = arith.constant 0.254829586 : f32
    %456 = vector.broadcast %cst_147 : f32 to vector<32x128xf32>
    %457 = arith.addf %455, %456 : vector<32x128xf32>
    %458 = arith.mulf %457, %444 : vector<32x128xf32>
    %cst_148 = arith.constant 0.000000e+00 : f32
    %459 = vector.broadcast %cst_148 : f32 to vector<32x128xf32>
    %460 = arith.subf %459, %438 : vector<32x128xf32>
    %461 = arith.mulf %460, %438 : vector<32x128xf32>
    %462 = math.exp %461 : vector<32x128xf32>
    %463 = arith.mulf %458, %462 : vector<32x128xf32>
    %cst_149 = arith.constant 1.000000e+00 : f32
    %464 = vector.broadcast %cst_149 : f32 to vector<32x128xf32>
    %465 = arith.subf %464, %463 : vector<32x128xf32>
    %466 = arith.mulf %437, %465 : vector<32x128xf32>
    %cst_150 = arith.constant 1.000000e+00 : f32
    %467 = vector.broadcast %cst_150 : f32 to vector<32x128xf32>
    %468 = arith.addf %467, %466 : vector<32x128xf32>
    %469 = arith.mulf %430, %468 : vector<32x128xf32>
    %470 = arith.truncf %469 : vector<32x128xf32> to vector<32x128xbf16>
    %cst_151 = arith.constant dense<0.000000e+00> : vector<32x64xf32>
    %471 = tpu.matmul %470, %422, %cst_151 {dimension_numbers = #tpu.dot_dimension_numbers<[1], [0], [0], [1], [0, 0, 1, 1], [], []>} : vector<32x128xbf16>, vector<128x64xbf16>, vector<32x64xf32> -> vector<32x64xf32>
    %472 = vector.broadcast %267 : vector<1x64xf32> to vector<32x64xf32>
    %473 = arith.addf %471, %472 : vector<32x64xf32>
    %474 = arith.addf %418, %473 : vector<32x64xf32>
    %cst_152 = arith.constant dense<0.000000e+00> : vector<32xf32>
    %475 = vector.multi_reduction <add>, %474, %cst_152 [1] : vector<32x64xf32> to vector<32xf32>
    %476 = vector.shape_cast %475 : vector<32xf32> to vector<32x1xf32>
    %cst_153 = arith.constant 6.400000e+01 : f32
    %477 = vector.broadcast %cst_153 : f32 to vector<32x1xf32>
    %478 = arith.divf %476, %477 : vector<32x1xf32>
    %479 = vector.broadcast %478 : vector<32x1xf32> to vector<32x64xf32>
    %480 = arith.subf %474, %479 : vector<32x64xf32>
    %481 = arith.mulf %480, %480 : vector<32x64xf32>
    %cst_154 = arith.constant dense<0.000000e+00> : vector<32xf32>
    %482 = vector.multi_reduction <add>, %481, %cst_154 [1] : vector<32x64xf32> to vector<32xf32>
    %483 = vector.shape_cast %482 : vector<32xf32> to vector<32x1xf32>
    %cst_155 = arith.constant 6.400000e+01 : f32
    %484 = vector.broadcast %cst_155 : f32 to vector<32x1xf32>
    %485 = arith.divf %483, %484 : vector<32x1xf32>
    %cst_156 = arith.constant 9.99999974E-6 : f32
    %486 = vector.broadcast %cst_156 : f32 to vector<32x1xf32>
    %487 = arith.addf %485, %486 : vector<32x1xf32>
    %488 = math.rsqrt %487 : vector<32x1xf32>
    %489 = vector.broadcast %488 : vector<32x1xf32> to vector<32x64xf32>
    %490 = arith.mulf %480, %489 : vector<32x64xf32>
    %491 = vector.broadcast %268 : vector<1x64xf32> to vector<32x64xf32>
    %492 = arith.mulf %490, %491 : vector<32x64xf32>
    %493 = vector.broadcast %269 : vector<1x64xf32> to vector<32x64xf32>
    %494 = arith.addf %492, %493 : vector<32x64xf32>
    %c0_157 = arith.constant 0 : index
    %c0_158 = arith.constant 0 : index
    %495 = vector.load %arg11[%c0_157, %c0_158] : memref<2x64xf32, #tpu.memory_space<vmem>>, vector<2x64xf32>
    %496 = vector.extract_strided_slice %495 {offsets = [0, 0], sizes = [1, 64], strides = [1, 1]} : vector<2x64xf32> to vector<1x64xf32>
    %497 = vector.extract_strided_slice %495 {offsets = [1, 0], sizes = [1, 64], strides = [1, 1]} : vector<2x64xf32> to vector<1x64xf32>
    %cst_159 = arith.constant dense<0.000000e+00> : vector<32xf32>
    %498 = vector.multi_reduction <add>, %494, %cst_159 [1] : vector<32x64xf32> to vector<32xf32>
    %499 = vector.shape_cast %498 : vector<32xf32> to vector<32x1xf32>
    %cst_160 = arith.constant 6.400000e+01 : f32
    %500 = vector.broadcast %cst_160 : f32 to vector<32x1xf32>
    %501 = arith.divf %499, %500 : vector<32x1xf32>
    %502 = vector.broadcast %501 : vector<32x1xf32> to vector<32x64xf32>
    %503 = arith.subf %494, %502 : vector<32x64xf32>
    %504 = arith.mulf %503, %503 : vector<32x64xf32>
    %cst_161 = arith.constant dense<0.000000e+00> : vector<32xf32>
    %505 = vector.multi_reduction <add>, %504, %cst_161 [1] : vector<32x64xf32> to vector<32xf32>
    %506 = vector.shape_cast %505 : vector<32xf32> to vector<32x1xf32>
    %cst_162 = arith.constant 6.400000e+01 : f32
    %507 = vector.broadcast %cst_162 : f32 to vector<32x1xf32>
    %508 = arith.divf %506, %507 : vector<32x1xf32>
    %cst_163 = arith.constant 9.99999974E-6 : f32
    %509 = vector.broadcast %cst_163 : f32 to vector<32x1xf32>
    %510 = arith.addf %508, %509 : vector<32x1xf32>
    %511 = math.rsqrt %510 : vector<32x1xf32>
    %512 = vector.broadcast %511 : vector<32x1xf32> to vector<32x64xf32>
    %513 = arith.mulf %503, %512 : vector<32x64xf32>
    %514 = vector.broadcast %496 : vector<1x64xf32> to vector<32x64xf32>
    %515 = arith.mulf %513, %514 : vector<32x64xf32>
    %516 = vector.broadcast %497 : vector<1x64xf32> to vector<32x64xf32>
    %517 = arith.addf %515, %516 : vector<32x64xf32>
    %518 = vector.shape_cast %517 : vector<32x64xf32> to vector<4x8x64xf32>
    %519 = tpu.transpose %518, [0, 2, 1] : vector<4x8x64xf32> -> vector<4x64x8xf32>
    %520 = vector.shape_cast %519 : vector<4x64x8xf32> to vector<4x1x512xf32>
    %c0_164 = arith.constant 0 : index
    %c0_165 = arith.constant 0 : index
    %c0_166 = arith.constant 0 : index
    %521 = vector.load %arg12[%c0_164, %c0_165, %c0_166] : memref<4x1x512xf32, #tpu.memory_space<vmem>>, vector<4x1x512xf32>
    tpu.vector_store %arg12[%c0_164, %c0_165, %c0_166], %520 {strides = array<i32>} : memref<4x1x512xf32, #tpu.memory_space<vmem>>, vector<4x1x512xf32>,
    return
  }
  func.func @transform_0(%arg0: i32) -> (i32, i32, i32) {
    %c0_i32 = arith.constant 0 : i32
    %c0_i32_0 = arith.constant 0 : i32
    %c0_i32_1 = arith.constant 0 : i32
    return %arg0, %c0_i32, %c0_i32_0 : i32, i32, i32
  }
  func.func @transform_1(%arg0: i32) -> (i32, i32) {
    %c0_i32 = arith.constant 0 : i32
    %c0_i32_0 = arith.constant 0 : i32
    %c0_i32_1 = arith.constant 0 : i32
    return %c0_i32, %c0_i32_0 : i32, i32
  }
  func.func @transform_2(%arg0: i32) -> (i32, i32) {
    %c0_i32 = arith.constant 0 : i32
    %c0_i32_0 = arith.constant 0 : i32
    %c0_i32_1 = arith.constant 0 : i32
    return %c0_i32, %c0_i32_0 : i32, i32
  }
  func.func @transform_3(%arg0: i32) -> (i32, i32, i32) {
    %c0_i32 = arith.constant 0 : i32
    %c0_i32_0 = arith.constant 0 : i32
    %c0_i32_1 = arith.constant 0 : i32
    %c0_i32_2 = arith.constant 0 : i32
    return %c0_i32, %c0_i32_0, %c0_i32_1 : i32, i32, i32
  }
  func.func @transform_4(%arg0: i32) -> (i32, i32, i32) {
    %c0_i32 = arith.constant 0 : i32
    %c0_i32_0 = arith.constant 0 : i32
    %c0_i32_1 = arith.constant 0 : i32
    %c0_i32_2 = arith.constant 0 : i32
    return %c0_i32, %c0_i32_0, %c0_i32_1 : i32, i32, i32
  }
  func.func @transform_5(%arg0: i32) -> (i32, i32, i32) {
    %c0_i32 = arith.constant 0 : i32
    %c0_i32_0 = arith.constant 0 : i32
    %c0_i32_1 = arith.constant 0 : i32
    %c0_i32_2 = arith.constant 0 : i32
    return %c0_i32, %c0_i32_0, %c0_i32_1 : i32, i32, i32
  }
  func.func @transform_6(%arg0: i32) -> (i32, i32, i32) {
    %c0_i32 = arith.constant 0 : i32
    %c0_i32_0 = arith.constant 0 : i32
    %c0_i32_1 = arith.constant 0 : i32
    %c0_i32_2 = arith.constant 0 : i32
    return %c0_i32, %c0_i32_0, %c0_i32_1 : i32, i32, i32
  }
  func.func @transform_7(%arg0: i32) -> (i32, i32, i32) {
    %c0_i32 = arith.constant 0 : i32
    %c0_i32_0 = arith.constant 0 : i32
    %c0_i32_1 = arith.constant 0 : i32
    %c0_i32_2 = arith.constant 0 : i32
    return %c0_i32, %c0_i32_0, %c0_i32_1 : i32, i32, i32
  }
  func.func @transform_8(%arg0: i32) -> (i32, i32, i32) {
    %c0_i32 = arith.constant 0 : i32
    %c0_i32_0 = arith.constant 0 : i32
    %c0_i32_1 = arith.constant 0 : i32
    %c0_i32_2 = arith.constant 0 : i32
    return %c0_i32, %c0_i32_0, %c0_i32_1 : i32, i32, i32
  }
  func.func @transform_9(%arg0: i32) -> (i32, i32, i32) {
    %c0_i32 = arith.constant 0 : i32
    %c0_i32_0 = arith.constant 0 : i32
    %c0_i32_1 = arith.constant 0 : i32
    %c0_i32_2 = arith.constant 0 : i32
    return %c0_i32, %c0_i32_0, %c0_i32_1 : i32, i32, i32
  }
  func.func @transform_10(%arg0: i32) -> (i32, i32) {
    %c0_i32 = arith.constant 0 : i32
    %c0_i32_0 = arith.constant 0 : i32
    %c0_i32_1 = arith.constant 0 : i32
    return %c0_i32, %c0_i32_0 : i32, i32
  }
  func.func @transform_11(%arg0: i32) -> (i32, i32, i32) {
    %c0_i32 = arith.constant 0 : i32
    %c0_i32_0 = arith.constant 0 : i32
    %c0_i32_1 = arith.constant 0 : i32
    return %arg0, %c0_i32, %c0_i32_0 : i32, i32, i32
  }
}

</mosaic_0001>

<llo_original>
// kernel: _lambda_.1
$region0: #{_lambda_.1}
  #allocation0 [shape = 'u32[]', space=smem, size = 0x4, offset = 0x4, fixed_abs, tag = 'smem constant byte address 0x4 - core index']
  #allocation1 [shape = 'u32[144,128]{1,0:T(1,128)}', space=vmem, size = 0x12000, scoped, tag = 'internal scratch']
  %s0 = inlined_call_operand.vmem [shape: f32[8,9,8], index: 0, kind: input, shape index: {}]
  %s1 = inlined_call_operand.vmem [shape: bf16[16,64], index: 1, kind: input, shape index: {}]
  %s2 = inlined_call_operand.vmem [shape: f32[8,64], index: 2, kind: input, shape index: {}]
  %s3 = inlined_call_operand.vmem [shape: bf16[2,64,192], index: 3, kind: input, shape index: {}]
  %s4 = inlined_call_operand.vmem [shape: f32[2,1,192], index: 4, kind: input, shape index: {}]
  %s5 = inlined_call_operand.vmem [shape: bf16[2,64,64], index: 5, kind: input, shape index: {}]
  %s6 = inlined_call_operand.vmem [shape: bf16[2,64,128], index: 6, kind: input, shape index: {}]
  %s7 = inlined_call_operand.vmem [shape: f32[2,1,128], index: 7, kind: input, shape index: {}]
  %s8 = inlined_call_operand.vmem [shape: bf16[2,128,64], index: 8, kind: input, shape index: {}]
  %s9 = inlined_call_operand.vmem [shape: f32[2,6,64], index: 9, kind: input, shape index: {}]
  %s10 = inlined_call_operand.vmem [shape: f32[2,64], index: 10, kind: input, shape index: {}]
  %s11 = inlined_call_operand.vmem [shape: f32[8,1,512], index: 11, kind: output, shape index: {}]
  %s12 = sld [smem:[#allocation0]]
  $region77: #{_lambda_.1} parent=0
    _
  %s14 = ssub.s32 1, %s12
  %s15 = scalar_select 0, %s14, %s12
  loop: start=0, step=1, limit=4
  $region2: #{_lambda_.1} parent=0 // loop_pre_header
    _
  $region3: #{_lambda_.1} parent=0 // loop_header
    %s17 = sphi 0, %s21
    %p18 = scmp.ge.s32.totalorder %s17, 4
    %s27 = sphi 0, %s29
    %s30 = sphi 0, %s27
    %s31 = sphi 0, %s30
    %s47 = sphi 0, %s31
    %s51 = sphi 0, %s51
    %s53 = sphi 0, %s51
    %s54 = sphi 0, %s53
    %s68 = sphi 0, %s54
    %s72 = sphi 0, %s72
    %s74 = sphi 0, %s72
    %s75 = sphi 0, %s74
    %s89 = sphi 0, %s75
    %s93 = sphi 0, %s93
    %s95 = sphi 0, %s93
    %s96 = sphi 0, %s95
    %s110 = sphi 0, %s96
    %s114 = sphi 0, %s114
    %s116 = sphi 0, %s114
    %s117 = sphi 0, %s116
    %s131 = sphi 0, %s117
    %s135 = sphi 0, %s135
    %s137 = sphi 0, %s135
    %s138 = sphi 0, %s137
    %s152 = sphi 0, %s138
    %s156 = sphi 0, %s156
    %s158 = sphi 0, %s156
    %s159 = sphi 0, %s158
    %s173 = sphi 0, %s159
    %s177 = sphi 0, %s177
    %s179 = sphi 0, %s177
    %s180 = sphi 0, %s179
    %s194 = sphi 0, %s180
    %s198 = sphi 0, %s198
    %s200 = sphi 0, %s198
    %s201 = sphi 0, %s200
    %s215 = sphi 0, %s201
    %s219 = sphi 0, %s219
    %s221 = sphi 0, %s219
    %s222 = sphi 0, %s221
    %s236 = sphi 0, %s222
    %s240 = sphi 0, %s240
    %s242 = sphi 0, %s240
    %s243 = sphi 0, %s242
    %s257 = sphi 0, %s243
    %s263 = sphi 0, %s265
    %s266 = sphi 0, %s263
    %s267 = sphi 0, %s266
    %s283 = sphi 0, %s267
  $region4: #{_lambda_.1} parent=0 // loop_header_branch
    %20 = sbr.rel (%p18) target = $region8
  $region5: #{_lambda_.1} parent=0 // loop_body
    %s22 = ssub.s32 %s17, 1
    %s23 = ssub.s32 %s17, 2
    %s24 = sadd.s32 %s17, 1
    %s25 = ssub.s32 %s17, %s24
    %p26 = scmp.eq.s32.totalorder %s25, 0
    %s28 = sadd.s32 %s27, 1
    %s29 = scalar_select %p26, %s27, %s28
    %p32 = pneg %p26
    %p33 = scmp.eq.s32.totalorder %s17, 1
    %p34 = por %p32, %p33
    %p35 = scmp.ne.s32.totalorder %s27, %s30
    %p36 = scmp.eq.s32.totalorder %s17, 0
    %p37 = por %p35, %p36
    %p38 = scmp.ne.s32.totalorder %s27, %s30
    %p39 = scmp.eq.s32.totalorder %s22, 1
    %p40 = por %p38, %p39
    %p41 = scmp.ne.s32.totalorder %s30, %s31
    %p42 = scmp.eq.s32.totalorder %s22, 0
    %p43 = por %p41, %p42
    %p44 = scmp.ne.s32.totalorder %s30, %s31
    %p45 = scmp.eq.s32.totalorder %s23, 1
    %p46 = por %p44, %p45
    %p48 = scmp.ne.s32.totalorder %s31, %s47
    %p49 = scmp.eq.s32.totalorder %s23, 0
    %p50 = por %p48, %p49
    %s52 = sadd.s32 %s51, 1
    %p55 = scmp.eq.s32.totalorder %s17, 1
    %p56 = scmp.ne.s32.totalorder %s51, %s53
    %p57 = scmp.eq.s32.totalorder %s17, 0
    %p58 = por %p56, %p57
    %p59 = scmp.ne.s32.totalorder %s51, %s53
    %p60 = scmp.eq.s32.totalorder %s22, 1
    %p61 = por %p59, %p60
    %p62 = scmp.ne.s32.totalorder %s53, %s54
    %p63 = scmp.eq.s32.totalorder %s22, 0
    %p64 = por %p62, %p63
    %p65 = scmp.ne.s32.totalorder %s53, %s54
    %p66 = scmp.eq.s32.totalorder %s23, 1
    %p67 = por %p65, %p66
    %p69 = scmp.ne.s32.totalorder %s54, %s68
    %p70 = scmp.eq.s32.totalorder %s23, 0
    %p71 = por %p69, %p70
    %s73 = sadd.s32 %s72, 1
    %p76 = scmp.eq.s32.totalorder %s17, 1
    %p77 = scmp.ne.s32.totalorder %s72, %s74
    %p78 = scmp.eq.s32.totalorder %s17, 0
    %p79 = por %p77, %p78
    %p80 = scmp.ne.s32.totalorder %s72, %s74
    %p81 = scmp.eq.s32.totalorder %s22, 1
    %p82 = por %p80, %p81
    %p83 = scmp.ne.s32.totalorder %s74, %s75
    %p84 = scmp.eq.s32.totalorder %s22, 0
    %p85 = por %p83, %p84
    %p86 = scmp.ne.s32.totalorder %s74, %s75
    %p87 = scmp.eq.s32.totalorder %s23, 1
    %p88 = por %p86, %p87
    %p90 = scmp.ne.s32.totalorder %s75, %s89
    %p91 = scmp.eq.s32.totalorder %s23, 0
    %p92 = por %p90, %p91
    %s94 = sadd.s32 %s93, 1
    %p97 = scmp.eq.s32.totalorder %s17, 1
    %p98 = scmp.ne.s32.totalorder %s93, %s95
    %p99 = scmp.eq.s32.totalorder %s17, 0
    %p100 = por %p98, %p99
    %p101 = scmp.ne.s32.totalorder %s93, %s95
    %p102 = scmp.eq.s32.totalorder %s22, 1
    %p103 = por %p101, %p102
    %p104 = scmp.ne.s32.totalorder %s95, %s96
    %p105 = scmp.eq.s32.totalorder %s22, 0
    %p106 = por %p104, %p105
    %p107 = scmp.ne.s32.totalorder %s95, %s96
    %p108 = scmp.eq.s32.totalorder %s23, 1
    %p109 = por %p107, %p108
    %p111 = scmp.ne.s32.totalorder %s96, %s110
    %p112 = scmp.eq.s32.totalorder %s23, 0
    %p113 = por %p111, %p112
    %s115 = sadd.s32 %s114, 1
    %p118 = scmp.eq.s32.totalorder %s17, 1
    %p119 = scmp.ne.s32.totalorder %s114, %s116
    %p120 = scmp.eq.s32.totalorder %s17, 0
    %p121 = por %p119, %p120
    %p122 = scmp.ne.s32.totalorder %s114, %s116
    %p123 = scmp.eq.s32.totalorder %s22, 1
    %p124 = por %p122, %p123
    %p125 = scmp.ne.s32.totalorder %s116, %s117
    %p126 = scmp.eq.s32.totalorder %s22, 0
    %p127 = por %p125, %p126
    %p128 = scmp.ne.s32.totalorder %s116, %s117
    %p129 = scmp.eq.s32.totalorder %s23, 1
    %p130 = por %p128, %p129
    %p132 = scmp.ne.s32.totalorder %s117, %s131
    %p133 = scmp.eq.s32.totalorder %s23, 0
    %p134 = por %p132, %p133
    %s136 = sadd.s32 %s135, 1
    %p139 = scmp.eq.s32.totalorder %s17, 1
    %p140 = scmp.ne.s32.totalorder %s135, %s137
    %p141 = scmp.eq.s32.totalorder %s17, 0
    %p142 = por %p140, %p141
    %p143 = scmp.ne.s32.totalorder %s135, %s137
    %p144 = scmp.eq.s32.totalorder %s22, 1
    %p145 = por %p143, %p144
    %p146 = scmp.ne.s32.totalorder %s137, %s138
    %p147 = scmp.eq.s32.totalorder %s22, 0
    %p148 = por %p146, %p147
    %p149 = scmp.ne.s32.totalorder %s137, %s138
    %p150 = scmp.eq.s32.totalorder %s23, 1
    %p151 = por %p149, %p150
    %p153 = scmp.ne.s32.totalorder %s138, %s152
    %p154 = scmp.eq.s32.totalorder %s23, 0
    %p155 = por %p153, %p154
    %s157 = sadd.s32 %s156, 1
    %p160 = scmp.eq.s32.totalorder %s17, 1
    %p161 = scmp.ne.s32.totalorder %s156, %s158
    %p162 = scmp.eq.s32.totalorder %s17, 0
    %p163 = por %p161, %p162
    %p164 = scmp.ne.s32.totalorder %s156, %s158
    %p165 = scmp.eq.s32.totalorder %s22, 1
    %p166 = por %p164, %p165
    %p167 = scmp.ne.s32.totalorder %s158, %s159
    %p168 = scmp.eq.s32.totalorder %s22, 0
    %p169 = por %p167, %p168
    %p170 = scmp.ne.s32.totalorder %s158, %s159
    %p171 = scmp.eq.s32.totalorder %s23, 1
    %p172 = por %p170, %p171
    %p174 = scmp.ne.s32.totalorder %s159, %s173
    %p175 = scmp.eq.s32.totalorder %s23, 0
    %p176 = por %p174, %p175
    %s178 = sadd.s32 %s177, 1
    %p181 = scmp.eq.s32.totalorder %s17, 1
    %p182 = scmp.ne.s32.totalorder %s177, %s179
    %p183 = scmp.eq.s32.totalorder %s17, 0
    %p184 = por %p182, %p183
    %p185 = scmp.ne.s32.totalorder %s177, %s179
    %p186 = scmp.eq.s32.totalorder %s22, 1
    %p187 = por %p185, %p186
    %p188 = scmp.ne.s32.totalorder %s179, %s180
    %p189 = scmp.eq.s32.totalorder %s22, 0
    %p190 = por %p188, %p189
    %p191 = scmp.ne.s32.totalorder %s179, %s180
    %p192 = scmp.eq.s32.totalorder %s23, 1
    %p193 = por %p191, %p192
    %p195 = scmp.ne.s32.totalorder %s180, %s194
    %p196 = scmp.eq.s32.totalorder %s23, 0
    %p197 = por %p195, %p196
    %s199 = sadd.s32 %s198, 1
    %p202 = scmp.eq.s32.totalorder %s17, 1
    %p203 = scmp.ne.s32.totalorder %s198, %s200
    %p204 = scmp.eq.s32.totalorder %s17, 0
    %p205 = por %p203, %p204
    %p206 = scmp.ne.s32.totalorder %s198, %s200
    %p207 = scmp.eq.s32.totalorder %s22, 1
    %p208 = por %p206, %p207
    %p209 = scmp.ne.s32.totalorder %s200, %s201
    %p210 = scmp.eq.s32.totalorder %s22, 0
    %p211 = por %p209, %p210
    %p212 = scmp.ne.s32.totalorder %s200, %s201
    %p213 = scmp.eq.s32.totalorder %s23, 1
    %p214 = por %p212, %p213
    %p216 = scmp.ne.s32.totalorder %s201, %s215
    %p217 = scmp.eq.s32.totalorder %s23, 0
    %p218 = por %p216, %p217
    %s220 = sadd.s32 %s219, 1
    %p223 = scmp.eq.s32.totalorder %s17, 1
    %p224 = scmp.ne.s32.totalorder %s219, %s221
    %p225 = scmp.eq.s32.totalorder %s17, 0
    %p226 = por %p224, %p225
    %p227 = scmp.ne.s32.totalorder %s219, %s221
    %p228 = scmp.eq.s32.totalorder %s22, 1
    %p229 = por %p227, %p228
    %p230 = scmp.ne.s32.totalorder %s221, %s222
    %p231 = scmp.eq.s32.totalorder %s22, 0
    %p232 = por %p230, %p231
    %p233 = scmp.ne.s32.totalorder %s221, %s222
    %p234 = scmp.eq.s32.totalorder %s23, 1
    %p235 = por %p233, %p234
    %p237 = scmp.ne.s32.totalorder %s222, %s236
    %p238 = scmp.eq.s32.totalorder %s23, 0
    %p239 = por %p237, %p238
    %s241 = sadd.s32 %s240, 1
    %p244 = scmp.eq.s32.totalorder %s17, 1
    %p245 = scmp.ne.s32.totalorder %s240, %s242
    %p246 = scmp.eq.s32.totalorder %s17, 0
    %p247 = por %p245, %p246
    %p248 = scmp.ne.s32.totalorder %s240, %s242
    %p249 = scmp.eq.s32.totalorder %s22, 1
    %p250 = por %p248, %p249
    %p251 = scmp.ne.s32.totalorder %s242, %s243
    %p252 = scmp.eq.s32.totalorder %s22, 0
    %p253 = por %p251, %p252
    %p254 = scmp.ne.s32.totalorder %s242, %s243
    %p255 = scmp.eq.s32.totalorder %s23, 1
    %p256 = por %p254, %p255
    %p258 = scmp.ne.s32.totalorder %s243, %s257
    %p259 = scmp.eq.s32.totalorder %s23, 0
    %p260 = por %p258, %p259
    %s261 = ssub.s32 %s17, %s24
    %p262 = scmp.eq.s32.totalorder %s261, 0
    %s264 = sadd.s32 %s263, 1
    %s265 = scalar_select %p262, %s263, %s264
    %p268 = pneg %p262
    %p269 = scmp.eq.s32.totalorder %s17, 1
    %p270 = por %p268, %p269
    %p271 = scmp.ne.s32.totalorder %s263, %s266
    %p272 = scmp.eq.s32.totalorder %s17, 0
    %p273 = por %p271, %p272
    %p274 = scmp.ne.s32.totalorder %s263, %s266
    %p275 = scmp.eq.s32.totalorder %s22, 1
    %p276 = por %p274, %p275
    %p277 = scmp.ne.s32.totalorder %s266, %s267
    %p278 = scmp.eq.s32.totalorder %s22, 0
    %p279 = por %p277, %p278
    %p280 = scmp.ne.s32.totalorder %s266, %s267
    %p281 = scmp.eq.s32.totalorder %s23, 1
    %p282 = por %p280, %p281
    %p284 = scmp.ne.s32.totalorder %s267, %s283
    %p285 = scmp.eq.s32.totalorder %s23, 0
    %p286 = por %p284, %p285
    %p287 = scmp.le.s32.totalorder 1, %s17
    %p288 = scmp.lt.s32.totalorder %s17, 3
    %p289 = pnand %p287, %p288
    %p290 = pneg %p289
    // Predicated region
    $region9: #{_lambda_.1} parent=5 // pred_check
      _
    $region10: #{_lambda_.1} parent=5 // pred_check_branch
      %292 = sbr.rel (%p289) target = $region12
    $region11: #{_lambda_.1} parent=5 // pred_region
      %s293 = ssub.s32 %s17, 1
      // Predicated region
      $region13: #{_lambda_.1} parent=11 // pred_check
        %p294 = pneg %p64
      $region14: #{_lambda_.1} parent=11 // pred_check_branch
        %296 = sbr.rel (%p294) target = $region16
      $region15: #{_lambda_.1} parent=11 // pred_region
        _
      $region16: #{_lambda_.1} parent=11 // pred_fallthru
        _
      // Predicated region
      $region17: #{_lambda_.1} parent=11 // pred_check
        %p297 = pneg %p85
      $region18: #{_lambda_.1} parent=11 // pred_check_branch
        %299 = sbr.rel (%p297) target = $region20
      $region19: #{_lambda_.1} parent=11 // pred_region
        _
      $region20: #{_lambda_.1} parent=11 // pred_fallthru
        _
      // Predicated region
      $region21: #{_lambda_.1} parent=11 // pred_check
        %p300 = pneg %p106
      $region22: #{_lambda_.1} parent=11 // pred_check_branch
        %302 = sbr.rel (%p300) target = $region24
      $region23: #{_lambda_.1} parent=11 // pred_region
        _
      $region24: #{_lambda_.1} parent=11 // pred_fallthru
        _
      // Predicated region
      $region25: #{_lambda_.1} parent=11 // pred_check
        %p303 = pneg %p127
      $region26: #{_lambda_.1} parent=11 // pred_check_branch
        %305 = sbr.rel (%p303) target = $region28
      $region27: #{_lambda_.1} parent=11 // pred_region
        _
      $region28: #{_lambda_.1} parent=11 // pred_fallthru
        _
      // Predicated region
      $region29: #{_lambda_.1} parent=11 // pred_check
        %p306 = pneg %p148
      $region30: #{_lambda_.1} parent=11 // pred_check_branch
        %308 = sbr.rel (%p306) target = $region32
      $region31: #{_lambda_.1} parent=11 // pred_region
        _
      $region32: #{_lambda_.1} parent=11 // pred_fallthru
        _
      // Predicated region
      $region33: #{_lambda_.1} parent=11 // pred_check
        %p309 = pneg %p169
      $region34: #{_lambda_.1} parent=11 // pred_check_branch
        %311 = sbr.rel (%p309) target = $region36
      $region35: #{_lambda_.1} parent=11 // pred_region
        _
      $region36: #{_lambda_.1} parent=11 // pred_fallthru
        _
      // Predicated region
      $region37: #{_lambda_.1} parent=11 // pred_check
        %p312 = pneg %p190
      $region38: #{_lambda_.1} parent=11 // pred_check_branch
        %314 = sbr.rel (%p312) target = $region40
      $region39: #{_lambda_.1} parent=11 // pred_region
        _
      $region40: #{_lambda_.1} parent=11 // pred_fallthru
        _
      // Predicated region
      $region41: #{_lambda_.1} parent=11 // pred_check
        %p315 = pneg %p211
      $region42: #{_lambda_.1} parent=11 // pred_check_branch
        %317 = sbr.rel (%p315) target = $region44
      $region43: #{_lambda_.1} parent=11 // pred_region
        _
      $region44: #{_lambda_.1} parent=11 // pred_fallthru
        _
      // Predicated region
      $region45: #{_lambda_.1} parent=11 // pred_check
        %p318 = pneg %p232
      $region46: #{_lambda_.1} parent=11 // pred_check_branch
        %320 = sbr.rel (%p318) target = $region48
      $region47: #{_lambda_.1} parent=11 // pred_region
        _
      $region48: #{_lambda_.1} parent=11 // pred_fallthru
        _
      // Predicated region
      $region49: #{_lambda_.1} parent=11 // pred_check
        %p321 = pneg %p253
      $region50: #{_lambda_.1} parent=11 // pred_check_branch
        %323 = sbr.rel (%p321) target = $region52
      $region51: #{_lambda_.1} parent=11 // pred_region
        _
      $region52: #{_lambda_.1} parent=11 // pred_fallthru
        _
    $region12: #{_lambda_.1} parent=5 // pred_fallthru
      _
    %p324 = scmp.lt.s32.totalorder %s17, 2
    // Predicated region
    $region53: #{_lambda_.1} parent=5 // pred_check
      %p325 = pneg %p324
    $region54: #{_lambda_.1} parent=5 // pred_check_branch
      %327 = sbr.rel (%p325) target = $region56
    $region55: #{_lambda_.1} parent=5 // pred_region
      // Predicated region
      $region57: #{_lambda_.1} parent=55 // pred_check
        %p328 = pneg %p37
      $region58: #{_lambda_.1} parent=55 // pred_check_branch
        %330 = sbr.rel (%p328) target = $region60
      $region59: #{_lambda_.1} parent=55 // pred_region
        %s331 = smul.u32 4, %s17
        %p332 = scmp.lt.s32.totalorder %s331, 7
        %s333 = scalar_select %p332, %s331, 7
        %s334 = smul.addr %s333, 2
        %s335 = smul.addr %s334, 8
        %s336 = scalar_lea.vmem %s0, %s335
        %s337 = smul.u32 4, %s17
      $region60: #{_lambda_.1} parent=55 // pred_fallthru
        _
    $region56: #{_lambda_.1} parent=5 // pred_fallthru
      _
    %p338 = scmp.le.s32.totalorder 1, %s17
    %p339 = scmp.lt.s32.totalorder %s17, 3
    %p340 = pnand %p338, %p339
    %p341 = pneg %p340
    // Predicated region
    $region61: #{_lambda_.1} parent=5 // pred_check
      _
    $region62: #{_lambda_.1} parent=5 // pred_check_branch
      %343 = sbr.rel (%p340) target = $region64
    $region63: #{_lambda_.1} parent=5 // pred_region
      %s344 = ssub.s32 %s17, 1
      %s345 = smul.u32 4, %s22
      %p346 = scmp.lt.s32.totalorder %s345, 7
      %s347 = scalar_select %p346, %s345, 7
      %s348 = smul.addr %s347, 2
      %s349 = smul.addr %s348, 8
      %s350 = scalar_lea.vmem %s0, %s349
      %p351 = pneg %p43
      %p352 = pneg %p40
      %p353 = pneg %p64
      %p354 = pneg %p61
      %p355 = pneg %p85
      %p356 = pneg %p82
      %p357 = pneg %p106
      %p358 = pneg %p103
      %p359 = pneg %p127
      %p360 = pneg %p124
      %p361 = pneg %p148
      %p362 = pneg %p145
      %p363 = pneg %p169
      %p364 = pneg %p166
      %p365 = pneg %p190
      %p366 = pneg %p187
      %p367 = pneg %p211
      %p368 = pneg %p208
      %p369 = pneg %p232
      %p370 = pneg %p229
      %p371 = pneg %p253
      %p372 = pneg %p250
      %p373 = pneg %p279
      %p374 = pneg %p276
      %s375 = smul.u32 4, %s22
      %p376 = scmp.lt.s32.totalorder %s375, 7
      %s377 = scalar_select %p376, %s375, 7
      %s378 = smul.addr %s377, 4
      %s379 = scalar_lea.vmem %s11, %s378
      %s380 = smul.u32 4, %s22
      %p381 = scmp.lt.s32.totalorder %s380, 7
      %s382 = scalar_select %p381, %s380, 7
      %s383 = smul.addr %s382, 2
      %s384 = smul.addr %s383, 8
      %s385 = scalar_lea.vmem %s0, %s384
      %s386 = smul.u32 4, %s22
      %s387 = smul.u32 4, %s22
      %p388 = scmp.lt.s32.totalorder %s387, 7
      %s389 = scalar_select %p388, %s387, 7
      %s390 = smul.addr %s389, 4
      %s391 = scalar_lea.vmem %s11, %s390
      %s392 = smul.u32 4, %s22
      %v394 = vld [vmem:[%s385] sm:$0xff]
      %v395 = vld [vmem:[%s385 + $0x8] sm:$0x1]
      %v396 = vld [vmem:[%s385 + $0x10] sm:$0xff]
      %v397 = vld [vmem:[%s385 + $0x18] sm:$0x1]
      %v398 = vld [vmem:[%s385 + $0x20] sm:$0xff]
      %v399 = vld [vmem:[%s385 + $0x28] sm:$0x1]
      %v400 = vld [vmem:[%s385 + $0x30] sm:$0xff]
      %v401 = vld [vmem:[%s385 + $0x38] sm:$0x1]
      %v402 = vld [vmem:[%s1] sm:$0xf]
      %v403 = vld [vmem:[%s1 + $0x4] sm:$0xf]
      %v404 = vpack.c.bf16 %v396, %v394
      %v405 = vpack.c.bf16 %v400, %v398
      %vm414 = vcmask 1046528
      %v415 = vrot.slane %v394, 1
      %v416 = vrot.slane %v395, 1
      %v417 = vsel %vm414, %v415, %v416
      %v418 = vrot.slane %v396, 1
      %v419 = vrot.slane %v397, 1
      %v420 = vsel %vm414, %v418, %v419
      %v421 = vrot.slane %v398, 1
      %v422 = vrot.slane %v399, 1
      %v423 = vsel %vm414, %v421, %v422
      %v424 = vrot.slane %v400, 1
      %v425 = vrot.slane %v401, 1
      %v426 = vsel %vm414, %v424, %v425
      %v431 = vpack.c.bf16 %v420, %v417
      %v432 = vpack.c.bf16 %v426, %v423
      %vm433 = vcmask 64512
      %v435 = vsel %vm433, %v431, 0
      %v438 = vsel %vm433, %v432, 0
      %vm440 = vcmask 1043456
      %v442 = vsel %vm440, %v403, 0
      %444 = vmatprep.subr.bf16.mxu0 0
      %445 = vmatpush1.bf16.msra.mxu0 %v442
      %446 = vmatprep.subr.bf16.mxu0 0
      %447 = vmatpush1.bf16.msra.mxu0 0
      %448 = vmatprep.subr.bf16.mxu0 0
      %449 = vmatpush1.bf16.msra.mxu0 0
      %450 = vmatprep.subr.bf16.mxu0 0
      %451 = vmatpush1.bf16.msra.mxu0 0
      %452 = vmatprep.subr.bf16.mxu0 0
      %453 = vmatpush1.bf16.msra.mxu0 0
      %454 = vmatprep.subr.bf16.mxu0 0
      %455 = vmatpush1.bf16.msra.mxu0 0
      %456 = vmatprep.subr.bf16.mxu0 0
      %457 = vmatpush1.bf16.msra.mxu0 0
      %458 = vmatprep.subr.bf16.mxu0 0
      %459 = vmatpush1.bf16.msra.mxu0 0
      %460 = vmatprep.subr.bf16.mxu0 0
      %461 = vmatpush1.bf16.msra.mxu0 0
      %462 = vmatprep.subr.bf16.mxu0 0
      %463 = vmatpush1.bf16.msra.mxu0 0
      %464 = vmatprep.subr.bf16.mxu0 0
      %465 = vmatpush1.bf16.msra.mxu0 0
      %466 = vmatprep.subr.bf16.mxu0 0
      %467 = vmatpush1.bf16.msra.mxu0 0
      %468 = vmatprep.subr.bf16.mxu0 0
      %469 = vmatpush1.bf16.msra.mxu0 0
      %470 = vmatprep.subr.bf16.mxu0 0
      %471 = vmatpush1.bf16.msra.mxu0 0
      %472 = vmatprep.subr.bf16.mxu0 0
      %473 = vmatpush1.bf16.msra.mxu0 0
      %474 = vmatprep.subr.bf16.mxu0 0
      %475 = vmatpush1.bf16.msra.mxu0 0
      %476 = vmatprep.mubr.bf16.mxu0 0
      %477 = vmatmul.mubr.bf16.gmra.mrb[0].mxu0 %v435
      %v478 = vpop.f32.mrb[0].mxu0
      %v479 = vadd.f32 0.0, %v478
      %v480 = vpop.f32.mrb[0].mxu0
      %v481 = vpop.f32.mrb[0].mxu0
      %v482 = vadd.f32 0.0, %v481
      %v483 = vpop.f32.mrb[0].mxu0
      %484 = vmatprep.mubr.bf16.mxu0 0
      %485 = vmatmul.mubr.bf16.gmra.mrb[0].mxu0 %v438
      %v486 = vpop.f32.mrb[0].mxu0
      %v487 = vadd.f32 0.0, %v486
      %v488 = vpop.f32.mrb[0].mxu0
      %v489 = vpop.f32.mrb[0].mxu0
      %v490 = vadd.f32 0.0, %v489
      %v491 = vpop.f32.mrb[0].mxu0
      %492 = vdwg.mxu0
      %v494 = vsel %vm433, %v404, 0
      %v497 = vsel %vm433, %v405, 0
      %v500 = vsel %vm440, %v402, 0
      %502 = vmatprep.subr.bf16.mxu0 0
      %503 = vmatpush1.bf16.msra.mxu0 %v500
      %504 = vmatprep.subr.bf16.mxu0 0
      %505 = vmatpush1.bf16.msra.mxu0 0
      %506 = vmatprep.subr.bf16.mxu0 0
      %507 = vmatpush1.bf16.msra.mxu0 0
      %508 = vmatprep.subr.bf16.mxu0 0
      %509 = vmatpush1.bf16.msra.mxu0 0
      %510 = vmatprep.subr.bf16.mxu0 0
      %511 = vmatpush1.bf16.msra.mxu0 0
      %512 = vmatprep.subr.bf16.mxu0 0
      %513 = vmatpush1.bf16.msra.mxu0 0
      %514 = vmatprep.subr.bf16.mxu0 0
      %515 = vmatpush1.bf16.msra.mxu0 0
      %516 = vmatprep.subr.bf16.mxu0 0
      %517 = vmatpush1.bf16.msra.mxu0 0
      %518 = vmatprep.subr.bf16.mxu0 0
      %519 = vmatpush1.bf16.msra.mxu0 0
      %520 = vmatprep.subr.bf16.mxu0 0
      %521 = vmatpush1.bf16.msra.mxu0 0
      %522 = vmatprep.subr.bf16.mxu0 0
      %523 = vmatpush1.bf16.msra.mxu0 0
      %524 = vmatprep.subr.bf16.mxu0 0
      %525 = vmatpush1.bf16.msra.mxu0 0
      %526 = vmatprep.subr.bf16.mxu0 0
      %527 = vmatpush1.bf16.msra.mxu0 0
      %528 = vmatprep.subr.bf16.mxu0 0
      %529 = vmatpush1.bf16.msra.mxu0 0
      %530 = vmatprep.subr.bf16.mxu0 0
      %531 = vmatpush1.bf16.msra.mxu0 0
      %532 = vmatprep.subr.bf16.mxu0 0
      %533 = vmatpush1.bf16.msra.mxu0 0
      %534 = vmatprep.mubr.bf16.mxu0 0
      %535 = vmatmul.mubr.bf16.gmra.mrb[0].mxu0 %v494
      %v536 = vpop.f32.mrb[0].mxu0
      %v537 = vadd.f32 %v479, %v536
      %v538 = vpop.f32.mrb[0].mxu0
      %v539 = vpop.f32.mrb[0].mxu0
      %v540 = vadd.f32 %v482, %v539
      %v541 = vpop.f32.mrb[0].mxu0
      %542 = vmatprep.mubr.bf16.mxu0 0
      %543 = vmatmul.mubr.bf16.gmra.mrb[0].mxu0 %v497
      %v544 = vpop.f32.mrb[0].mxu0
      %v545 = vadd.f32 %v487, %v544
      %v546 = vpop.f32.mrb[0].mxu0
      %v547 = vpop.f32.mrb[0].mxu0
      %v548 = vadd.f32 %v490, %v547
      %v549 = vpop.f32.mrb[0].mxu0
      %550 = vdwg.mxu0
      %v551 = vld [vmem:[%s2] sm:$0xff]
      %v552 = vadd.f32 %v537, %v551
      %v553 = vadd.f32 %v540, %v551
      %v554 = vadd.f32 %v545, %v551
      %v555 = vadd.f32 %v548, %v551
      %v556 = vld [vmem:[%s3] sm:$0xff]
      %v557 = vld [vmem:[%s3 + $0x8] sm:$0xff]
      %v558 = vld [vmem:[%s3 + $0x10] sm:$0xff]
      %v559 = vld [vmem:[%s3 + $0x18] sm:$0xff]
      %v560 = vld [vmem:[%s3 + $0x20] sm:$0xff]
      %v561 = vld [vmem:[%s3 + $0x28] sm:$0xff]
      %v562 = vld [vmem:[%s3 + $0x30] sm:$0xff]
      %v563 = vld [vmem:[%s3 + $0x38] sm:$0xff]
      %v564 = vld [vmem:[%s5] sm:$0xf]
      %v565 = vld [vmem:[%s5 + $0x4] sm:$0xf]
      %v566 = vld [vmem:[%s5 + $0x8] sm:$0xf]
      %v567 = vld [vmem:[%s5 + $0xc] sm:$0xf]
      %v568 = vld [vmem:[%s5 + $0x10] sm:$0xf]
      %v569 = vld [vmem:[%s5 + $0x14] sm:$0xf]
      %v570 = vld [vmem:[%s5 + $0x18] sm:$0xf]
      %v571 = vld [vmem:[%s5 + $0x1c] sm:$0xf]
      %v572 = vld [vmem:[%s9] sm:$0x3f]
      %v573 = vpack.c.bf16 %v553, %v552
      %v574 = vpack.c.bf16 %v555, %v554
      %v575 = vld [vmem:[%s4] sm:$0x3]
      %v577 = vlaneseq
      %v578 = vshrl.u32 %v577, 7
      %v579 = vsub.s32 0, %v578
      %v580 = vrot.slane %v575, %v579
      %v581 = vlaneseq
      %v582 = vshrl.u32 %v581, 7
      %v583 = vsub.s32 1, %v582
      %v584 = vrot.slane %v575, %v583
      %v595 = vunpack.c.l.b16 %v556
      %v596 = vunpack.c.h.b16 %v556
      %v597 = vunpack.c.l.b16 %v557
      %v598 = vunpack.c.h.b16 %v557
      %v599 = vunpack.c.l.b16 %v558
      %v600 = vunpack.c.h.b16 %v558
      %v601 = vunpack.c.l.b16 %v559
      %v602 = vunpack.c.h.b16 %v559
      %v603 = vunpack.c.l.b16 %v560
      %v604 = vunpack.c.h.b16 %v560
      %v605 = vunpack.c.l.b16 %v561
      %v606 = vunpack.c.h.b16 %v561
      %v607 = vunpack.c.l.b16 %v562
      %v608 = vunpack.c.h.b16 %v562
      %v609 = vunpack.c.l.b16 %v563
      %v610 = vunpack.c.h.b16 %v563
      %v611 = vpack.c.b16 %v597, %v595
      %v612 = vpack.c.b16 %v598, %v596
      %v613 = vpack.c.b16 %v601, %v599
      %v614 = vpack.c.b16 %v602, %v600
      %v615 = vpack.c.b16 %v605, %v603
      %v616 = vpack.c.b16 %v606, %v604
      %v617 = vpack.c.b16 %v609, %v607
      %v618 = vpack.c.b16 %v610, %v608
      %vm627 = vcmask 523264
      %v629 = vsel %vm627, %v573, 0
      %v632 = vsel %vm627, %v574, 0
      %634 = vmatprep.subr.bf16.mxu0 %v612
      %635 = vmatpush1.bf16.msra.mxu0 %v611
      %636 = vmatprep.subr.bf16.mxu0 %v614
      %637 = vmatpush1.bf16.msra.mxu0 %v613
      %638 = vmatprep.subr.bf16.mxu0 %v616
      %639 = vmatpush1.bf16.msra.mxu0 %v615
      %640 = vmatprep.subr.bf16.mxu0 %v618
      %641 = vmatpush1.bf16.msra.mxu0 %v617
      %642 = vmatprep.subr.bf16.mxu0 0
      %643 = vmatpush1.bf16.msra.mxu0 0
      %644 = vmatprep.subr.bf16.mxu0 0
      %645 = vmatpush1.bf16.msra.mxu0 0
      %646 = vmatprep.subr.bf16.mxu0 0
      %647 = vmatpush1.bf16.msra.mxu0 0
      %648 = vmatprep.subr.bf16.mxu0 0
      %649 = vmatpush1.bf16.msra.mxu0 0
      %650 = vmatprep.subr.bf16.mxu0 0
      %651 = vmatpush1.bf16.msra.mxu0 0
      %652 = vmatprep.subr.bf16.mxu0 0
      %653 = vmatpush1.bf16.msra.mxu0 0
      %654 = vmatprep.subr.bf16.mxu0 0
      %655 = vmatpush1.bf16.msra.mxu0 0
      %656 = vmatprep.subr.bf16.mxu0 0
      %657 = vmatpush1.bf16.msra.mxu0 0
      %658 = vmatprep.subr.bf16.mxu0 0
      %659 = vmatpush1.bf16.msra.mxu0 0
      %660 = vmatprep.subr.bf16.mxu0 0
      %661 = vmatpush1.bf16.msra.mxu0 0
      %662 = vmatprep.subr.bf16.mxu0 0
      %663 = vmatpush1.bf16.msra.mxu0 0
      %664 = vmatprep.subr.bf16.mxu0 0
      %665 = vmatpush1.bf16.msra.mxu0 0
      %666 = vmatprep.mubr.bf16.mxu0 0
      %667 = vmatmul.mubr.bf16.gmra.mrb[0].mxu0 %v629
      %v668 = vpop.f32.mrb[0].mxu0
      %v669 = vadd.f32 %v580, %v668
      %v670 = vpop.f32.mrb[0].mxu0
      %v671 = vadd.f32 %v584, %v670
      %v672 = vpop.f32.mrb[0].mxu0
      %v673 = vadd.f32 %v580, %v672
      %v674 = vpop.f32.mrb[0].mxu0
      %v675 = vadd.f32 %v584, %v674
      %676 = vmatprep.mubr.bf16.mxu0 0
      %677 = vmatmul.mubr.bf16.gmra.mrb[0].mxu0 %v632
      %v678 = vpop.f32.mrb[0].mxu0
      %v679 = vadd.f32 %v580, %v678
      %v680 = vpop.f32.mrb[0].mxu0
      %v681 = vadd.f32 %v584, %v680
      %v682 = vpop.f32.mrb[0].mxu0
      %v683 = vadd.f32 %v580, %v682
      %v684 = vpop.f32.mrb[0].mxu0
      %v685 = vadd.f32 %v584, %v684
      %686 = vdwg.mxu0
      %v687 = vpack.c.bf16 %v669, %v669
      %v688 = vpack.c.bf16 %v673, %v673
      %v689 = vpack.c.bf16 %v679, %v679
      %v690 = vpack.c.bf16 %v683, %v683
      %692 = vrot.lane.b32.xlu0 %v687, 64
      %v693 = vpop.permute.xlu0 %692
      %vm694 = vcmask 130048
      %v696 = vsel %vm694, %v687, 0
      %v699 = vsel %vm694, %v693, 0
      %701 = vmatprep.subr.bf16.mxu0 0
      %702 = vmatpush1.bf16.xpose.msra.mxu0 %v699
      %703 = vmatprep.subr.bf16.mxu0 0
      %704 = vmatpush1.bf16.xpose.msra.mxu0 0
      %705 = vmatprep.subr.bf16.mxu0 0
      %706 = vmatpush1.bf16.xpose.msra.mxu0 0
      %707 = vmatprep.subr.bf16.mxu0 0
      %708 = vmatpush1.bf16.xpose.msra.mxu0 0
      %709 = vmatprep.subr.bf16.mxu0 0
      %710 = vmatpush1.bf16.xpose.msra.mxu0 0
      %711 = vmatprep.subr.bf16.mxu0 0
      %712 = vmatpush1.bf16.xpose.msra.mxu0 0
      %713 = vmatprep.subr.bf16.mxu0 0
      %714 = vmatpush1.bf16.xpose.msra.mxu0 0
      %715 = vmatprep.subr.bf16.mxu0 0
      %716 = vmatpush1.bf16.xpose.msra.mxu0 0
      %717 = vmatprep.subr.bf16.mxu0 0
      %718 = vmatpush1.bf16.xpose.msra.mxu0 0
      %719 = vmatprep.subr.bf16.mxu0 0
      %720 = vmatpush1.bf16.xpose.msra.mxu0 0
      %721 = vmatprep.subr.bf16.mxu0 0
      %722 = vmatpush1.bf16.xpose.msra.mxu0 0
      %723 = vmatprep.subr.bf16.mxu0 0
      %724 = vmatpush1.bf16.xpose.msra.mxu0 0
      %725 = vmatprep.subr.bf16.mxu0 0
      %726 = vmatpush1.bf16.xpose.msra.mxu0 0
      %727 = vmatprep.subr.bf16.mxu0 0
      %728 = vmatpush1.bf16.xpose.msra.mxu0 0
      %729 = vmatprep.subr.bf16.mxu0 0
      %730 = vmatpush1.bf16.xpose.msra.mxu0 0
      %731 = vmatprep.subr.bf16.mxu0 0
      %732 = vmatpush1.bf16.xpose.msra.mxu0 0
      %733 = vmatprep.mubr.bf16.mxu0 0
      %734 = vmatmul.mubr.bf16.gmra.mrb[0].mxu0 %v696
      %v735 = vpop.f32.mrb[0].mxu0
      %v736 = vadd.f32 0.0, %v735
      %v737 = vpop.f32.mrb[0].mxu0
      %v738 = vpop.f32.mrb[0].mxu0
      %v739 = vpop.f32.mrb[0].mxu0
      %740 = vdwg.mxu0
      %742 = vrot.lane.b32.xlu0 %v688, 64
      %v743 = vpop.permute.xlu0 %742
      %v745 = vsel %vm694, %v688, 0
      %v748 = vsel %vm694, %v743, 0
      %750 = vmatprep.subr.bf16.mxu0 0
      %751 = vmatpush1.bf16.xpose.msra.mxu0 %v748
      %752 = vmatprep.subr.bf16.mxu0 0
      %753 = vmatpush1.bf16.xpose.msra.mxu0 0
      %754 = vmatprep.subr.bf16.mxu0 0
      %755 = vmatpush1.bf16.xpose.msra.mxu0 0
      %756 = vmatprep.subr.bf16.mxu0 0
      %757 = vmatpush1.bf16.xpose.msra.mxu0 0
      %758 = vmatprep.subr.bf16.mxu0 0
      %759 = vmatpush1.bf16.xpose.msra.mxu0 0
      %760 = vmatprep.subr.bf16.mxu0 0
      %761 = vmatpush1.bf16.xpose.msra.mxu0 0
      %762 = vmatprep.subr.bf16.mxu0 0
      %763 = vmatpush1.bf16.xpose.msra.mxu0 0
      %764 = vmatprep.subr.bf16.mxu0 0
      %765 = vmatpush1.bf16.xpose.msra.mxu0 0
      %766 = vmatprep.subr.bf16.mxu0 0
      %767 = vmatpush1.bf16.xpose.msra.mxu0 0
      %768 = vmatprep.subr.bf16.mxu0 0
      %769 = vmatpush1.bf16.xpose.msra.mxu0 0
      %770 = vmatprep.subr.bf16.mxu0 0
      %771 = vmatpush1.bf16.xpose.msra.mxu0 0
      %772 = vmatprep.subr.bf16.mxu0 0
      %773 = vmatpush1.bf16.xpose.msra.mxu0 0
      %774 = vmatprep.subr.bf16.mxu0 0
      %775 = vmatpush1.bf16.xpose.msra.mxu0 0
      %776 = vmatprep.subr.bf16.mxu0 0
      %777 = vmatpush1.bf16.xpose.msra.mxu0 0
      %778 = vmatprep.subr.bf16.mxu0 0
      %779 = vmatpush1.bf16.xpose.msra.mxu0 0
      %780 = vmatprep.subr.bf16.mxu0 0
      %781 = vmatpush1.bf16.xpose.msra.mxu0 0
      %782 = vmatprep.mubr.bf16.mxu0 0
      %783 = vmatmul.mubr.bf16.gmra.mrb[0].mxu0 %v745
      %v784 = vpop.f32.mrb[0].mxu0
      %v785 = vadd.f32 0.0, %v784
      %v786 = vpop.f32.mrb[0].mxu0
      %v787 = vpop.f32.mrb[0].mxu0
      %v788 = vpop.f32.mrb[0].mxu0
      %789 = vdwg.mxu0
      %791 = vrot.lane.b32.xlu0 %v689, 64
      %v792 = vpop.permute.xlu0 %791
      %v794 = vsel %vm694, %v689, 0
      %v797 = vsel %vm694, %v792, 0
      %799 = vmatprep.subr.bf16.mxu0 0
      %800 = vmatpush1.bf16.xpose.msra.mxu0 %v797
      %801 = vmatprep.subr.bf16.mxu0 0
      %802 = vmatpush1.bf16.xpose.msra.mxu0 0
      %803 = vmatprep.subr.bf16.mxu0 0
      %804 = vmatpush1.bf16.xpose.msra.mxu0 0
      %805 = vmatprep.subr.bf16.mxu0 0
      %806 = vmatpush1.bf16.xpose.msra.mxu0 0
      %807 = vmatprep.subr.bf16.mxu0 0
      %808 = vmatpush1.bf16.xpose.msra.mxu0 0
      %809 = vmatprep.subr.bf16.mxu0 0
      %810 = vmatpush1.bf16.xpose.msra.mxu0 0
      %811 = vmatprep.subr.bf16.mxu0 0
      %812 = vmatpush1.bf16.xpose.msra.mxu0 0
      %813 = vmatprep.subr.bf16.mxu0 0
      %814 = vmatpush1.bf16.xpose.msra.mxu0 0
      %815 = vmatprep.subr.bf16.mxu0 0
      %816 = vmatpush1.bf16.xpose.msra.mxu0 0
      %817 = vmatprep.subr.bf16.mxu0 0
      %818 = vmatpush1.bf16.xpose.msra.mxu0 0
      %819 = vmatprep.subr.bf16.mxu0 0
      %820 = vmatpush1.bf16.xpose.msra.mxu0 0
      %821 = vmatprep.subr.bf16.mxu0 0
      %822 = vmatpush1.bf16.xpose.msra.mxu0 0
      %823 = vmatprep.subr.bf16.mxu0 0
      %824 = vmatpush1.bf16.xpose.msra.mxu0 0
      %825 = vmatprep.subr.bf16.mxu0 0
      %826 = vmatpush1.bf16.xpose.msra.mxu0 0
      %827 = vmatprep.subr.bf16.mxu0 0
      %828 = vmatpush1.bf16.xpose.msra.mxu0 0
      %829 = vmatprep.subr.bf16.mxu0 0
      %830 = vmatpush1.bf16.xpose.msra.mxu0 0
      %831 = vmatprep.mubr.bf16.mxu0 0
      %832 = vmatmul.mubr.bf16.gmra.mrb[0].mxu0 %v794
      %v833 = vpop.f32.mrb[0].mxu0
      %v834 = vadd.f32 0.0, %v833
      %v835 = vpop.f32.mrb[0].mxu0
      %v836 = vpop.f32.mrb[0].mxu0
      %v837 = vpop.f32.mrb[0].mxu0
      %838 = vdwg.mxu0
      %840 = vrot.lane.b32.xlu0 %v690, 64
      %v841 = vpop.permute.xlu0 %840
      %v843 = vsel %vm694, %v690, 0
      %v846 = vsel %vm694, %v841, 0
      %848 = vmatprep.subr.bf16.mxu0 0
      %849 = vmatpush1.bf16.xpose.msra.mxu0 %v846
      %850 = vmatprep.subr.bf16.mxu0 0
      %851 = vmatpush1.bf16.xpose.msra.mxu0 0
      %852 = vmatprep.subr.bf16.mxu0 0
      %853 = vmatpush1.bf16.xpose.msra.mxu0 0
      %854 = vmatprep.subr.bf16.mxu0 0
      %855 = vmatpush1.bf16.xpose.msra.mxu0 0
      %856 = vmatprep.subr.bf16.mxu0 0
      %857 = vmatpush1.bf16.xpose.msra.mxu0 0
      %858 = vmatprep.subr.bf16.mxu0 0
      %859 = vmatpush1.bf16.xpose.msra.mxu0 0
      %860 = vmatprep.subr.bf16.mxu0 0
      %861 = vmatpush1.bf16.xpose.msra.mxu0 0
      %862 = vmatprep.subr.bf16.mxu0 0
      %863 = vmatpush1.bf16.xpose.msra.mxu0 0
      %864 = vmatprep.subr.bf16.mxu0 0
      %865 = vmatpush1.bf16.xpose.msra.mxu0 0
      %866 = vmatprep.subr.bf16.mxu0 0
      %867 = vmatpush1.bf16.xpose.msra.mxu0 0
      %868 = vmatprep.subr.bf16.mxu0 0
      %869 = vmatpush1.bf16.xpose.msra.mxu0 0
      %870 = vmatprep.subr.bf16.mxu0 0
      %871 = vmatpush1.bf16.xpose.msra.mxu0 0
      %872 = vmatprep.subr.bf16.mxu0 0
      %873 = vmatpush1.bf16.xpose.msra.mxu0 0
      %874 = vmatprep.subr.bf16.mxu0 0
      %875 = vmatpush1.bf16.xpose.msra.mxu0 0
      %876 = vmatprep.subr.bf16.mxu0 0
      %877 = vmatpush1.bf16.xpose.msra.mxu0 0
      %878 = vmatprep.subr.bf16.mxu0 0
      %879 = vmatpush1.bf16.xpose.msra.mxu0 0
      %880 = vmatprep.mubr.bf16.mxu0 0
      %881 = vmatmul.mubr.bf16.gmra.mrb[0].mxu0 %v843
      %v882 = vpop.f32.mrb[0].mxu0
      %v883 = vadd.f32 0.0, %v882
      %v884 = vpop.f32.mrb[0].mxu0
      %v885 = vpop.f32.mrb[0].mxu0
      %v886 = vpop.f32.mrb[0].mxu0
      %887 = vdwg.mxu0
      %v888 = vmul.f32 %v736, 0.25
      %v889 = vmul.f32 %v785, 0.25
      %v890 = vmul.f32 %v834, 0.25
      %v891 = vmul.f32 %v883, 0.25
      %v892 = vsel %vm433, %v888, -inf
      %893 = vmax.xlane.f32.xlu0 %v892
      %v894 = vpop.xlane.xlu0 %893
      %v895 = vsel %vm433, %v889, -inf
      %896 = vmax.xlane.f32.xlu0 %v895
      %v897 = vpop.xlane.xlu0 %896
      %v898 = vsel %vm433, %v890, -inf
      %899 = vmax.xlane.f32.xlu0 %v898
      %v900 = vpop.xlane.xlu0 %899
      %v901 = vsel %vm433, %v891, -inf
      %902 = vmax.xlane.f32.xlu0 %v901
      %v903 = vpop.xlane.xlu0 %902
      %v904 = vsub.f32 %v888, %v894
      %v905 = vsub.f32 %v889, %v897
      %v906 = vsub.f32 %v890, %v900
      %v907 = vsub.f32 %v891, %v903
      %v908 = vmul.f32 %v904, 1.442695
      %v909 = vpow.pop %v908
      %v910 = vmul.f32 %v905, 1.442695
      %v911 = vpow.pop %v910
      %v912 = vmul.f32 %v906, 1.442695
      %v913 = vpow.pop %v912
      %v914 = vmul.f32 %v907, 1.442695
      %v915 = vpow.pop %v914
      %v916 = vsel %vm433, %v909, 0.0
      %917 = vadd.xlane.f32.xlu0 %v916
      %v918 = vpop.xlane.xlu0 %917
      %v919 = vsel %vm433, %v911, 0.0
      %920 = vadd.xlane.f32.xlu0 %v919
      %v921 = vpop.xlane.xlu0 %920
      %v922 = vsel %vm433, %v913, 0.0
      %923 = vadd.xlane.f32.xlu0 %v922
      %v924 = vpop.xlane.xlu0 %923
      %v925 = vsel %vm433, %v915, 0.0
      %926 = vadd.xlane.f32.xlu0 %v925
      %v927 = vpop.xlane.xlu0 %926
      %v928 = vrcp.pop %v918
      %v929 = vrcp.pop %v921
      %v930 = vrcp.pop %v924
      %v931 = vrcp.pop %v927
      %v932 = vmul.f32 %v909, %v928
      %v933 = vmul.f32 %v911, %v929
      %v934 = vmul.f32 %v913, %v930
      %v935 = vmul.f32 %v915, %v931
      %v936 = vpack.c.bf16 %v932, %v932
      %v937 = vpack.c.bf16 %v933, %v933
      %v938 = vpack.c.bf16 %v934, %v934
      %v939 = vpack.c.bf16 %v935, %v935
      %v940 = vpack.c.bf16 %v671, %v671
      %v941 = vpack.c.bf16 %v675, %v675
      %v942 = vpack.c.bf16 %v681, %v681
      %v943 = vpack.c.bf16 %v685, %v685
      %v945 = vsel %vm433, %v936, 0
      %v948 = vsel %vm440, %v940, 0
      %950 = vmatprep.subr.bf16.mxu0 0
      %951 = vmatpush1.bf16.msra.mxu0 %v948
      %952 = vmatprep.subr.bf16.mxu0 0
      %953 = vmatpush1.bf16.msra.mxu0 0
      %954 = vmatprep.subr.bf16.mxu0 0
      %955 = vmatpush1.bf16.msra.mxu0 0
      %956 = vmatprep.subr.bf16.mxu0 0
      %957 = vmatpush1.bf16.msra.mxu0 0
      %958 = vmatprep.subr.bf16.mxu0 0
      %959 = vmatpush1.bf16.msra.mxu0 0
      %960 = vmatprep.subr.bf16.mxu0 0
      %961 = vmatpush1.bf16.msra.mxu0 0
      %962 = vmatprep.subr.bf16.mxu0 0
      %963 = vmatpush1.bf16.msra.mxu0 0
      %964 = vmatprep.subr.bf16.mxu0 0
      %965 = vmatpush1.bf16.msra.mxu0 0
      %966 = vmatprep.subr.bf16.mxu0 0
      %967 = vmatpush1.bf16.msra.mxu0 0
      %968 = vmatprep.subr.bf16.mxu0 0
      %969 = vmatpush1.bf16.msra.mxu0 0
      %970 = vmatprep.subr.bf16.mxu0 0
      %971 = vmatpush1.bf16.msra.mxu0 0
      %972 = vmatprep.subr.bf16.mxu0 0
      %973 = vmatpush1.bf16.msra.mxu0 0
      %974 = vmatprep.subr.bf16.mxu0 0
      %975 = vmatpush1.bf16.msra.mxu0 0
      %976 = vmatprep.subr.bf16.mxu0 0
      %977 = vmatpush1.bf16.msra.mxu0 0
      %978 = vmatprep.subr.bf16.mxu0 0
      %979 = vmatpush1.bf16.msra.mxu0 0
      %980 = vmatprep.subr.bf16.mxu0 0
      %981 = vmatpush1.bf16.msra.mxu0 0
      %982 = vmatprep.mubr.bf16.mxu0 0
      %983 = vmatmul.mubr.bf16.gmra.mrb[0].mxu0 %v945
      %v984 = vpop.f32.mrb[0].mxu0
      %v985 = vadd.f32 0.0, %v984
      %v986 = vpop.f32.mrb[0].mxu0
      %v987 = vpop.f32.mrb[0].mxu0
      %v988 = vpop.f32.mrb[0].mxu0
      %989 = vdwg.mxu0
      %v991 = vsel %vm433, %v937, 0
      %v994 = vsel %vm440, %v941, 0
      %996 = vmatprep.subr.bf16.mxu0 0
      %997 = vmatpush1.bf16.msra.mxu0 %v994
      %998 = vmatprep.subr.bf16.mxu0 0
      %999 = vmatpush1.bf16.msra.mxu0 0
      %1000 = vmatprep.subr.bf16.mxu0 0
      %1001 = vmatpush1.bf16.msra.mxu0 0
      %1002 = vmatprep.subr.bf16.mxu0 0
      %1003 = vmatpush1.bf16.msra.mxu0 0
      %1004 = vmatprep.subr.bf16.mxu0 0
      %1005 = vmatpush1.bf16.msra.mxu0 0
      %1006 = vmatprep.subr.bf16.mxu0 0
      %1007 = vmatpush1.bf16.msra.mxu0 0
      %1008 = vmatprep.subr.bf16.mxu0 0
      %1009 = vmatpush1.bf16.msra.mxu0 0
      %1010 = vmatprep.subr.bf16.mxu0 0
      %1011 = vmatpush1.bf16.msra.mxu0 0
      %1012 = vmatprep.subr.bf16.mxu0 0
      %1013 = vmatpush1.bf16.msra.mxu0 0
      %1014 = vmatprep.subr.bf16.mxu0 0
      %1015 = vmatpush1.bf16.msra.mxu0 0
      %1016 = vmatprep.subr.bf16.mxu0 0
      %1017 = vmatpush1.bf16.msra.mxu0 0
      %1018 = vmatprep.subr.bf16.mxu0 0
      %1019 = vmatpush1.bf16.msra.mxu0 0
      %1020 = vmatprep.subr.bf16.mxu0 0
      %1021 = vmatpush1.bf16.msra.mxu0 0
      %1022 = vmatprep.subr.bf16.mxu0 0
      %1023 = vmatpush1.bf16.msra.mxu0 0
      %1024 = vmatprep.subr.bf16.mxu0 0
      %1025 = vmatpush1.bf16.msra.mxu0 0
      %1026 = vmatprep.subr.bf16.mxu0 0
      %1027 = vmatpush1.bf16.msra.mxu0 0
      %1028 = vmatprep.mubr.bf16.mxu0 0
      %1029 = vmatmul.mubr.bf16.gmra.mrb[0].mxu0 %v991
      %v1030 = vpop.f32.mrb[0].mxu0
      %v1031 = vadd.f32 0.0, %v1030
      %v1032 = vpop.f32.mrb[0].mxu0
      %v1033 = vpop.f32.mrb[0].mxu0
      %v1034 = vpop.f32.mrb[0].mxu0
      %1035 = vdwg.mxu0
      %v1037 = vsel %vm433, %v938, 0
      %v1040 = vsel %vm440, %v942, 0
      %1042 = vmatprep.subr.bf16.mxu0 0
      %1043 = vmatpush1.bf16.msra.mxu0 %v1040
      %1044 = vmatprep.subr.bf16.mxu0 0
      %1045 = vmatpush1.bf16.msra.mxu0 0
      %1046 = vmatprep.subr.bf16.mxu0 0
      %1047 = vmatpush1.bf16.msra.mxu0 0
      %1048 = vmatprep.subr.bf16.mxu0 0
      %1049 = vmatpush1.bf16.msra.mxu0 0
      %1050 = vmatprep.subr.bf16.mxu0 0
      %1051 = vmatpush1.bf16.msra.mxu0 0
      %1052 = vmatprep.subr.bf16.mxu0 0
      %1053 = vmatpush1.bf16.msra.mxu0 0
      %1054 = vmatprep.subr.bf16.mxu0 0
      %1055 = vmatpush1.bf16.msra.mxu0 0
      %1056 = vmatprep.subr.bf16.mxu0 0
      %1057 = vmatpush1.bf16.msra.mxu0 0
      %1058 = vmatprep.subr.bf16.mxu0 0
      %1059 = vmatpush1.bf16.msra.mxu0 0
      %1060 = vmatprep.subr.bf16.mxu0 0
      %1061 = vmatpush1.bf16.msra.mxu0 0
      %1062 = vmatprep.subr.bf16.mxu0 0
      %1063 = vmatpush1.bf16.msra.mxu0 0
      %1064 = vmatprep.subr.bf16.mxu0 0
      %1065 = vmatpush1.bf16.msra.mxu0 0
      %1066 = vmatprep.subr.bf16.mxu0 0
      %1067 = vmatpush1.bf16.msra.mxu0 0
      %1068 = vmatprep.subr.bf16.mxu0 0
      %1069 = vmatpush1.bf16.msra.mxu0 0
      %1070 = vmatprep.subr.bf16.mxu0 0
      %1071 = vmatpush1.bf16.msra.mxu0 0
      %1072 = vmatprep.subr.bf16.mxu0 0
      %1073 = vmatpush1.bf16.msra.mxu0 0
      %1074 = vmatprep.mubr.bf16.mxu0 0
      %1075 = vmatmul.mubr.bf16.gmra.mrb[0].mxu0 %v1037
      %v1076 = vpop.f32.mrb[0].mxu0
      %v1077 = vadd.f32 0.0, %v1076
      %v1078 = vpop.f32.mrb[0].mxu0
      %v1079 = vpop.f32.mrb[0].mxu0
      %v1080 = vpop.f32.mrb[0].mxu0
      %1081 = vdwg.mxu0
      %v1083 = vsel %vm433, %v939, 0
      %v1086 = vsel %vm440, %v943, 0
      %1088 = vmatprep.subr.bf16.mxu0 0
      %1089 = vmatpush1.bf16.msra.mxu0 %v1086
      %1090 = vmatprep.subr.bf16.mxu0 0
      %1091 = vmatpush1.bf16.msra.mxu0 0
      %1092 = vmatprep.subr.bf16.mxu0 0
      %1093 = vmatpush1.bf16.msra.mxu0 0
      %1094 = vmatprep.subr.bf16.mxu0 0
      %1095 = vmatpush1.bf16.msra.mxu0 0
      %1096 = vmatprep.subr.bf16.mxu0 0
      %1097 = vmatpush1.bf16.msra.mxu0 0
      %1098 = vmatprep.subr.bf16.mxu0 0
      %1099 = vmatpush1.bf16.msra.mxu0 0
      %1100 = vmatprep.subr.bf16.mxu0 0
      %1101 = vmatpush1.bf16.msra.mxu0 0
      %1102 = vmatprep.subr.bf16.mxu0 0
      %1103 = vmatpush1.bf16.msra.mxu0 0
      %1104 = vmatprep.subr.bf16.mxu0 0
      %1105 = vmatpush1.bf16.msra.mxu0 0
      %1106 = vmatprep.subr.bf16.mxu0 0
      %1107 = vmatpush1.bf16.msra.mxu0 0
      %1108 = vmatprep.subr.bf16.mxu0 0
      %1109 = vmatpush1.bf16.msra.mxu0 0
      %1110 = vmatprep.subr.bf16.mxu0 0
      %1111 = vmatpush1.bf16.msra.mxu0 0
      %1112 = vmatprep.subr.bf16.mxu0 0
      %1113 = vmatpush1.bf16.msra.mxu0 0
      %1114 = vmatprep.subr.bf16.mxu0 0
      %1115 = vmatpush1.bf16.msra.mxu0 0
      %1116 = vmatprep.subr.bf16.mxu0 0
      %1117 = vmatpush1.bf16.msra.mxu0 0
      %1118 = vmatprep.subr.bf16.mxu0 0
      %1119 = vmatpush1.bf16.msra.mxu0 0
      %1120 = vmatprep.mubr.bf16.mxu0 0
      %1121 = vmatmul.mubr.bf16.gmra.mrb[0].mxu0 %v1083
      %v1122 = vpop.f32.mrb[0].mxu0
      %v1123 = vadd.f32 0.0, %v1122
      %v1124 = vpop.f32.mrb[0].mxu0
      %v1125 = vpop.f32.mrb[0].mxu0
      %v1126 = vpop.f32.mrb[0].mxu0
      %1127 = vdwg.mxu0
      %v1128 = vpack.c.bf16 %v1031, %v985
      %v1129 = vpack.c.bf16 %v1123, %v1077
      %1130 = vrot.lane.b32.xlu0 %v687, 112
      %v1131 = vpop.permute.xlu0 %1130
      %1132 = vrot.lane.b32.xlu0 %v687, 48
      %v1133 = vpop.permute.xlu0 %1132
      %v1135 = vsel %vm694, %v1131, 0
      %v1138 = vsel %vm694, %v1133, 0
      %1140 = vmatprep.subr.bf16.mxu0 0
      %1141 = vmatpush1.bf16.xpose.msra.mxu0 %v1138
      %1142 = vmatprep.subr.bf16.mxu0 0
      %1143 = vmatpush1.bf16.xpose.msra.mxu0 0
      %1144 = vmatprep.subr.bf16.mxu0 0
      %1145 = vmatpush1.bf16.xpose.msra.mxu0 0
      %1146 = vmatprep.subr.bf16.mxu0 0
      %1147 = vmatpush1.bf16.xpose.msra.mxu0 0
      %1148 = vmatprep.subr.bf16.mxu0 0
      %1149 = vmatpush1.bf16.xpose.msra.mxu0 0
      %1150 = vmatprep.subr.bf16.mxu0 0
      %1151 = vmatpush1.bf16.xpose.msra.mxu0 0
      %1152 = vmatprep.subr.bf16.mxu0 0
      %1153 = vmatpush1.bf16.xpose.msra.mxu0 0
      %1154 = vmatprep.subr.bf16.mxu0 0
      %1155 = vmatpush1.bf16.xpose.msra.mxu0 0
      %1156 = vmatprep.subr.bf16.mxu0 0
      %1157 = vmatpush1.bf16.xpose.msra.mxu0 0
      %1158 = vmatprep.subr.bf16.mxu0 0
      %1159 = vmatpush1.bf16.xpose.msra.mxu0 0
      %1160 = vmatprep.subr.bf16.mxu0 0
      %1161 = vmatpush1.bf16.xpose.msra.mxu0 0
      %1162 = vmatprep.subr.bf16.mxu0 0
      %1163 = vmatpush1.bf16.xpose.msra.mxu0 0
      %1164 = vmatprep.subr.bf16.mxu0 0
      %1165 = vmatpush1.bf16.xpose.msra.mxu0 0
      %1166 = vmatprep.subr.bf16.mxu0 0
      %1167 = vmatpush1.bf16.xpose.msra.mxu0 0
      %1168 = vmatprep.subr.bf16.mxu0 0
      %1169 = vmatpush1.bf16.xpose.msra.mxu0 0
      %1170 = vmatprep.subr.bf16.mxu0 0
      %1171 = vmatpush1.bf16.xpose.msra.mxu0 0
      %1172 = vmatprep.mubr.bf16.mxu0 0
      %1173 = vmatmul.mubr.bf16.gmra.mrb[0].mxu0 %v1135
      %v1174 = vpop.f32.mrb[0].mxu0
      %v1175 = vadd.f32 0.0, %v1174
      %v1176 = vpop.f32.mrb[0].mxu0
      %v1177 = vpop.f32.mrb[0].mxu0
      %v1178 = vpop.f32.mrb[0].mxu0
      %1179 = vdwg.mxu0
      %1180 = vrot.lane.b32.xlu0 %v688, 112
      %v1181 = vpop.permute.xlu0 %1180
      %1182 = vrot.lane.b32.xlu0 %v688, 48
      %v1183 = vpop.permute.xlu0 %1182
      %v1185 = vsel %vm694, %v1181, 0
      %v1188 = vsel %vm694, %v1183, 0
      %1190 = vmatprep.subr.bf16.mxu0 0
      %1191 = vmatpush1.bf16.xpose.msra.mxu0 %v1188
      %1192 = vmatprep.subr.bf16.mxu0 0
      %1193 = vmatpush1.bf16.xpose.msra.mxu0 0
      %1194 = vmatprep.subr.bf16.mxu0 0
      %1195 = vmatpush1.bf16.xpose.msra.mxu0 0
      %1196 = vmatprep.subr.bf16.mxu0 0
      %1197 = vmatpush1.bf16.xpose.msra.mxu0 0
      %1198 = vmatprep.subr.bf16.mxu0 0
      %1199 = vmatpush1.bf16.xpose.msra.mxu0 0
      %1200 = vmatprep.subr.bf16.mxu0 0
      %1201 = vmatpush1.bf16.xpose.msra.mxu0 0
      %1202 = vmatprep.subr.bf16.mxu0 0
      %1203 = vmatpush1.bf16.xpose.msra.mxu0 0
      %1204 = vmatprep.subr.bf16.mxu0 0
      %1205 = vmatpush1.bf16.xpose.msra.mxu0 0
      %1206 = vmatprep.subr.bf16.mxu0 0
      %1207 = vmatpush1.bf16.xpose.msra.mxu0 0
      %1208 = vmatprep.subr.bf16.mxu0 0
      %1209 = vmatpush1.bf16.xpose.msra.mxu0 0
      %1210 = vmatprep.subr.bf16.mxu0 0
      %1211 = vmatpush1.bf16.xpose.msra.mxu0 0
      %1212 = vmatprep.subr.bf16.mxu0 0
      %1213 = vmatpush1.bf16.xpose.msra.mxu0 0
      %1214 = vmatprep.subr.bf16.mxu0 0
      %1215 = vmatpush1.bf16.xpose.msra.mxu0 0
      %1216 = vmatprep.subr.bf16.mxu0 0
      %1217 = vmatpush1.bf16.xpose.msra.mxu0 0
      %1218 = vmatprep.subr.bf16.mxu0 0
      %1219 = vmatpush1.bf16.xpose.msra.mxu0 0
      %1220 = vmatprep.subr.bf16.mxu0 0
      %1221 = vmatpush1.bf16.xpose.msra.mxu0 0
      %1222 = vmatprep.mubr.bf16.mxu0 0
      %1223 = vmatmul.mubr.bf16.gmra.mrb[0].mxu0 %v1185
      %v1224 = vpop.f32.mrb[0].mxu0
      %v1225 = vadd.f32 0.0, %v1224
      %v1226 = vpop.f32.mrb[0].mxu0
      %v1227 = vpop.f32.mrb[0].mxu0
      %v1228 = vpop.f32.mrb[0].mxu0
      %1229 = vdwg.mxu0
      %1230 = vrot.lane.b32.xlu0 %v689, 112
      %v1231 = vpop.permute.xlu0 %1230
      %1232 = vrot.lane.b32.xlu0 %v689, 48
      %v1233 = vpop.permute.xlu0 %1232
      %v1235 = vsel %vm694, %v1231, 0
      %v1238 = vsel %vm694, %v1233, 0
      %1240 = vmatprep.subr.bf16.mxu0 0
      %1241 = vmatpush1.bf16.xpose.msra.mxu0 %v1238
      %1242 = vmatprep.subr.bf16.mxu0 0
      %1243 = vmatpush1.bf16.xpose.msra.mxu0 0
      %1244 = vmatprep.subr.bf16.mxu0 0
      %1245 = vmatpush1.bf16.xpose.msra.mxu0 0
      %1246 = vmatprep.subr.bf16.mxu0 0
      %1247 = vmatpush1.bf16.xpose.msra.mxu0 0
      %1248 = vmatprep.subr.bf16.mxu0 0
      %1249 = vmatpush1.bf16.xpose.msra.mxu0 0
      %1250 = vmatprep.subr.bf16.mxu0 0
      %1251 = vmatpush1.bf16.xpose.msra.mxu0 0
      %1252 = vmatprep.subr.bf16.mxu0 0
      %1253 = vmatpush1.bf16.xpose.msra.mxu0 0
      %1254 = vmatprep.subr.bf16.mxu0 0
      %1255 = vmatpush1.bf16.xpose.msra.mxu0 0
      %1256 = vmatprep.subr.bf16.mxu0 0
      %1257 = vmatpush1.bf16.xpose.msra.mxu0 0
      %1258 = vmatprep.subr.bf16.mxu0 0
      %1259 = vmatpush1.bf16.xpose.msra.mxu0 0
      %1260 = vmatprep.subr.bf16.mxu0 0
      %1261 = vmatpush1.bf16.xpose.msra.mxu0 0
      %1262 = vmatprep.subr.bf16.mxu0 0
      %1263 = vmatpush1.bf16.xpose.msra.mxu0 0
      %1264 = vmatprep.subr.bf16.mxu0 0
      %1265 = vmatpush1.bf16.xpose.msra.mxu0 0
      %1266 = vmatprep.subr.bf16.mxu0 0
      %1267 = vmatpush1.bf16.xpose.msra.mxu0 0
      %1268 = vmatprep.subr.bf16.mxu0 0
      %1269 = vmatpush1.bf16.xpose.msra.mxu0 0
      %1270 = vmatprep.subr.bf16.mxu0 0
      %1271 = vmatpush1.bf16.xpose.msra.mxu0 0
      %1272 = vmatprep.mubr.bf16.mxu0 0
      %1273 = vmatmul.mubr.bf16.gmra.mrb[0].mxu0 %v1235
      %v1274 = vpop.f32.mrb[0].mxu0
      %v1275 = vadd.f32 0.0, %v1274
      %v1276 = vpop.f32.mrb[0].mxu0
      %v1277 = vpop.f32.mrb[0].mxu0
      %v1278 = vpop.f32.mrb[0].mxu0
      %1279 = vdwg.mxu0
      %1280 = vrot.lane.b32.xlu0 %v690, 112
      %v1281 = vpop.permute.xlu0 %1280
      %1282 = vrot.lane.b32.xlu0 %v690, 48
      %v1283 = vpop.permute.xlu0 %1282
      %v1285 = vsel %vm694, %v1281, 0
      %v1288 = vsel %vm694, %v1283, 0
      %1290 = vmatprep.subr.bf16.mxu0 0
      %1291 = vmatpush1.bf16.xpose.msra.mxu0 %v1288
      %1292 = vmatprep.subr.bf16.mxu0 0
      %1293 = vmatpush1.bf16.xpose.msra.mxu0 0
      %1294 = vmatprep.subr.bf16.mxu0 0
      %1295 = vmatpush1.bf16.xpose.msra.mxu0 0
      %1296 = vmatprep.subr.bf16.mxu0 0
      %1297 = vmatpush1.bf16.xpose.msra.mxu0 0
      %1298 = vmatprep.subr.bf16.mxu0 0
      %1299 = vmatpush1.bf16.xpose.msra.mxu0 0
      %1300 = vmatprep.subr.bf16.mxu0 0
      %1301 = vmatpush1.bf16.xpose.msra.mxu0 0
      %1302 = vmatprep.subr.bf16.mxu0 0
      %1303 = vmatpush1.bf16.xpose.msra.mxu0 0
      %1304 = vmatprep.subr.bf16.mxu0 0
      %1305 = vmatpush1.bf16.xpose.msra.mxu0 0
      %1306 = vmatprep.subr.bf16.mxu0 0
      %1307 = vmatpush1.bf16.xpose.msra.mxu0 0
      %1308 = vmatprep.subr.bf16.mxu0 0
      %1309 = vmatpush1.bf16.xpose.msra.mxu0 0
      %1310 = vmatprep.subr.bf16.mxu0 0
      %1311 = vmatpush1.bf16.xpose.msra.mxu0 0
      %1312 = vmatprep.subr.bf16.mxu0 0
      %1313 = vmatpush1.bf16.xpose.msra.mxu0 0
      %1314 = vmatprep.subr.bf16.mxu0 0
      %1315 = vmatpush1.bf16.xpose.msra.mxu0 0
      %1316 = vmatprep.subr.bf16.mxu0 0
      %1317 = vmatpush1.bf16.xpose.msra.mxu0 0
      %1318 = vmatprep.subr.bf16.mxu0 0
      %1319 = vmatpush1.bf16.xpose.msra.mxu0 0
      %1320 = vmatprep.subr.bf16.mxu0 0
      %1321 = vmatpush1.bf16.xpose.msra.mxu0 0
      %1322 = vmatprep.mubr.bf16.mxu0 0
      %1323 = vmatmul.mubr.bf16.gmra.mrb[0].mxu0 %v1285
      %v1324 = vpop.f32.mrb[0].mxu0
      %v1325 = vadd.f32 0.0, %v1324
      %v1326 = vpop.f32.mrb[0].mxu0
      %v1327 = vpop.f32.mrb[0].mxu0
      %v1328 = vpop.f32.mrb[0].mxu0
      %1329 = vdwg.mxu0
      %v1330 = vmul.f32 %v1175, 0.25
      %v1331 = vmul.f32 %v1225, 0.25
      %v1332 = vmul.f32 %v1275, 0.25
      %v1333 = vmul.f32 %v1325, 0.25
      %v1334 = vsel %vm433, %v1330, -inf
      %1335 = vmax.xlane.f32.xlu0 %v1334
      %v1336 = vpop.xlane.xlu0 %1335
      %v1337 = vsel %vm433, %v1331, -inf
      %1338 = vmax.xlane.f32.xlu0 %v1337
      %v1339 = vpop.xlane.xlu0 %1338
      %v1340 = vsel %vm433, %v1332, -inf
      %1341 = vmax.xlane.f32.xlu0 %v1340
      %v1342 = vpop.xlane.xlu0 %1341
      %v1343 = vsel %vm433, %v1333, -inf
      %1344 = vmax.xlane.f32.xlu0 %v1343
      %v1345 = vpop.xlane.xlu0 %1344
      %v1346 = vsub.f32 %v1330, %v1336
      %v1347 = vsub.f32 %v1331, %v1339
      %v1348 = vsub.f32 %v1332, %v1342
      %v1349 = vsub.f32 %v1333, %v1345
      %v1350 = vmul.f32 %v1346, 1.442695
      %v1351 = vpow.pop %v1350
      %v1352 = vmul.f32 %v1347, 1.442695
      %v1353 = vpow.pop %v1352
      %v1354 = vmul.f32 %v1348, 1.442695
      %v1355 = vpow.pop %v1354
      %v1356 = vmul.f32 %v1349, 1.442695
      %v1357 = vpow.pop %v1356
      %v1358 = vsel %vm433, %v1351, 0.0
      %1359 = vadd.xlane.f32.xlu0 %v1358
      %v1360 = vpop.xlane.xlu0 %1359
      %v1361 = vsel %vm433, %v1353, 0.0
      %1362 = vadd.xlane.f32.xlu0 %v1361
      %v1363 = vpop.xlane.xlu0 %1362
      %v1364 = vsel %vm433, %v1355, 0.0
      %1365 = vadd.xlane.f32.xlu0 %v1364
      %v1366 = vpop.xlane.xlu0 %1365
      %v1367 = vsel %vm433, %v1357, 0.0
      %1368 = vadd.xlane.f32.xlu0 %v1367
      %v1369 = vpop.xlane.xlu0 %1368
      %v1370 = vrcp.pop %v1360
      %v1371 = vrcp.pop %v1363
      %v1372 = vrcp.pop %v1366
      %v1373 = vrcp.pop %v1369
      %v1374 = vmul.f32 %v1351, %v1370
      %v1375 = vmul.f32 %v1353, %v1371
      %v1376 = vmul.f32 %v1355, %v1372
      %v1377 = vmul.f32 %v1357, %v1373
      %v1378 = vpack.c.bf16 %v1374, %v1374
      %v1379 = vpack.c.bf16 %v1375, %v1375
      %v1380 = vpack.c.bf16 %v1376, %v1376
      %v1381 = vpack.c.bf16 %v1377, %v1377
      %1383 = vrot.lane.b32.xlu0 %v940, 112
      %v1384 = vpop.permute.xlu0 %1383
      %v1386 = vsel %vm433, %v1378, 0
      %v1389 = vsel %vm440, %v1384, 0
      %1391 = vmatprep.subr.bf16.mxu0 0
      %1392 = vmatpush1.bf16.msra.mxu0 %v1389
      %1393 = vmatprep.subr.bf16.mxu0 0
      %1394 = vmatpush1.bf16.msra.mxu0 0
      %1395 = vmatprep.subr.bf16.mxu0 0
      %1396 = vmatpush1.bf16.msra.mxu0 0
      %1397 = vmatprep.subr.bf16.mxu0 0
      %1398 = vmatpush1.bf16.msra.mxu0 0
      %1399 = vmatprep.subr.bf16.mxu0 0
      %1400 = vmatpush1.bf16.msra.mxu0 0
      %1401 = vmatprep.subr.bf16.mxu0 0
      %1402 = vmatpush1.bf16.msra.mxu0 0
      %1403 = vmatprep.subr.bf16.mxu0 0
      %1404 = vmatpush1.bf16.msra.mxu0 0
      %1405 = vmatprep.subr.bf16.mxu0 0
      %1406 = vmatpush1.bf16.msra.mxu0 0
      %1407 = vmatprep.subr.bf16.mxu0 0
      %1408 = vmatpush1.bf16.msra.mxu0 0
      %1409 = vmatprep.subr.bf16.mxu0 0
      %1410 = vmatpush1.bf16.msra.mxu0 0
      %1411 = vmatprep.subr.bf16.mxu0 0
      %1412 = vmatpush1.bf16.msra.mxu0 0
      %1413 = vmatprep.subr.bf16.mxu0 0
      %1414 = vmatpush1.bf16.msra.mxu0 0
      %1415 = vmatprep.subr.bf16.mxu0 0
      %1416 = vmatpush1.bf16.msra.mxu0 0
      %1417 = vmatprep.subr.bf16.mxu0 0
      %1418 = vmatpush1.bf16.msra.mxu0 0
      %1419 = vmatprep.subr.bf16.mxu0 0
      %1420 = vmatpush1.bf16.msra.mxu0 0
      %1421 = vmatprep.subr.bf16.mxu0 0
      %1422 = vmatpush1.bf16.msra.mxu0 0
      %1423 = vmatprep.mubr.bf16.mxu0 0
      %1424 = vmatmul.mubr.bf16.gmra.mrb[0].mxu0 %v1386
      %v1425 = vpop.f32.mrb[0].mxu0
      %v1426 = vadd.f32 0.0, %v1425
      %v1427 = vpop.f32.mrb[0].mxu0
      %v1428 = vpop.f32.mrb[0].mxu0
      %v1429 = vpop.f32.mrb[0].mxu0
      %1430 = vdwg.mxu0
      %1432 = vrot.lane.b32.xlu0 %v941, 112
      %v1433 = vpop.permute.xlu0 %1432
      %v1435 = vsel %vm433, %v1379, 0
      %v1438 = vsel %vm440, %v1433, 0
      %1440 = vmatprep.subr.bf16.mxu0 0
      %1441 = vmatpush1.bf16.msra.mxu0 %v1438
      %1442 = vmatprep.subr.bf16.mxu0 0
      %1443 = vmatpush1.bf16.msra.mxu0 0
      %1444 = vmatprep.subr.bf16.mxu0 0
      %1445 = vmatpush1.bf16.msra.mxu0 0
      %1446 = vmatprep.subr.bf16.mxu0 0
      %1447 = vmatpush1.bf16.msra.mxu0 0
      %1448 = vmatprep.subr.bf16.mxu0 0
      %1449 = vmatpush1.bf16.msra.mxu0 0
      %1450 = vmatprep.subr.bf16.mxu0 0
      %1451 = vmatpush1.bf16.msra.mxu0 0
      %1452 = vmatprep.subr.bf16.mxu0 0
      %1453 = vmatpush1.bf16.msra.mxu0 0
      %1454 = vmatprep.subr.bf16.mxu0 0
      %1455 = vmatpush1.bf16.msra.mxu0 0
      %1456 = vmatprep.subr.bf16.mxu0 0
      %1457 = vmatpush1.bf16.msra.mxu0 0
      %1458 = vmatprep.subr.bf16.mxu0 0
      %1459 = vmatpush1.bf16.msra.mxu0 0
      %1460 = vmatprep.subr.bf16.mxu0 0
      %1461 = vmatpush1.bf16.msra.mxu0 0
      %1462 = vmatprep.subr.bf16.mxu0 0
      %1463 = vmatpush1.bf16.msra.mxu0 0
      %1464 = vmatprep.subr.bf16.mxu0 0
      %1465 = vmatpush1.bf16.msra.mxu0 0
      %1466 = vmatprep.subr.bf16.mxu0 0
      %1467 = vmatpush1.bf16.msra.mxu0 0
      %1468 = vmatprep.subr.bf16.mxu0 0
      %1469 = vmatpush1.bf16.msra.mxu0 0
      %1470 = vmatprep.subr.bf16.mxu0 0
      %1471 = vmatpush1.bf16.msra.mxu0 0
      %1472 = vmatprep.mubr.bf16.mxu0 0
      %1473 = vmatmul.mubr.bf16.gmra.mrb[0].mxu0 %v1435
      %v1474 = vpop.f32.mrb[0].mxu0
      %v1475 = vadd.f32 0.0, %v1474
      %v1476 = vpop.f32.mrb[0].mxu0
      %v1477 = vpop.f32.mrb[0].mxu0
      %v1478 = vpop.f32.mrb[0].mxu0
      %1479 = vdwg.mxu0
      %1481 = vrot.lane.b32.xlu0 %v942, 112
      %v1482 = vpop.permute.xlu0 %1481
      %v1484 = vsel %vm433, %v1380, 0
      %v1487 = vsel %vm440, %v1482, 0
      %1489 = vmatprep.subr.bf16.mxu0 0
      %1490 = vmatpush1.bf16.msra.mxu0 %v1487
      %1491 = vmatprep.subr.bf16.mxu0 0
      %1492 = vmatpush1.bf16.msra.mxu0 0
      %1493 = vmatprep.subr.bf16.mxu0 0
      %1494 = vmatpush1.bf16.msra.mxu0 0
      %1495 = vmatprep.subr.bf16.mxu0 0
      %1496 = vmatpush1.bf16.msra.mxu0 0
      %1497 = vmatprep.subr.bf16.mxu0 0
      %1498 = vmatpush1.bf16.msra.mxu0 0
      %1499 = vmatprep.subr.bf16.mxu0 0
      %1500 = vmatpush1.bf16.msra.mxu0 0
      %1501 = vmatprep.subr.bf16.mxu0 0
      %1502 = vmatpush1.bf16.msra.mxu0 0
      %1503 = vmatprep.subr.bf16.mxu0 0
      %1504 = vmatpush1.bf16.msra.mxu0 0
      %1505 = vmatprep.subr.bf16.mxu0 0
      %1506 = vmatpush1.bf16.msra.mxu0 0
      %1507 = vmatprep.subr.bf16.mxu0 0
      %1508 = vmatpush1.bf16.msra.mxu0 0
      %1509 = vmatprep.subr.bf16.mxu0 0
      %1510 = vmatpush1.bf16.msra.mxu0 0
      %1511 = vmatprep.subr.bf16.mxu0 0
      %1512 = vmatpush1.bf16.msra.mxu0 0
      %1513 = vmatprep.subr.bf16.mxu0 0
      %1514 = vmatpush1.bf16.msra.mxu0 0
      %1515 = vmatprep.subr.bf16.mxu0 0
      %1516 = vmatpush1.bf16.msra.mxu0 0
      %1517 = vmatprep.subr.bf16.mxu0 0
      %1518 = vmatpush1.bf16.msra.mxu0 0
      %1519 = vmatprep.subr.bf16.mxu0 0
      %1520 = vmatpush1.bf16.msra.mxu0 0
      %1521 = vmatprep.mubr.bf16.mxu0 0
      %1522 = vmatmul.mubr.bf16.gmra.mrb[0].mxu0 %v1484
      %v1523 = vpop.f32.mrb[0].mxu0
      %v1524 = vadd.f32 0.0, %v1523
      %v1525 = vpop.f32.mrb[0].mxu0
      %v1526 = vpop.f32.mrb[0].mxu0
      %v1527 = vpop.f32.mrb[0].mxu0
      %1528 = vdwg.mxu0
      %1530 = vrot.lane.b32.xlu0 %v943, 112
      %v1531 = vpop.permute.xlu0 %1530
      %v1533 = vsel %vm433, %v1381, 0
      %v1536 = vsel %vm440, %v1531, 0
      %1538 = vmatprep.subr.bf16.mxu0 0
      %1539 = vmatpush1.bf16.msra.mxu0 %v1536
      %1540 = vmatprep.subr.bf16.mxu0 0
      %1541 = vmatpush1.bf16.msra.mxu0 0
      %1542 = vmatprep.subr.bf16.mxu0 0
      %1543 = vmatpush1.bf16.msra.mxu0 0
      %1544 = vmatprep.subr.bf16.mxu0 0
      %1545 = vmatpush1.bf16.msra.mxu0 0
      %1546 = vmatprep.subr.bf16.mxu0 0
      %1547 = vmatpush1.bf16.msra.mxu0 0
      %1548 = vmatprep.subr.bf16.mxu0 0
      %1549 = vmatpush1.bf16.msra.mxu0 0
      %1550 = vmatprep.subr.bf16.mxu0 0
      %1551 = vmatpush1.bf16.msra.mxu0 0
      %1552 = vmatprep.subr.bf16.mxu0 0
      %1553 = vmatpush1.bf16.msra.mxu0 0
      %1554 = vmatprep.subr.bf16.mxu0 0
      %1555 = vmatpush1.bf16.msra.mxu0 0
      %1556 = vmatprep.subr.bf16.mxu0 0
      %1557 = vmatpush1.bf16.msra.mxu0 0
      %1558 = vmatprep.subr.bf16.mxu0 0
      %1559 = vmatpush1.bf16.msra.mxu0 0
      %1560 = vmatprep.subr.bf16.mxu0 0
      %1561 = vmatpush1.bf16.msra.mxu0 0
      %1562 = vmatprep.subr.bf16.mxu0 0
      %1563 = vmatpush1.bf16.msra.mxu0 0
      %1564 = vmatprep.subr.bf16.mxu0 0
      %1565 = vmatpush1.bf16.msra.mxu0 0
      %1566 = vmatprep.subr.bf16.mxu0 0
      %1567 = vmatpush1.bf16.msra.mxu0 0
      %1568 = vmatprep.subr.bf16.mxu0 0
      %1569 = vmatpush1.bf16.msra.mxu0 0
      %1570 = vmatprep.mubr.bf16.mxu0 0
      %1571 = vmatmul.mubr.bf16.gmra.mrb[0].mxu0 %v1533
      %v1572 = vpop.f32.mrb[0].mxu0
      %v1573 = vadd.f32 0.0, %v1572
      %v1574 = vpop.f32.mrb[0].mxu0
      %v1575 = vpop.f32.mrb[0].mxu0
      %v1576 = vpop.f32.mrb[0].mxu0
      %1577 = vdwg.mxu0
      %v1578 = vpack.c.bf16 %v1475, %v1426
      %v1579 = vpack.c.bf16 %v1573, %v1524
      %v1582 = vunpack.c.l.b16 %v566
      %v1583 = vunpack.c.l.b16 %v567
      %v1584 = vpack.c.b16 %v1583, %v1582
      %v1587 = vsel %vm694, %v1578, 0
      %v1590 = vsel %vm694, %v1579, 0
      %1592 = vmatprep.subr.bf16.mxu0 0
      %1593 = vmatpush1.bf16.msra.mxu0 %v1584
      %1594 = vmatprep.subr.bf16.mxu0 0
      %1595 = vmatpush1.bf16.msra.mxu0 0
      %1596 = vmatprep.subr.bf16.mxu0 0
      %1597 = vmatpush1.bf16.msra.mxu0 0
      %1598 = vmatprep.subr.bf16.mxu0 0
      %1599 = vmatpush1.bf16.msra.mxu0 0
      %1600 = vmatprep.subr.bf16.mxu0 0
      %1601 = vmatpush1.bf16.msra.mxu0 0
      %1602 = vmatprep.subr.bf16.mxu0 0
      %1603 = vmatpush1.bf16.msra.mxu0 0
      %1604 = vmatprep.subr.bf16.mxu0 0
      %1605 = vmatpush1.bf16.msra.mxu0 0
      %1606 = vmatprep.subr.bf16.mxu0 0
      %1607 = vmatpush1.bf16.msra.mxu0 0
      %1608 = vmatprep.subr.bf16.mxu0 0
      %1609 = vmatpush1.bf16.msra.mxu0 0
      %1610 = vmatprep.subr.bf16.mxu0 0
      %1611 = vmatpush1.bf16.msra.mxu0 0
      %1612 = vmatprep.subr.bf16.mxu0 0
      %1613 = vmatpush1.bf16.msra.mxu0 0
      %1614 = vmatprep.subr.bf16.mxu0 0
      %1615 = vmatpush1.bf16.msra.mxu0 0
      %1616 = vmatprep.subr.bf16.mxu0 0
      %1617 = vmatpush1.bf16.msra.mxu0 0
      %1618 = vmatprep.subr.bf16.mxu0 0
      %1619 = vmatpush1.bf16.msra.mxu0 0
      %1620 = vmatprep.subr.bf16.mxu0 0
      %1621 = vmatpush1.bf16.msra.mxu0 0
      %1622 = vmatprep.subr.bf16.mxu0 0
      %1623 = vmatpush1.bf16.msra.mxu0 0
      %1624 = vmatprep.mubr.bf16.mxu0 0
      %1625 = vmatmul.mubr.bf16.gmra.mrb[0].mxu0 %v1587
      %v1626 = vpop.f32.mrb[0].mxu0
      %v1627 = vadd.f32 0.0, %v1626
      %v1628 = vpop.f32.mrb[0].mxu0
      %v1629 = vpop.f32.mrb[0].mxu0
      %v1630 = vadd.f32 0.0, %v1629
      %v1631 = vpop.f32.mrb[0].mxu0
      %1632 = vmatprep.mubr.bf16.mxu0 0
      %1633 = vmatmul.mubr.bf16.gmra.mrb[0].mxu0 %v1590
      %v1634 = vpop.f32.mrb[0].mxu0
      %v1635 = vadd.f32 0.0, %v1634
      %v1636 = vpop.f32.mrb[0].mxu0
      %v1637 = vpop.f32.mrb[0].mxu0
      %v1638 = vadd.f32 0.0, %v1637
      %v1639 = vpop.f32.mrb[0].mxu0
      %1640 = vdwg.mxu0
      %v1643 = vunpack.c.l.b16 %v564
      %v1644 = vunpack.c.l.b16 %v565
      %v1645 = vpack.c.b16 %v1644, %v1643
      %v1648 = vsel %vm694, %v1128, 0
      %v1651 = vsel %vm694, %v1129, 0
      %1653 = vmatprep.subr.bf16.mxu0 0
      %1654 = vmatpush1.bf16.msra.mxu0 %v1645
      %1655 = vmatprep.subr.bf16.mxu0 0
      %1656 = vmatpush1.bf16.msra.mxu0 0
      %1657 = vmatprep.subr.bf16.mxu0 0
      %1658 = vmatpush1.bf16.msra.mxu0 0
      %1659 = vmatprep.subr.bf16.mxu0 0
      %1660 = vmatpush1.bf16.msra.mxu0 0
      %1661 = vmatprep.subr.bf16.mxu0 0
      %1662 = vmatpush1.bf16.msra.mxu0 0
      %1663 = vmatprep.subr.bf16.mxu0 0
      %1664 = vmatpush1.bf16.msra.mxu0 0
      %1665 = vmatprep.subr.bf16.mxu0 0
      %1666 = vmatpush1.bf16.msra.mxu0 0
      %1667 = vmatprep.subr.bf16.mxu0 0
      %1668 = vmatpush1.bf16.msra.mxu0 0
      %1669 = vmatprep.subr.bf16.mxu0 0
      %1670 = vmatpush1.bf16.msra.mxu0 0
      %1671 = vmatprep.subr.bf16.mxu0 0
      %1672 = vmatpush1.bf16.msra.mxu0 0
      %1673 = vmatprep.subr.bf16.mxu0 0
      %1674 = vmatpush1.bf16.msra.mxu0 0
      %1675 = vmatprep.subr.bf16.mxu0 0
      %1676 = vmatpush1.bf16.msra.mxu0 0
      %1677 = vmatprep.subr.bf16.mxu0 0
      %1678 = vmatpush1.bf16.msra.mxu0 0
      %1679 = vmatprep.subr.bf16.mxu0 0
      %1680 = vmatpush1.bf16.msra.mxu0 0
      %1681 = vmatprep.subr.bf16.mxu0 0
      %1682 = vmatpush1.bf16.msra.mxu0 0
      %1683 = vmatprep.subr.bf16.mxu0 0
      %1684 = vmatpush1.bf16.msra.mxu0 0
      %1685 = vmatprep.mubr.bf16.mxu0 0
      %1686 = vmatmul.mubr.bf16.gmra.mrb[0].mxu0 %v1648
      %v1687 = vpop.f32.mrb[0].mxu0
      %v1688 = vadd.f32 %v1627, %v1687
      %v1689 = vpop.f32.mrb[0].mxu0
      %v1690 = vpop.f32.mrb[0].mxu0
      %v1691 = vadd.f32 %v1630, %v1690
      %v1692 = vpop.f32.mrb[0].mxu0
      %1693 = vmatprep.mubr.bf16.mxu0 0
      %1694 = vmatmul.mubr.bf16.gmra.mrb[0].mxu0 %v1651
      %v1695 = vpop.f32.mrb[0].mxu0
      %v1696 = vadd.f32 %v1635, %v1695
      %v1697 = vpop.f32.mrb[0].mxu0
      %v1698 = vpop.f32.mrb[0].mxu0
      %v1699 = vadd.f32 %v1638, %v1698
      %v1700 = vpop.f32.mrb[0].mxu0
      %1701 = vdwg.mxu0
      %1702 = vrot.lane.b32.xlu0 %v687, 96
      %v1703 = vpop.permute.xlu0 %1702
      %1704 = vrot.lane.b32.xlu0 %v687, 32
      %v1705 = vpop.permute.xlu0 %1704
      %v1707 = vsel %vm694, %v1703, 0
      %v1710 = vsel %vm694, %v1705, 0
      %1712 = vmatprep.subr.bf16.mxu0 0
      %1713 = vmatpush1.bf16.xpose.msra.mxu0 %v1710
      %1714 = vmatprep.subr.bf16.mxu0 0
      %1715 = vmatpush1.bf16.xpose.msra.mxu0 0
      %1716 = vmatprep.subr.bf16.mxu0 0
      %1717 = vmatpush1.bf16.xpose.msra.mxu0 0
      %1718 = vmatprep.subr.bf16.mxu0 0
      %1719 = vmatpush1.bf16.xpose.msra.mxu0 0
      %1720 = vmatprep.subr.bf16.mxu0 0
      %1721 = vmatpush1.bf16.xpose.msra.mxu0 0
      %1722 = vmatprep.subr.bf16.mxu0 0
      %1723 = vmatpush1.bf16.xpose.msra.mxu0 0
      %1724 = vmatprep.subr.bf16.mxu0 0
      %1725 = vmatpush1.bf16.xpose.msra.mxu0 0
      %1726 = vmatprep.subr.bf16.mxu0 0
      %1727 = vmatpush1.bf16.xpose.msra.mxu0 0
      %1728 = vmatprep.subr.bf16.mxu0 0
      %1729 = vmatpush1.bf16.xpose.msra.mxu0 0
      %1730 = vmatprep.subr.bf16.mxu0 0
      %1731 = vmatpush1.bf16.xpose.msra.mxu0 0
      %1732 = vmatprep.subr.bf16.mxu0 0
      %1733 = vmatpush1.bf16.xpose.msra.mxu0 0
      %1734 = vmatprep.subr.bf16.mxu0 0
      %1735 = vmatpush1.bf16.xpose.msra.mxu0 0
      %1736 = vmatprep.subr.bf16.mxu0 0
      %1737 = vmatpush1.bf16.xpose.msra.mxu0 0
      %1738 = vmatprep.subr.bf16.mxu0 0
      %1739 = vmatpush1.bf16.xpose.msra.mxu0 0
      %1740 = vmatprep.subr.bf16.mxu0 0
      %1741 = vmatpush1.bf16.xpose.msra.mxu0 0
      %1742 = vmatprep.subr.bf16.mxu0 0
      %1743 = vmatpush1.bf16.xpose.msra.mxu0 0
      %1744 = vmatprep.mubr.bf16.mxu0 0
      %1745 = vmatmul.mubr.bf16.gmra.mrb[0].mxu0 %v1707
      %v1746 = vpop.f32.mrb[0].mxu0
      %v1747 = vadd.f32 0.0, %v1746
      %v1748 = vpop.f32.mrb[0].mxu0
      %v1749 = vpop.f32.mrb[0].mxu0
      %v1750 = vpop.f32.mrb[0].mxu0
      %1751 = vdwg.mxu0
      %1752 = vrot.lane.b32.xlu0 %v688, 96
      %v1753 = vpop.permute.xlu0 %1752
      %1754 = vrot.lane.b32.xlu0 %v688, 32
      %v1755 = vpop.permute.xlu0 %1754
      %v1757 = vsel %vm694, %v1753, 0
      %v1760 = vsel %vm694, %v1755, 0
      %1762 = vmatprep.subr.bf16.mxu0 0
      %1763 = vmatpush1.bf16.xpose.msra.mxu0 %v1760
      %1764 = vmatprep.subr.bf16.mxu0 0
      %1765 = vmatpush1.bf16.xpose.msra.mxu0 0
      %1766 = vmatprep.subr.bf16.mxu0 0
      %1767 = vmatpush1.bf16.xpose.msra.mxu0 0
      %1768 = vmatprep.subr.bf16.mxu0 0
      %1769 = vmatpush1.bf16.xpose.msra.mxu0 0
      %1770 = vmatprep.subr.bf16.mxu0 0
      %1771 = vmatpush1.bf16.xpose.msra.mxu0 0
      %1772 = vmatprep.subr.bf16.mxu0 0
      %1773 = vmatpush1.bf16.xpose.msra.mxu0 0
      %1774 = vmatprep.subr.bf16.mxu0 0
      %1775 = vmatpush1.bf16.xpose.msra.mxu0 0
      %1776 = vmatprep.subr.bf16.mxu0 0
      %1777 = vmatpush1.bf16.xpose.msra.mxu0 0
      %1778 = vmatprep.subr.bf16.mxu0 0
      %1779 = vmatpush1.bf16.xpose.msra.mxu0 0
      %1780 = vmatprep.subr.bf16.mxu0 0
      %1781 = vmatpush1.bf16.xpose.msra.mxu0 0
      %1782 = vmatprep.subr.bf16.mxu0 0
      %1783 = vmatpush1.bf16.xpose.msra.mxu0 0
      %1784 = vmatprep.subr.bf16.mxu0 0
      %1785 = vmatpush1.bf16.xpose.msra.mxu0 0
      %1786 = vmatprep.subr.bf16.mxu0 0
      %1787 = vmatpush1.bf16.xpose.msra.mxu0 0
      %1788 = vmatprep.subr.bf16.mxu0 0
      %1789 = vmatpush1.bf16.xpose.msra.mxu0 0
      %1790 = vmatprep.subr.bf16.mxu0 0
      %1791 = vmatpush1.bf16.xpose.msra.mxu0 0
      %1792 = vmatprep.subr.bf16.mxu0 0
      %1793 = vmatpush1.bf16.xpose.msra.mxu0 0
      %1794 = vmatprep.mubr.bf16.mxu0 0
      %1795 = vmatmul.mubr.bf16.gmra.mrb[0].mxu0 %v1757
      %v1796 = vpop.f32.mrb[0].mxu0
      %v1797 = vadd.f32 0.0, %v1796
      %v1798 = vpop.f32.mrb[0].mxu0
      %v1799 = vpop.f32.mrb[0].mxu0
      %v1800 = vpop.f32.mrb[0].mxu0
      %1801 = vdwg.mxu0
      %1802 = vrot.lane.b32.xlu0 %v689, 96
      %v1803 = vpop.permute.xlu0 %1802
      %1804 = vrot.lane.b32.xlu0 %v689, 32
      %v1805 = vpop.permute.xlu0 %1804
      %v1807 = vsel %vm694, %v1803, 0
      %v1810 = vsel %vm694, %v1805, 0
      %1812 = vmatprep.subr.bf16.mxu0 0
      %1813 = vmatpush1.bf16.xpose.msra.mxu0 %v1810
      %1814 = vmatprep.subr.bf16.mxu0 0
      %1815 = vmatpush1.bf16.xpose.msra.mxu0 0
      %1816 = vmatprep.subr.bf16.mxu0 0
      %1817 = vmatpush1.bf16.xpose.msra.mxu0 0
      %1818 = vmatprep.subr.bf16.mxu0 0
      %1819 = vmatpush1.bf16.xpose.msra.mxu0 0
      %1820 = vmatprep.subr.bf16.mxu0 0
      %1821 = vmatpush1.bf16.xpose.msra.mxu0 0
      %1822 = vmatprep.subr.bf16.mxu0 0
      %1823 = vmatpush1.bf16.xpose.msra.mxu0 0
      %1824 = vmatprep.subr.bf16.mxu0 0
      %1825 = vmatpush1.bf16.xpose.msra.mxu0 0
      %1826 = vmatprep.subr.bf16.mxu0 0
      %1827 = vmatpush1.bf16.xpose.msra.mxu0 0
      %1828 = vmatprep.subr.bf16.mxu0 0
      %1829 = vmatpush1.bf16.xpose.msra.mxu0 0
      %1830 = vmatprep.subr.bf16.mxu0 0
      %1831 = vmatpush1.bf16.xpose.msra.mxu0 0
      %1832 = vmatprep.subr.bf16.mxu0 0
      %1833 = vmatpush1.bf16.xpose.msra.mxu0 0
      %1834 = vmatprep.subr.bf16.mxu0 0
      %1835 = vmatpush1.bf16.xpose.msra.mxu0 0
      %1836 = vmatprep.subr.bf16.mxu0 0
      %1837 = vmatpush1.bf16.xpose.msra.mxu0 0
      %1838 = vmatprep.subr.bf16.mxu0 0
      %1839 = vmatpush1.bf16.xpose.msra.mxu0 0
      %1840 = vmatprep.subr.bf16.mxu0 0
      %1841 = vmatpush1.bf16.xpose.msra.mxu0 0
      %1842 = vmatprep.subr.bf16.mxu0 0
      %1843 = vmatpush1.bf16.xpose.msra.mxu0 0
      %1844 = vmatprep.mubr.bf16.mxu0 0
      %1845 = vmatmul.mubr.bf16.gmra.mrb[0].mxu0 %v1807
      %v1846 = vpop.f32.mrb[0].mxu0
      %v1847 = vadd.f32 0.0, %v1846
      %v1848 = vpop.f32.mrb[0].mxu0
      %v1849 = vpop.f32.mrb[0].mxu0
      %v1850 = vpop.f32.mrb[0].mxu0
      %1851 = vdwg.mxu0
      %1852 = vrot.lane.b32.xlu0 %v690, 96
      %v1853 = vpop.permute.xlu0 %1852
      %1854 = vrot.lane.b32.xlu0 %v690, 32
      %v1855 = vpop.permute.xlu0 %1854
      %v1857 = vsel %vm694, %v1853, 0
      %v1860 = vsel %vm694, %v1855, 0
      %1862 = vmatprep.subr.bf16.mxu0 0
      %1863 = vmatpush1.bf16.xpose.msra.mxu0 %v1860
      %1864 = vmatprep.subr.bf16.mxu0 0
      %1865 = vmatpush1.bf16.xpose.msra.mxu0 0
      %1866 = vmatprep.subr.bf16.mxu0 0
      %1867 = vmatpush1.bf16.xpose.msra.mxu0 0
      %1868 = vmatprep.subr.bf16.mxu0 0
      %1869 = vmatpush1.bf16.xpose.msra.mxu0 0
      %1870 = vmatprep.subr.bf16.mxu0 0
      %1871 = vmatpush1.bf16.xpose.msra.mxu0 0
      %1872 = vmatprep.subr.bf16.mxu0 0
      %1873 = vmatpush1.bf16.xpose.msra.mxu0 0
      %1874 = vmatprep.subr.bf16.mxu0 0
      %1875 = vmatpush1.bf16.xpose.msra.mxu0 0
      %1876 = vmatprep.subr.bf16.mxu0 0
      %1877 = vmatpush1.bf16.xpose.msra.mxu0 0
      %1878 = vmatprep.subr.bf16.mxu0 0
      %1879 = vmatpush1.bf16.xpose.msra.mxu0 0
      %1880 = vmatprep.subr.bf16.mxu0 0
      %1881 = vmatpush1.bf16.xpose.msra.mxu0 0
      %1882 = vmatprep.subr.bf16.mxu0 0
      %1883 = vmatpush1.bf16.xpose.msra.mxu0 0
      %1884 = vmatprep.subr.bf16.mxu0 0
      %1885 = vmatpush1.bf16.xpose.msra.mxu0 0
      %1886 = vmatprep.subr.bf16.mxu0 0
      %1887 = vmatpush1.bf16.xpose.msra.mxu0 0
      %1888 = vmatprep.subr.bf16.mxu0 0
      %1889 = vmatpush1.bf16.xpose.msra.mxu0 0
      %1890 = vmatprep.subr.bf16.mxu0 0
      %1891 = vmatpush1.bf16.xpose.msra.mxu0 0
      %1892 = vmatprep.subr.bf16.mxu0 0
      %1893 = vmatpush1.bf16.xpose.msra.mxu0 0
      %1894 = vmatprep.mubr.bf16.mxu0 0
      %1895 = vmatmul.mubr.bf16.gmra.mrb[0].mxu0 %v1857
      %v1896 = vpop.f32.mrb[0].mxu0
      %v1897 = vadd.f32 0.0, %v1896
      %v1898 = vpop.f32.mrb[0].mxu0
      %v1899 = vpop.f32.mrb[0].mxu0
      %v1900 = vpop.f32.mrb[0].mxu0
      %1901 = vdwg.mxu0
      %v1902 = vmul.f32 %v1747, 0.25
      %v1903 = vmul.f32 %v1797, 0.25
      %v1904 = vmul.f32 %v1847, 0.25
      %v1905 = vmul.f32 %v1897, 0.25
      %v1906 = vsel %vm433, %v1902, -inf
      %1907 = vmax.xlane.f32.xlu0 %v1906
      %v1908 = vpop.xlane.xlu0 %1907
      %v1909 = vsel %vm433, %v1903, -inf
      %1910 = vmax.xlane.f32.xlu0 %v1909
      %v1911 = vpop.xlane.xlu0 %1910
      %v1912 = vsel %vm433, %v1904, -inf
      %1913 = vmax.xlane.f32.xlu0 %v1912
      %v1914 = vpop.xlane.xlu0 %1913
      %v1915 = vsel %vm433, %v1905, -inf
      %1916 = vmax.xlane.f32.xlu0 %v1915
      %v1917 = vpop.xlane.xlu0 %1916
      %v1918 = vsub.f32 %v1902, %v1908
      %v1919 = vsub.f32 %v1903, %v1911
      %v1920 = vsub.f32 %v1904, %v1914
      %v1921 = vsub.f32 %v1905, %v1917
      %v1922 = vmul.f32 %v1918, 1.442695
      %v1923 = vpow.pop %v1922
      %v1924 = vmul.f32 %v1919, 1.442695
      %v1925 = vpow.pop %v1924
      %v1926 = vmul.f32 %v1920, 1.442695
      %v1927 = vpow.pop %v1926
      %v1928 = vmul.f32 %v1921, 1.442695
      %v1929 = vpow.pop %v1928
      %v1930 = vsel %vm433, %v1923, 0.0
      %1931 = vadd.xlane.f32.xlu0 %v1930
      %v1932 = vpop.xlane.xlu0 %1931
      %v1933 = vsel %vm433, %v1925, 0.0
      %1934 = vadd.xlane.f32.xlu0 %v1933
      %v1935 = vpop.xlane.xlu0 %1934
      %v1936 = vsel %vm433, %v1927, 0.0
      %1937 = vadd.xlane.f32.xlu0 %v1936
      %v1938 = vpop.xlane.xlu0 %1937
      %v1939 = vsel %vm433, %v1929, 0.0
      %1940 = vadd.xlane.f32.xlu0 %v1939
      %v1941 = vpop.xlane.xlu0 %1940
      %v1942 = vrcp.pop %v1932
      %v1943 = vrcp.pop %v1935
      %v1944 = vrcp.pop %v1938
      %v1945 = vrcp.pop %v1941
      %v1946 = vmul.f32 %v1923, %v1942
      %v1947 = vmul.f32 %v1925, %v1943
      %v1948 = vmul.f32 %v1927, %v1944
      %v1949 = vmul.f32 %v1929, %v1945
      %v1950 = vpack.c.bf16 %v1946, %v1946
      %v1951 = vpack.c.bf16 %v1947, %v1947
      %v1952 = vpack.c.bf16 %v1948, %v1948
      %v1953 = vpack.c.bf16 %v1949, %v1949
      %1954 = vrot.lane.b32.xlu0 %v940, 96
      %v1955 = vpop.permute.xlu0 %1954
      %v1957 = vsel %vm433, %v1950, 0
      %v1960 = vsel %vm440, %v1955, 0
      %1962 = vmatprep.subr.bf16.mxu0 0
      %1963 = vmatpush1.bf16.msra.mxu0 %v1960
      %1964 = vmatprep.subr.bf16.mxu0 0
      %1965 = vmatpush1.bf16.msra.mxu0 0
      %1966 = vmatprep.subr.bf16.mxu0 0
      %1967 = vmatpush1.bf16.msra.mxu0 0
      %1968 = vmatprep.subr.bf16.mxu0 0
      %1969 = vmatpush1.bf16.msra.mxu0 0
      %1970 = vmatprep.subr.bf16.mxu0 0
      %1971 = vmatpush1.bf16.msra.mxu0 0
      %1972 = vmatprep.subr.bf16.mxu0 0
      %1973 = vmatpush1.bf16.msra.mxu0 0
      %1974 = vmatprep.subr.bf16.mxu0 0
      %1975 = vmatpush1.bf16.msra.mxu0 0
      %1976 = vmatprep.subr.bf16.mxu0 0
      %1977 = vmatpush1.bf16.msra.mxu0 0
      %1978 = vmatprep.subr.bf16.mxu0 0
      %1979 = vmatpush1.bf16.msra.mxu0 0
      %1980 = vmatprep.subr.bf16.mxu0 0
      %1981 = vmatpush1.bf16.msra.mxu0 0
      %1982 = vmatprep.subr.bf16.mxu0 0
      %1983 = vmatpush1.bf16.msra.mxu0 0
      %1984 = vmatprep.subr.bf16.mxu0 0
      %1985 = vmatpush1.bf16.msra.mxu0 0
      %1986 = vmatprep.subr.bf16.mxu0 0
      %1987 = vmatpush1.bf16.msra.mxu0 0
      %1988 = vmatprep.subr.bf16.mxu0 0
      %1989 = vmatpush1.bf16.msra.mxu0 0
      %1990 = vmatprep.subr.bf16.mxu0 0
      %1991 = vmatpush1.bf16.msra.mxu0 0
      %1992 = vmatprep.subr.bf16.mxu0 0
      %1993 = vmatpush1.bf16.msra.mxu0 0
      %1994 = vmatprep.mubr.bf16.mxu0 0
      %1995 = vmatmul.mubr.bf16.gmra.mrb[0].mxu0 %v1957
      %v1996 = vpop.f32.mrb[0].mxu0
      %v1997 = vadd.f32 0.0, %v1996
      %v1998 = vpop.f32.mrb[0].mxu0
      %v1999 = vpop.f32.mrb[0].mxu0
      %v2000 = vpop.f32.mrb[0].mxu0
      %2001 = vdwg.mxu0
      %2002 = vrot.lane.b32.xlu0 %v941, 96
      %v2003 = vpop.permute.xlu0 %2002
      %v2005 = vsel %vm433, %v1951, 0
      %v2008 = vsel %vm440, %v2003, 0
      %2010 = vmatprep.subr.bf16.mxu0 0
      %2011 = vmatpush1.bf16.msra.mxu0 %v2008
      %2012 = vmatprep.subr.bf16.mxu0 0
      %2013 = vmatpush1.bf16.msra.mxu0 0
      %2014 = vmatprep.subr.bf16.mxu0 0
      %2015 = vmatpush1.bf16.msra.mxu0 0
      %2016 = vmatprep.subr.bf16.mxu0 0
      %2017 = vmatpush1.bf16.msra.mxu0 0
      %2018 = vmatprep.subr.bf16.mxu0 0
      %2019 = vmatpush1.bf16.msra.mxu0 0
      %2020 = vmatprep.subr.bf16.mxu0 0
      %2021 = vmatpush1.bf16.msra.mxu0 0
      %2022 = vmatprep.subr.bf16.mxu0 0
      %2023 = vmatpush1.bf16.msra.mxu0 0
      %2024 = vmatprep.subr.bf16.mxu0 0
      %2025 = vmatpush1.bf16.msra.mxu0 0
      %2026 = vmatprep.subr.bf16.mxu0 0
      %2027 = vmatpush1.bf16.msra.mxu0 0
      %2028 = vmatprep.subr.bf16.mxu0 0
      %2029 = vmatpush1.bf16.msra.mxu0 0
      %2030 = vmatprep.subr.bf16.mxu0 0
      %2031 = vmatpush1.bf16.msra.mxu0 0
      %2032 = vmatprep.subr.bf16.mxu0 0
      %2033 = vmatpush1.bf16.msra.mxu0 0
      %2034 = vmatprep.subr.bf16.mxu0 0
      %2035 = vmatpush1.bf16.msra.mxu0 0
      %2036 = vmatprep.subr.bf16.mxu0 0
      %2037 = vmatpush1.bf16.msra.mxu0 0
      %2038 = vmatprep.subr.bf16.mxu0 0
      %2039 = vmatpush1.bf16.msra.mxu0 0
      %2040 = vmatprep.subr.bf16.mxu0 0
      %2041 = vmatpush1.bf16.msra.mxu0 0
      %2042 = vmatprep.mubr.bf16.mxu0 0
      %2043 = vmatmul.mubr.bf16.gmra.mrb[0].mxu0 %v2005
      %v2044 = vpop.f32.mrb[0].mxu0
      %v2045 = vadd.f32 0.0, %v2044
      %v2046 = vpop.f32.mrb[0].mxu0
      %v2047 = vpop.f32.mrb[0].mxu0
      %v2048 = vpop.f32.mrb[0].mxu0
      %2049 = vdwg.mxu0
      %2050 = vrot.lane.b32.xlu0 %v942, 96
      %v2051 = vpop.permute.xlu0 %2050
      %v2053 = vsel %vm433, %v1952, 0
      %v2056 = vsel %vm440, %v2051, 0
      %2058 = vmatprep.subr.bf16.mxu0 0
      %2059 = vmatpush1.bf16.msra.mxu0 %v2056
      %2060 = vmatprep.subr.bf16.mxu0 0
      %2061 = vmatpush1.bf16.msra.mxu0 0
      %2062 = vmatprep.subr.bf16.mxu0 0
      %2063 = vmatpush1.bf16.msra.mxu0 0
      %2064 = vmatprep.subr.bf16.mxu0 0
      %2065 = vmatpush1.bf16.msra.mxu0 0
      %2066 = vmatprep.subr.bf16.mxu0 0
      %2067 = vmatpush1.bf16.msra.mxu0 0
      %2068 = vmatprep.subr.bf16.mxu0 0
      %2069 = vmatpush1.bf16.msra.mxu0 0
      %2070 = vmatprep.subr.bf16.mxu0 0
      %2071 = vmatpush1.bf16.msra.mxu0 0
      %2072 = vmatprep.subr.bf16.mxu0 0
      %2073 = vmatpush1.bf16.msra.mxu0 0
      %2074 = vmatprep.subr.bf16.mxu0 0
      %2075 = vmatpush1.bf16.msra.mxu0 0
      %2076 = vmatprep.subr.bf16.mxu0 0
      %2077 = vmatpush1.bf16.msra.mxu0 0
      %2078 = vmatprep.subr.bf16.mxu0 0
      %2079 = vmatpush1.bf16.msra.mxu0 0
      %2080 = vmatprep.subr.bf16.mxu0 0
      %2081 = vmatpush1.bf16.msra.mxu0 0
      %2082 = vmatprep.subr.bf16.mxu0 0
      %2083 = vmatpush1.bf16.msra.mxu0 0
      %2084 = vmatprep.subr.bf16.mxu0 0
      %2085 = vmatpush1.bf16.msra.mxu0 0
      %2086 = vmatprep.subr.bf16.mxu0 0
      %2087 = vmatpush1.bf16.msra.mxu0 0
      %2088 = vmatprep.subr.bf16.mxu0 0
      %2089 = vmatpush1.bf16.msra.mxu0 0
      %2090 = vmatprep.mubr.bf16.mxu0 0
      %2091 = vmatmul.mubr.bf16.gmra.mrb[0].mxu0 %v2053
      %v2092 = vpop.f32.mrb[0].mxu0
      %v2093 = vadd.f32 0.0, %v2092
      %v2094 = vpop.f32.mrb[0].mxu0
      %v2095 = vpop.f32.mrb[0].mxu0
      %v2096 = vpop.f32.mrb[0].mxu0
      %2097 = vdwg.mxu0
      %2098 = vrot.lane.b32.xlu0 %v943, 96
      %v2099 = vpop.permute.xlu0 %2098
      %v2101 = vsel %vm433, %v1953, 0
      %v2104 = vsel %vm440, %v2099, 0
      %2106 = vmatprep.subr.bf16.mxu0 0
      %2107 = vmatpush1.bf16.msra.mxu0 %v2104
      %2108 = vmatprep.subr.bf16.mxu0 0
      %2109 = vmatpush1.bf16.msra.mxu0 0
      %2110 = vmatprep.subr.bf16.mxu0 0
      %2111 = vmatpush1.bf16.msra.mxu0 0
      %2112 = vmatprep.subr.bf16.mxu0 0
      %2113 = vmatpush1.bf16.msra.mxu0 0
      %2114 = vmatprep.subr.bf16.mxu0 0
      %2115 = vmatpush1.bf16.msra.mxu0 0
      %2116 = vmatprep.subr.bf16.mxu0 0
      %2117 = vmatpush1.bf16.msra.mxu0 0
      %2118 = vmatprep.subr.bf16.mxu0 0
      %2119 = vmatpush1.bf16.msra.mxu0 0
      %2120 = vmatprep.subr.bf16.mxu0 0
      %2121 = vmatpush1.bf16.msra.mxu0 0
      %2122 = vmatprep.subr.bf16.mxu0 0
      %2123 = vmatpush1.bf16.msra.mxu0 0
      %2124 = vmatprep.subr.bf16.mxu0 0
      %2125 = vmatpush1.bf16.msra.mxu0 0
      %2126 = vmatprep.subr.bf16.mxu0 0
      %2127 = vmatpush1.bf16.msra.mxu0 0
      %2128 = vmatprep.subr.bf16.mxu0 0
      %2129 = vmatpush1.bf16.msra.mxu0 0
      %2130 = vmatprep.subr.bf16.mxu0 0
      %2131 = vmatpush1.bf16.msra.mxu0 0
      %2132 = vmatprep.subr.bf16.mxu0 0
      %2133 = vmatpush1.bf16.msra.mxu0 0
      %2134 = vmatprep.subr.bf16.mxu0 0
      %2135 = vmatpush1.bf16.msra.mxu0 0
      %2136 = vmatprep.subr.bf16.mxu0 0
      %2137 = vmatpush1.bf16.msra.mxu0 0
      %2138 = vmatprep.mubr.bf16.mxu0 0
      %2139 = vmatmul.mubr.bf16.gmra.mrb[0].mxu0 %v2101
      %v2140 = vpop.f32.mrb[0].mxu0
      %v2141 = vadd.f32 0.0, %v2140
      %v2142 = vpop.f32.mrb[0].mxu0
      %v2143 = vpop.f32.mrb[0].mxu0
      %v2144 = vpop.f32.mrb[0].mxu0
      %2145 = vdwg.mxu0
      %v2146 = vpack.c.bf16 %v2045, %v1997
      %v2147 = vpack.c.bf16 %v2141, %v2093
      %v2150 = vunpack.c.l.b16 %v568
      %v2151 = vunpack.c.l.b16 %v569
      %v2152 = vpack.c.b16 %v2151, %v2150
      %v2155 = vsel %vm694, %v2146, 0
      %v2158 = vsel %vm694, %v2147, 0
      %2160 = vmatprep.subr.bf16.mxu0 0
      %2161 = vmatpush1.bf16.msra.mxu0 %v2152
      %2162 = vmatprep.subr.bf16.mxu0 0
      %2163 = vmatpush1.bf16.msra.mxu0 0
      %2164 = vmatprep.subr.bf16.mxu0 0
      %2165 = vmatpush1.bf16.msra.mxu0 0
      %2166 = vmatprep.subr.bf16.mxu0 0
      %2167 = vmatpush1.bf16.msra.mxu0 0
      %2168 = vmatprep.subr.bf16.mxu0 0
      %2169 = vmatpush1.bf16.msra.mxu0 0
      %2170 = vmatprep.subr.bf16.mxu0 0
      %2171 = vmatpush1.bf16.msra.mxu0 0
      %2172 = vmatprep.subr.bf16.mxu0 0
      %2173 = vmatpush1.bf16.msra.mxu0 0
      %2174 = vmatprep.subr.bf16.mxu0 0
      %2175 = vmatpush1.bf16.msra.mxu0 0
      %2176 = vmatprep.subr.bf16.mxu0 0
      %2177 = vmatpush1.bf16.msra.mxu0 0
      %2178 = vmatprep.subr.bf16.mxu0 0
      %2179 = vmatpush1.bf16.msra.mxu0 0
      %2180 = vmatprep.subr.bf16.mxu0 0
      %2181 = vmatpush1.bf16.msra.mxu0 0
      %2182 = vmatprep.subr.bf16.mxu0 0
      %2183 = vmatpush1.bf16.msra.mxu0 0
      %2184 = vmatprep.subr.bf16.mxu0 0
      %2185 = vmatpush1.bf16.msra.mxu0 0
      %2186 = vmatprep.subr.bf16.mxu0 0
      %2187 = vmatpush1.bf16.msra.mxu0 0
      %2188 = vmatprep.subr.bf16.mxu0 0
      %2189 = vmatpush1.bf16.msra.mxu0 0
      %2190 = vmatprep.subr.bf16.mxu0 0
      %2191 = vmatpush1.bf16.msra.mxu0 0
      %2192 = vmatprep.mubr.bf16.mxu0 0
      %2193 = vmatmul.mubr.bf16.gmra.mrb[0].mxu0 %v2155
      %v2194 = vpop.f32.mrb[0].mxu0
      %v2195 = vadd.f32 0.0, %v2194
      %v2196 = vpop.f32.mrb[0].mxu0
      %v2197 = vpop.f32.mrb[0].mxu0
      %v2198 = vadd.f32 0.0, %v2197
      %v2199 = vpop.f32.mrb[0].mxu0
      %2200 = vmatprep.mubr.bf16.mxu0 0
      %2201 = vmatmul.mubr.bf16.gmra.mrb[0].mxu0 %v2158
      %v2202 = vpop.f32.mrb[0].mxu0
      %v2203 = vadd.f32 0.0, %v2202
      %v2204 = vpop.f32.mrb[0].mxu0
      %v2205 = vpop.f32.mrb[0].mxu0
      %v2206 = vadd.f32 0.0, %v2205
      %v2207 = vpop.f32.mrb[0].mxu0
      %2208 = vdwg.mxu0
      %v2209 = vadd.f32 %v1688, %v2195
      %v2210 = vadd.f32 %v1691, %v2198
      %v2211 = vadd.f32 %v1696, %v2203
      %v2212 = vadd.f32 %v1699, %v2206
      %2213 = vrot.lane.b32.xlu0 %v687, 80
      %v2214 = vpop.permute.xlu0 %2213
      %2215 = vrot.lane.b32.xlu0 %v687, 16
      %v2216 = vpop.permute.xlu0 %2215
      %v2218 = vsel %vm694, %v2214, 0
      %v2221 = vsel %vm694, %v2216, 0
      %2223 = vmatprep.subr.bf16.mxu0 0
      %2224 = vmatpush1.bf16.xpose.msra.mxu0 %v2221
      %2225 = vmatprep.subr.bf16.mxu0 0
      %2226 = vmatpush1.bf16.xpose.msra.mxu0 0
      %2227 = vmatprep.subr.bf16.mxu0 0
      %2228 = vmatpush1.bf16.xpose.msra.mxu0 0
      %2229 = vmatprep.subr.bf16.mxu0 0
      %2230 = vmatpush1.bf16.xpose.msra.mxu0 0
      %2231 = vmatprep.subr.bf16.mxu0 0
      %2232 = vmatpush1.bf16.xpose.msra.mxu0 0
      %2233 = vmatprep.subr.bf16.mxu0 0
      %2234 = vmatpush1.bf16.xpose.msra.mxu0 0
      %2235 = vmatprep.subr.bf16.mxu0 0
      %2236 = vmatpush1.bf16.xpose.msra.mxu0 0
      %2237 = vmatprep.subr.bf16.mxu0 0
      %2238 = vmatpush1.bf16.xpose.msra.mxu0 0
      %2239 = vmatprep.subr.bf16.mxu0 0
      %2240 = vmatpush1.bf16.xpose.msra.mxu0 0
      %2241 = vmatprep.subr.bf16.mxu0 0
      %2242 = vmatpush1.bf16.xpose.msra.mxu0 0
      %2243 = vmatprep.subr.bf16.mxu0 0
      %2244 = vmatpush1.bf16.xpose.msra.mxu0 0
      %2245 = vmatprep.subr.bf16.mxu0 0
      %2246 = vmatpush1.bf16.xpose.msra.mxu0 0
      %2247 = vmatprep.subr.bf16.mxu0 0
      %2248 = vmatpush1.bf16.xpose.msra.mxu0 0
      %2249 = vmatprep.subr.bf16.mxu0 0
      %2250 = vmatpush1.bf16.xpose.msra.mxu0 0
      %2251 = vmatprep.subr.bf16.mxu0 0
      %2252 = vmatpush1.bf16.xpose.msra.mxu0 0
      %2253 = vmatprep.subr.bf16.mxu0 0
      %2254 = vmatpush1.bf16.xpose.msra.mxu0 0
      %2255 = vmatprep.mubr.bf16.mxu0 0
      %2256 = vmatmul.mubr.bf16.gmra.mrb[0].mxu0 %v2218
      %v2257 = vpop.f32.mrb[0].mxu0
      %v2258 = vadd.f32 0.0, %v2257
      %v2259 = vpop.f32.mrb[0].mxu0
      %v2260 = vpop.f32.mrb[0].mxu0
      %v2261 = vpop.f32.mrb[0].mxu0
      %2262 = vdwg.mxu0
      %2263 = vrot.lane.b32.xlu0 %v688, 80
      %v2264 = vpop.permute.xlu0 %2263
      %2265 = vrot.lane.b32.xlu0 %v688, 16
      %v2266 = vpop.permute.xlu0 %2265
      %v2268 = vsel %vm694, %v2264, 0
      %v2271 = vsel %vm694, %v2266, 0
      %2273 = vmatprep.subr.bf16.mxu0 0
      %2274 = vmatpush1.bf16.xpose.msra.mxu0 %v2271
      %2275 = vmatprep.subr.bf16.mxu0 0
      %2276 = vmatpush1.bf16.xpose.msra.mxu0 0
      %2277 = vmatprep.subr.bf16.mxu0 0
      %2278 = vmatpush1.bf16.xpose.msra.mxu0 0
      %2279 = vmatprep.subr.bf16.mxu0 0
      %2280 = vmatpush1.bf16.xpose.msra.mxu0 0
      %2281 = vmatprep.subr.bf16.mxu0 0
      %2282 = vmatpush1.bf16.xpose.msra.mxu0 0
      %2283 = vmatprep.subr.bf16.mxu0 0
      %2284 = vmatpush1.bf16.xpose.msra.mxu0 0
      %2285 = vmatprep.subr.bf16.mxu0 0
      %2286 = vmatpush1.bf16.xpose.msra.mxu0 0
      %2287 = vmatprep.subr.bf16.mxu0 0
      %2288 = vmatpush1.bf16.xpose.msra.mxu0 0
      %2289 = vmatprep.subr.bf16.mxu0 0
      %2290 = vmatpush1.bf16.xpose.msra.mxu0 0
      %2291 = vmatprep.subr.bf16.mxu0 0
      %2292 = vmatpush1.bf16.xpose.msra.mxu0 0
      %2293 = vmatprep.subr.bf16.mxu0 0
      %2294 = vmatpush1.bf16.xpose.msra.mxu0 0
      %2295 = vmatprep.subr.bf16.mxu0 0
      %2296 = vmatpush1.bf16.xpose.msra.mxu0 0
      %2297 = vmatprep.subr.bf16.mxu0 0
      %2298 = vmatpush1.bf16.xpose.msra.mxu0 0
      %2299 = vmatprep.subr.bf16.mxu0 0
      %2300 = vmatpush1.bf16.xpose.msra.mxu0 0
      %2301 = vmatprep.subr.bf16.mxu0 0
      %2302 = vmatpush1.bf16.xpose.msra.mxu0 0
      %2303 = vmatprep.subr.bf16.mxu0 0
      %2304 = vmatpush1.bf16.xpose.msra.mxu0 0
      %2305 = vmatprep.mubr.bf16.mxu0 0
      %2306 = vmatmul.mubr.bf16.gmra.mrb[0].mxu0 %v2268
      %v2307 = vpop.f32.mrb[0].mxu0
      %v2308 = vadd.f32 0.0, %v2307
      %v2309 = vpop.f32.mrb[0].mxu0
      %v2310 = vpop.f32.mrb[0].mxu0
      %v2311 = vpop.f32.mrb[0].mxu0
      %2312 = vdwg.mxu0
      %2313 = vrot.lane.b32.xlu0 %v689, 80
      %v2314 = vpop.permute.xlu0 %2313
      %2315 = vrot.lane.b32.xlu0 %v689, 16
      %v2316 = vpop.permute.xlu0 %2315
      %v2318 = vsel %vm694, %v2314, 0
      %v2321 = vsel %vm694, %v2316, 0
      %2323 = vmatprep.subr.bf16.mxu0 0
      %2324 = vmatpush1.bf16.xpose.msra.mxu0 %v2321
      %2325 = vmatprep.subr.bf16.mxu0 0
      %2326 = vmatpush1.bf16.xpose.msra.mxu0 0
      %2327 = vmatprep.subr.bf16.mxu0 0
      %2328 = vmatpush1.bf16.xpose.msra.mxu0 0
      %2329 = vmatprep.subr.bf16.mxu0 0
      %2330 = vmatpush1.bf16.xpose.msra.mxu0 0
      %2331 = vmatprep.subr.bf16.mxu0 0
      %2332 = vmatpush1.bf16.xpose.msra.mxu0 0
      %2333 = vmatprep.subr.bf16.mxu0 0
      %2334 = vmatpush1.bf16.xpose.msra.mxu0 0
      %2335 = vmatprep.subr.bf16.mxu0 0
      %2336 = vmatpush1.bf16.xpose.msra.mxu0 0
      %2337 = vmatprep.subr.bf16.mxu0 0
      %2338 = vmatpush1.bf16.xpose.msra.mxu0 0
      %2339 = vmatprep.subr.bf16.mxu0 0
      %2340 = vmatpush1.bf16.xpose.msra.mxu0 0
      %2341 = vmatprep.subr.bf16.mxu0 0
      %2342 = vmatpush1.bf16.xpose.msra.mxu0 0
      %2343 = vmatprep.subr.bf16.mxu0 0
      %2344 = vmatpush1.bf16.xpose.msra.mxu0 0
      %2345 = vmatprep.subr.bf16.mxu0 0
      %2346 = vmatpush1.bf16.xpose.msra.mxu0 0
      %2347 = vmatprep.subr.bf16.mxu0 0
      %2348 = vmatpush1.bf16.xpose.msra.mxu0 0
      %2349 = vmatprep.subr.bf16.mxu0 0
      %2350 = vmatpush1.bf16.xpose.msra.mxu0 0
      %2351 = vmatprep.subr.bf16.mxu0 0
      %2352 = vmatpush1.bf16.xpose.msra.mxu0 0
      %2353 = vmatprep.subr.bf16.mxu0 0
      %2354 = vmatpush1.bf16.xpose.msra.mxu0 0
      %2355 = vmatprep.mubr.bf16.mxu0 0
      %2356 = vmatmul.mubr.bf16.gmra.mrb[0].mxu0 %v2318
      %v2357 = vpop.f32.mrb[0].mxu0
      %v2358 = vadd.f32 0.0, %v2357
      %v2359 = vpop.f32.mrb[0].mxu0
      %v2360 = vpop.f32.mrb[0].mxu0
      %v2361 = vpop.f32.mrb[0].mxu0
      %2362 = vdwg.mxu0
      %2363 = vrot.lane.b32.xlu0 %v690, 80
      %v2364 = vpop.permute.xlu0 %2363
      %2365 = vrot.lane.b32.xlu0 %v690, 16
      %v2366 = vpop.permute.xlu0 %2365
      %v2368 = vsel %vm694, %v2364, 0
      %v2371 = vsel %vm694, %v2366, 0
      %2373 = vmatprep.subr.bf16.mxu0 0
      %2374 = vmatpush1.bf16.xpose.msra.mxu0 %v2371
      %2375 = vmatprep.subr.bf16.mxu0 0
      %2376 = vmatpush1.bf16.xpose.msra.mxu0 0
      %2377 = vmatprep.subr.bf16.mxu0 0
      %2378 = vmatpush1.bf16.xpose.msra.mxu0 0
      %2379 = vmatprep.subr.bf16.mxu0 0
      %2380 = vmatpush1.bf16.xpose.msra.mxu0 0
      %2381 = vmatprep.subr.bf16.mxu0 0
      %2382 = vmatpush1.bf16.xpose.msra.mxu0 0
      %2383 = vmatprep.subr.bf16.mxu0 0
      %2384 = vmatpush1.bf16.xpose.msra.mxu0 0
      %2385 = vmatprep.subr.bf16.mxu0 0
      %2386 = vmatpush1.bf16.xpose.msra.mxu0 0
      %2387 = vmatprep.subr.bf16.mxu0 0
      %2388 = vmatpush1.bf16.xpose.msra.mxu0 0
      %2389 = vmatprep.subr.bf16.mxu0 0
      %2390 = vmatpush1.bf16.xpose.msra.mxu0 0
      %2391 = vmatprep.subr.bf16.mxu0 0
      %2392 = vmatpush1.bf16.xpose.msra.mxu0 0
      %2393 = vmatprep.subr.bf16.mxu0 0
      %2394 = vmatpush1.bf16.xpose.msra.mxu0 0
      %2395 = vmatprep.subr.bf16.mxu0 0
      %2396 = vmatpush1.bf16.xpose.msra.mxu0 0
      %2397 = vmatprep.subr.bf16.mxu0 0
      %2398 = vmatpush1.bf16.xpose.msra.mxu0 0
      %2399 = vmatprep.subr.bf16.mxu0 0
      %2400 = vmatpush1.bf16.xpose.msra.mxu0 0
      %2401 = vmatprep.subr.bf16.mxu0 0
      %2402 = vmatpush1.bf16.xpose.msra.mxu0 0
      %2403 = vmatprep.subr.bf16.mxu0 0
      %2404 = vmatpush1.bf16.xpose.msra.mxu0 0
      %2405 = vmatprep.mubr.bf16.mxu0 0
      %2406 = vmatmul.mubr.bf16.gmra.mrb[0].mxu0 %v2368
      %v2407 = vpop.f32.mrb[0].mxu0
      %v2408 = vadd.f32 0.0, %v2407
      %v2409 = vpop.f32.mrb[0].mxu0
      %v2410 = vpop.f32.mrb[0].mxu0
      %v2411 = vpop.f32.mrb[0].mxu0
      %2412 = vdwg.mxu0
      %v2413 = vmul.f32 %v2258, 0.25
      %v2414 = vmul.f32 %v2308, 0.25
      %v2415 = vmul.f32 %v2358, 0.25
      %v2416 = vmul.f32 %v2408, 0.25
      %v2417 = vsel %vm433, %v2413, -inf
      %2418 = vmax.xlane.f32.xlu0 %v2417
      %v2419 = vpop.xlane.xlu0 %2418
      %v2420 = vsel %vm433, %v2414, -inf
      %2421 = vmax.xlane.f32.xlu0 %v2420
      %v2422 = vpop.xlane.xlu0 %2421
      %v2423 = vsel %vm433, %v2415, -inf
      %2424 = vmax.xlane.f32.xlu0 %v2423
      %v2425 = vpop.xlane.xlu0 %2424
      %v2426 = vsel %vm433, %v2416, -inf
      %2427 = vmax.xlane.f32.xlu0 %v2426
      %v2428 = vpop.xlane.xlu0 %2427
      %v2429 = vsub.f32 %v2413, %v2419
      %v2430 = vsub.f32 %v2414, %v2422
      %v2431 = vsub.f32 %v2415, %v2425
      %v2432 = vsub.f32 %v2416, %v2428
      %v2433 = vmul.f32 %v2429, 1.442695
      %v2434 = vpow.pop %v2433
      %v2435 = vmul.f32 %v2430, 1.442695
      %v2436 = vpow.pop %v2435
      %v2437 = vmul.f32 %v2431, 1.442695
      %v2438 = vpow.pop %v2437
      %v2439 = vmul.f32 %v2432, 1.442695
      %v2440 = vpow.pop %v2439
      %v2441 = vsel %vm433, %v2434, 0.0
      %2442 = vadd.xlane.f32.xlu0 %v2441
      %v2443 = vpop.xlane.xlu0 %2442
      %v2444 = vsel %vm433, %v2436, 0.0
      %2445 = vadd.xlane.f32.xlu0 %v2444
      %v2446 = vpop.xlane.xlu0 %2445
      %v2447 = vsel %vm433, %v2438, 0.0
      %2448 = vadd.xlane.f32.xlu0 %v2447
      %v2449 = vpop.xlane.xlu0 %2448
      %v2450 = vsel %vm433, %v2440, 0.0
      %2451 = vadd.xlane.f32.xlu0 %v2450
      %v2452 = vpop.xlane.xlu0 %2451
      %v2453 = vrcp.pop %v2443
      %v2454 = vrcp.pop %v2446
      %v2455 = vrcp.pop %v2449
      %v2456 = vrcp.pop %v2452
      %v2457 = vmul.f32 %v2434, %v2453
      %v2458 = vmul.f32 %v2436, %v2454
      %v2459 = vmul.f32 %v2438, %v2455
      %v2460 = vmul.f32 %v2440, %v2456
      %v2461 = vpack.c.bf16 %v2457, %v2457
      %v2462 = vpack.c.bf16 %v2458, %v2458
      %v2463 = vpack.c.bf16 %v2459, %v2459
      %v2464 = vpack.c.bf16 %v2460, %v2460
      %2465 = vrot.lane.b32.xlu0 %v940, 80
      %v2466 = vpop.permute.xlu0 %2465
      %v2468 = vsel %vm433, %v2461, 0
      %v2471 = vsel %vm440, %v2466, 0
      %2473 = vmatprep.subr.bf16.mxu0 0
      %2474 = vmatpush1.bf16.msra.mxu0 %v2471
      %2475 = vmatprep.subr.bf16.mxu0 0
      %2476 = vmatpush1.bf16.msra.mxu0 0
      %2477 = vmatprep.subr.bf16.mxu0 0
      %2478 = vmatpush1.bf16.msra.mxu0 0
      %2479 = vmatprep.subr.bf16.mxu0 0
      %2480 = vmatpush1.bf16.msra.mxu0 0
      %2481 = vmatprep.subr.bf16.mxu0 0
      %2482 = vmatpush1.bf16.msra.mxu0 0
      %2483 = vmatprep.subr.bf16.mxu0 0
      %2484 = vmatpush1.bf16.msra.mxu0 0
      %2485 = vmatprep.subr.bf16.mxu0 0
      %2486 = vmatpush1.bf16.msra.mxu0 0
      %2487 = vmatprep.subr.bf16.mxu0 0
      %2488 = vmatpush1.bf16.msra.mxu0 0
      %2489 = vmatprep.subr.bf16.mxu0 0
      %2490 = vmatpush1.bf16.msra.mxu0 0
      %2491 = vmatprep.subr.bf16.mxu0 0
      %2492 = vmatpush1.bf16.msra.mxu0 0
      %2493 = vmatprep.subr.bf16.mxu0 0
      %2494 = vmatpush1.bf16.msra.mxu0 0
      %2495 = vmatprep.subr.bf16.mxu0 0
      %2496 = vmatpush1.bf16.msra.mxu0 0
      %2497 = vmatprep.subr.bf16.mxu0 0
      %2498 = vmatpush1.bf16.msra.mxu0 0
      %2499 = vmatprep.subr.bf16.mxu0 0
      %2500 = vmatpush1.bf16.msra.mxu0 0
      %2501 = vmatprep.subr.bf16.mxu0 0
      %2502 = vmatpush1.bf16.msra.mxu0 0
      %2503 = vmatprep.subr.bf16.mxu0 0
      %2504 = vmatpush1.bf16.msra.mxu0 0
      %2505 = vmatprep.mubr.bf16.mxu0 0
      %2506 = vmatmul.mubr.bf16.gmra.mrb[0].mxu0 %v2468
      %v2507 = vpop.f32.mrb[0].mxu0
      %v2508 = vadd.f32 0.0, %v2507
      %v2509 = vpop.f32.mrb[0].mxu0
      %v2510 = vpop.f32.mrb[0].mxu0
      %v2511 = vpop.f32.mrb[0].mxu0
      %2512 = vdwg.mxu0
      %2513 = vrot.lane.b32.xlu0 %v941, 80
      %v2514 = vpop.permute.xlu0 %2513
      %v2516 = vsel %vm433, %v2462, 0
      %v2519 = vsel %vm440, %v2514, 0
      %2521 = vmatprep.subr.bf16.mxu0 0
      %2522 = vmatpush1.bf16.msra.mxu0 %v2519
      %2523 = vmatprep.subr.bf16.mxu0 0
      %2524 = vmatpush1.bf16.msra.mxu0 0
      %2525 = vmatprep.subr.bf16.mxu0 0
      %2526 = vmatpush1.bf16.msra.mxu0 0
      %2527 = vmatprep.subr.bf16.mxu0 0
      %2528 = vmatpush1.bf16.msra.mxu0 0
      %2529 = vmatprep.subr.bf16.mxu0 0
      %2530 = vmatpush1.bf16.msra.mxu0 0
      %2531 = vmatprep.subr.bf16.mxu0 0
      %2532 = vmatpush1.bf16.msra.mxu0 0
      %2533 = vmatprep.subr.bf16.mxu0 0
      %2534 = vmatpush1.bf16.msra.mxu0 0
      %2535 = vmatprep.subr.bf16.mxu0 0
      %2536 = vmatpush1.bf16.msra.mxu0 0
      %2537 = vmatprep.subr.bf16.mxu0 0
      %2538 = vmatpush1.bf16.msra.mxu0 0
      %2539 = vmatprep.subr.bf16.mxu0 0
      %2540 = vmatpush1.bf16.msra.mxu0 0
      %2541 = vmatprep.subr.bf16.mxu0 0
      %2542 = vmatpush1.bf16.msra.mxu0 0
      %2543 = vmatprep.subr.bf16.mxu0 0
      %2544 = vmatpush1.bf16.msra.mxu0 0
      %2545 = vmatprep.subr.bf16.mxu0 0
      %2546 = vmatpush1.bf16.msra.mxu0 0
      %2547 = vmatprep.subr.bf16.mxu0 0
      %2548 = vmatpush1.bf16.msra.mxu0 0
      %2549 = vmatprep.subr.bf16.mxu0 0
      %2550 = vmatpush1.bf16.msra.mxu0 0
      %2551 = vmatprep.subr.bf16.mxu0 0
      %2552 = vmatpush1.bf16.msra.mxu0 0
      %2553 = vmatprep.mubr.bf16.mxu0 0
      %2554 = vmatmul.mubr.bf16.gmra.mrb[0].mxu0 %v2516
      %v2555 = vpop.f32.mrb[0].mxu0
      %v2556 = vadd.f32 0.0, %v2555
      %v2557 = vpop.f32.mrb[0].mxu0
      %v2558 = vpop.f32.mrb[0].mxu0
      %v2559 = vpop.f32.mrb[0].mxu0
      %2560 = vdwg.mxu0
      %2561 = vrot.lane.b32.xlu0 %v942, 80
      %v2562 = vpop.permute.xlu0 %2561
      %v2564 = vsel %vm433, %v2463, 0
      %v2567 = vsel %vm440, %v2562, 0
      %2569 = vmatprep.subr.bf16.mxu0 0
      %2570 = vmatpush1.bf16.msra.mxu0 %v2567
      %2571 = vmatprep.subr.bf16.mxu0 0
      %2572 = vmatpush1.bf16.msra.mxu0 0
      %2573 = vmatprep.subr.bf16.mxu0 0
      %2574 = vmatpush1.bf16.msra.mxu0 0
      %2575 = vmatprep.subr.bf16.mxu0 0
      %2576 = vmatpush1.bf16.msra.mxu0 0
      %2577 = vmatprep.subr.bf16.mxu0 0
      %2578 = vmatpush1.bf16.msra.mxu0 0
      %2579 = vmatprep.subr.bf16.mxu0 0
      %2580 = vmatpush1.bf16.msra.mxu0 0
      %2581 = vmatprep.subr.bf16.mxu0 0
      %2582 = vmatpush1.bf16.msra.mxu0 0
      %2583 = vmatprep.subr.bf16.mxu0 0
      %2584 = vmatpush1.bf16.msra.mxu0 0
      %2585 = vmatprep.subr.bf16.mxu0 0
      %2586 = vmatpush1.bf16.msra.mxu0 0
      %2587 = vmatprep.subr.bf16.mxu0 0
      %2588 = vmatpush1.bf16.msra.mxu0 0
      %2589 = vmatprep.subr.bf16.mxu0 0
      %2590 = vmatpush1.bf16.msra.mxu0 0
      %2591 = vmatprep.subr.bf16.mxu0 0
      %2592 = vmatpush1.bf16.msra.mxu0 0
      %2593 = vmatprep.subr.bf16.mxu0 0
      %2594 = vmatpush1.bf16.msra.mxu0 0
      %2595 = vmatprep.subr.bf16.mxu0 0
      %2596 = vmatpush1.bf16.msra.mxu0 0
      %2597 = vmatprep.subr.bf16.mxu0 0
      %2598 = vmatpush1.bf16.msra.mxu0 0
      %2599 = vmatprep.subr.bf16.mxu0 0
      %2600 = vmatpush1.bf16.msra.mxu0 0
      %2601 = vmatprep.mubr.bf16.mxu0 0
      %2602 = vmatmul.mubr.bf16.gmra.mrb[0].mxu0 %v2564
      %v2603 = vpop.f32.mrb[0].mxu0
      %v2604 = vadd.f32 0.0, %v2603
      %v2605 = vpop.f32.mrb[0].mxu0
      %v2606 = vpop.f32.mrb[0].mxu0
      %v2607 = vpop.f32.mrb[0].mxu0
      %2608 = vdwg.mxu0
      %2609 = vrot.lane.b32.xlu0 %v943, 80
      %v2610 = vpop.permute.xlu0 %2609
      %v2612 = vsel %vm433, %v2464, 0
      %v2615 = vsel %vm440, %v2610, 0
      %2617 = vmatprep.subr.bf16.mxu0 0
      %2618 = vmatpush1.bf16.msra.mxu0 %v2615
      %2619 = vmatprep.subr.bf16.mxu0 0
      %2620 = vmatpush1.bf16.msra.mxu0 0
      %2621 = vmatprep.subr.bf16.mxu0 0
      %2622 = vmatpush1.bf16.msra.mxu0 0
      %2623 = vmatprep.subr.bf16.mxu0 0
      %2624 = vmatpush1.bf16.msra.mxu0 0
      %2625 = vmatprep.subr.bf16.mxu0 0
      %2626 = vmatpush1.bf16.msra.mxu0 0
      %2627 = vmatprep.subr.bf16.mxu0 0
      %2628 = vmatpush1.bf16.msra.mxu0 0
      %2629 = vmatprep.subr.bf16.mxu0 0
      %2630 = vmatpush1.bf16.msra.mxu0 0
      %2631 = vmatprep.subr.bf16.mxu0 0
      %2632 = vmatpush1.bf16.msra.mxu0 0
      %2633 = vmatprep.subr.bf16.mxu0 0
      %2634 = vmatpush1.bf16.msra.mxu0 0
      %2635 = vmatprep.subr.bf16.mxu0 0
      %2636 = vmatpush1.bf16.msra.mxu0 0
      %2637 = vmatprep.subr.bf16.mxu0 0
      %2638 = vmatpush1.bf16.msra.mxu0 0
      %2639 = vmatprep.subr.bf16.mxu0 0
      %2640 = vmatpush1.bf16.msra.mxu0 0
      %2641 = vmatprep.subr.bf16.mxu0 0
      %2642 = vmatpush1.bf16.msra.mxu0 0
      %2643 = vmatprep.subr.bf16.mxu0 0
      %2644 = vmatpush1.bf16.msra.mxu0 0
      %2645 = vmatprep.subr.bf16.mxu0 0
      %2646 = vmatpush1.bf16.msra.mxu0 0
      %2647 = vmatprep.subr.bf16.mxu0 0
      %2648 = vmatpush1.bf16.msra.mxu0 0
      %2649 = vmatprep.mubr.bf16.mxu0 0
      %2650 = vmatmul.mubr.bf16.gmra.mrb[0].mxu0 %v2612
      %v2651 = vpop.f32.mrb[0].mxu0
      %v2652 = vadd.f32 0.0, %v2651
      %v2653 = vpop.f32.mrb[0].mxu0
      %v2654 = vpop.f32.mrb[0].mxu0
      %v2655 = vpop.f32.mrb[0].mxu0
      %2656 = vdwg.mxu0
      %v2657 = vpack.c.bf16 %v2556, %v2508
      %v2658 = vpack.c.bf16 %v2652, %v2604
      %v2661 = vunpack.c.l.b16 %v570
      %v2662 = vunpack.c.l.b16 %v571
      %v2663 = vpack.c.b16 %v2662, %v2661
      %v2666 = vsel %vm694, %v2657, 0
      %v2669 = vsel %vm694, %v2658, 0
      %2671 = vmatprep.subr.bf16.mxu0 0
      %2672 = vmatpush1.bf16.msra.mxu0 %v2663
      %2673 = vmatprep.subr.bf16.mxu0 0
      %2674 = vmatpush1.bf16.msra.mxu0 0
      %2675 = vmatprep.subr.bf16.mxu0 0
      %2676 = vmatpush1.bf16.msra.mxu0 0
      %2677 = vmatprep.subr.bf16.mxu0 0
      %2678 = vmatpush1.bf16.msra.mxu0 0
      %2679 = vmatprep.subr.bf16.mxu0 0
      %2680 = vmatpush1.bf16.msra.mxu0 0
      %2681 = vmatprep.subr.bf16.mxu0 0
      %2682 = vmatpush1.bf16.msra.mxu0 0
      %2683 = vmatprep.subr.bf16.mxu0 0
      %2684 = vmatpush1.bf16.msra.mxu0 0
      %2685 = vmatprep.subr.bf16.mxu0 0
      %2686 = vmatpush1.bf16.msra.mxu0 0
      %2687 = vmatprep.subr.bf16.mxu0 0
      %2688 = vmatpush1.bf16.msra.mxu0 0
      %2689 = vmatprep.subr.bf16.mxu0 0
      %2690 = vmatpush1.bf16.msra.mxu0 0
      %2691 = vmatprep.subr.bf16.mxu0 0
      %2692 = vmatpush1.bf16.msra.mxu0 0
      %2693 = vmatprep.subr.bf16.mxu0 0
      %2694 = vmatpush1.bf16.msra.mxu0 0
      %2695 = vmatprep.subr.bf16.mxu0 0
      %2696 = vmatpush1.bf16.msra.mxu0 0
      %2697 = vmatprep.subr.bf16.mxu0 0
      %2698 = vmatpush1.bf16.msra.mxu0 0
      %2699 = vmatprep.subr.bf16.mxu0 0
      %2700 = vmatpush1.bf16.msra.mxu0 0
      %2701 = vmatprep.subr.bf16.mxu0 0
      %2702 = vmatpush1.bf16.msra.mxu0 0
      %2703 = vmatprep.mubr.bf16.mxu0 0
      %2704 = vmatmul.mubr.bf16.gmra.mrb[0].mxu0 %v2666
      %v2705 = vpop.f32.mrb[0].mxu0
      %v2706 = vadd.f32 0.0, %v2705
      %v2707 = vpop.f32.mrb[0].mxu0
      %v2708 = vpop.f32.mrb[0].mxu0
      %v2709 = vadd.f32 0.0, %v2708
      %v2710 = vpop.f32.mrb[0].mxu0
      %2711 = vmatprep.mubr.bf16.mxu0 0
      %2712 = vmatmul.mubr.bf16.gmra.mrb[0].mxu0 %v2669
      %v2713 = vpop.f32.mrb[0].mxu0
      %v2714 = vadd.f32 0.0, %v2713
      %v2715 = vpop.f32.mrb[0].mxu0
      %v2716 = vpop.f32.mrb[0].mxu0
      %v2717 = vadd.f32 0.0, %v2716
      %v2718 = vpop.f32.mrb[0].mxu0
      %2719 = vdwg.mxu0
      %v2720 = vadd.f32 %v2209, %v2706
      %v2721 = vadd.f32 %v2210, %v2709
      %v2722 = vadd.f32 %v2211, %v2714
      %v2723 = vadd.f32 %v2212, %v2717
      %v2724 = vlaneseq
      %v2725 = vshrl.u32 %v2724, 7
      %v2726 = vsub.s32 0, %v2725
      %v2727 = vrot.slane %v572, %v2726
      %v2728 = vadd.f32 %v2720, %v2727
      %v2729 = vadd.f32 %v2721, %v2727
      %v2730 = vadd.f32 %v2722, %v2727
      %v2731 = vadd.f32 %v2723, %v2727
      %v2732 = vadd.f32 %v552, %v2728
      %v2733 = vadd.f32 %v553, %v2729
      %v2734 = vadd.f32 %v554, %v2730
      %v2735 = vadd.f32 %v555, %v2731
      %v2736 = vsel %vm627, %v2732, 0.0
      %2737 = vadd.xlane.f32.xlu0 %v2736
      %v2738 = vpop.xlane.xlu0 %2737
      %v2739 = vsel %vm627, %v2733, 0.0
      %2740 = vadd.xlane.f32.xlu0 %v2739
      %v2741 = vpop.xlane.xlu0 %2740
      %v2742 = vsel %vm627, %v2734, 0.0
      %2743 = vadd.xlane.f32.xlu0 %v2742
      %v2744 = vpop.xlane.xlu0 %2743
      %v2745 = vsel %vm627, %v2735, 0.0
      %2746 = vadd.xlane.f32.xlu0 %v2745
      %v2747 = vpop.xlane.xlu0 %2746
      %v2748 = vrcp.pop 64.0
      %v2749 = vmul.f32 %v2738, %v2748
      %v2750 = vmul.f32 %v2741, %v2748
      %v2751 = vmul.f32 %v2744, %v2748
      %v2752 = vmul.f32 %v2747, %v2748
      %v2753 = vsub.f32 %v2732, %v2749
      %v2754 = vsub.f32 %v2733, %v2750
      %v2755 = vsub.f32 %v2734, %v2751
      %v2756 = vsub.f32 %v2735, %v2752
      %v2757 = vmul.f32 %v2753, %v2753
      %v2758 = vmul.f32 %v2754, %v2754
      %v2759 = vmul.f32 %v2755, %v2755
      %v2760 = vmul.f32 %v2756, %v2756
      %v2761 = vsel %vm627, %v2757, 0.0
      %2762 = vadd.xlane.f32.xlu0 %v2761
      %v2763 = vpop.xlane.xlu0 %2762
      %v2764 = vsel %vm627, %v2758, 0.0
      %2765 = vadd.xlane.f32.xlu0 %v2764
      %v2766 = vpop.xlane.xlu0 %2765
      %v2767 = vsel %vm627, %v2759, 0.0
      %2768 = vadd.xlane.f32.xlu0 %v2767
      %v2769 = vpop.xlane.xlu0 %2768
      %v2770 = vsel %vm627, %v2760, 0.0
      %2771 = vadd.xlane.f32.xlu0 %v2770
      %v2772 = vpop.xlane.xlu0 %2771
      %v2773 = vmul.f32 %v2763, %v2748
      %v2774 = vmul.f32 %v2766, %v2748
      %v2775 = vmul.f32 %v2769, %v2748
      %v2776 = vmul.f32 %v2772, %v2748
      %v2777 = vadd.f32 %v2773, 1e-05
      %v2778 = vadd.f32 %v2774, 1e-05
      %v2779 = vadd.f32 %v2775, 1e-05
      %v2780 = vadd.f32 %v2776, 1e-05
      %v2781 = vrsqrt.pop %v2777
      %v2782 = vrsqrt.pop %v2778
      %v2783 = vrsqrt.pop %v2779
      %v2784 = vrsqrt.pop %v2780
      %v2785 = vmul.f32 %v2753, %v2781
      %v2786 = vmul.f32 %v2754, %v2782
      %v2787 = vmul.f32 %v2755, %v2783
      %v2788 = vmul.f32 %v2756, %v2784
      %v2789 = vlaneseq
      %v2790 = vshrl.u32 %v2789, 7
      %v2791 = vsub.s32 1, %v2790
      %v2792 = vrot.slane %v572, %v2791
      %v2793 = vmul.f32 %v2785, %v2792
      %v2794 = vmul.f32 %v2786, %v2792
      %v2795 = vmul.f32 %v2787, %v2792
      %v2796 = vmul.f32 %v2788, %v2792
      %v2797 = vlaneseq
      %v2798 = vshrl.u32 %v2797, 7
      %v2799 = vsub.s32 2, %v2798
      %v2800 = vrot.slane %v572, %v2799
      %v2801 = vadd.f32 %v2793, %v2800
      %v2802 = vadd.f32 %v2794, %v2800
      %v2803 = vadd.f32 %v2795, %v2800
      %v2804 = vadd.f32 %v2796, %v2800
      %v2805 = vld [vmem:[%s6] sm:$0xf]
      %v2806 = vld [vmem:[%s6 + $0x4] sm:$0xf]
      %v2807 = vld [vmem:[%s6 + $0x8] sm:$0xf]
      %v2808 = vld [vmem:[%s6 + $0xc] sm:$0xf]
      %v2809 = vld [vmem:[%s6 + $0x10] sm:$0xf]
      %v2810 = vld [vmem:[%s6 + $0x14] sm:$0xf]
      %v2811 = vld [vmem:[%s6 + $0x18] sm:$0xf]
      %v2812 = vld [vmem:[%s6 + $0x1c] sm:$0xf]
      %v2813 = vld [vmem:[%s8] sm:$0xf]
      %v2814 = vld [vmem:[%s8 + $0x4] sm:$0xf]
      %v2815 = vld [vmem:[%s8 + $0x8] sm:$0xf]
      %v2816 = vld [vmem:[%s8 + $0xc] sm:$0xf]
      %v2817 = vld [vmem:[%s8 + $0x10] sm:$0xf]
      %v2818 = vld [vmem:[%s8 + $0x14] sm:$0xf]
      %v2819 = vld [vmem:[%s8 + $0x18] sm:$0xf]
      %v2820 = vld [vmem:[%s8 + $0x1c] sm:$0xf]
      %v2821 = vld [vmem:[%s8 + $0x20] sm:$0xf]
      %v2822 = vld [vmem:[%s8 + $0x24] sm:$0xf]
      %v2823 = vld [vmem:[%s8 + $0x28] sm:$0xf]
      %v2824 = vld [vmem:[%s8 + $0x2c] sm:$0xf]
      %v2825 = vld [vmem:[%s8 + $0x30] sm:$0xf]
      %v2826 = vld [vmem:[%s8 + $0x34] sm:$0xf]
      %v2827 = vld [vmem:[%s8 + $0x38] sm:$0xf]
      %v2828 = vld [vmem:[%s8 + $0x3c] sm:$0xf]
      %v2829 = vpack.c.bf16 %v2802, %v2801
      %v2830 = vpack.c.bf16 %v2804, %v2803
      %v2831 = vld [vmem:[%s7] sm:$0x1]
      %v2833 = vlaneseq
      %v2834 = vshrl.u32 %v2833, 7
      %v2835 = vsub.s32 0, %v2834
      %v2836 = vrot.slane %v2831, %v2835
      %v2846 = vunpack.c.l.b16 %v2805
      %v2847 = vunpack.c.l.b16 %v2806
      %v2848 = vunpack.c.l.b16 %v2807
      %v2849 = vunpack.c.l.b16 %v2808
      %v2850 = vunpack.c.l.b16 %v2809
      %v2851 = vunpack.c.l.b16 %v2810
      %v2852 = vunpack.c.l.b16 %v2811
      %v2853 = vunpack.c.l.b16 %v2812
      %v2854 = vpack.c.b16 %v2847, %v2846
      %v2855 = vpack.c.b16 %v2849, %v2848
      %v2856 = vpack.c.b16 %v2851, %v2850
      %v2857 = vpack.c.b16 %v2853, %v2852
      %v2863 = vsel %vm627, %v2829, 0
      %v2866 = vsel %vm627, %v2830, 0
      %2868 = vmatprep.subr.bf16.mxu0 0
      %2869 = vmatpush1.bf16.msra.mxu0 %v2854
      %2870 = vmatprep.subr.bf16.mxu0 0
      %2871 = vmatpush1.bf16.msra.mxu0 %v2855
      %2872 = vmatprep.subr.bf16.mxu0 0
      %2873 = vmatpush1.bf16.msra.mxu0 %v2856
      %2874 = vmatprep.subr.bf16.mxu0 0
      %2875 = vmatpush1.bf16.msra.mxu0 %v2857
      %2876 = vmatprep.subr.bf16.mxu0 0
      %2877 = vmatpush1.bf16.msra.mxu0 0
      %2878 = vmatprep.subr.bf16.mxu0 0
      %2879 = vmatpush1.bf16.msra.mxu0 0
      %2880 = vmatprep.subr.bf16.mxu0 0
      %2881 = vmatpush1.bf16.msra.mxu0 0
      %2882 = vmatprep.subr.bf16.mxu0 0
      %2883 = vmatpush1.bf16.msra.mxu0 0
      %2884 = vmatprep.subr.bf16.mxu0 0
      %2885 = vmatpush1.bf16.msra.mxu0 0
      %2886 = vmatprep.subr.bf16.mxu0 0
      %2887 = vmatpush1.bf16.msra.mxu0 0
      %2888 = vmatprep.subr.bf16.mxu0 0
      %2889 = vmatpush1.bf16.msra.mxu0 0
      %2890 = vmatprep.subr.bf16.mxu0 0
      %2891 = vmatpush1.bf16.msra.mxu0 0
      %2892 = vmatprep.subr.bf16.mxu0 0
      %2893 = vmatpush1.bf16.msra.mxu0 0
      %2894 = vmatprep.subr.bf16.mxu0 0
      %2895 = vmatpush1.bf16.msra.mxu0 0
      %2896 = vmatprep.subr.bf16.mxu0 0
      %2897 = vmatpush1.bf16.msra.mxu0 0
      %2898 = vmatprep.subr.bf16.mxu0 0
      %2899 = vmatpush1.bf16.msra.mxu0 0
      %2900 = vmatprep.mubr.bf16.mxu0 0
      %2901 = vmatmul.mubr.bf16.gmra.mrb[0].mxu0 %v2863
      %v2902 = vpop.f32.mrb[0].mxu0
      %v2903 = vadd.f32 %v2836, %v2902
      %v2904 = vpop.f32.mrb[0].mxu0
      %v2905 = vpop.f32.mrb[0].mxu0
      %v2906 = vadd.f32 %v2836, %v2905
      %v2907 = vpop.f32.mrb[0].mxu0
      %2908 = vmatprep.mubr.bf16.mxu0 0
      %2909 = vmatmul.mubr.bf16.gmra.mrb[0].mxu0 %v2866
      %v2910 = vpop.f32.mrb[0].mxu0
      %v2911 = vadd.f32 %v2836, %v2910
      %v2912 = vpop.f32.mrb[0].mxu0
      %v2913 = vpop.f32.mrb[0].mxu0
      %v2914 = vadd.f32 %v2836, %v2913
      %v2915 = vpop.f32.mrb[0].mxu0
      %2916 = vdwg.mxu0
      %v2917 = vmul.f32 %v2903, 0.5
      %v2918 = vmul.f32 %v2906, 0.5
      %v2919 = vmul.f32 %v2911, 0.5
      %v2920 = vmul.f32 %v2914, 0.5
      %v2921 = vmul.f32 %v2903, 0.70710677
      %v2922 = vmul.f32 %v2906, 0.70710677
      %v2923 = vmul.f32 %v2911, 0.70710677
      %v2924 = vmul.f32 %v2914, 0.70710677
      %vm2925 = vcmp.ge.f32.partialorder %v2921, 0.0
      %vm2926 = vcmp.ge.f32.partialorder %v2922, 0.0
      %vm2927 = vcmp.ge.f32.partialorder %v2923, 0.0
      %vm2928 = vcmp.ge.f32.partialorder %v2924, 0.0
      %v2929 = vsel %vm2925, 1.0, -1.0
      %v2930 = vsel %vm2926, 1.0, -1.0
      %v2931 = vsel %vm2927, 1.0, -1.0
      %v2932 = vsel %vm2928, 1.0, -1.0
      %v2933 = vand.u32 2147483647, %v2921
      %v2934 = vand.u32 2147483647, %v2922
      %v2935 = vand.u32 2147483647, %v2923
      %v2936 = vand.u32 2147483647, %v2924
      %v2937 = vmul.f32 %v2933, 0.3275911
      %v2938 = vmul.f32 %v2934, 0.3275911
      %v2939 = vmul.f32 %v2935, 0.3275911
      %v2940 = vmul.f32 %v2936, 0.3275911
      %v2941 = vadd.f32 %v2937, 1.0
      %v2942 = vadd.f32 %v2938, 1.0
      %v2943 = vadd.f32 %v2939, 1.0
      %v2944 = vadd.f32 %v2940, 1.0
      %v2945 = vrcp.pop %v2941
      %v2946 = vmul.f32 1.0, %v2945
      %v2947 = vrcp.pop %v2942
      %v2948 = vmul.f32 1.0, %v2947
      %v2949 = vrcp.pop %v2943
      %v2950 = vmul.f32 1.0, %v2949
      %v2951 = vrcp.pop %v2944
      %v2952 = vmul.f32 1.0, %v2951
      %v2953 = vmul.f32 %v2946, 1.0614054
      %v2954 = vmul.f32 %v2948, 1.0614054
      %v2955 = vmul.f32 %v2950, 1.0614054
      %v2956 = vmul.f32 %v2952, 1.0614054
      %v2957 = vadd.f32 %v2953, -1.4531521
      %v2958 = vadd.f32 %v2954, -1.4531521
      %v2959 = vadd.f32 %v2955, -1.4531521
      %v2960 = vadd.f32 %v2956, -1.4531521
      %v2961 = vmul.f32 %v2957, %v2946
      %v2962 = vmul.f32 %v2958, %v2948
      %v2963 = vmul.f32 %v2959, %v2950
      %v2964 = vmul.f32 %v2960, %v2952
      %v2965 = vadd.f32 %v2961, 1.4214138
      %v2966 = vadd.f32 %v2962, 1.4214138
      %v2967 = vadd.f32 %v2963, 1.4214138
      %v2968 = vadd.f32 %v2964, 1.4214138
      %v2969 = vmul.f32 %v2965, %v2946
      %v2970 = vmul.f32 %v2966, %v2948
      %v2971 = vmul.f32 %v2967, %v2950
      %v2972 = vmul.f32 %v2968, %v2952
      %v2973 = vadd.f32 %v2969, -0.28449672
      %v2974 = vadd.f32 %v2970, -0.28449672
      %v2975 = vadd.f32 %v2971, -0.28449672
      %v2976 = vadd.f32 %v2972, -0.28449672
      %v2977 = vmul.f32 %v2973, %v2946
      %v2978 = vmul.f32 %v2974, %v2948
      %v2979 = vmul.f32 %v2975, %v2950
      %v2980 = vmul.f32 %v2976, %v2952
      %v2981 = vadd.f32 %v2977, 0.2548296
      %v2982 = vadd.f32 %v2978, 0.2548296
      %v2983 = vadd.f32 %v2979, 0.2548296
      %v2984 = vadd.f32 %v2980, 0.2548296
      %v2985 = vmul.f32 %v2981, %v2946
      %v2986 = vmul.f32 %v2982, %v2948
      %v2987 = vmul.f32 %v2983, %v2950
      %v2988 = vmul.f32 %v2984, %v2952
      %v2989 = vsub.f32 0.0, %v2933
      %v2990 = vsub.f32 0.0, %v2934
      %v2991 = vsub.f32 0.0, %v2935
      %v2992 = vsub.f32 0.0, %v2936
      %v2993 = vmul.f32 %v2989, %v2933
      %v2994 = vmul.f32 %v2990, %v2934
      %v2995 = vmul.f32 %v2991, %v2935
      %v2996 = vmul.f32 %v2992, %v2936
      %v2997 = vmul.f32 %v2993, 1.442695
      %v2998 = vpow.pop %v2997
      %v2999 = vmul.f32 %v2994, 1.442695
      %v3000 = vpow.pop %v2999
      %v3001 = vmul.f32 %v2995, 1.442695
      %v3002 = vpow.pop %v3001
      %v3003 = vmul.f32 %v2996, 1.442695
      %v3004 = vpow.pop %v3003
      %v3005 = vmul.f32 %v2985, %v2998
      %v3006 = vmul.f32 %v2986, %v3000
      %v3007 = vmul.f32 %v2987, %v3002
      %v3008 = vmul.f32 %v2988, %v3004
      %v3009 = vsub.f32 1.0, %v3005
      %v3010 = vsub.f32 1.0, %v3006
      %v3011 = vsub.f32 1.0, %v3007
      %v3012 = vsub.f32 1.0, %v3008
      %v3013 = vmul.f32 %v2929, %v3009
      %v3014 = vmul.f32 %v2930, %v3010
      %v3015 = vmul.f32 %v2931, %v3011
      %v3016 = vmul.f32 %v2932, %v3012
      %v3017 = vadd.f32 %v3013, 1.0
      %v3018 = vadd.f32 %v3014, 1.0
      %v3019 = vadd.f32 %v3015, 1.0
      %v3020 = vadd.f32 %v3016, 1.0
      %v3021 = vmul.f32 %v2917, %v3017
      %v3022 = vmul.f32 %v2918, %v3018
      %v3023 = vmul.f32 %v2919, %v3019
      %v3024 = vmul.f32 %v2920, %v3020
      %v3025 = vpack.c.bf16 %v3022, %v3021
      %v3026 = vpack.c.bf16 %v3024, %v3023
      %v3027 = vlaneseq
      %v3028 = vshrl.u32 %v3027, 7
      %v3029 = vsub.s32 3, %v3028
      %v3030 = vrot.slane %v572, %v3029
      %v3047 = vunpack.c.l.b16 %v2813
      %v3048 = vunpack.c.l.b16 %v2814
      %v3049 = vunpack.c.l.b16 %v2815
      %v3050 = vunpack.c.l.b16 %v2816
      %v3051 = vunpack.c.l.b16 %v2817
      %v3052 = vunpack.c.l.b16 %v2818
      %v3053 = vunpack.c.l.b16 %v2819
      %v3054 = vunpack.c.l.b16 %v2820
      %v3055 = vunpack.c.l.b16 %v2821
      %v3056 = vunpack.c.l.b16 %v2822
      %v3057 = vunpack.c.l.b16 %v2823
      %v3058 = vunpack.c.l.b16 %v2824
      %v3059 = vunpack.c.l.b16 %v2825
      %v3060 = vunpack.c.l.b16 %v2826
      %v3061 = vunpack.c.l.b16 %v2827
      %v3062 = vunpack.c.l.b16 %v2828
      %v3063 = vpack.c.b16 %v3048, %v3047
      %v3064 = vpack.c.b16 %v3050, %v3049
      %v3065 = vpack.c.b16 %v3052, %v3051
      %v3066 = vpack.c.b16 %v3054, %v3053
      %v3067 = vpack.c.b16 %v3056, %v3055
      %v3068 = vpack.c.b16 %v3058, %v3057
      %v3069 = vpack.c.b16 %v3060, %v3059
      %v3070 = vpack.c.b16 %v3062, %v3061
      %3079 = vmatprep.subr.bf16.mxu0 0
      %3080 = vmatpush1.bf16.msra.mxu0 %v3063
      %3081 = vmatprep.subr.bf16.mxu0 0
      %3082 = vmatpush1.bf16.msra.mxu0 %v3064
      %3083 = vmatprep.subr.bf16.mxu0 0
      %3084 = vmatpush1.bf16.msra.mxu0 %v3065
      %3085 = vmatprep.subr.bf16.mxu0 0
      %3086 = vmatpush1.bf16.msra.mxu0 %v3066
      %3087 = vmatprep.subr.bf16.mxu0 0
      %3088 = vmatpush1.bf16.msra.mxu0 %v3067
      %3089 = vmatprep.subr.bf16.mxu0 0
      %3090 = vmatpush1.bf16.msra.mxu0 %v3068
      %3091 = vmatprep.subr.bf16.mxu0 0
      %3092 = vmatpush1.bf16.msra.mxu0 %v3069
      %3093 = vmatprep.subr.bf16.mxu0 0
      %3094 = vmatpush1.bf16.msra.mxu0 %v3070
      %3095 = vmatprep.subr.bf16.mxu0 0
      %3096 = vmatpush1.bf16.msra.mxu0 0
      %3097 = vmatprep.subr.bf16.mxu0 0
      %3098 = vmatpush1.bf16.msra.mxu0 0
      %3099 = vmatprep.subr.bf16.mxu0 0
      %3100 = vmatpush1.bf16.msra.mxu0 0
      %3101 = vmatprep.subr.bf16.mxu0 0
      %3102 = vmatpush1.bf16.msra.mxu0 0
      %3103 = vmatprep.subr.bf16.mxu0 0
      %3104 = vmatpush1.bf16.msra.mxu0 0
      %3105 = vmatprep.subr.bf16.mxu0 0
      %3106 = vmatpush1.bf16.msra.mxu0 0
      %3107 = vmatprep.subr.bf16.mxu0 0
      %3108 = vmatpush1.bf16.msra.mxu0 0
      %3109 = vmatprep.subr.bf16.mxu0 0
      %3110 = vmatpush1.bf16.msra.mxu0 0
      %3111 = vmatprep.mubr.bf16.mxu0 0
      %3112 = vmatmul.mubr.bf16.gmra.mrb[0].mxu0 %v3025
      %v3113 = vpop.f32.mrb[0].mxu0
      %v3114 = vadd.f32 %v3030, %v3113
      %v3115 = vpop.f32.mrb[0].mxu0
      %v3116 = vpop.f32.mrb[0].mxu0
      %v3117 = vadd.f32 %v3030, %v3116
      %v3118 = vpop.f32.mrb[0].mxu0
      %3119 = vmatprep.mubr.bf16.mxu0 0
      %3120 = vmatmul.mubr.bf16.gmra.mrb[0].mxu0 %v3026
      %v3121 = vpop.f32.mrb[0].mxu0
      %v3122 = vadd.f32 %v3030, %v3121
      %v3123 = vpop.f32.mrb[0].mxu0
      %v3124 = vpop.f32.mrb[0].mxu0
      %v3125 = vadd.f32 %v3030, %v3124
      %v3126 = vpop.f32.mrb[0].mxu0
      %3127 = vdwg.mxu0
      %v3128 = vadd.f32 %v2801, %v3114
      %v3129 = vadd.f32 %v2802, %v3117
      %v3130 = vadd.f32 %v2803, %v3122
      %v3131 = vadd.f32 %v2804, %v3125
      %v3132 = vsel %vm627, %v3128, 0.0
      %3133 = vadd.xlane.f32.xlu0 %v3132
      %v3134 = vpop.xlane.xlu0 %3133
      %v3135 = vsel %vm627, %v3129, 0.0
      %3136 = vadd.xlane.f32.xlu0 %v3135
      %v3137 = vpop.xlane.xlu0 %3136
      %v3138 = vsel %vm627, %v3130, 0.0
      %3139 = vadd.xlane.f32.xlu0 %v3138
      %v3140 = vpop.xlane.xlu0 %3139
      %v3141 = vsel %vm627, %v3131, 0.0
      %3142 = vadd.xlane.f32.xlu0 %v3141
      %v3143 = vpop.xlane.xlu0 %3142
      %v3144 = vmul.f32 %v3134, %v2748
      %v3145 = vmul.f32 %v3137, %v2748
      %v3146 = vmul.f32 %v3140, %v2748
      %v3147 = vmul.f32 %v3143, %v2748
      %v3148 = vsub.f32 %v3128, %v3144
      %v3149 = vsub.f32 %v3129, %v3145
      %v3150 = vsub.f32 %v3130, %v3146
      %v3151 = vsub.f32 %v3131, %v3147
      %v3152 = vmul.f32 %v3148, %v3148
      %v3153 = vmul.f32 %v3149, %v3149
      %v3154 = vmul.f32 %v3150, %v3150
      %v3155 = vmul.f32 %v3151, %v3151
      %v3156 = vsel %vm627, %v3152, 0.0
      %3157 = vadd.xlane.f32.xlu0 %v3156
      %v3158 = vpop.xlane.xlu0 %3157
      %v3159 = vsel %vm627, %v3153, 0.0
      %3160 = vadd.xlane.f32.xlu0 %v3159
      %v3161 = vpop.xlane.xlu0 %3160
      %v3162 = vsel %vm627, %v3154, 0.0
      %3163 = vadd.xlane.f32.xlu0 %v3162
      %v3164 = vpop.xlane.xlu0 %3163
      %v3165 = vsel %vm627, %v3155, 0.0
      %3166 = vadd.xlane.f32.xlu0 %v3165
      %v3167 = vpop.xlane.xlu0 %3166
      %v3168 = vmul.f32 %v3158, %v2748
      %v3169 = vmul.f32 %v3161, %v2748
      %v3170 = vmul.f32 %v3164, %v2748
      %v3171 = vmul.f32 %v3167, %v2748
      %v3172 = vadd.f32 %v3168, 1e-05
      %v3173 = vadd.f32 %v3169, 1e-05
      %v3174 = vadd.f32 %v3170, 1e-05
      %v3175 = vadd.f32 %v3171, 1e-05
      %v3176 = vrsqrt.pop %v3172
      %v3177 = vrsqrt.pop %v3173
      %v3178 = vrsqrt.pop %v3174
      %v3179 = vrsqrt.pop %v3175
      %v3180 = vmul.f32 %v3148, %v3176
      %v3181 = vmul.f32 %v3149, %v3177
      %v3182 = vmul.f32 %v3150, %v3178
      %v3183 = vmul.f32 %v3151, %v3179
      %v3184 = vlaneseq
      %v3185 = vshrl.u32 %v3184, 7
      %v3186 = vsub.s32 4, %v3185
      %v3187 = vrot.slane %v572, %v3186
      %v3188 = vmul.f32 %v3180, %v3187
      %v3189 = vmul.f32 %v3181, %v3187
      %v3190 = vmul.f32 %v3182, %v3187
      %v3191 = vmul.f32 %v3183, %v3187
      %v3192 = vlaneseq
      %v3193 = vshrl.u32 %v3192, 7
      %v3194 = vsub.s32 5, %v3193
      %v3195 = vrot.slane %v572, %v3194
      %v3196 = vadd.f32 %v3188, %v3195
      %v3197 = vadd.f32 %v3189, %v3195
      %v3198 = vadd.f32 %v3190, %v3195
      %v3199 = vadd.f32 %v3191, %v3195
      %s3200 = scalar_lea.vmem %s3, 64
      %v3201 = vld [vmem:[%s3200] sm:$0xff]
      %v3202 = vld [vmem:[%s3200 + $0x8] sm:$0xff]
      %v3203 = vld [vmem:[%s3200 + $0x10] sm:$0xff]
      %v3204 = vld [vmem:[%s3200 + $0x18] sm:$0xff]
      %v3205 = vld [vmem:[%s3200 + $0x20] sm:$0xff]
      %v3206 = vld [vmem:[%s3200 + $0x28] sm:$0xff]
      %v3207 = vld [vmem:[%s3200 + $0x30] sm:$0xff]
      %v3208 = vld [vmem:[%s3200 + $0x38] sm:$0xff]
      %s3209 = scalar_lea.vmem %s5, 32
      %v3210 = vld [vmem:[%s3209] sm:$0xf]
      %v3211 = vld [vmem:[%s3209 + $0x4] sm:$0xf]
      %v3212 = vld [vmem:[%s3209 + $0x8] sm:$0xf]
      %v3213 = vld [vmem:[%s3209 + $0xc] sm:$0xf]
      %v3214 = vld [vmem:[%s3209 + $0x10] sm:$0xf]
      %v3215 = vld [vmem:[%s3209 + $0x14] sm:$0xf]
      %v3216 = vld [vmem:[%s3209 + $0x18] sm:$0xf]
      %v3217 = vld [vmem:[%s3209 + $0x1c] sm:$0xf]
      %s3218 = scalar_lea.vmem %s9, 8
      %v3219 = vld [vmem:[%s3218] sm:$0x3f]
      %v3220 = vpack.c.bf16 %v3197, %v3196
      %v3221 = vpack.c.bf16 %v3199, %v3198
      %s3222 = scalar_lea.vmem %s4, 2
      %v3223 = vld [vmem:[%s3222] sm:$0x3]
      %v3225 = vlaneseq
      %v3226 = vshrl.u32 %v3225, 7
      %v3227 = vsub.s32 0, %v3226
      %v3228 = vrot.slane %v3223, %v3227
      %v3229 = vlaneseq
      %v3230 = vshrl.u32 %v3229, 7
      %v3231 = vsub.s32 1, %v3230
      %v3232 = vrot.slane %v3223, %v3231
      %v3243 = vunpack.c.l.b16 %v3201
      %v3244 = vunpack.c.h.b16 %v3201
      %v3245 = vunpack.c.l.b16 %v3202
      %v3246 = vunpack.c.h.b16 %v3202
      %v3247 = vunpack.c.l.b16 %v3203
      %v3248 = vunpack.c.h.b16 %v3203
      %v3249 = vunpack.c.l.b16 %v3204
      %v3250 = vunpack.c.h.b16 %v3204
      %v3251 = vunpack.c.l.b16 %v3205
      %v3252 = vunpack.c.h.b16 %v3205
      %v3253 = vunpack.c.l.b16 %v3206
      %v3254 = vunpack.c.h.b16 %v3206
      %v3255 = vunpack.c.l.b16 %v3207
      %v3256 = vunpack.c.h.b16 %v3207
      %v3257 = vunpack.c.l.b16 %v3208
      %v3258 = vunpack.c.h.b16 %v3208
      %v3259 = vpack.c.b16 %v3245, %v3243
      %v3260 = vpack.c.b16 %v3246, %v3244
      %v3261 = vpack.c.b16 %v3249, %v3247
      %v3262 = vpack.c.b16 %v3250, %v3248
      %v3263 = vpack.c.b16 %v3253, %v3251
      %v3264 = vpack.c.b16 %v3254, %v3252
      %v3265 = vpack.c.b16 %v3257, %v3255
      %v3266 = vpack.c.b16 %v3258, %v3256
      %v3276 = vsel %vm627, %v3220, 0
      %v3279 = vsel %vm627, %v3221, 0
      %3281 = vmatprep.subr.bf16.mxu0 %v3260
      %3282 = vmatpush1.bf16.msra.mxu0 %v3259
      %3283 = vmatprep.subr.bf16.mxu0 %v3262
      %3284 = vmatpush1.bf16.msra.mxu0 %v3261
      %3285 = vmatprep.subr.bf16.mxu0 %v3264
      %3286 = vmatpush1.bf16.msra.mxu0 %v3263
      %3287 = vmatprep.subr.bf16.mxu0 %v3266
      %3288 = vmatpush1.bf16.msra.mxu0 %v3265
      %3289 = vmatprep.subr.bf16.mxu0 0
      %3290 = vmatpush1.bf16.msra.mxu0 0
      %3291 = vmatprep.subr.bf16.mxu0 0
      %3292 = vmatpush1.bf16.msra.mxu0 0
      %3293 = vmatprep.subr.bf16.mxu0 0
      %3294 = vmatpush1.bf16.msra.mxu0 0
      %3295 = vmatprep.subr.bf16.mxu0 0
      %3296 = vmatpush1.bf16.msra.mxu0 0
      %3297 = vmatprep.subr.bf16.mxu0 0
      %3298 = vmatpush1.bf16.msra.mxu0 0
      %3299 = vmatprep.subr.bf16.mxu0 0
      %3300 = vmatpush1.bf16.msra.mxu0 0
      %3301 = vmatprep.subr.bf16.mxu0 0
      %3302 = vmatpush1.bf16.msra.mxu0 0
      %3303 = vmatprep.subr.bf16.mxu0 0
      %3304 = vmatpush1.bf16.msra.mxu0 0
      %3305 = vmatprep.subr.bf16.mxu0 0
      %3306 = vmatpush1.bf16.msra.mxu0 0
      %3307 = vmatprep.subr.bf16.mxu0 0
      %3308 = vmatpush1.bf16.msra.mxu0 0
      %3309 = vmatprep.subr.bf16.mxu0 0
      %3310 = vmatpush1.bf16.msra.mxu0 0
      %3311 = vmatprep.subr.bf16.mxu0 0
      %3312 = vmatpush1.bf16.msra.mxu0 0
      %3313 = vmatprep.mubr.bf16.mxu0 0
      %3314 = vmatmul.mubr.bf16.gmra.mrb[0].mxu0 %v3276
      %v3315 = vpop.f32.mrb[0].mxu0
      %v3316 = vadd.f32 %v3228, %v3315
      %v3317 = vpop.f32.mrb[0].mxu0
      %v3318 = vadd.f32 %v3232, %v3317
      %v3319 = vpop.f32.mrb[0].mxu0
      %v3320 = vadd.f32 %v3228, %v3319
      %v3321 = vpop.f32.mrb[0].mxu0
      %v3322 = vadd.f32 %v3232, %v3321
      %3323 = vmatprep.mubr.bf16.mxu0 0
      %3324 = vmatmul.mubr.bf16.gmra.mrb[0].mxu0 %v3279
      %v3325 = vpop.f32.mrb[0].mxu0
      %v3326 = vadd.f32 %v3228, %v3325
      %v3327 = vpop.f32.mrb[0].mxu0
      %v3328 = vadd.f32 %v3232, %v3327
      %v3329 = vpop.f32.mrb[0].mxu0
      %v3330 = vadd.f32 %v3228, %v3329
      %v3331 = vpop.f32.mrb[0].mxu0
      %v3332 = vadd.f32 %v3232, %v3331
      %3333 = vdwg.mxu0
      %v3334 = vpack.c.bf16 %v3316, %v3316
      %v3335 = vpack.c.bf16 %v3320, %v3320
      %v3336 = vpack.c.bf16 %v3326, %v3326
      %v3337 = vpack.c.bf16 %v3330, %v3330
      %3339 = vrot.lane.b32.xlu0 %v3334, 64
      %v3340 = vpop.permute.xlu0 %3339
      %v3342 = vsel %vm694, %v3334, 0
      %v3345 = vsel %vm694, %v3340, 0
      %3347 = vmatprep.subr.bf16.mxu0 0
      %3348 = vmatpush1.bf16.xpose.msra.mxu0 %v3345
      %3349 = vmatprep.subr.bf16.mxu0 0
      %3350 = vmatpush1.bf16.xpose.msra.mxu0 0
      %3351 = vmatprep.subr.bf16.mxu0 0
      %3352 = vmatpush1.bf16.xpose.msra.mxu0 0
      %3353 = vmatprep.subr.bf16.mxu0 0
      %3354 = vmatpush1.bf16.xpose.msra.mxu0 0
      %3355 = vmatprep.subr.bf16.mxu0 0
      %3356 = vmatpush1.bf16.xpose.msra.mxu0 0
      %3357 = vmatprep.subr.bf16.mxu0 0
      %3358 = vmatpush1.bf16.xpose.msra.mxu0 0
      %3359 = vmatprep.subr.bf16.mxu0 0
      %3360 = vmatpush1.bf16.xpose.msra.mxu0 0
      %3361 = vmatprep.subr.bf16.mxu0 0
      %3362 = vmatpush1.bf16.xpose.msra.mxu0 0
      %3363 = vmatprep.subr.bf16.mxu0 0
      %3364 = vmatpush1.bf16.xpose.msra.mxu0 0
      %3365 = vmatprep.subr.bf16.mxu0 0
      %3366 = vmatpush1.bf16.xpose.msra.mxu0 0
      %3367 = vmatprep.subr.bf16.mxu0 0
      %3368 = vmatpush1.bf16.xpose.msra.mxu0 0
      %3369 = vmatprep.subr.bf16.mxu0 0
      %3370 = vmatpush1.bf16.xpose.msra.mxu0 0
      %3371 = vmatprep.subr.bf16.mxu0 0
      %3372 = vmatpush1.bf16.xpose.msra.mxu0 0
      %3373 = vmatprep.subr.bf16.mxu0 0
      %3374 = vmatpush1.bf16.xpose.msra.mxu0 0
      %3375 = vmatprep.subr.bf16.mxu0 0
      %3376 = vmatpush1.bf16.xpose.msra.mxu0 0
      %3377 = vmatprep.subr.bf16.mxu0 0
      %3378 = vmatpush1.bf16.xpose.msra.mxu0 0
      %3379 = vmatprep.mubr.bf16.mxu0 0
      %3380 = vmatmul.mubr.bf16.gmra.mrb[0].mxu0 %v3342
      %v3381 = vpop.f32.mrb[0].mxu0
      %v3382 = vadd.f32 0.0, %v3381
      %v3383 = vpop.f32.mrb[0].mxu0
      %v3384 = vpop.f32.mrb[0].mxu0
      %v3385 = vpop.f32.mrb[0].mxu0
      %3386 = vdwg.mxu0
      %3388 = vrot.lane.b32.xlu0 %v3335, 64
      %v3389 = vpop.permute.xlu0 %3388
      %v3391 = vsel %vm694, %v3335, 0
      %v3394 = vsel %vm694, %v3389, 0
      %3396 = vmatprep.subr.bf16.mxu0 0
      %3397 = vmatpush1.bf16.xpose.msra.mxu0 %v3394
      %3398 = vmatprep.subr.bf16.mxu0 0
      %3399 = vmatpush1.bf16.xpose.msra.mxu0 0
      %3400 = vmatprep.subr.bf16.mxu0 0
      %3401 = vmatpush1.bf16.xpose.msra.mxu0 0
      %3402 = vmatprep.subr.bf16.mxu0 0
      %3403 = vmatpush1.bf16.xpose.msra.mxu0 0
      %3404 = vmatprep.subr.bf16.mxu0 0
      %3405 = vmatpush1.bf16.xpose.msra.mxu0 0
      %3406 = vmatprep.subr.bf16.mxu0 0
      %3407 = vmatpush1.bf16.xpose.msra.mxu0 0
      %3408 = vmatprep.subr.bf16.mxu0 0
      %3409 = vmatpush1.bf16.xpose.msra.mxu0 0
      %3410 = vmatprep.subr.bf16.mxu0 0
      %3411 = vmatpush1.bf16.xpose.msra.mxu0 0
      %3412 = vmatprep.subr.bf16.mxu0 0
      %3413 = vmatpush1.bf16.xpose.msra.mxu0 0
      %3414 = vmatprep.subr.bf16.mxu0 0
      %3415 = vmatpush1.bf16.xpose.msra.mxu0 0
      %3416 = vmatprep.subr.bf16.mxu0 0
      %3417 = vmatpush1.bf16.xpose.msra.mxu0 0
      %3418 = vmatprep.subr.bf16.mxu0 0
      %3419 = vmatpush1.bf16.xpose.msra.mxu0 0
      %3420 = vmatprep.subr.bf16.mxu0 0
      %3421 = vmatpush1.bf16.xpose.msra.mxu0 0
      %3422 = vmatprep.subr.bf16.mxu0 0
      %3423 = vmatpush1.bf16.xpose.msra.mxu0 0
      %3424 = vmatprep.subr.bf16.mxu0 0
      %3425 = vmatpush1.bf16.xpose.msra.mxu0 0
      %3426 = vmatprep.subr.bf16.mxu0 0
      %3427 = vmatpush1.bf16.xpose.msra.mxu0 0
      %3428 = vmatprep.mubr.bf16.mxu0 0
      %3429 = vmatmul.mubr.bf16.gmra.mrb[0].mxu0 %v3391
      %v3430 = vpop.f32.mrb[0].mxu0
      %v3431 = vadd.f32 0.0, %v3430
      %v3432 = vpop.f32.mrb[0].mxu0
      %v3433 = vpop.f32.mrb[0].mxu0
      %v3434 = vpop.f32.mrb[0].mxu0
      %3435 = vdwg.mxu0
      %3437 = vrot.lane.b32.xlu0 %v3336, 64
      %v3438 = vpop.permute.xlu0 %3437
      %v3440 = vsel %vm694, %v3336, 0
      %v3443 = vsel %vm694, %v3438, 0
      %3445 = vmatprep.subr.bf16.mxu0 0
      %3446 = vmatpush1.bf16.xpose.msra.mxu0 %v3443
      %3447 = vmatprep.subr.bf16.mxu0 0
      %3448 = vmatpush1.bf16.xpose.msra.mxu0 0
      %3449 = vmatprep.subr.bf16.mxu0 0
      %3450 = vmatpush1.bf16.xpose.msra.mxu0 0
      %3451 = vmatprep.subr.bf16.mxu0 0
      %3452 = vmatpush1.bf16.xpose.msra.mxu0 0
      %3453 = vmatprep.subr.bf16.mxu0 0
      %3454 = vmatpush1.bf16.xpose.msra.mxu0 0
      %3455 = vmatprep.subr.bf16.mxu0 0
      %3456 = vmatpush1.bf16.xpose.msra.mxu0 0
      %3457 = vmatprep.subr.bf16.mxu0 0
      %3458 = vmatpush1.bf16.xpose.msra.mxu0 0
      %3459 = vmatprep.subr.bf16.mxu0 0
      %3460 = vmatpush1.bf16.xpose.msra.mxu0 0
      %3461 = vmatprep.subr.bf16.mxu0 0
      %3462 = vmatpush1.bf16.xpose.msra.mxu0 0
      %3463 = vmatprep.subr.bf16.mxu0 0
      %3464 = vmatpush1.bf16.xpose.msra.mxu0 0
      %3465 = vmatprep.subr.bf16.mxu0 0
      %3466 = vmatpush1.bf16.xpose.msra.mxu0 0
      %3467 = vmatprep.subr.bf16.mxu0 0
      %3468 = vmatpush1.bf16.xpose.msra.mxu0 0
      %3469 = vmatprep.subr.bf16.mxu0 0
      %3470 = vmatpush1.bf16.xpose.msra.mxu0 0
      %3471 = vmatprep.subr.bf16.mxu0 0
      %3472 = vmatpush1.bf16.xpose.msra.mxu0 0
      %3473 = vmatprep.subr.bf16.mxu0 0
      %3474 = vmatpush1.bf16.xpose.msra.mxu0 0
      %3475 = vmatprep.subr.bf16.mxu0 0
      %3476 = vmatpush1.bf16.xpose.msra.mxu0 0
      %3477 = vmatprep.mubr.bf16.mxu0 0
      %3478 = vmatmul.mubr.bf16.gmra.mrb[0].mxu0 %v3440
      %v3479 = vpop.f32.mrb[0].mxu0
      %v3480 = vadd.f32 0.0, %v3479
      %v3481 = vpop.f32.mrb[0].mxu0
      %v3482 = vpop.f32.mrb[0].mxu0
      %v3483 = vpop.f32.mrb[0].mxu0
      %3484 = vdwg.mxu0
      %3486 = vrot.lane.b32.xlu0 %v3337, 64
      %v3487 = vpop.permute.xlu0 %3486
      %v3489 = vsel %vm694, %v3337, 0
      %v3492 = vsel %vm694, %v3487, 0
      %3494 = vmatprep.subr.bf16.mxu0 0
      %3495 = vmatpush1.bf16.xpose.msra.mxu0 %v3492
      %3496 = vmatprep.subr.bf16.mxu0 0
      %3497 = vmatpush1.bf16.xpose.msra.mxu0 0
      %3498 = vmatprep.subr.bf16.mxu0 0
      %3499 = vmatpush1.bf16.xpose.msra.mxu0 0
      %3500 = vmatprep.subr.bf16.mxu0 0
      %3501 = vmatpush1.bf16.xpose.msra.mxu0 0
      %3502 = vmatprep.subr.bf16.mxu0 0
      %3503 = vmatpush1.bf16.xpose.msra.mxu0 0
      %3504 = vmatprep.subr.bf16.mxu0 0
      %3505 = vmatpush1.bf16.xpose.msra.mxu0 0
      %3506 = vmatprep.subr.bf16.mxu0 0
      %3507 = vmatpush1.bf16.xpose.msra.mxu0 0
      %3508 = vmatprep.subr.bf16.mxu0 0
      %3509 = vmatpush1.bf16.xpose.msra.mxu0 0
      %3510 = vmatprep.subr.bf16.mxu0 0
      %3511 = vmatpush1.bf16.xpose.msra.mxu0 0
      %3512 = vmatprep.subr.bf16.mxu0 0
      %3513 = vmatpush1.bf16.xpose.msra.mxu0 0
      %3514 = vmatprep.subr.bf16.mxu0 0
      %3515 = vmatpush1.bf16.xpose.msra.mxu0 0
      %3516 = vmatprep.subr.bf16.mxu0 0
      %3517 = vmatpush1.bf16.xpose.msra.mxu0 0
      %3518 = vmatprep.subr.bf16.mxu0 0
      %3519 = vmatpush1.bf16.xpose.msra.mxu0 0
      %3520 = vmatprep.subr.bf16.mxu0 0
      %3521 = vmatpush1.bf16.xpose.msra.mxu0 0
      %3522 = vmatprep.subr.bf16.mxu0 0
      %3523 = vmatpush1.bf16.xpose.msra.mxu0 0
      %3524 = vmatprep.subr.bf16.mxu0 0
      %3525 = vmatpush1.bf16.xpose.msra.mxu0 0
      %3526 = vmatprep.mubr.bf16.mxu0 0
      %3527 = vmatmul.mubr.bf16.gmra.mrb[0].mxu0 %v3489
      %v3528 = vpop.f32.mrb[0].mxu0
      %v3529 = vadd.f32 0.0, %v3528
      %v3530 = vpop.f32.mrb[0].mxu0
      %v3531 = vpop.f32.mrb[0].mxu0
      %v3532 = vpop.f32.mrb[0].mxu0
      %3533 = vdwg.mxu0
      %v3534 = vmul.f32 %v3382, 0.25
      %v3535 = vmul.f32 %v3431, 0.25
      %v3536 = vmul.f32 %v3480, 0.25
      %v3537 = vmul.f32 %v3529, 0.25
      %v3538 = vsel %vm433, %v3534, -inf
      %3539 = vmax.xlane.f32.xlu0 %v3538
      %v3540 = vpop.xlane.xlu0 %3539
      %v3541 = vsel %vm433, %v3535, -inf
      %3542 = vmax.xlane.f32.xlu0 %v3541
      %v3543 = vpop.xlane.xlu0 %3542
      %v3544 = vsel %vm433, %v3536, -inf
      %3545 = vmax.xlane.f32.xlu0 %v3544
      %v3546 = vpop.xlane.xlu0 %3545
      %v3547 = vsel %vm433, %v3537, -inf
      %3548 = vmax.xlane.f32.xlu0 %v3547
      %v3549 = vpop.xlane.xlu0 %3548
      %v3550 = vsub.f32 %v3534, %v3540
      %v3551 = vsub.f32 %v3535, %v3543
      %v3552 = vsub.f32 %v3536, %v3546
      %v3553 = vsub.f32 %v3537, %v3549
      %v3554 = vmul.f32 %v3550, 1.442695
      %v3555 = vpow.pop %v3554
      %v3556 = vmul.f32 %v3551, 1.442695
      %v3557 = vpow.pop %v3556
      %v3558 = vmul.f32 %v3552, 1.442695
      %v3559 = vpow.pop %v3558
      %v3560 = vmul.f32 %v3553, 1.442695
      %v3561 = vpow.pop %v3560
      %v3562 = vsel %vm433, %v3555, 0.0
      %3563 = vadd.xlane.f32.xlu0 %v3562
      %v3564 = vpop.xlane.xlu0 %3563
      %v3565 = vsel %vm433, %v3557, 0.0
      %3566 = vadd.xlane.f32.xlu0 %v3565
      %v3567 = vpop.xlane.xlu0 %3566
      %v3568 = vsel %vm433, %v3559, 0.0
      %3569 = vadd.xlane.f32.xlu0 %v3568
      %v3570 = vpop.xlane.xlu0 %3569
      %v3571 = vsel %vm433, %v3561, 0.0
      %3572 = vadd.xlane.f32.xlu0 %v3571
      %v3573 = vpop.xlane.xlu0 %3572
      %v3574 = vrcp.pop %v3564
      %v3575 = vrcp.pop %v3567
      %v3576 = vrcp.pop %v3570
      %v3577 = vrcp.pop %v3573
      %v3578 = vmul.f32 %v3555, %v3574
      %v3579 = vmul.f32 %v3557, %v3575
      %v3580 = vmul.f32 %v3559, %v3576
      %v3581 = vmul.f32 %v3561, %v3577
      %v3582 = vpack.c.bf16 %v3578, %v3578
      %v3583 = vpack.c.bf16 %v3579, %v3579
      %v3584 = vpack.c.bf16 %v3580, %v3580
      %v3585 = vpack.c.bf16 %v3581, %v3581
      %v3586 = vpack.c.bf16 %v3318, %v3318
      %v3587 = vpack.c.bf16 %v3322, %v3322
      %v3588 = vpack.c.bf16 %v3328, %v3328
      %v3589 = vpack.c.bf16 %v3332, %v3332
      %v3591 = vsel %vm433, %v3582, 0
      %v3594 = vsel %vm440, %v3586, 0
      %3596 = vmatprep.subr.bf16.mxu0 0
      %3597 = vmatpush1.bf16.msra.mxu0 %v3594
      %3598 = vmatprep.subr.bf16.mxu0 0
      %3599 = vmatpush1.bf16.msra.mxu0 0
      %3600 = vmatprep.subr.bf16.mxu0 0
      %3601 = vmatpush1.bf16.msra.mxu0 0
      %3602 = vmatprep.subr.bf16.mxu0 0
      %3603 = vmatpush1.bf16.msra.mxu0 0
      %3604 = vmatprep.subr.bf16.mxu0 0
      %3605 = vmatpush1.bf16.msra.mxu0 0
      %3606 = vmatprep.subr.bf16.mxu0 0
      %3607 = vmatpush1.bf16.msra.mxu0 0
      %3608 = vmatprep.subr.bf16.mxu0 0
      %3609 = vmatpush1.bf16.msra.mxu0 0
      %3610 = vmatprep.subr.bf16.mxu0 0
      %3611 = vmatpush1.bf16.msra.mxu0 0
      %3612 = vmatprep.subr.bf16.mxu0 0
      %3613 = vmatpush1.bf16.msra.mxu0 0
      %3614 = vmatprep.subr.bf16.mxu0 0
      %3615 = vmatpush1.bf16.msra.mxu0 0
      %3616 = vmatprep.subr.bf16.mxu0 0
      %3617 = vmatpush1.bf16.msra.mxu0 0
      %3618 = vmatprep.subr.bf16.mxu0 0
      %3619 = vmatpush1.bf16.msra.mxu0 0
      %3620 = vmatprep.subr.bf16.mxu0 0
      %3621 = vmatpush1.bf16.msra.mxu0 0
      %3622 = vmatprep.subr.bf16.mxu0 0
      %3623 = vmatpush1.bf16.msra.mxu0 0
      %3624 = vmatprep.subr.bf16.mxu0 0
      %3625 = vmatpush1.bf16.msra.mxu0 0
      %3626 = vmatprep.subr.bf16.mxu0 0
      %3627 = vmatpush1.bf16.msra.mxu0 0
      %3628 = vmatprep.mubr.bf16.mxu0 0
      %3629 = vmatmul.mubr.bf16.gmra.mrb[0].mxu0 %v3591
      %v3630 = vpop.f32.mrb[0].mxu0
      %v3631 = vadd.f32 0.0, %v3630
      %v3632 = vpop.f32.mrb[0].mxu0
      %v3633 = vpop.f32.mrb[0].mxu0
      %v3634 = vpop.f32.mrb[0].mxu0
      %3635 = vdwg.mxu0
      %v3637 = vsel %vm433, %v3583, 0
      %v3640 = vsel %vm440, %v3587, 0
      %3642 = vmatprep.subr.bf16.mxu0 0
      %3643 = vmatpush1.bf16.msra.mxu0 %v3640
      %3644 = vmatprep.subr.bf16.mxu0 0
      %3645 = vmatpush1.bf16.msra.mxu0 0
      %3646 = vmatprep.subr.bf16.mxu0 0
      %3647 = vmatpush1.bf16.msra.mxu0 0
      %3648 = vmatprep.subr.bf16.mxu0 0
      %3649 = vmatpush1.bf16.msra.mxu0 0
      %3650 = vmatprep.subr.bf16.mxu0 0
      %3651 = vmatpush1.bf16.msra.mxu0 0
      %3652 = vmatprep.subr.bf16.mxu0 0
      %3653 = vmatpush1.bf16.msra.mxu0 0
      %3654 = vmatprep.subr.bf16.mxu0 0
      %3655 = vmatpush1.bf16.msra.mxu0 0
      %3656 = vmatprep.subr.bf16.mxu0 0
      %3657 = vmatpush1.bf16.msra.mxu0 0
      %3658 = vmatprep.subr.bf16.mxu0 0
      %3659 = vmatpush1.bf16.msra.mxu0 0
      %3660 = vmatprep.subr.bf16.mxu0 0
      %3661 = vmatpush1.bf16.msra.mxu0 0
      %3662 = vmatprep.subr.bf16.mxu0 0
      %3663 = vmatpush1.bf16.msra.mxu0 0
      %3664 = vmatprep.subr.bf16.mxu0 0
      %3665 = vmatpush1.bf16.msra.mxu0 0
      %3666 = vmatprep.subr.bf16.mxu0 0
      %3667 = vmatpush1.bf16.msra.mxu0 0
      %3668 = vmatprep.subr.bf16.mxu0 0
      %3669 = vmatpush1.bf16.msra.mxu0 0
      %3670 = vmatprep.subr.bf16.mxu0 0
      %3671 = vmatpush1.bf16.msra.mxu0 0
      %3672 = vmatprep.subr.bf16.mxu0 0
      %3673 = vmatpush1.bf16.msra.mxu0 0
      %3674 = vmatprep.mubr.bf16.mxu0 0
      %3675 = vmatmul.mubr.bf16.gmra.mrb[0].mxu0 %v3637
      %v3676 = vpop.f32.mrb[0].mxu0
      %v3677 = vadd.f32 0.0, %v3676
      %v3678 = vpop.f32.mrb[0].mxu0
      %v3679 = vpop.f32.mrb[0].mxu0
      %v3680 = vpop.f32.mrb[0].mxu0
      %3681 = vdwg.mxu0
      %v3683 = vsel %vm433, %v3584, 0
      %v3686 = vsel %vm440, %v3588, 0
      %3688 = vmatprep.subr.bf16.mxu0 0
      %3689 = vmatpush1.bf16.msra.mxu0 %v3686
      %3690 = vmatprep.subr.bf16.mxu0 0
      %3691 = vmatpush1.bf16.msra.mxu0 0
      %3692 = vmatprep.subr.bf16.mxu0 0
      %3693 = vmatpush1.bf16.msra.mxu0 0
      %3694 = vmatprep.subr.bf16.mxu0 0
      %3695 = vmatpush1.bf16.msra.mxu0 0
      %3696 = vmatprep.subr.bf16.mxu0 0
      %3697 = vmatpush1.bf16.msra.mxu0 0
      %3698 = vmatprep.subr.bf16.mxu0 0
      %3699 = vmatpush1.bf16.msra.mxu0 0
      %3700 = vmatprep.subr.bf16.mxu0 0
      %3701 = vmatpush1.bf16.msra.mxu0 0
      %3702 = vmatprep.subr.bf16.mxu0 0
      %3703 = vmatpush1.bf16.msra.mxu0 0
      %3704 = vmatprep.subr.bf16.mxu0 0
      %3705 = vmatpush1.bf16.msra.mxu0 0
      %3706 = vmatprep.subr.bf16.mxu0 0
      %3707 = vmatpush1.bf16.msra.mxu0 0
      %3708 = vmatprep.subr.bf16.mxu0 0
      %3709 = vmatpush1.bf16.msra.mxu0 0
      %3710 = vmatprep.subr.bf16.mxu0 0
      %3711 = vmatpush1.bf16.msra.mxu0 0
      %3712 = vmatprep.subr.bf16.mxu0 0
      %3713 = vmatpush1.bf16.msra.mxu0 0
      %3714 = vmatprep.subr.bf16.mxu0 0
      %3715 = vmatpush1.bf16.msra.mxu0 0
      %3716 = vmatprep.subr.bf16.mxu0 0
      %3717 = vmatpush1.bf16.msra.mxu0 0
      %3718 = vmatprep.subr.bf16.mxu0 0
      %3719 = vmatpush1.bf16.msra.mxu0 0
      %3720 = vmatprep.mubr.bf16.mxu0 0
      %3721 = vmatmul.mubr.bf16.gmra.mrb[0].mxu0 %v3683
      %v3722 = vpop.f32.mrb[0].mxu0
      %v3723 = vadd.f32 0.0, %v3722
      %v3724 = vpop.f32.mrb[0].mxu0
      %v3725 = vpop.f32.mrb[0].mxu0
      %v3726 = vpop.f32.mrb[0].mxu0
      %3727 = vdwg.mxu0
      %v3729 = vsel %vm433, %v3585, 0
      %v3732 = vsel %vm440, %v3589, 0
      %3734 = vmatprep.subr.bf16.mxu0 0
      %3735 = vmatpush1.bf16.msra.mxu0 %v3732
      %3736 = vmatprep.subr.bf16.mxu0 0
      %3737 = vmatpush1.bf16.msra.mxu0 0
      %3738 = vmatprep.subr.bf16.mxu0 0
      %3739 = vmatpush1.bf16.msra.mxu0 0
      %3740 = vmatprep.subr.bf16.mxu0 0
      %3741 = vmatpush1.bf16.msra.mxu0 0
      %3742 = vmatprep.subr.bf16.mxu0 0
      %3743 = vmatpush1.bf16.msra.mxu0 0
      %3744 = vmatprep.subr.bf16.mxu0 0
      %3745 = vmatpush1.bf16.msra.mxu0 0
      %3746 = vmatprep.subr.bf16.mxu0 0
      %3747 = vmatpush1.bf16.msra.mxu0 0
      %3748 = vmatprep.subr.bf16.mxu0 0
      %3749 = vmatpush1.bf16.msra.mxu0 0
      %3750 = vmatprep.subr.bf16.mxu0 0
      %3751 = vmatpush1.bf16.msra.mxu0 0
      %3752 = vmatprep.subr.bf16.mxu0 0
      %3753 = vmatpush1.bf16.msra.mxu0 0
      %3754 = vmatprep.subr.bf16.mxu0 0
      %3755 = vmatpush1.bf16.msra.mxu0 0
      %3756 = vmatprep.subr.bf16.mxu0 0
      %3757 = vmatpush1.bf16.msra.mxu0 0
      %3758 = vmatprep.subr.bf16.mxu0 0
      %3759 = vmatpush1.bf16.msra.mxu0 0
      %3760 = vmatprep.subr.bf16.mxu0 0
      %3761 = vmatpush1.bf16.msra.mxu0 0
      %3762 = vmatprep.subr.bf16.mxu0 0
      %3763 = vmatpush1.bf16.msra.mxu0 0
      %3764 = vmatprep.subr.bf16.mxu0 0
      %3765 = vmatpush1.bf16.msra.mxu0 0
      %3766 = vmatprep.mubr.bf16.mxu0 0
      %3767 = vmatmul.mubr.bf16.gmra.mrb[0].mxu0 %v3729
      %v3768 = vpop.f32.mrb[0].mxu0
      %v3769 = vadd.f32 0.0, %v3768
      %v3770 = vpop.f32.mrb[0].mxu0
      %v3771 = vpop.f32.mrb[0].mxu0
      %v3772 = vpop.f32.mrb[0].mxu0
      %3773 = vdwg.mxu0
      %v3774 = vpack.c.bf16 %v3677, %v3631
      %v3775 = vpack.c.bf16 %v3769, %v3723
      %3776 = vrot.lane.b32.xlu0 %v3334, 112
      %v3777 = vpop.permute.xlu0 %3776
      %3778 = vrot.lane.b32.xlu0 %v3334, 48
      %v3779 = vpop.permute.xlu0 %3778
      %v3781 = vsel %vm694, %v3777, 0
      %v3784 = vsel %vm694, %v3779, 0
      %3786 = vmatprep.subr.bf16.mxu0 0
      %3787 = vmatpush1.bf16.xpose.msra.mxu0 %v3784
      %3788 = vmatprep.subr.bf16.mxu0 0
      %3789 = vmatpush1.bf16.xpose.msra.mxu0 0
      %3790 = vmatprep.subr.bf16.mxu0 0
      %3791 = vmatpush1.bf16.xpose.msra.mxu0 0
      %3792 = vmatprep.subr.bf16.mxu0 0
      %3793 = vmatpush1.bf16.xpose.msra.mxu0 0
      %3794 = vmatprep.subr.bf16.mxu0 0
      %3795 = vmatpush1.bf16.xpose.msra.mxu0 0
      %3796 = vmatprep.subr.bf16.mxu0 0
      %3797 = vmatpush1.bf16.xpose.msra.mxu0 0
      %3798 = vmatprep.subr.bf16.mxu0 0
      %3799 = vmatpush1.bf16.xpose.msra.mxu0 0
      %3800 = vmatprep.subr.bf16.mxu0 0
      %3801 = vmatpush1.bf16.xpose.msra.mxu0 0
      %3802 = vmatprep.subr.bf16.mxu0 0
      %3803 = vmatpush1.bf16.xpose.msra.mxu0 0
      %3804 = vmatprep.subr.bf16.mxu0 0
      %3805 = vmatpush1.bf16.xpose.msra.mxu0 0
      %3806 = vmatprep.subr.bf16.mxu0 0
      %3807 = vmatpush1.bf16.xpose.msra.mxu0 0
      %3808 = vmatprep.subr.bf16.mxu0 0
      %3809 = vmatpush1.bf16.xpose.msra.mxu0 0
      %3810 = vmatprep.subr.bf16.mxu0 0
      %3811 = vmatpush1.bf16.xpose.msra.mxu0 0
      %3812 = vmatprep.subr.bf16.mxu0 0
      %3813 = vmatpush1.bf16.xpose.msra.mxu0 0
      %3814 = vmatprep.subr.bf16.mxu0 0
      %3815 = vmatpush1.bf16.xpose.msra.mxu0 0
      %3816 = vmatprep.subr.bf16.mxu0 0
      %3817 = vmatpush1.bf16.xpose.msra.mxu0 0
      %3818 = vmatprep.mubr.bf16.mxu0 0
      %3819 = vmatmul.mubr.bf16.gmra.mrb[0].mxu0 %v3781
      %v3820 = vpop.f32.mrb[0].mxu0
      %v3821 = vadd.f32 0.0, %v3820
      %v3822 = vpop.f32.mrb[0].mxu0
      %v3823 = vpop.f32.mrb[0].mxu0
      %v3824 = vpop.f32.mrb[0].mxu0
      %3825 = vdwg.mxu0
      %3826 = vrot.lane.b32.xlu0 %v3335, 112
      %v3827 = vpop.permute.xlu0 %3826
      %3828 = vrot.lane.b32.xlu0 %v3335, 48
      %v3829 = vpop.permute.xlu0 %3828
      %v3831 = vsel %vm694, %v3827, 0
      %v3834 = vsel %vm694, %v3829, 0
      %3836 = vmatprep.subr.bf16.mxu0 0
      %3837 = vmatpush1.bf16.xpose.msra.mxu0 %v3834
      %3838 = vmatprep.subr.bf16.mxu0 0
      %3839 = vmatpush1.bf16.xpose.msra.mxu0 0
      %3840 = vmatprep.subr.bf16.mxu0 0
      %3841 = vmatpush1.bf16.xpose.msra.mxu0 0
      %3842 = vmatprep.subr.bf16.mxu0 0
      %3843 = vmatpush1.bf16.xpose.msra.mxu0 0
      %3844 = vmatprep.subr.bf16.mxu0 0
      %3845 = vmatpush1.bf16.xpose.msra.mxu0 0
      %3846 = vmatprep.subr.bf16.mxu0 0
      %3847 = vmatpush1.bf16.xpose.msra.mxu0 0
      %3848 = vmatprep.subr.bf16.mxu0 0
      %3849 = vmatpush1.bf16.xpose.msra.mxu0 0
      %3850 = vmatprep.subr.bf16.mxu0 0
      %3851 = vmatpush1.bf16.xpose.msra.mxu0 0
      %3852 = vmatprep.subr.bf16.mxu0 0
      %3853 = vmatpush1.bf16.xpose.msra.mxu0 0
      %3854 = vmatprep.subr.bf16.mxu0 0
      %3855 = vmatpush1.bf16.xpose.msra.mxu0 0
      %3856 = vmatprep.subr.bf16.mxu0 0
      %3857 = vmatpush1.bf16.xpose.msra.mxu0 0
      %3858 = vmatprep.subr.bf16.mxu0 0
      %3859 = vmatpush1.bf16.xpose.msra.mxu0 0
      %3860 = vmatprep.subr.bf16.mxu0 0
      %3861 = vmatpush1.bf16.xpose.msra.mxu0 0
      %3862 = vmatprep.subr.bf16.mxu0 0
      %3863 = vmatpush1.bf16.xpose.msra.mxu0 0
      %3864 = vmatprep.subr.bf16.mxu0 0
      %3865 = vmatpush1.bf16.xpose.msra.mxu0 0
      %3866 = vmatprep.subr.bf16.mxu0 0
      %3867 = vmatpush1.bf16.xpose.msra.mxu0 0
      %3868 = vmatprep.mubr.bf16.mxu0 0
      %3869 = vmatmul.mubr.bf16.gmra.mrb[0].mxu0 %v3831
      %v3870 = vpop.f32.mrb[0].mxu0
      %v3871 = vadd.f32 0.0, %v3870
      %v3872 = vpop.f32.mrb[0].mxu0
      %v3873 = vpop.f32.mrb[0].mxu0
      %v3874 = vpop.f32.mrb[0].mxu0
      %3875 = vdwg.mxu0
      %3876 = vrot.lane.b32.xlu0 %v3336, 112
      %v3877 = vpop.permute.xlu0 %3876
      %3878 = vrot.lane.b32.xlu0 %v3336, 48
      %v3879 = vpop.permute.xlu0 %3878
      %v3881 = vsel %vm694, %v3877, 0
      %v3884 = vsel %vm694, %v3879, 0
      %3886 = vmatprep.subr.bf16.mxu0 0
      %3887 = vmatpush1.bf16.xpose.msra.mxu0 %v3884
      %3888 = vmatprep.subr.bf16.mxu0 0
      %3889 = vmatpush1.bf16.xpose.msra.mxu0 0
      %3890 = vmatprep.subr.bf16.mxu0 0
      %3891 = vmatpush1.bf16.xpose.msra.mxu0 0
      %3892 = vmatprep.subr.bf16.mxu0 0
      %3893 = vmatpush1.bf16.xpose.msra.mxu0 0
      %3894 = vmatprep.subr.bf16.mxu0 0
      %3895 = vmatpush1.bf16.xpose.msra.mxu0 0
      %3896 = vmatprep.subr.bf16.mxu0 0
      %3897 = vmatpush1.bf16.xpose.msra.mxu0 0
      %3898 = vmatprep.subr.bf16.mxu0 0
      %3899 = vmatpush1.bf16.xpose.msra.mxu0 0
      %3900 = vmatprep.subr.bf16.mxu0 0
      %3901 = vmatpush1.bf16.xpose.msra.mxu0 0
      %3902 = vmatprep.subr.bf16.mxu0 0
      %3903 = vmatpush1.bf16.xpose.msra.mxu0 0
      %3904 = vmatprep.subr.bf16.mxu0 0
      %3905 = vmatpush1.bf16.xpose.msra.mxu0 0
      %3906 = vmatprep.subr.bf16.mxu0 0
      %3907 = vmatpush1.bf16.xpose.msra.mxu0 0
      %3908 = vmatprep.subr.bf16.mxu0 0
      %3909 = vmatpush1.bf16.xpose.msra.mxu0 0
      %3910 = vmatprep.subr.bf16.mxu0 0
      %3911 = vmatpush1.bf16.xpose.msra.mxu0 0
      %3912 = vmatprep.subr.bf16.mxu0 0
      %3913 = vmatpush1.bf16.xpose.msra.mxu0 0
      %3914 = vmatprep.subr.bf16.mxu0 0
      %3915 = vmatpush1.bf16.xpose.msra.mxu0 0
      %3916 = vmatprep.subr.bf16.mxu0 0
      %3917 = vmatpush1.bf16.xpose.msra.mxu0 0
      %3918 = vmatprep.mubr.bf16.mxu0 0
      %3919 = vmatmul.mubr.bf16.gmra.mrb[0].mxu0 %v3881
      %v3920 = vpop.f32.mrb[0].mxu0
      %v3921 = vadd.f32 0.0, %v3920
      %v3922 = vpop.f32.mrb[0].mxu0
      %v3923 = vpop.f32.mrb[0].mxu0
      %v3924 = vpop.f32.mrb[0].mxu0
      %3925 = vdwg.mxu0
      %3926 = vrot.lane.b32.xlu0 %v3337, 112
      %v3927 = vpop.permute.xlu0 %3926
      %3928 = vrot.lane.b32.xlu0 %v3337, 48
      %v3929 = vpop.permute.xlu0 %3928
      %v3931 = vsel %vm694, %v3927, 0
      %v3934 = vsel %vm694, %v3929, 0
      %3936 = vmatprep.subr.bf16.mxu0 0
      %3937 = vmatpush1.bf16.xpose.msra.mxu0 %v3934
      %3938 = vmatprep.subr.bf16.mxu0 0
      %3939 = vmatpush1.bf16.xpose.msra.mxu0 0
      %3940 = vmatprep.subr.bf16.mxu0 0
      %3941 = vmatpush1.bf16.xpose.msra.mxu0 0
      %3942 = vmatprep.subr.bf16.mxu0 0
      %3943 = vmatpush1.bf16.xpose.msra.mxu0 0
      %3944 = vmatprep.subr.bf16.mxu0 0
      %3945 = vmatpush1.bf16.xpose.msra.mxu0 0
      %3946 = vmatprep.subr.bf16.mxu0 0
      %3947 = vmatpush1.bf16.xpose.msra.mxu0 0
      %3948 = vmatprep.subr.bf16.mxu0 0
      %3949 = vmatpush1.bf16.xpose.msra.mxu0 0
      %3950 = vmatprep.subr.bf16.mxu0 0
      %3951 = vmatpush1.bf16.xpose.msra.mxu0 0
      %3952 = vmatprep.subr.bf16.mxu0 0
      %3953 = vmatpush1.bf16.xpose.msra.mxu0 0
      %3954 = vmatprep.subr.bf16.mxu0 0
      %3955 = vmatpush1.bf16.xpose.msra.mxu0 0
      %3956 = vmatprep.subr.bf16.mxu0 0
      %3957 = vmatpush1.bf16.xpose.msra.mxu0 0
      %3958 = vmatprep.subr.bf16.mxu0 0
      %3959 = vmatpush1.bf16.xpose.msra.mxu0 0
      %3960 = vmatprep.subr.bf16.mxu0 0
      %3961 = vmatpush1.bf16.xpose.msra.mxu0 0
      %3962 = vmatprep.subr.bf16.mxu0 0
      %3963 = vmatpush1.bf16.xpose.msra.mxu0 0
      %3964 = vmatprep.subr.bf16.mxu0 0
      %3965 = vmatpush1.bf16.xpose.msra.mxu0 0
      %3966 = vmatprep.subr.bf16.mxu0 0
      %3967 = vmatpush1.bf16.xpose.msra.mxu0 0
      %3968 = vmatprep.mubr.bf16.mxu0 0
      %3969 = vmatmul.mubr.bf16.gmra.mrb[0].mxu0 %v3931
      %v3970 = vpop.f32.mrb[0].mxu0
      %v3971 = vadd.f32 0.0, %v3970
      %v3972 = vpop.f32.mrb[0].mxu0
      %v3973 = vpop.f32.mrb[0].mxu0
      %v3974 = vpop.f32.mrb[0].mxu0
      %3975 = vdwg.mxu0
      %v3976 = vmul.f32 %v3821, 0.25
      %v3977 = vmul.f32 %v3871, 0.25
      %v3978 = vmul.f32 %v3921, 0.25
      %v3979 = vmul.f32 %v3971, 0.25
      %v3980 = vsel %vm433, %v3976, -inf
      %3981 = vmax.xlane.f32.xlu0 %v3980
      %v3982 = vpop.xlane.xlu0 %3981
      %v3983 = vsel %vm433, %v3977, -inf
      %3984 = vmax.xlane.f32.xlu0 %v3983
      %v3985 = vpop.xlane.xlu0 %3984
      %v3986 = vsel %vm433, %v3978, -inf
      %3987 = vmax.xlane.f32.xlu0 %v3986
      %v3988 = vpop.xlane.xlu0 %3987
      %v3989 = vsel %vm433, %v3979, -inf
      %3990 = vmax.xlane.f32.xlu0 %v3989
      %v3991 = vpop.xlane.xlu0 %3990
      %v3992 = vsub.f32 %v3976, %v3982
      %v3993 = vsub.f32 %v3977, %v3985
      %v3994 = vsub.f32 %v3978, %v3988
      %v3995 = vsub.f32 %v3979, %v3991
      %v3996 = vmul.f32 %v3992, 1.442695
      %v3997 = vpow.pop %v3996
      %v3998 = vmul.f32 %v3993, 1.442695
      %v3999 = vpow.pop %v3998
      %v4000 = vmul.f32 %v3994, 1.442695
      %v4001 = vpow.pop %v4000
      %v4002 = vmul.f32 %v3995, 1.442695
      %v4003 = vpow.pop %v4002
      %v4004 = vsel %vm433, %v3997, 0.0
      %4005 = vadd.xlane.f32.xlu0 %v4004
      %v4006 = vpop.xlane.xlu0 %4005
      %v4007 = vsel %vm433, %v3999, 0.0
      %4008 = vadd.xlane.f32.xlu0 %v4007
      %v4009 = vpop.xlane.xlu0 %4008
      %v4010 = vsel %vm433, %v4001, 0.0
      %4011 = vadd.xlane.f32.xlu0 %v4010
      %v4012 = vpop.xlane.xlu0 %4011
      %v4013 = vsel %vm433, %v4003, 0.0
      %4014 = vadd.xlane.f32.xlu0 %v4013
      %v4015 = vpop.xlane.xlu0 %4014
      %v4016 = vrcp.pop %v4006
      %v4017 = vrcp.pop %v4009
      %v4018 = vrcp.pop %v4012
      %v4019 = vrcp.pop %v4015
      %v4020 = vmul.f32 %v3997, %v4016
      %v4021 = vmul.f32 %v3999, %v4017
      %v4022 = vmul.f32 %v4001, %v4018
      %v4023 = vmul.f32 %v4003, %v4019
      %v4024 = vpack.c.bf16 %v4020, %v4020
      %v4025 = vpack.c.bf16 %v4021, %v4021
      %v4026 = vpack.c.bf16 %v4022, %v4022
      %v4027 = vpack.c.bf16 %v4023, %v4023
      %4029 = vrot.lane.b32.xlu0 %v3586, 112
      %v4030 = vpop.permute.xlu0 %4029
      %v4032 = vsel %vm433, %v4024, 0
      %v4035 = vsel %vm440, %v4030, 0
      %4037 = vmatprep.subr.bf16.mxu0 0
      %4038 = vmatpush1.bf16.msra.mxu0 %v4035
      %4039 = vmatprep.subr.bf16.mxu0 0
      %4040 = vmatpush1.bf16.msra.mxu0 0
      %4041 = vmatprep.subr.bf16.mxu0 0
      %4042 = vmatpush1.bf16.msra.mxu0 0
      %4043 = vmatprep.subr.bf16.mxu0 0
      %4044 = vmatpush1.bf16.msra.mxu0 0
      %4045 = vmatprep.subr.bf16.mxu0 0
      %4046 = vmatpush1.bf16.msra.mxu0 0
      %4047 = vmatprep.subr.bf16.mxu0 0
      %4048 = vmatpush1.bf16.msra.mxu0 0
      %4049 = vmatprep.subr.bf16.mxu0 0
      %4050 = vmatpush1.bf16.msra.mxu0 0
      %4051 = vmatprep.subr.bf16.mxu0 0
      %4052 = vmatpush1.bf16.msra.mxu0 0
      %4053 = vmatprep.subr.bf16.mxu0 0
      %4054 = vmatpush1.bf16.msra.mxu0 0
      %4055 = vmatprep.subr.bf16.mxu0 0
      %4056 = vmatpush1.bf16.msra.mxu0 0
      %4057 = vmatprep.subr.bf16.mxu0 0
      %4058 = vmatpush1.bf16.msra.mxu0 0
      %4059 = vmatprep.subr.bf16.mxu0 0
      %4060 = vmatpush1.bf16.msra.mxu0 0
      %4061 = vmatprep.subr.bf16.mxu0 0
      %4062 = vmatpush1.bf16.msra.mxu0 0
      %4063 = vmatprep.subr.bf16.mxu0 0
      %4064 = vmatpush1.bf16.msra.mxu0 0
      %4065 = vmatprep.subr.bf16.mxu0 0
      %4066 = vmatpush1.bf16.msra.mxu0 0
      %4067 = vmatprep.subr.bf16.mxu0 0
      %4068 = vmatpush1.bf16.msra.mxu0 0
      %4069 = vmatprep.mubr.bf16.mxu0 0
      %4070 = vmatmul.mubr.bf16.gmra.mrb[0].mxu0 %v4032
      %v4071 = vpop.f32.mrb[0].mxu0
      %v4072 = vadd.f32 0.0, %v4071
      %v4073 = vpop.f32.mrb[0].mxu0
      %v4074 = vpop.f32.mrb[0].mxu0
      %v4075 = vpop.f32.mrb[0].mxu0
      %4076 = vdwg.mxu0
      %4078 = vrot.lane.b32.xlu0 %v3587, 112
      %v4079 = vpop.permute.xlu0 %4078
      %v4081 = vsel %vm433, %v4025, 0
      %v4084 = vsel %vm440, %v4079, 0
      %4086 = vmatprep.subr.bf16.mxu0 0
      %4087 = vmatpush1.bf16.msra.mxu0 %v4084
      %4088 = vmatprep.subr.bf16.mxu0 0
      %4089 = vmatpush1.bf16.msra.mxu0 0
      %4090 = vmatprep.subr.bf16.mxu0 0
      %4091 = vmatpush1.bf16.msra.mxu0 0
      %4092 = vmatprep.subr.bf16.mxu0 0
      %4093 = vmatpush1.bf16.msra.mxu0 0
      %4094 = vmatprep.subr.bf16.mxu0 0
      %4095 = vmatpush1.bf16.msra.mxu0 0
      %4096 = vmatprep.subr.bf16.mxu0 0
      %4097 = vmatpush1.bf16.msra.mxu0 0
      %4098 = vmatprep.subr.bf16.mxu0 0
      %4099 = vmatpush1.bf16.msra.mxu0 0
      %4100 = vmatprep.subr.bf16.mxu0 0
      %4101 = vmatpush1.bf16.msra.mxu0 0
      %4102 = vmatprep.subr.bf16.mxu0 0
      %4103 = vmatpush1.bf16.msra.mxu0 0
      %4104 = vmatprep.subr.bf16.mxu0 0
      %4105 = vmatpush1.bf16.msra.mxu0 0
      %4106 = vmatprep.subr.bf16.mxu0 0
      %4107 = vmatpush1.bf16.msra.mxu0 0
      %4108 = vmatprep.subr.bf16.mxu0 0
      %4109 = vmatpush1.bf16.msra.mxu0 0
      %4110 = vmatprep.subr.bf16.mxu0 0
      %4111 = vmatpush1.bf16.msra.mxu0 0
      %4112 = vmatprep.subr.bf16.mxu0 0
      %4113 = vmatpush1.bf16.msra.mxu0 0
      %4114 = vmatprep.subr.bf16.mxu0 0
      %4115 = vmatpush1.bf16.msra.mxu0 0
      %4116 = vmatprep.subr.bf16.mxu0 0
      %4117 = vmatpush1.bf16.msra.mxu0 0
      %4118 = vmatprep.mubr.bf16.mxu0 0
      %4119 = vmatmul.mubr.bf16.gmra.mrb[0].mxu0 %v4081
      %v4120 = vpop.f32.mrb[0].mxu0
      %v4121 = vadd.f32 0.0, %v4120
      %v4122 = vpop.f32.mrb[0].mxu0
      %v4123 = vpop.f32.mrb[0].mxu0
      %v4124 = vpop.f32.mrb[0].mxu0
      %4125 = vdwg.mxu0
      %4127 = vrot.lane.b32.xlu0 %v3588, 112
      %v4128 = vpop.permute.xlu0 %4127
      %v4130 = vsel %vm433, %v4026, 0
      %v4133 = vsel %vm440, %v4128, 0
      %4135 = vmatprep.subr.bf16.mxu0 0
      %4136 = vmatpush1.bf16.msra.mxu0 %v4133
      %4137 = vmatprep.subr.bf16.mxu0 0
      %4138 = vmatpush1.bf16.msra.mxu0 0
      %4139 = vmatprep.subr.bf16.mxu0 0
      %4140 = vmatpush1.bf16.msra.mxu0 0
      %4141 = vmatprep.subr.bf16.mxu0 0
      %4142 = vmatpush1.bf16.msra.mxu0 0
      %4143 = vmatprep.subr.bf16.mxu0 0
      %4144 = vmatpush1.bf16.msra.mxu0 0
      %4145 = vmatprep.subr.bf16.mxu0 0
      %4146 = vmatpush1.bf16.msra.mxu0 0
      %4147 = vmatprep.subr.bf16.mxu0 0
      %4148 = vmatpush1.bf16.msra.mxu0 0
      %4149 = vmatprep.subr.bf16.mxu0 0
      %4150 = vmatpush1.bf16.msra.mxu0 0
      %4151 = vmatprep.subr.bf16.mxu0 0
      %4152 = vmatpush1.bf16.msra.mxu0 0
      %4153 = vmatprep.subr.bf16.mxu0 0
      %4154 = vmatpush1.bf16.msra.mxu0 0
      %4155 = vmatprep.subr.bf16.mxu0 0
      %4156 = vmatpush1.bf16.msra.mxu0 0
      %4157 = vmatprep.subr.bf16.mxu0 0
      %4158 = vmatpush1.bf16.msra.mxu0 0
      %4159 = vmatprep.subr.bf16.mxu0 0
      %4160 = vmatpush1.bf16.msra.mxu0 0
      %4161 = vmatprep.subr.bf16.mxu0 0
      %4162 = vmatpush1.bf16.msra.mxu0 0
      %4163 = vmatprep.subr.bf16.mxu0 0
      %4164 = vmatpush1.bf16.msra.mxu0 0
      %4165 = vmatprep.subr.bf16.mxu0 0
      %4166 = vmatpush1.bf16.msra.mxu0 0
      %4167 = vmatprep.mubr.bf16.mxu0 0
      %4168 = vmatmul.mubr.bf16.gmra.mrb[0].mxu0 %v4130
      %v4169 = vpop.f32.mrb[0].mxu0
      %v4170 = vadd.f32 0.0, %v4169
      %v4171 = vpop.f32.mrb[0].mxu0
      %v4172 = vpop.f32.mrb[0].mxu0
      %v4173 = vpop.f32.mrb[0].mxu0
      %4174 = vdwg.mxu0
      %4176 = vrot.lane.b32.xlu0 %v3589, 112
      %v4177 = vpop.permute.xlu0 %4176
      %v4179 = vsel %vm433, %v4027, 0
      %v4182 = vsel %vm440, %v4177, 0
      %4184 = vmatprep.subr.bf16.mxu0 0
      %4185 = vmatpush1.bf16.msra.mxu0 %v4182
      %4186 = vmatprep.subr.bf16.mxu0 0
      %4187 = vmatpush1.bf16.msra.mxu0 0
      %4188 = vmatprep.subr.bf16.mxu0 0
      %4189 = vmatpush1.bf16.msra.mxu0 0
      %4190 = vmatprep.subr.bf16.mxu0 0
      %4191 = vmatpush1.bf16.msra.mxu0 0
      %4192 = vmatprep.subr.bf16.mxu0 0
      %4193 = vmatpush1.bf16.msra.mxu0 0
      %4194 = vmatprep.subr.bf16.mxu0 0
      %4195 = vmatpush1.bf16.msra.mxu0 0
      %4196 = vmatprep.subr.bf16.mxu0 0
      %4197 = vmatpush1.bf16.msra.mxu0 0
      %4198 = vmatprep.subr.bf16.mxu0 0
      %4199 = vmatpush1.bf16.msra.mxu0 0
      %4200 = vmatprep.subr.bf16.mxu0 0
      %4201 = vmatpush1.bf16.msra.mxu0 0
      %4202 = vmatprep.subr.bf16.mxu0 0
      %4203 = vmatpush1.bf16.msra.mxu0 0
      %4204 = vmatprep.subr.bf16.mxu0 0
      %4205 = vmatpush1.bf16.msra.mxu0 0
      %4206 = vmatprep.subr.bf16.mxu0 0
      %4207 = vmatpush1.bf16.msra.mxu0 0
      %4208 = vmatprep.subr.bf16.mxu0 0
      %4209 = vmatpush1.bf16.msra.mxu0 0
      %4210 = vmatprep.subr.bf16.mxu0 0
      %4211 = vmatpush1.bf16.msra.mxu0 0
      %4212 = vmatprep.subr.bf16.mxu0 0
      %4213 = vmatpush1.bf16.msra.mxu0 0
      %4214 = vmatprep.subr.bf16.mxu0 0
      %4215 = vmatpush1.bf16.msra.mxu0 0
      %4216 = vmatprep.mubr.bf16.mxu0 0
      %4217 = vmatmul.mubr.bf16.gmra.mrb[0].mxu0 %v4179
      %v4218 = vpop.f32.mrb[0].mxu0
      %v4219 = vadd.f32 0.0, %v4218
      %v4220 = vpop.f32.mrb[0].mxu0
      %v4221 = vpop.f32.mrb[0].mxu0
      %v4222 = vpop.f32.mrb[0].mxu0
      %4223 = vdwg.mxu0
      %v4224 = vpack.c.bf16 %v4121, %v4072
      %v4225 = vpack.c.bf16 %v4219, %v4170
      %v4228 = vunpack.c.l.b16 %v3212
      %v4229 = vunpack.c.l.b16 %v3213
      %v4230 = vpack.c.b16 %v4229, %v4228
      %v4233 = vsel %vm694, %v4224, 0
      %v4236 = vsel %vm694, %v4225, 0
      %4238 = vmatprep.subr.bf16.mxu0 0
      %4239 = vmatpush1.bf16.msra.mxu0 %v4230
      %4240 = vmatprep.subr.bf16.mxu0 0
      %4241 = vmatpush1.bf16.msra.mxu0 0
      %4242 = vmatprep.subr.bf16.mxu0 0
      %4243 = vmatpush1.bf16.msra.mxu0 0
      %4244 = vmatprep.subr.bf16.mxu0 0
      %4245 = vmatpush1.bf16.msra.mxu0 0
      %4246 = vmatprep.subr.bf16.mxu0 0
      %4247 = vmatpush1.bf16.msra.mxu0 0
      %4248 = vmatprep.subr.bf16.mxu0 0
      %4249 = vmatpush1.bf16.msra.mxu0 0
      %4250 = vmatprep.subr.bf16.mxu0 0
      %4251 = vmatpush1.bf16.msra.mxu0 0
      %4252 = vmatprep.subr.bf16.mxu0 0
      %4253 = vmatpush1.bf16.msra.mxu0 0
      %4254 = vmatprep.subr.bf16.mxu0 0
      %4255 = vmatpush1.bf16.msra.mxu0 0
      %4256 = vmatprep.subr.bf16.mxu0 0
      %4257 = vmatpush1.bf16.msra.mxu0 0
      %4258 = vmatprep.subr.bf16.mxu0 0
      %4259 = vmatpush1.bf16.msra.mxu0 0
      %4260 = vmatprep.subr.bf16.mxu0 0
      %4261 = vmatpush1.bf16.msra.mxu0 0
      %4262 = vmatprep.subr.bf16.mxu0 0
      %4263 = vmatpush1.bf16.msra.mxu0 0
      %4264 = vmatprep.subr.bf16.mxu0 0
      %4265 = vmatpush1.bf16.msra.mxu0 0
      %4266 = vmatprep.subr.bf16.mxu0 0
      %4267 = vmatpush1.bf16.msra.mxu0 0
      %4268 = vmatprep.subr.bf16.mxu0 0
      %4269 = vmatpush1.bf16.msra.mxu0 0
      %4270 = vmatprep.mubr.bf16.mxu0 0
      %4271 = vmatmul.mubr.bf16.gmra.mrb[0].mxu0 %v4233
      %v4272 = vpop.f32.mrb[0].mxu0
      %v4273 = vadd.f32 0.0, %v4272
      %v4274 = vpop.f32.mrb[0].mxu0
      %v4275 = vpop.f32.mrb[0].mxu0
      %v4276 = vadd.f32 0.0, %v4275
      %v4277 = vpop.f32.mrb[0].mxu0
      %4278 = vmatprep.mubr.bf16.mxu0 0
      %4279 = vmatmul.mubr.bf16.gmra.mrb[0].mxu0 %v4236
      %v4280 = vpop.f32.mrb[0].mxu0
      %v4281 = vadd.f32 0.0, %v4280
      %v4282 = vpop.f32.mrb[0].mxu0
      %v4283 = vpop.f32.mrb[0].mxu0
      %v4284 = vadd.f32 0.0, %v4283
      %v4285 = vpop.f32.mrb[0].mxu0
      %4286 = vdwg.mxu0
      %v4289 = vunpack.c.l.b16 %v3210
      %v4290 = vunpack.c.l.b16 %v3211
      %v4291 = vpack.c.b16 %v4290, %v4289
      %v4294 = vsel %vm694, %v3774, 0
      %v4297 = vsel %vm694, %v3775, 0
      %4299 = vmatprep.subr.bf16.mxu0 0
      %4300 = vmatpush1.bf16.msra.mxu0 %v4291
      %4301 = vmatprep.subr.bf16.mxu0 0
      %4302 = vmatpush1.bf16.msra.mxu0 0
      %4303 = vmatprep.subr.bf16.mxu0 0
      %4304 = vmatpush1.bf16.msra.mxu0 0
      %4305 = vmatprep.subr.bf16.mxu0 0
      %4306 = vmatpush1.bf16.msra.mxu0 0
      %4307 = vmatprep.subr.bf16.mxu0 0
      %4308 = vmatpush1.bf16.msra.mxu0 0
      %4309 = vmatprep.subr.bf16.mxu0 0
      %4310 = vmatpush1.bf16.msra.mxu0 0
      %4311 = vmatprep.subr.bf16.mxu0 0
      %4312 = vmatpush1.bf16.msra.mxu0 0
      %4313 = vmatprep.subr.bf16.mxu0 0
      %4314 = vmatpush1.bf16.msra.mxu0 0
      %4315 = vmatprep.subr.bf16.mxu0 0
      %4316 = vmatpush1.bf16.msra.mxu0 0
      %4317 = vmatprep.subr.bf16.mxu0 0
      %4318 = vmatpush1.bf16.msra.mxu0 0
      %4319 = vmatprep.subr.bf16.mxu0 0
      %4320 = vmatpush1.bf16.msra.mxu0 0
      %4321 = vmatprep.subr.bf16.mxu0 0
      %4322 = vmatpush1.bf16.msra.mxu0 0
      %4323 = vmatprep.subr.bf16.mxu0 0
      %4324 = vmatpush1.bf16.msra.mxu0 0
      %4325 = vmatprep.subr.bf16.mxu0 0
      %4326 = vmatpush1.bf16.msra.mxu0 0
      %4327 = vmatprep.subr.bf16.mxu0 0
      %4328 = vmatpush1.bf16.msra.mxu0 0
      %4329 = vmatprep.subr.bf16.mxu0 0
      %4330 = vmatpush1.bf16.msra.mxu0 0
      %4331 = vmatprep.mubr.bf16.mxu0 0
      %4332 = vmatmul.mubr.bf16.gmra.mrb[0].mxu0 %v4294
      %v4333 = vpop.f32.mrb[0].mxu0
      %v4334 = vadd.f32 %v4273, %v4333
      %v4335 = vpop.f32.mrb[0].mxu0
      %v4336 = vpop.f32.mrb[0].mxu0
      %v4337 = vadd.f32 %v4276, %v4336
      %v4338 = vpop.f32.mrb[0].mxu0
      %4339 = vmatprep.mubr.bf16.mxu0 0
      %4340 = vmatmul.mubr.bf16.gmra.mrb[0].mxu0 %v4297
      %v4341 = vpop.f32.mrb[0].mxu0
      %v4342 = vadd.f32 %v4281, %v4341
      %v4343 = vpop.f32.mrb[0].mxu0
      %v4344 = vpop.f32.mrb[0].mxu0
      %v4345 = vadd.f32 %v4284, %v4344
      %v4346 = vpop.f32.mrb[0].mxu0
      %4347 = vdwg.mxu0
      %4348 = vrot.lane.b32.xlu0 %v3334, 96
      %v4349 = vpop.permute.xlu0 %4348
      %4350 = vrot.lane.b32.xlu0 %v3334, 32
      %v4351 = vpop.permute.xlu0 %4350
      %v4353 = vsel %vm694, %v4349, 0
      %v4356 = vsel %vm694, %v4351, 0
      %4358 = vmatprep.subr.bf16.mxu0 0
      %4359 = vmatpush1.bf16.xpose.msra.mxu0 %v4356
      %4360 = vmatprep.subr.bf16.mxu0 0
      %4361 = vmatpush1.bf16.xpose.msra.mxu0 0
      %4362 = vmatprep.subr.bf16.mxu0 0
      %4363 = vmatpush1.bf16.xpose.msra.mxu0 0
      %4364 = vmatprep.subr.bf16.mxu0 0
      %4365 = vmatpush1.bf16.xpose.msra.mxu0 0
      %4366 = vmatprep.subr.bf16.mxu0 0
      %4367 = vmatpush1.bf16.xpose.msra.mxu0 0
      %4368 = vmatprep.subr.bf16.mxu0 0
      %4369 = vmatpush1.bf16.xpose.msra.mxu0 0
      %4370 = vmatprep.subr.bf16.mxu0 0
      %4371 = vmatpush1.bf16.xpose.msra.mxu0 0
      %4372 = vmatprep.subr.bf16.mxu0 0
      %4373 = vmatpush1.bf16.xpose.msra.mxu0 0
      %4374 = vmatprep.subr.bf16.mxu0 0
      %4375 = vmatpush1.bf16.xpose.msra.mxu0 0
      %4376 = vmatprep.subr.bf16.mxu0 0
      %4377 = vmatpush1.bf16.xpose.msra.mxu0 0
      %4378 = vmatprep.subr.bf16.mxu0 0
      %4379 = vmatpush1.bf16.xpose.msra.mxu0 0
      %4380 = vmatprep.subr.bf16.mxu0 0
      %4381 = vmatpush1.bf16.xpose.msra.mxu0 0
      %4382 = vmatprep.subr.bf16.mxu0 0
      %4383 = vmatpush1.bf16.xpose.msra.mxu0 0
      %4384 = vmatprep.subr.bf16.mxu0 0
      %4385 = vmatpush1.bf16.xpose.msra.mxu0 0
      %4386 = vmatprep.subr.bf16.mxu0 0
      %4387 = vmatpush1.bf16.xpose.msra.mxu0 0
      %4388 = vmatprep.subr.bf16.mxu0 0
      %4389 = vmatpush1.bf16.xpose.msra.mxu0 0
      %4390 = vmatprep.mubr.bf16.mxu0 0
      %4391 = vmatmul.mubr.bf16.gmra.mrb[0].mxu0 %v4353
      %v4392 = vpop.f32.mrb[0].mxu0
      %v4393 = vadd.f32 0.0, %v4392
      %v4394 = vpop.f32.mrb[0].mxu0
      %v4395 = vpop.f32.mrb[0].mxu0
      %v4396 = vpop.f32.mrb[0].mxu0
      %4397 = vdwg.mxu0
      %4398 = vrot.lane.b32.xlu0 %v3335, 96
      %v4399 = vpop.permute.xlu0 %4398
      %4400 = vrot.lane.b32.xlu0 %v3335, 32
      %v4401 = vpop.permute.xlu0 %4400
      %v4403 = vsel %vm694, %v4399, 0
      %v4406 = vsel %vm694, %v4401, 0
      %4408 = vmatprep.subr.bf16.mxu0 0
      %4409 = vmatpush1.bf16.xpose.msra.mxu0 %v4406
      %4410 = vmatprep.subr.bf16.mxu0 0
      %4411 = vmatpush1.bf16.xpose.msra.mxu0 0
      %4412 = vmatprep.subr.bf16.mxu0 0
      %4413 = vmatpush1.bf16.xpose.msra.mxu0 0
      %4414 = vmatprep.subr.bf16.mxu0 0
      %4415 = vmatpush1.bf16.xpose.msra.mxu0 0
      %4416 = vmatprep.subr.bf16.mxu0 0
      %4417 = vmatpush1.bf16.xpose.msra.mxu0 0
      %4418 = vmatprep.subr.bf16.mxu0 0
      %4419 = vmatpush1.bf16.xpose.msra.mxu0 0
      %4420 = vmatprep.subr.bf16.mxu0 0
      %4421 = vmatpush1.bf16.xpose.msra.mxu0 0
      %4422 = vmatprep.subr.bf16.mxu0 0
      %4423 = vmatpush1.bf16.xpose.msra.mxu0 0
      %4424 = vmatprep.subr.bf16.mxu0 0
      %4425 = vmatpush1.bf16.xpose.msra.mxu0 0
      %4426 = vmatprep.subr.bf16.mxu0 0
      %4427 = vmatpush1.bf16.xpose.msra.mxu0 0
      %4428 = vmatprep.subr.bf16.mxu0 0
      %4429 = vmatpush1.bf16.xpose.msra.mxu0 0
      %4430 = vmatprep.subr.bf16.mxu0 0
      %4431 = vmatpush1.bf16.xpose.msra.mxu0 0
      %4432 = vmatprep.subr.bf16.mxu0 0
      %4433 = vmatpush1.bf16.xpose.msra.mxu0 0
      %4434 = vmatprep.subr.bf16.mxu0 0
      %4435 = vmatpush1.bf16.xpose.msra.mxu0 0
      %4436 = vmatprep.subr.bf16.mxu0 0
      %4437 = vmatpush1.bf16.xpose.msra.mxu0 0
      %4438 = vmatprep.subr.bf16.mxu0 0
      %4439 = vmatpush1.bf16.xpose.msra.mxu0 0
      %4440 = vmatprep.mubr.bf16.mxu0 0
      %4441 = vmatmul.mubr.bf16.gmra.mrb[0].mxu0 %v4403
      %v4442 = vpop.f32.mrb[0].mxu0
      %v4443 = vadd.f32 0.0, %v4442
      %v4444 = vpop.f32.mrb[0].mxu0
      %v4445 = vpop.f32.mrb[0].mxu0
      %v4446 = vpop.f32.mrb[0].mxu0
      %4447 = vdwg.mxu0
      %4448 = vrot.lane.b32.xlu0 %v3336, 96
      %v4449 = vpop.permute.xlu0 %4448
      %4450 = vrot.lane.b32.xlu0 %v3336, 32
      %v4451 = vpop.permute.xlu0 %4450
      %v4453 = vsel %vm694, %v4449, 0
      %v4456 = vsel %vm694, %v4451, 0
      %4458 = vmatprep.subr.bf16.mxu0 0
      %4459 = vmatpush1.bf16.xpose.msra.mxu0 %v4456
      %4460 = vmatprep.subr.bf16.mxu0 0
      %4461 = vmatpush1.bf16.xpose.msra.mxu0 0
      %4462 = vmatprep.subr.bf16.mxu0 0
      %4463 = vmatpush1.bf16.xpose.msra.mxu0 0
      %4464 = vmatprep.subr.bf16.mxu0 0
      %4465 = vmatpush1.bf16.xpose.msra.mxu0 0
      %4466 = vmatprep.subr.bf16.mxu0 0
      %4467 = vmatpush1.bf16.xpose.msra.mxu0 0
      %4468 = vmatprep.subr.bf16.mxu0 0
      %4469 = vmatpush1.bf16.xpose.msra.mxu0 0
      %4470 = vmatprep.subr.bf16.mxu0 0
      %4471 = vmatpush1.bf16.xpose.msra.mxu0 0
      %4472 = vmatprep.subr.bf16.mxu0 0
      %4473 = vmatpush1.bf16.xpose.msra.mxu0 0
      %4474 = vmatprep.subr.bf16.mxu0 0
      %4475 = vmatpush1.bf16.xpose.msra.mxu0 0
      %4476 = vmatprep.subr.bf16.mxu0 0
      %4477 = vmatpush1.bf16.xpose.msra.mxu0 0
      %4478 = vmatprep.subr.bf16.mxu0 0
      %4479 = vmatpush1.bf16.xpose.msra.mxu0 0
      %4480 = vmatprep.subr.bf16.mxu0 0
      %4481 = vmatpush1.bf16.xpose.msra.mxu0 0
      %4482 = vmatprep.subr.bf16.mxu0 0
      %4483 = vmatpush1.bf16.xpose.msra.mxu0 0
      %4484 = vmatprep.subr.bf16.mxu0 0
      %4485 = vmatpush1.bf16.xpose.msra.mxu0 0
      %4486 = vmatprep.subr.bf16.mxu0 0
      %4487 = vmatpush1.bf16.xpose.msra.mxu0 0
      %4488 = vmatprep.subr.bf16.mxu0 0
      %4489 = vmatpush1.bf16.xpose.msra.mxu0 0
      %4490 = vmatprep.mubr.bf16.mxu0 0
      %4491 = vmatmul.mubr.bf16.gmra.mrb[0].mxu0 %v4453
      %v4492 = vpop.f32.mrb[0].mxu0
      %v4493 = vadd.f32 0.0, %v4492
      %v4494 = vpop.f32.mrb[0].mxu0
      %v4495 = vpop.f32.mrb[0].mxu0
      %v4496 = vpop.f32.mrb[0].mxu0
      %4497 = vdwg.mxu0
      %4498 = vrot.lane.b32.xlu0 %v3337, 96
      %v4499 = vpop.permute.xlu0 %4498
      %4500 = vrot.lane.b32.xlu0 %v3337, 32
      %v4501 = vpop.permute.xlu0 %4500
      %v4503 = vsel %vm694, %v4499, 0
      %v4506 = vsel %vm694, %v4501, 0
      %4508 = vmatprep.subr.bf16.mxu0 0
      %4509 = vmatpush1.bf16.xpose.msra.mxu0 %v4506
      %4510 = vmatprep.subr.bf16.mxu0 0
      %4511 = vmatpush1.bf16.xpose.msra.mxu0 0
      %4512 = vmatprep.subr.bf16.mxu0 0
      %4513 = vmatpush1.bf16.xpose.msra.mxu0 0
      %4514 = vmatprep.subr.bf16.mxu0 0
      %4515 = vmatpush1.bf16.xpose.msra.mxu0 0
      %4516 = vmatprep.subr.bf16.mxu0 0
      %4517 = vmatpush1.bf16.xpose.msra.mxu0 0
      %4518 = vmatprep.subr.bf16.mxu0 0
      %4519 = vmatpush1.bf16.xpose.msra.mxu0 0
      %4520 = vmatprep.subr.bf16.mxu0 0
      %4521 = vmatpush1.bf16.xpose.msra.mxu0 0
      %4522 = vmatprep.subr.bf16.mxu0 0
      %4523 = vmatpush1.bf16.xpose.msra.mxu0 0
      %4524 = vmatprep.subr.bf16.mxu0 0
      %4525 = vmatpush1.bf16.xpose.msra.mxu0 0
      %4526 = vmatprep.subr.bf16.mxu0 0
      %4527 = vmatpush1.bf16.xpose.msra.mxu0 0
      %4528 = vmatprep.subr.bf16.mxu0 0
      %4529 = vmatpush1.bf16.xpose.msra.mxu0 0
      %4530 = vmatprep.subr.bf16.mxu0 0
      %4531 = vmatpush1.bf16.xpose.msra.mxu0 0
      %4532 = vmatprep.subr.bf16.mxu0 0
      %4533 = vmatpush1.bf16.xpose.msra.mxu0 0
      %4534 = vmatprep.subr.bf16.mxu0 0
      %4535 = vmatpush1.bf16.xpose.msra.mxu0 0
      %4536 = vmatprep.subr.bf16.mxu0 0
      %4537 = vmatpush1.bf16.xpose.msra.mxu0 0
      %4538 = vmatprep.subr.bf16.mxu0 0
      %4539 = vmatpush1.bf16.xpose.msra.mxu0 0
      %4540 = vmatprep.mubr.bf16.mxu0 0
      %4541 = vmatmul.mubr.bf16.gmra.mrb[0].mxu0 %v4503
      %v4542 = vpop.f32.mrb[0].mxu0
      %v4543 = vadd.f32 0.0, %v4542
      %v4544 = vpop.f32.mrb[0].mxu0
      %v4545 = vpop.f32.mrb[0].mxu0
      %v4546 = vpop.f32.mrb[0].mxu0
      %4547 = vdwg.mxu0
      %v4548 = vmul.f32 %v4393, 0.25
      %v4549 = vmul.f32 %v4443, 0.25
      %v4550 = vmul.f32 %v4493, 0.25
      %v4551 = vmul.f32 %v4543, 0.25
      %v4552 = vsel %vm433, %v4548, -inf
      %4553 = vmax.xlane.f32.xlu0 %v4552
      %v4554 = vpop.xlane.xlu0 %4553
      %v4555 = vsel %vm433, %v4549, -inf
      %4556 = vmax.xlane.f32.xlu0 %v4555
      %v4557 = vpop.xlane.xlu0 %4556
      %v4558 = vsel %vm433, %v4550, -inf
      %4559 = vmax.xlane.f32.xlu0 %v4558
      %v4560 = vpop.xlane.xlu0 %4559
      %v4561 = vsel %vm433, %v4551, -inf
      %4562 = vmax.xlane.f32.xlu0 %v4561
      %v4563 = vpop.xlane.xlu0 %4562
      %v4564 = vsub.f32 %v4548, %v4554
      %v4565 = vsub.f32 %v4549, %v4557
      %v4566 = vsub.f32 %v4550, %v4560
      %v4567 = vsub.f32 %v4551, %v4563
      %v4568 = vmul.f32 %v4564, 1.442695
      %v4569 = vpow.pop %v4568
      %v4570 = vmul.f32 %v4565, 1.442695
      %v4571 = vpow.pop %v4570
      %v4572 = vmul.f32 %v4566, 1.442695
      %v4573 = vpow.pop %v4572
      %v4574 = vmul.f32 %v4567, 1.442695
      %v4575 = vpow.pop %v4574
      %v4576 = vsel %vm433, %v4569, 0.0
      %4577 = vadd.xlane.f32.xlu0 %v4576
      %v4578 = vpop.xlane.xlu0 %4577
      %v4579 = vsel %vm433, %v4571, 0.0
      %4580 = vadd.xlane.f32.xlu0 %v4579
      %v4581 = vpop.xlane.xlu0 %4580
      %v4582 = vsel %vm433, %v4573, 0.0
      %4583 = vadd.xlane.f32.xlu0 %v4582
      %v4584 = vpop.xlane.xlu0 %4583
      %v4585 = vsel %vm433, %v4575, 0.0
      %4586 = vadd.xlane.f32.xlu0 %v4585
      %v4587 = vpop.xlane.xlu0 %4586
      %v4588 = vrcp.pop %v4578
      %v4589 = vrcp.pop %v4581
      %v4590 = vrcp.pop %v4584
      %v4591 = vrcp.pop %v4587
      %v4592 = vmul.f32 %v4569, %v4588
      %v4593 = vmul.f32 %v4571, %v4589
      %v4594 = vmul.f32 %v4573, %v4590
      %v4595 = vmul.f32 %v4575, %v4591
      %v4596 = vpack.c.bf16 %v4592, %v4592
      %v4597 = vpack.c.bf16 %v4593, %v4593
      %v4598 = vpack.c.bf16 %v4594, %v4594
      %v4599 = vpack.c.bf16 %v4595, %v4595
      %4600 = vrot.lane.b32.xlu0 %v3586, 96
      %v4601 = vpop.permute.xlu0 %4600
      %v4603 = vsel %vm433, %v4596, 0
      %v4606 = vsel %vm440, %v4601, 0
      %4608 = vmatprep.subr.bf16.mxu0 0
      %4609 = vmatpush1.bf16.msra.mxu0 %v4606
      %4610 = vmatprep.subr.bf16.mxu0 0
      %4611 = vmatpush1.bf16.msra.mxu0 0
      %4612 = vmatprep.subr.bf16.mxu0 0
      %4613 = vmatpush1.bf16.msra.mxu0 0
      %4614 = vmatprep.subr.bf16.mxu0 0
      %4615 = vmatpush1.bf16.msra.mxu0 0
      %4616 = vmatprep.subr.bf16.mxu0 0
      %4617 = vmatpush1.bf16.msra.mxu0 0
      %4618 = vmatprep.subr.bf16.mxu0 0
      %4619 = vmatpush1.bf16.msra.mxu0 0
      %4620 = vmatprep.subr.bf16.mxu0 0
      %4621 = vmatpush1.bf16.msra.mxu0 0
      %4622 = vmatprep.subr.bf16.mxu0 0
      %4623 = vmatpush1.bf16.msra.mxu0 0
      %4624 = vmatprep.subr.bf16.mxu0 0
      %4625 = vmatpush1.bf16.msra.mxu0 0
      %4626 = vmatprep.subr.bf16.mxu0 0
      %4627 = vmatpush1.bf16.msra.mxu0 0
      %4628 = vmatprep.subr.bf16.mxu0 0
      %4629 = vmatpush1.bf16.msra.mxu0 0
      %4630 = vmatprep.subr.bf16.mxu0 0
      %4631 = vmatpush1.bf16.msra.mxu0 0
      %4632 = vmatprep.subr.bf16.mxu0 0
      %4633 = vmatpush1.bf16.msra.mxu0 0
      %4634 = vmatprep.subr.bf16.mxu0 0
      %4635 = vmatpush1.bf16.msra.mxu0 0
      %4636 = vmatprep.subr.bf16.mxu0 0
      %4637 = vmatpush1.bf16.msra.mxu0 0
      %4638 = vmatprep.subr.bf16.mxu0 0
      %4639 = vmatpush1.bf16.msra.mxu0 0
      %4640 = vmatprep.mubr.bf16.mxu0 0
      %4641 = vmatmul.mubr.bf16.gmra.mrb[0].mxu0 %v4603
      %v4642 = vpop.f32.mrb[0].mxu0
      %v4643 = vadd.f32 0.0, %v4642
      %v4644 = vpop.f32.mrb[0].mxu0
      %v4645 = vpop.f32.mrb[0].mxu0
      %v4646 = vpop.f32.mrb[0].mxu0
      %4647 = vdwg.mxu0
      %4648 = vrot.lane.b32.xlu0 %v3587, 96
      %v4649 = vpop.permute.xlu0 %4648
      %v4651 = vsel %vm433, %v4597, 0
      %v4654 = vsel %vm440, %v4649, 0
      %4656 = vmatprep.subr.bf16.mxu0 0
      %4657 = vmatpush1.bf16.msra.mxu0 %v4654
      %4658 = vmatprep.subr.bf16.mxu0 0
      %4659 = vmatpush1.bf16.msra.mxu0 0
      %4660 = vmatprep.subr.bf16.mxu0 0
      %4661 = vmatpush1.bf16.msra.mxu0 0
      %4662 = vmatprep.subr.bf16.mxu0 0
      %4663 = vmatpush1.bf16.msra.mxu0 0
      %4664 = vmatprep.subr.bf16.mxu0 0
      %4665 = vmatpush1.bf16.msra.mxu0 0
      %4666 = vmatprep.subr.bf16.mxu0 0
      %4667 = vmatpush1.bf16.msra.mxu0 0
      %4668 = vmatprep.subr.bf16.mxu0 0
      %4669 = vmatpush1.bf16.msra.mxu0 0
      %4670 = vmatprep.subr.bf16.mxu0 0
      %4671 = vmatpush1.bf16.msra.mxu0 0
      %4672 = vmatprep.subr.bf16.mxu0 0
      %4673 = vmatpush1.bf16.msra.mxu0 0
      %4674 = vmatprep.subr.bf16.mxu0 0
      %4675 = vmatpush1.bf16.msra.mxu0 0
      %4676 = vmatprep.subr.bf16.mxu0 0
      %4677 = vmatpush1.bf16.msra.mxu0 0
      %4678 = vmatprep.subr.bf16.mxu0 0
      %4679 = vmatpush1.bf16.msra.mxu0 0
      %4680 = vmatprep.subr.bf16.mxu0 0
      %4681 = vmatpush1.bf16.msra.mxu0 0
      %4682 = vmatprep.subr.bf16.mxu0 0
      %4683 = vmatpush1.bf16.msra.mxu0 0
      %4684 = vmatprep.subr.bf16.mxu0 0
      %4685 = vmatpush1.bf16.msra.mxu0 0
      %4686 = vmatprep.subr.bf16.mxu0 0
      %4687 = vmatpush1.bf16.msra.mxu0 0
      %4688 = vmatprep.mubr.bf16.mxu0 0
      %4689 = vmatmul.mubr.bf16.gmra.mrb[0].mxu0 %v4651
      %v4690 = vpop.f32.mrb[0].mxu0
      %v4691 = vadd.f32 0.0, %v4690
      %v4692 = vpop.f32.mrb[0].mxu0
      %v4693 = vpop.f32.mrb[0].mxu0
      %v4694 = vpop.f32.mrb[0].mxu0
      %4695 = vdwg.mxu0
      %4696 = vrot.lane.b32.xlu0 %v3588, 96
      %v4697 = vpop.permute.xlu0 %4696
      %v4699 = vsel %vm433, %v4598, 0
      %v4702 = vsel %vm440, %v4697, 0
      %4704 = vmatprep.subr.bf16.mxu0 0
      %4705 = vmatpush1.bf16.msra.mxu0 %v4702
      %4706 = vmatprep.subr.bf16.mxu0 0
      %4707 = vmatpush1.bf16.msra.mxu0 0
      %4708 = vmatprep.subr.bf16.mxu0 0
      %4709 = vmatpush1.bf16.msra.mxu0 0
      %4710 = vmatprep.subr.bf16.mxu0 0
      %4711 = vmatpush1.bf16.msra.mxu0 0
      %4712 = vmatprep.subr.bf16.mxu0 0
      %4713 = vmatpush1.bf16.msra.mxu0 0
      %4714 = vmatprep.subr.bf16.mxu0 0
      %4715 = vmatpush1.bf16.msra.mxu0 0
      %4716 = vmatprep.subr.bf16.mxu0 0
      %4717 = vmatpush1.bf16.msra.mxu0 0
      %4718 = vmatprep.subr.bf16.mxu0 0
      %4719 = vmatpush1.bf16.msra.mxu0 0
      %4720 = vmatprep.subr.bf16.mxu0 0
      %4721 = vmatpush1.bf16.msra.mxu0 0
      %4722 = vmatprep.subr.bf16.mxu0 0
      %4723 = vmatpush1.bf16.msra.mxu0 0
      %4724 = vmatprep.subr.bf16.mxu0 0
      %4725 = vmatpush1.bf16.msra.mxu0 0
      %4726 = vmatprep.subr.bf16.mxu0 0
      %4727 = vmatpush1.bf16.msra.mxu0 0
      %4728 = vmatprep.subr.bf16.mxu0 0
      %4729 = vmatpush1.bf16.msra.mxu0 0
      %4730 = vmatprep.subr.bf16.mxu0 0
      %4731 = vmatpush1.bf16.msra.mxu0 0
      %4732 = vmatprep.subr.bf16.mxu0 0
      %4733 = vmatpush1.bf16.msra.mxu0 0
      %4734 = vmatprep.subr.bf16.mxu0 0
      %4735 = vmatpush1.bf16.msra.mxu0 0
      %4736 = vmatprep.mubr.bf16.mxu0 0
      %4737 = vmatmul.mubr.bf16.gmra.mrb[0].mxu0 %v4699
      %v4738 = vpop.f32.mrb[0].mxu0
      %v4739 = vadd.f32 0.0, %v4738
      %v4740 = vpop.f32.mrb[0].mxu0
      %v4741 = vpop.f32.mrb[0].mxu0
      %v4742 = vpop.f32.mrb[0].mxu0
      %4743 = vdwg.mxu0
      %4744 = vrot.lane.b32.xlu0 %v3589, 96
      %v4745 = vpop.permute.xlu0 %4744
      %v4747 = vsel %vm433, %v4599, 0
      %v4750 = vsel %vm440, %v4745, 0
      %4752 = vmatprep.subr.bf16.mxu0 0
      %4753 = vmatpush1.bf16.msra.mxu0 %v4750
      %4754 = vmatprep.subr.bf16.mxu0 0
      %4755 = vmatpush1.bf16.msra.mxu0 0
      %4756 = vmatprep.subr.bf16.mxu0 0
      %4757 = vmatpush1.bf16.msra.mxu0 0
      %4758 = vmatprep.subr.bf16.mxu0 0
      %4759 = vmatpush1.bf16.msra.mxu0 0
      %4760 = vmatprep.subr.bf16.mxu0 0
      %4761 = vmatpush1.bf16.msra.mxu0 0
      %4762 = vmatprep.subr.bf16.mxu0 0
      %4763 = vmatpush1.bf16.msra.mxu0 0
      %4764 = vmatprep.subr.bf16.mxu0 0
      %4765 = vmatpush1.bf16.msra.mxu0 0
      %4766 = vmatprep.subr.bf16.mxu0 0
      %4767 = vmatpush1.bf16.msra.mxu0 0
      %4768 = vmatprep.subr.bf16.mxu0 0
      %4769 = vmatpush1.bf16.msra.mxu0 0
      %4770 = vmatprep.subr.bf16.mxu0 0
      %4771 = vmatpush1.bf16.msra.mxu0 0
      %4772 = vmatprep.subr.bf16.mxu0 0
      %4773 = vmatpush1.bf16.msra.mxu0 0
      %4774 = vmatprep.subr.bf16.mxu0 0
      %4775 = vmatpush1.bf16.msra.mxu0 0
      %4776 = vmatprep.subr.bf16.mxu0 0
      %4777 = vmatpush1.bf16.msra.mxu0 0
      %4778 = vmatprep.subr.bf16.mxu0 0
      %4779 = vmatpush1.bf16.msra.mxu0 0
      %4780 = vmatprep.subr.bf16.mxu0 0
      %4781 = vmatpush1.bf16.msra.mxu0 0
      %4782 = vmatprep.subr.bf16.mxu0 0
      %4783 = vmatpush1.bf16.msra.mxu0 0
      %4784 = vmatprep.mubr.bf16.mxu0 0
      %4785 = vmatmul.mubr.bf16.gmra.mrb[0].mxu0 %v4747
      %v4786 = vpop.f32.mrb[0].mxu0
      %v4787 = vadd.f32 0.0, %v4786
      %v4788 = vpop.f32.mrb[0].mxu0
      %v4789 = vpop.f32.mrb[0].mxu0
      %v4790 = vpop.f32.mrb[0].mxu0
      %4791 = vdwg.mxu0
      %v4792 = vpack.c.bf16 %v4691, %v4643
      %v4793 = vpack.c.bf16 %v4787, %v4739
      %v4796 = vunpack.c.l.b16 %v3214
      %v4797 = vunpack.c.l.b16 %v3215
      %v4798 = vpack.c.b16 %v4797, %v4796
      %v4801 = vsel %vm694, %v4792, 0
      %v4804 = vsel %vm694, %v4793, 0
      %4806 = vmatprep.subr.bf16.mxu0 0
      %4807 = vmatpush1.bf16.msra.mxu0 %v4798
      %4808 = vmatprep.subr.bf16.mxu0 0
      %4809 = vmatpush1.bf16.msra.mxu0 0
      %4810 = vmatprep.subr.bf16.mxu0 0
      %4811 = vmatpush1.bf16.msra.mxu0 0
      %4812 = vmatprep.subr.bf16.mxu0 0
      %4813 = vmatpush1.bf16.msra.mxu0 0
      %4814 = vmatprep.subr.bf16.mxu0 0
      %4815 = vmatpush1.bf16.msra.mxu0 0
      %4816 = vmatprep.subr.bf16.mxu0 0
      %4817 = vmatpush1.bf16.msra.mxu0 0
      %4818 = vmatprep.subr.bf16.mxu0 0
      %4819 = vmatpush1.bf16.msra.mxu0 0
      %4820 = vmatprep.subr.bf16.mxu0 0
      %4821 = vmatpush1.bf16.msra.mxu0 0
      %4822 = vmatprep.subr.bf16.mxu0 0
      %4823 = vmatpush1.bf16.msra.mxu0 0
      %4824 = vmatprep.subr.bf16.mxu0 0
      %4825 = vmatpush1.bf16.msra.mxu0 0
      %4826 = vmatprep.subr.bf16.mxu0 0
      %4827 = vmatpush1.bf16.msra.mxu0 0
      %4828 = vmatprep.subr.bf16.mxu0 0
      %4829 = vmatpush1.bf16.msra.mxu0 0
      %4830 = vmatprep.subr.bf16.mxu0 0
      %4831 = vmatpush1.bf16.msra.mxu0 0
      %4832 = vmatprep.subr.bf16.mxu0 0
      %4833 = vmatpush1.bf16.msra.mxu0 0
      %4834 = vmatprep.subr.bf16.mxu0 0
      %4835 = vmatpush1.bf16.msra.mxu0 0
      %4836 = vmatprep.subr.bf16.mxu0 0
      %4837 = vmatpush1.bf16.msra.mxu0 0
      %4838 = vmatprep.mubr.bf16.mxu0 0
      %4839 = vmatmul.mubr.bf16.gmra.mrb[0].mxu0 %v4801
      %v4840 = vpop.f32.mrb[0].mxu0
      %v4841 = vadd.f32 0.0, %v4840
      %v4842 = vpop.f32.mrb[0].mxu0
      %v4843 = vpop.f32.mrb[0].mxu0
      %v4844 = vadd.f32 0.0, %v4843
      %v4845 = vpop.f32.mrb[0].mxu0
      %4846 = vmatprep.mubr.bf16.mxu0 0
      %4847 = vmatmul.mubr.bf16.gmra.mrb[0].mxu0 %v4804
      %v4848 = vpop.f32.mrb[0].mxu0
      %v4849 = vadd.f32 0.0, %v4848
      %v4850 = vpop.f32.mrb[0].mxu0
      %v4851 = vpop.f32.mrb[0].mxu0
      %v4852 = vadd.f32 0.0, %v4851
      %v4853 = vpop.f32.mrb[0].mxu0
      %4854 = vdwg.mxu0
      %v4855 = vadd.f32 %v4334, %v4841
      %v4856 = vadd.f32 %v4337, %v4844
      %v4857 = vadd.f32 %v4342, %v4849
      %v4858 = vadd.f32 %v4345, %v4852
      %4859 = vrot.lane.b32.xlu0 %v3334, 80
      %v4860 = vpop.permute.xlu0 %4859
      %4861 = vrot.lane.b32.xlu0 %v3334, 16
      %v4862 = vpop.permute.xlu0 %4861
      %v4864 = vsel %vm694, %v4860, 0
      %v4867 = vsel %vm694, %v4862, 0
      %4869 = vmatprep.subr.bf16.mxu0 0
      %4870 = vmatpush1.bf16.xpose.msra.mxu0 %v4867
      %4871 = vmatprep.subr.bf16.mxu0 0
      %4872 = vmatpush1.bf16.xpose.msra.mxu0 0
      %4873 = vmatprep.subr.bf16.mxu0 0
      %4874 = vmatpush1.bf16.xpose.msra.mxu0 0
      %4875 = vmatprep.subr.bf16.mxu0 0
      %4876 = vmatpush1.bf16.xpose.msra.mxu0 0
      %4877 = vmatprep.subr.bf16.mxu0 0
      %4878 = vmatpush1.bf16.xpose.msra.mxu0 0
      %4879 = vmatprep.subr.bf16.mxu0 0
      %4880 = vmatpush1.bf16.xpose.msra.mxu0 0
      %4881 = vmatprep.subr.bf16.mxu0 0
      %4882 = vmatpush1.bf16.xpose.msra.mxu0 0
      %4883 = vmatprep.subr.bf16.mxu0 0
      %4884 = vmatpush1.bf16.xpose.msra.mxu0 0
      %4885 = vmatprep.subr.bf16.mxu0 0
      %4886 = vmatpush1.bf16.xpose.msra.mxu0 0
      %4887 = vmatprep.subr.bf16.mxu0 0
      %4888 = vmatpush1.bf16.xpose.msra.mxu0 0
      %4889 = vmatprep.subr.bf16.mxu0 0
      %4890 = vmatpush1.bf16.xpose.msra.mxu0 0
      %4891 = vmatprep.subr.bf16.mxu0 0
      %4892 = vmatpush1.bf16.xpose.msra.mxu0 0
      %4893 = vmatprep.subr.bf16.mxu0 0
      %4894 = vmatpush1.bf16.xpose.msra.mxu0 0
      %4895 = vmatprep.subr.bf16.mxu0 0
      %4896 = vmatpush1.bf16.xpose.msra.mxu0 0
      %4897 = vmatprep.subr.bf16.mxu0 0
      %4898 = vmatpush1.bf16.xpose.msra.mxu0 0
      %4899 = vmatprep.subr.bf16.mxu0 0
      %4900 = vmatpush1.bf16.xpose.msra.mxu0 0
      %4901 = vmatprep.mubr.bf16.mxu0 0
      %4902 = vmatmul.mubr.bf16.gmra.mrb[0].mxu0 %v4864
      %v4903 = vpop.f32.mrb[0].mxu0
      %v4904 = vadd.f32 0.0, %v4903
      %v4905 = vpop.f32.mrb[0].mxu0
      %v4906 = vpop.f32.mrb[0].mxu0
      %v4907 = vpop.f32.mrb[0].mxu0
      %4908 = vdwg.mxu0
      %4909 = vrot.lane.b32.xlu0 %v3335, 80
      %v4910 = vpop.permute.xlu0 %4909
      %4911 = vrot.lane.b32.xlu0 %v3335, 16
      %v4912 = vpop.permute.xlu0 %4911
      %v4914 = vsel %vm694, %v4910, 0
      %v4917 = vsel %vm694, %v4912, 0
      %4919 = vmatprep.subr.bf16.mxu0 0
      %4920 = vmatpush1.bf16.xpose.msra.mxu0 %v4917
      %4921 = vmatprep.subr.bf16.mxu0 0
      %4922 = vmatpush1.bf16.xpose.msra.mxu0 0
      %4923 = vmatprep.subr.bf16.mxu0 0
      %4924 = vmatpush1.bf16.xpose.msra.mxu0 0
      %4925 = vmatprep.subr.bf16.mxu0 0
      %4926 = vmatpush1.bf16.xpose.msra.mxu0 0
      %4927 = vmatprep.subr.bf16.mxu0 0
      %4928 = vmatpush1.bf16.xpose.msra.mxu0 0
      %4929 = vmatprep.subr.bf16.mxu0 0
      %4930 = vmatpush1.bf16.xpose.msra.mxu0 0
      %4931 = vmatprep.subr.bf16.mxu0 0
      %4932 = vmatpush1.bf16.xpose.msra.mxu0 0
      %4933 = vmatprep.subr.bf16.mxu0 0
      %4934 = vmatpush1.bf16.xpose.msra.mxu0 0
      %4935 = vmatprep.subr.bf16.mxu0 0
      %4936 = vmatpush1.bf16.xpose.msra.mxu0 0
      %4937 = vmatprep.subr.bf16.mxu0 0
      %4938 = vmatpush1.bf16.xpose.msra.mxu0 0
      %4939 = vmatprep.subr.bf16.mxu0 0
      %4940 = vmatpush1.bf16.xpose.msra.mxu0 0
      %4941 = vmatprep.subr.bf16.mxu0 0
      %4942 = vmatpush1.bf16.xpose.msra.mxu0 0
      %4943 = vmatprep.subr.bf16.mxu0 0
      %4944 = vmatpush1.bf16.xpose.msra.mxu0 0
      %4945 = vmatprep.subr.bf16.mxu0 0
      %4946 = vmatpush1.bf16.xpose.msra.mxu0 0
      %4947 = vmatprep.subr.bf16.mxu0 0
      %4948 = vmatpush1.bf16.xpose.msra.mxu0 0
      %4949 = vmatprep.subr.bf16.mxu0 0
      %4950 = vmatpush1.bf16.xpose.msra.mxu0 0
      %4951 = vmatprep.mubr.bf16.mxu0 0
      %4952 = vmatmul.mubr.bf16.gmra.mrb[0].mxu0 %v4914
      %v4953 = vpop.f32.mrb[0].mxu0
      %v4954 = vadd.f32 0.0, %v4953
      %v4955 = vpop.f32.mrb[0].mxu0
      %v4956 = vpop.f32.mrb[0].mxu0
      %v4957 = vpop.f32.mrb[0].mxu0
      %4958 = vdwg.mxu0
      %4959 = vrot.lane.b32.xlu0 %v3336, 80
      %v4960 = vpop.permute.xlu0 %4959
      %4961 = vrot.lane.b32.xlu0 %v3336, 16
      %v4962 = vpop.permute.xlu0 %4961
      %v4964 = vsel %vm694, %v4960, 0
      %v4967 = vsel %vm694, %v4962, 0
      %4969 = vmatprep.subr.bf16.mxu0 0
      %4970 = vmatpush1.bf16.xpose.msra.mxu0 %v4967
      %4971 = vmatprep.subr.bf16.mxu0 0
      %4972 = vmatpush1.bf16.xpose.msra.mxu0 0
      %4973 = vmatprep.subr.bf16.mxu0 0
      %4974 = vmatpush1.bf16.xpose.msra.mxu0 0
      %4975 = vmatprep.subr.bf16.mxu0 0
      %4976 = vmatpush1.bf16.xpose.msra.mxu0 0
      %4977 = vmatprep.subr.bf16.mxu0 0
      %4978 = vmatpush1.bf16.xpose.msra.mxu0 0
      %4979 = vmatprep.subr.bf16.mxu0 0
      %4980 = vmatpush1.bf16.xpose.msra.mxu0 0
      %4981 = vmatprep.subr.bf16.mxu0 0
      %4982 = vmatpush1.bf16.xpose.msra.mxu0 0
      %4983 = vmatprep.subr.bf16.mxu0 0
      %4984 = vmatpush1.bf16.xpose.msra.mxu0 0
      %4985 = vmatprep.subr.bf16.mxu0 0
      %4986 = vmatpush1.bf16.xpose.msra.mxu0 0
      %4987 = vmatprep.subr.bf16.mxu0 0
      %4988 = vmatpush1.bf16.xpose.msra.mxu0 0
      %4989 = vmatprep.subr.bf16.mxu0 0
      %4990 = vmatpush1.bf16.xpose.msra.mxu0 0
      %4991 = vmatprep.subr.bf16.mxu0 0
      %4992 = vmatpush1.bf16.xpose.msra.mxu0 0
      %4993 = vmatprep.subr.bf16.mxu0 0
      %4994 = vmatpush1.bf16.xpose.msra.mxu0 0
      %4995 = vmatprep.subr.bf16.mxu0 0
      %4996 = vmatpush1.bf16.xpose.msra.mxu0 0
      %4997 = vmatprep.subr.bf16.mxu0 0
      %4998 = vmatpush1.bf16.xpose.msra.mxu0 0
      %4999 = vmatprep.subr.bf16.mxu0 0
      %5000 = vmatpush1.bf16.xpose.msra.mxu0 0
      %5001 = vmatprep.mubr.bf16.mxu0 0
      %5002 = vmatmul.mubr.bf16.gmra.mrb[0].mxu0 %v4964
      %v5003 = vpop.f32.mrb[0].mxu0
      %v5004 = vadd.f32 0.0, %v5003
      %v5005 = vpop.f32.mrb[0].mxu0
      %v5006 = vpop.f32.mrb[0].mxu0
      %v5007 = vpop.f32.mrb[0].mxu0
      %5008 = vdwg.mxu0
      %5009 = vrot.lane.b32.xlu0 %v3337, 80
      %v5010 = vpop.permute.xlu0 %5009
      %5011 = vrot.lane.b32.xlu0 %v3337, 16
      %v5012 = vpop.permute.xlu0 %5011
      %v5014 = vsel %vm694, %v5010, 0
      %v5017 = vsel %vm694, %v5012, 0
      %5019 = vmatprep.subr.bf16.mxu0 0
      %5020 = vmatpush1.bf16.xpose.msra.mxu0 %v5017
      %5021 = vmatprep.subr.bf16.mxu0 0
      %5022 = vmatpush1.bf16.xpose.msra.mxu0 0
      %5023 = vmatprep.subr.bf16.mxu0 0
      %5024 = vmatpush1.bf16.xpose.msra.mxu0 0
      %5025 = vmatprep.subr.bf16.mxu0 0
      %5026 = vmatpush1.bf16.xpose.msra.mxu0 0
      %5027 = vmatprep.subr.bf16.mxu0 0
      %5028 = vmatpush1.bf16.xpose.msra.mxu0 0
      %5029 = vmatprep.subr.bf16.mxu0 0
      %5030 = vmatpush1.bf16.xpose.msra.mxu0 0
      %5031 = vmatprep.subr.bf16.mxu0 0
      %5032 = vmatpush1.bf16.xpose.msra.mxu0 0
      %5033 = vmatprep.subr.bf16.mxu0 0
      %5034 = vmatpush1.bf16.xpose.msra.mxu0 0
      %5035 = vmatprep.subr.bf16.mxu0 0
      %5036 = vmatpush1.bf16.xpose.msra.mxu0 0
      %5037 = vmatprep.subr.bf16.mxu0 0
      %5038 = vmatpush1.bf16.xpose.msra.mxu0 0
      %5039 = vmatprep.subr.bf16.mxu0 0
      %5040 = vmatpush1.bf16.xpose.msra.mxu0 0
      %5041 = vmatprep.subr.bf16.mxu0 0
      %5042 = vmatpush1.bf16.xpose.msra.mxu0 0
      %5043 = vmatprep.subr.bf16.mxu0 0
      %5044 = vmatpush1.bf16.xpose.msra.mxu0 0
      %5045 = vmatprep.subr.bf16.mxu0 0
      %5046 = vmatpush1.bf16.xpose.msra.mxu0 0
      %5047 = vmatprep.subr.bf16.mxu0 0
      %5048 = vmatpush1.bf16.xpose.msra.mxu0 0
      %5049 = vmatprep.subr.bf16.mxu0 0
      %5050 = vmatpush1.bf16.xpose.msra.mxu0 0
      %5051 = vmatprep.mubr.bf16.mxu0 0
      %5052 = vmatmul.mubr.bf16.gmra.mrb[0].mxu0 %v5014
      %v5053 = vpop.f32.mrb[0].mxu0
      %v5054 = vadd.f32 0.0, %v5053
      %v5055 = vpop.f32.mrb[0].mxu0
      %v5056 = vpop.f32.mrb[0].mxu0
      %v5057 = vpop.f32.mrb[0].mxu0
      %5058 = vdwg.mxu0
      %v5059 = vmul.f32 %v4904, 0.25
      %v5060 = vmul.f32 %v4954, 0.25
      %v5061 = vmul.f32 %v5004, 0.25
      %v5062 = vmul.f32 %v5054, 0.25
      %v5063 = vsel %vm433, %v5059, -inf
      %5064 = vmax.xlane.f32.xlu0 %v5063
      %v5065 = vpop.xlane.xlu0 %5064
      %v5066 = vsel %vm433, %v5060, -inf
      %5067 = vmax.xlane.f32.xlu0 %v5066
      %v5068 = vpop.xlane.xlu0 %5067
      %v5069 = vsel %vm433, %v5061, -inf
      %5070 = vmax.xlane.f32.xlu0 %v5069
      %v5071 = vpop.xlane.xlu0 %5070
      %v5072 = vsel %vm433, %v5062, -inf
      %5073 = vmax.xlane.f32.xlu0 %v5072
      %v5074 = vpop.xlane.xlu0 %5073
      %v5075 = vsub.f32 %v5059, %v5065
      %v5076 = vsub.f32 %v5060, %v5068
      %v5077 = vsub.f32 %v5061, %v5071
      %v5078 = vsub.f32 %v5062, %v5074
      %v5079 = vmul.f32 %v5075, 1.442695
      %v5080 = vpow.pop %v5079
      %v5081 = vmul.f32 %v5076, 1.442695
      %v5082 = vpow.pop %v5081
      %v5083 = vmul.f32 %v5077, 1.442695
      %v5084 = vpow.pop %v5083
      %v5085 = vmul.f32 %v5078, 1.442695
      %v5086 = vpow.pop %v5085
      %v5087 = vsel %vm433, %v5080, 0.0
      %5088 = vadd.xlane.f32.xlu0 %v5087
      %v5089 = vpop.xlane.xlu0 %5088
      %v5090 = vsel %vm433, %v5082, 0.0
      %5091 = vadd.xlane.f32.xlu0 %v5090
      %v5092 = vpop.xlane.xlu0 %5091
      %v5093 = vsel %vm433, %v5084, 0.0
      %5094 = vadd.xlane.f32.xlu0 %v5093
      %v5095 = vpop.xlane.xlu0 %5094
      %v5096 = vsel %vm433, %v5086, 0.0
      %5097 = vadd.xlane.f32.xlu0 %v5096
      %v5098 = vpop.xlane.xlu0 %5097
      %v5099 = vrcp.pop %v5089
      %v5100 = vrcp.pop %v5092
      %v5101 = vrcp.pop %v5095
      %v5102 = vrcp.pop %v5098
      %v5103 = vmul.f32 %v5080, %v5099
      %v5104 = vmul.f32 %v5082, %v5100
      %v5105 = vmul.f32 %v5084, %v5101
      %v5106 = vmul.f32 %v5086, %v5102
      %v5107 = vpack.c.bf16 %v5103, %v5103
      %v5108 = vpack.c.bf16 %v5104, %v5104
      %v5109 = vpack.c.bf16 %v5105, %v5105
      %v5110 = vpack.c.bf16 %v5106, %v5106
      %5111 = vrot.lane.b32.xlu0 %v3586, 80
      %v5112 = vpop.permute.xlu0 %5111
      %v5114 = vsel %vm433, %v5107, 0
      %v5117 = vsel %vm440, %v5112, 0
      %5119 = vmatprep.subr.bf16.mxu0 0
      %5120 = vmatpush1.bf16.msra.mxu0 %v5117
      %5121 = vmatprep.subr.bf16.mxu0 0
      %5122 = vmatpush1.bf16.msra.mxu0 0
      %5123 = vmatprep.subr.bf16.mxu0 0
      %5124 = vmatpush1.bf16.msra.mxu0 0
      %5125 = vmatprep.subr.bf16.mxu0 0
      %5126 = vmatpush1.bf16.msra.mxu0 0
      %5127 = vmatprep.subr.bf16.mxu0 0
      %5128 = vmatpush1.bf16.msra.mxu0 0
      %5129 = vmatprep.subr.bf16.mxu0 0
      %5130 = vmatpush1.bf16.msra.mxu0 0
      %5131 = vmatprep.subr.bf16.mxu0 0
      %5132 = vmatpush1.bf16.msra.mxu0 0
      %5133 = vmatprep.subr.bf16.mxu0 0
      %5134 = vmatpush1.bf16.msra.mxu0 0
      %5135 = vmatprep.subr.bf16.mxu0 0
      %5136 = vmatpush1.bf16.msra.mxu0 0
      %5137 = vmatprep.subr.bf16.mxu0 0
      %5138 = vmatpush1.bf16.msra.mxu0 0
      %5139 = vmatprep.subr.bf16.mxu0 0
      %5140 = vmatpush1.bf16.msra.mxu0 0
      %5141 = vmatprep.subr.bf16.mxu0 0
      %5142 = vmatpush1.bf16.msra.mxu0 0
      %5143 = vmatprep.subr.bf16.mxu0 0
      %5144 = vmatpush1.bf16.msra.mxu0 0
      %5145 = vmatprep.subr.bf16.mxu0 0
      %5146 = vmatpush1.bf16.msra.mxu0 0
      %5147 = vmatprep.subr.bf16.mxu0 0
      %5148 = vmatpush1.bf16.msra.mxu0 0
      %5149 = vmatprep.subr.bf16.mxu0 0
      %5150 = vmatpush1.bf16.msra.mxu0 0
      %5151 = vmatprep.mubr.bf16.mxu0 0
      %5152 = vmatmul.mubr.bf16.gmra.mrb[0].mxu0 %v5114
      %v5153 = vpop.f32.mrb[0].mxu0
      %v5154 = vadd.f32 0.0, %v5153
      %v5155 = vpop.f32.mrb[0].mxu0
      %v5156 = vpop.f32.mrb[0].mxu0
      %v5157 = vpop.f32.mrb[0].mxu0
      %5158 = vdwg.mxu0
      %5159 = vrot.lane.b32.xlu0 %v3587, 80
      %v5160 = vpop.permute.xlu0 %5159
      %v5162 = vsel %vm433, %v5108, 0
      %v5165 = vsel %vm440, %v5160, 0
      %5167 = vmatprep.subr.bf16.mxu0 0
      %5168 = vmatpush1.bf16.msra.mxu0 %v5165
      %5169 = vmatprep.subr.bf16.mxu0 0
      %5170 = vmatpush1.bf16.msra.mxu0 0
      %5171 = vmatprep.subr.bf16.mxu0 0
      %5172 = vmatpush1.bf16.msra.mxu0 0
      %5173 = vmatprep.subr.bf16.mxu0 0
      %5174 = vmatpush1.bf16.msra.mxu0 0
      %5175 = vmatprep.subr.bf16.mxu0 0
      %5176 = vmatpush1.bf16.msra.mxu0 0
      %5177 = vmatprep.subr.bf16.mxu0 0
      %5178 = vmatpush1.bf16.msra.mxu0 0
      %5179 = vmatprep.subr.bf16.mxu0 0
      %5180 = vmatpush1.bf16.msra.mxu0 0
      %5181 = vmatprep.subr.bf16.mxu0 0
      %5182 = vmatpush1.bf16.msra.mxu0 0
      %5183 = vmatprep.subr.bf16.mxu0 0
      %5184 = vmatpush1.bf16.msra.mxu0 0
      %5185 = vmatprep.subr.bf16.mxu0 0
      %5186 = vmatpush1.bf16.msra.mxu0 0
      %5187 = vmatprep.subr.bf16.mxu0 0
      %5188 = vmatpush1.bf16.msra.mxu0 0
      %5189 = vmatprep.subr.bf16.mxu0 0
      %5190 = vmatpush1.bf16.msra.mxu0 0
      %5191 = vmatprep.subr.bf16.mxu0 0
      %5192 = vmatpush1.bf16.msra.mxu0 0
      %5193 = vmatprep.subr.bf16.mxu0 0
      %5194 = vmatpush1.bf16.msra.mxu0 0
      %5195 = vmatprep.subr.bf16.mxu0 0
      %5196 = vmatpush1.bf16.msra.mxu0 0
      %5197 = vmatprep.subr.bf16.mxu0 0
      %5198 = vmatpush1.bf16.msra.mxu0 0
      %5199 = vmatprep.mubr.bf16.mxu0 0
      %5200 = vmatmul.mubr.bf16.gmra.mrb[0].mxu0 %v5162
      %v5201 = vpop.f32.mrb[0].mxu0
      %v5202 = vadd.f32 0.0, %v5201
      %v5203 = vpop.f32.mrb[0].mxu0
      %v5204 = vpop.f32.mrb[0].mxu0
      %v5205 = vpop.f32.mrb[0].mxu0
      %5206 = vdwg.mxu0
      %5207 = vrot.lane.b32.xlu0 %v3588, 80
      %v5208 = vpop.permute.xlu0 %5207
      %v5210 = vsel %vm433, %v5109, 0
      %v5213 = vsel %vm440, %v5208, 0
      %5215 = vmatprep.subr.bf16.mxu0 0
      %5216 = vmatpush1.bf16.msra.mxu0 %v5213
      %5217 = vmatprep.subr.bf16.mxu0 0
      %5218 = vmatpush1.bf16.msra.mxu0 0
      %5219 = vmatprep.subr.bf16.mxu0 0
      %5220 = vmatpush1.bf16.msra.mxu0 0
      %5221 = vmatprep.subr.bf16.mxu0 0
      %5222 = vmatpush1.bf16.msra.mxu0 0
      %5223 = vmatprep.subr.bf16.mxu0 0
      %5224 = vmatpush1.bf16.msra.mxu0 0
      %5225 = vmatprep.subr.bf16.mxu0 0
      %5226 = vmatpush1.bf16.msra.mxu0 0
      %5227 = vmatprep.subr.bf16.mxu0 0
      %5228 = vmatpush1.bf16.msra.mxu0 0
      %5229 = vmatprep.subr.bf16.mxu0 0
      %5230 = vmatpush1.bf16.msra.mxu0 0
      %5231 = vmatprep.subr.bf16.mxu0 0
      %5232 = vmatpush1.bf16.msra.mxu0 0
      %5233 = vmatprep.subr.bf16.mxu0 0
      %5234 = vmatpush1.bf16.msra.mxu0 0
      %5235 = vmatprep.subr.bf16.mxu0 0
      %5236 = vmatpush1.bf16.msra.mxu0 0
      %5237 = vmatprep.subr.bf16.mxu0 0
      %5238 = vmatpush1.bf16.msra.mxu0 0
      %5239 = vmatprep.subr.bf16.mxu0 0
      %5240 = vmatpush1.bf16.msra.mxu0 0
      %5241 = vmatprep.subr.bf16.mxu0 0
      %5242 = vmatpush1.bf16.msra.mxu0 0
      %5243 = vmatprep.subr.bf16.mxu0 0
      %5244 = vmatpush1.bf16.msra.mxu0 0
      %5245 = vmatprep.subr.bf16.mxu0 0
      %5246 = vmatpush1.bf16.msra.mxu0 0
      %5247 = vmatprep.mubr.bf16.mxu0 0
      %5248 = vmatmul.mubr.bf16.gmra.mrb[0].mxu0 %v5210
      %v5249 = vpop.f32.mrb[0].mxu0
      %v5250 = vadd.f32 0.0, %v5249
      %v5251 = vpop.f32.mrb[0].mxu0
      %v5252 = vpop.f32.mrb[0].mxu0
      %v5253 = vpop.f32.mrb[0].mxu0
      %5254 = vdwg.mxu0
      %5255 = vrot.lane.b32.xlu0 %v3589, 80
      %v5256 = vpop.permute.xlu0 %5255
      %v5258 = vsel %vm433, %v5110, 0
      %v5261 = vsel %vm440, %v5256, 0
      %5263 = vmatprep.subr.bf16.mxu0 0
      %5264 = vmatpush1.bf16.msra.mxu0 %v5261
      %5265 = vmatprep.subr.bf16.mxu0 0
      %5266 = vmatpush1.bf16.msra.mxu0 0
      %5267 = vmatprep.subr.bf16.mxu0 0
      %5268 = vmatpush1.bf16.msra.mxu0 0
      %5269 = vmatprep.subr.bf16.mxu0 0
      %5270 = vmatpush1.bf16.msra.mxu0 0
      %5271 = vmatprep.subr.bf16.mxu0 0
      %5272 = vmatpush1.bf16.msra.mxu0 0
      %5273 = vmatprep.subr.bf16.mxu0 0
      %5274 = vmatpush1.bf16.msra.mxu0 0
      %5275 = vmatprep.subr.bf16.mxu0 0
      %5276 = vmatpush1.bf16.msra.mxu0 0
      %5277 = vmatprep.subr.bf16.mxu0 0
      %5278 = vmatpush1.bf16.msra.mxu0 0
      %5279 = vmatprep.subr.bf16.mxu0 0
      %5280 = vmatpush1.bf16.msra.mxu0 0
      %5281 = vmatprep.subr.bf16.mxu0 0
      %5282 = vmatpush1.bf16.msra.mxu0 0
      %5283 = vmatprep.subr.bf16.mxu0 0
      %5284 = vmatpush1.bf16.msra.mxu0 0
      %5285 = vmatprep.subr.bf16.mxu0 0
      %5286 = vmatpush1.bf16.msra.mxu0 0
      %5287 = vmatprep.subr.bf16.mxu0 0
      %5288 = vmatpush1.bf16.msra.mxu0 0
      %5289 = vmatprep.subr.bf16.mxu0 0
      %5290 = vmatpush1.bf16.msra.mxu0 0
      %5291 = vmatprep.subr.bf16.mxu0 0
      %5292 = vmatpush1.bf16.msra.mxu0 0
      %5293 = vmatprep.subr.bf16.mxu0 0
      %5294 = vmatpush1.bf16.msra.mxu0 0
      %5295 = vmatprep.mubr.bf16.mxu0 0
      %5296 = vmatmul.mubr.bf16.gmra.mrb[0].mxu0 %v5258
      %v5297 = vpop.f32.mrb[0].mxu0
      %v5298 = vadd.f32 0.0, %v5297
      %v5299 = vpop.f32.mrb[0].mxu0
      %v5300 = vpop.f32.mrb[0].mxu0
      %v5301 = vpop.f32.mrb[0].mxu0
      %5302 = vdwg.mxu0
      %v5303 = vpack.c.bf16 %v5202, %v5154
      %v5304 = vpack.c.bf16 %v5298, %v5250
      %v5307 = vunpack.c.l.b16 %v3216
      %v5308 = vunpack.c.l.b16 %v3217
      %v5309 = vpack.c.b16 %v5308, %v5307
      %v5312 = vsel %vm694, %v5303, 0
      %v5315 = vsel %vm694, %v5304, 0
      %5317 = vmatprep.subr.bf16.mxu0 0
      %5318 = vmatpush1.bf16.msra.mxu0 %v5309
      %5319 = vmatprep.subr.bf16.mxu0 0
      %5320 = vmatpush1.bf16.msra.mxu0 0
      %5321 = vmatprep.subr.bf16.mxu0 0
      %5322 = vmatpush1.bf16.msra.mxu0 0
      %5323 = vmatprep.subr.bf16.mxu0 0
      %5324 = vmatpush1.bf16.msra.mxu0 0
      %5325 = vmatprep.subr.bf16.mxu0 0
      %5326 = vmatpush1.bf16.msra.mxu0 0
      %5327 = vmatprep.subr.bf16.mxu0 0
      %5328 = vmatpush1.bf16.msra.mxu0 0
      %5329 = vmatprep.subr.bf16.mxu0 0
      %5330 = vmatpush1.bf16.msra.mxu0 0
      %5331 = vmatprep.subr.bf16.mxu0 0
      %5332 = vmatpush1.bf16.msra.mxu0 0
      %5333 = vmatprep.subr.bf16.mxu0 0
      %5334 = vmatpush1.bf16.msra.mxu0 0
      %5335 = vmatprep.subr.bf16.mxu0 0
      %5336 = vmatpush1.bf16.msra.mxu0 0
      %5337 = vmatprep.subr.bf16.mxu0 0
      %5338 = vmatpush1.bf16.msra.mxu0 0
      %5339 = vmatprep.subr.bf16.mxu0 0
      %5340 = vmatpush1.bf16.msra.mxu0 0
      %5341 = vmatprep.subr.bf16.mxu0 0
      %5342 = vmatpush1.bf16.msra.mxu0 0
      %5343 = vmatprep.subr.bf16.mxu0 0
      %5344 = vmatpush1.bf16.msra.mxu0 0
      %5345 = vmatprep.subr.bf16.mxu0 0
      %5346 = vmatpush1.bf16.msra.mxu0 0
      %5347 = vmatprep.subr.bf16.mxu0 0
      %5348 = vmatpush1.bf16.msra.mxu0 0
      %5349 = vmatprep.mubr.bf16.mxu0 0
      %5350 = vmatmul.mubr.bf16.gmra.mrb[0].mxu0 %v5312
      %v5351 = vpop.f32.mrb[0].mxu0
      %v5352 = vadd.f32 0.0, %v5351
      %v5353 = vpop.f32.mrb[0].mxu0
      %v5354 = vpop.f32.mrb[0].mxu0
      %v5355 = vadd.f32 0.0, %v5354
      %v5356 = vpop.f32.mrb[0].mxu0
      %5357 = vmatprep.mubr.bf16.mxu0 0
      %5358 = vmatmul.mubr.bf16.gmra.mrb[0].mxu0 %v5315
      %v5359 = vpop.f32.mrb[0].mxu0
      %v5360 = vadd.f32 0.0, %v5359
      %v5361 = vpop.f32.mrb[0].mxu0
      %v5362 = vpop.f32.mrb[0].mxu0
      %v5363 = vadd.f32 0.0, %v5362
      %v5364 = vpop.f32.mrb[0].mxu0
      %5365 = vdwg.mxu0
      %v5366 = vadd.f32 %v4855, %v5352
      %v5367 = vadd.f32 %v4856, %v5355
      %v5368 = vadd.f32 %v4857, %v5360
      %v5369 = vadd.f32 %v4858, %v5363
      %v5370 = vlaneseq
      %v5371 = vshrl.u32 %v5370, 7
      %v5372 = vsub.s32 0, %v5371
      %v5373 = vrot.slane %v3219, %v5372
      %v5374 = vadd.f32 %v5366, %v5373
      %v5375 = vadd.f32 %v5367, %v5373
      %v5376 = vadd.f32 %v5368, %v5373
      %v5377 = vadd.f32 %v5369, %v5373
      %v5378 = vadd.f32 %v3196, %v5374
      %v5379 = vadd.f32 %v3197, %v5375
      %v5380 = vadd.f32 %v3198, %v5376
      %v5381 = vadd.f32 %v3199, %v5377
      %v5382 = vsel %vm627, %v5378, 0.0
      %5383 = vadd.xlane.f32.xlu0 %v5382
      %v5384 = vpop.xlane.xlu0 %5383
      %v5385 = vsel %vm627, %v5379, 0.0
      %5386 = vadd.xlane.f32.xlu0 %v5385
      %v5387 = vpop.xlane.xlu0 %5386
      %v5388 = vsel %vm627, %v5380, 0.0
      %5389 = vadd.xlane.f32.xlu0 %v5388
      %v5390 = vpop.xlane.xlu0 %5389
      %v5391 = vsel %vm627, %v5381, 0.0
      %5392 = vadd.xlane.f32.xlu0 %v5391
      %v5393 = vpop.xlane.xlu0 %5392
      %v5394 = vmul.f32 %v5384, %v2748
      %v5395 = vmul.f32 %v5387, %v2748
      %v5396 = vmul.f32 %v5390, %v2748
      %v5397 = vmul.f32 %v5393, %v2748
      %v5398 = vsub.f32 %v5378, %v5394
      %v5399 = vsub.f32 %v5379, %v5395
      %v5400 = vsub.f32 %v5380, %v5396
      %v5401 = vsub.f32 %v5381, %v5397
      %v5402 = vmul.f32 %v5398, %v5398
      %v5403 = vmul.f32 %v5399, %v5399
      %v5404 = vmul.f32 %v5400, %v5400
      %v5405 = vmul.f32 %v5401, %v5401
      %v5406 = vsel %vm627, %v5402, 0.0
      %5407 = vadd.xlane.f32.xlu0 %v5406
      %v5408 = vpop.xlane.xlu0 %5407
      %v5409 = vsel %vm627, %v5403, 0.0
      %5410 = vadd.xlane.f32.xlu0 %v5409
      %v5411 = vpop.xlane.xlu0 %5410
      %v5412 = vsel %vm627, %v5404, 0.0
      %5413 = vadd.xlane.f32.xlu0 %v5412
      %v5414 = vpop.xlane.xlu0 %5413
      %v5415 = vsel %vm627, %v5405, 0.0
      %5416 = vadd.xlane.f32.xlu0 %v5415
      %v5417 = vpop.xlane.xlu0 %5416
      %v5418 = vmul.f32 %v5408, %v2748
      %v5419 = vmul.f32 %v5411, %v2748
      %v5420 = vmul.f32 %v5414, %v2748
      %v5421 = vmul.f32 %v5417, %v2748
      %v5422 = vadd.f32 %v5418, 1e-05
      %v5423 = vadd.f32 %v5419, 1e-05
      %v5424 = vadd.f32 %v5420, 1e-05
      %v5425 = vadd.f32 %v5421, 1e-05
      %v5426 = vrsqrt.pop %v5422
      %v5427 = vrsqrt.pop %v5423
      %v5428 = vrsqrt.pop %v5424
      %v5429 = vrsqrt.pop %v5425
      %v5430 = vmul.f32 %v5398, %v5426
      %v5431 = vmul.f32 %v5399, %v5427
      %v5432 = vmul.f32 %v5400, %v5428
      %v5433 = vmul.f32 %v5401, %v5429
      %v5434 = vlaneseq
      %v5435 = vshrl.u32 %v5434, 7
      %v5436 = vsub.s32 1, %v5435
      %v5437 = vrot.slane %v3219, %v5436
      %v5438 = vmul.f32 %v5430, %v5437
      %v5439 = vmul.f32 %v5431, %v5437
      %v5440 = vmul.f32 %v5432, %v5437
      %v5441 = vmul.f32 %v5433, %v5437
      %v5442 = vlaneseq
      %v5443 = vshrl.u32 %v5442, 7
      %v5444 = vsub.s32 2, %v5443
      %v5445 = vrot.slane %v3219, %v5444
      %v5446 = vadd.f32 %v5438, %v5445
      %v5447 = vadd.f32 %v5439, %v5445
      %v5448 = vadd.f32 %v5440, %v5445
      %v5449 = vadd.f32 %v5441, %v5445
      %s5450 = scalar_lea.vmem %s6, 32
      %v5451 = vld [vmem:[%s5450] sm:$0xf]
      %v5452 = vld [vmem:[%s5450 + $0x4] sm:$0xf]
      %v5453 = vld [vmem:[%s5450 + $0x8] sm:$0xf]
      %v5454 = vld [vmem:[%s5450 + $0xc] sm:$0xf]
      %v5455 = vld [vmem:[%s5450 + $0x10] sm:$0xf]
      %v5456 = vld [vmem:[%s5450 + $0x14] sm:$0xf]
      %v5457 = vld [vmem:[%s5450 + $0x18] sm:$0xf]
      %v5458 = vld [vmem:[%s5450 + $0x1c] sm:$0xf]
      %s5459 = scalar_lea.vmem %s8, 64
      %v5460 = vld [vmem:[%s5459] sm:$0xf]
      %v5461 = vld [vmem:[%s5459 + $0x4] sm:$0xf]
      %v5462 = vld [vmem:[%s5459 + $0x8] sm:$0xf]
      %v5463 = vld [vmem:[%s5459 + $0xc] sm:$0xf]
      %v5464 = vld [vmem:[%s5459 + $0x10] sm:$0xf]
      %v5465 = vld [vmem:[%s5459 + $0x14] sm:$0xf]
      %v5466 = vld [vmem:[%s5459 + $0x18] sm:$0xf]
      %v5467 = vld [vmem:[%s5459 + $0x1c] sm:$0xf]
      %v5468 = vld [vmem:[%s5459 + $0x20] sm:$0xf]
      %v5469 = vld [vmem:[%s5459 + $0x24] sm:$0xf]
      %v5470 = vld [vmem:[%s5459 + $0x28] sm:$0xf]
      %v5471 = vld [vmem:[%s5459 + $0x2c] sm:$0xf]
      %v5472 = vld [vmem:[%s5459 + $0x30] sm:$0xf]
      %v5473 = vld [vmem:[%s5459 + $0x34] sm:$0xf]
      %v5474 = vld [vmem:[%s5459 + $0x38] sm:$0xf]
      %v5475 = vld [vmem:[%s5459 + $0x3c] sm:$0xf]
      %v5476 = vpack.c.bf16 %v5447, %v5446
      %v5477 = vpack.c.bf16 %v5449, %v5448
      %s5478 = scalar_lea.vmem %s7, 1
      %v5479 = vld [vmem:[%s5478] sm:$0x1]
      %v5481 = vlaneseq
      %v5482 = vshrl.u32 %v5481, 7
      %v5483 = vsub.s32 0, %v5482
      %v5484 = vrot.slane %v5479, %v5483
      %v5494 = vunpack.c.l.b16 %v5451
      %v5495 = vunpack.c.l.b16 %v5452
      %v5496 = vunpack.c.l.b16 %v5453
      %v5497 = vunpack.c.l.b16 %v5454
      %v5498 = vunpack.c.l.b16 %v5455
      %v5499 = vunpack.c.l.b16 %v5456
      %v5500 = vunpack.c.l.b16 %v5457
      %v5501 = vunpack.c.l.b16 %v5458
      %v5502 = vpack.c.b16 %v5495, %v5494
      %v5503 = vpack.c.b16 %v5497, %v5496
      %v5504 = vpack.c.b16 %v5499, %v5498
      %v5505 = vpack.c.b16 %v5501, %v5500
      %v5511 = vsel %vm627, %v5476, 0
      %v5514 = vsel %vm627, %v5477, 0
      %5516 = vmatprep.subr.bf16.mxu0 0
      %5517 = vmatpush1.bf16.msra.mxu0 %v5502
      %5518 = vmatprep.subr.bf16.mxu0 0
      %5519 = vmatpush1.bf16.msra.mxu0 %v5503
      %5520 = vmatprep.subr.bf16.mxu0 0
      %5521 = vmatpush1.bf16.msra.mxu0 %v5504
      %5522 = vmatprep.subr.bf16.mxu0 0
      %5523 = vmatpush1.bf16.msra.mxu0 %v5505
      %5524 = vmatprep.subr.bf16.mxu0 0
      %5525 = vmatpush1.bf16.msra.mxu0 0
      %5526 = vmatprep.subr.bf16.mxu0 0
      %5527 = vmatpush1.bf16.msra.mxu0 0
      %5528 = vmatprep.subr.bf16.mxu0 0
      %5529 = vmatpush1.bf16.msra.mxu0 0
      %5530 = vmatprep.subr.bf16.mxu0 0
      %5531 = vmatpush1.bf16.msra.mxu0 0
      %5532 = vmatprep.subr.bf16.mxu0 0
      %5533 = vmatpush1.bf16.msra.mxu0 0
      %5534 = vmatprep.subr.bf16.mxu0 0
      %5535 = vmatpush1.bf16.msra.mxu0 0
      %5536 = vmatprep.subr.bf16.mxu0 0
      %5537 = vmatpush1.bf16.msra.mxu0 0
      %5538 = vmatprep.subr.bf16.mxu0 0
      %5539 = vmatpush1.bf16.msra.mxu0 0
      %5540 = vmatprep.subr.bf16.mxu0 0
      %5541 = vmatpush1.bf16.msra.mxu0 0
      %5542 = vmatprep.subr.bf16.mxu0 0
      %5543 = vmatpush1.bf16.msra.mxu0 0
      %5544 = vmatprep.subr.bf16.mxu0 0
      %5545 = vmatpush1.bf16.msra.mxu0 0
      %5546 = vmatprep.subr.bf16.mxu0 0
      %5547 = vmatpush1.bf16.msra.mxu0 0
      %5548 = vmatprep.mubr.bf16.mxu0 0
      %5549 = vmatmul.mubr.bf16.gmra.mrb[0].mxu0 %v5511
      %v5550 = vpop.f32.mrb[0].mxu0
      %v5551 = vadd.f32 %v5484, %v5550
      %v5552 = vpop.f32.mrb[0].mxu0
      %v5553 = vpop.f32.mrb[0].mxu0
      %v5554 = vadd.f32 %v5484, %v5553
      %v5555 = vpop.f32.mrb[0].mxu0
      %5556 = vmatprep.mubr.bf16.mxu0 0
      %5557 = vmatmul.mubr.bf16.gmra.mrb[0].mxu0 %v5514
      %v5558 = vpop.f32.mrb[0].mxu0
      %v5559 = vadd.f32 %v5484, %v5558
      %v5560 = vpop.f32.mrb[0].mxu0
      %v5561 = vpop.f32.mrb[0].mxu0
      %v5562 = vadd.f32 %v5484, %v5561
      %v5563 = vpop.f32.mrb[0].mxu0
      %5564 = vdwg.mxu0
      %v5565 = vmul.f32 %v5551, 0.5
      %v5566 = vmul.f32 %v5554, 0.5
      %v5567 = vmul.f32 %v5559, 0.5
      %v5568 = vmul.f32 %v5562, 0.5
      %v5569 = vmul.f32 %v5551, 0.70710677
      %v5570 = vmul.f32 %v5554, 0.70710677
      %v5571 = vmul.f32 %v5559, 0.70710677
      %v5572 = vmul.f32 %v5562, 0.70710677
      %vm5573 = vcmp.ge.f32.partialorder %v5569, 0.0
      %vm5574 = vcmp.ge.f32.partialorder %v5570, 0.0
      %vm5575 = vcmp.ge.f32.partialorder %v5571, 0.0
      %vm5576 = vcmp.ge.f32.partialorder %v5572, 0.0
      %v5577 = vsel %vm5573, 1.0, -1.0
      %v5578 = vsel %vm5574, 1.0, -1.0
      %v5579 = vsel %vm5575, 1.0, -1.0
      %v5580 = vsel %vm5576, 1.0, -1.0
      %v5581 = vand.u32 2147483647, %v5569
      %v5582 = vand.u32 2147483647, %v5570
      %v5583 = vand.u32 2147483647, %v5571
      %v5584 = vand.u32 2147483647, %v5572
      %v5585 = vmul.f32 %v5581, 0.3275911
      %v5586 = vmul.f32 %v5582, 0.3275911
      %v5587 = vmul.f32 %v5583, 0.3275911
      %v5588 = vmul.f32 %v5584, 0.3275911
      %v5589 = vadd.f32 %v5585, 1.0
      %v5590 = vadd.f32 %v5586, 1.0
      %v5591 = vadd.f32 %v5587, 1.0
      %v5592 = vadd.f32 %v5588, 1.0
      %v5593 = vrcp.pop %v5589
      %v5594 = vmul.f32 1.0, %v5593
      %v5595 = vrcp.pop %v5590
      %v5596 = vmul.f32 1.0, %v5595
      %v5597 = vrcp.pop %v5591
      %v5598 = vmul.f32 1.0, %v5597
      %v5599 = vrcp.pop %v5592
      %v5600 = vmul.f32 1.0, %v5599
      %v5601 = vmul.f32 %v5594, 1.0614054
      %v5602 = vmul.f32 %v5596, 1.0614054
      %v5603 = vmul.f32 %v5598, 1.0614054
      %v5604 = vmul.f32 %v5600, 1.0614054
      %v5605 = vadd.f32 %v5601, -1.4531521
      %v5606 = vadd.f32 %v5602, -1.4531521
      %v5607 = vadd.f32 %v5603, -1.4531521
      %v5608 = vadd.f32 %v5604, -1.4531521
      %v5609 = vmul.f32 %v5605, %v5594
      %v5610 = vmul.f32 %v5606, %v5596
      %v5611 = vmul.f32 %v5607, %v5598
      %v5612 = vmul.f32 %v5608, %v5600
      %v5613 = vadd.f32 %v5609, 1.4214138
      %v5614 = vadd.f32 %v5610, 1.4214138
      %v5615 = vadd.f32 %v5611, 1.4214138
      %v5616 = vadd.f32 %v5612, 1.4214138
      %v5617 = vmul.f32 %v5613, %v5594
      %v5618 = vmul.f32 %v5614, %v5596
      %v5619 = vmul.f32 %v5615, %v5598
      %v5620 = vmul.f32 %v5616, %v5600
      %v5621 = vadd.f32 %v5617, -0.28449672
      %v5622 = vadd.f32 %v5618, -0.28449672
      %v5623 = vadd.f32 %v5619, -0.28449672
      %v5624 = vadd.f32 %v5620, -0.28449672
      %v5625 = vmul.f32 %v5621, %v5594
      %v5626 = vmul.f32 %v5622, %v5596
      %v5627 = vmul.f32 %v5623, %v5598
      %v5628 = vmul.f32 %v5624, %v5600
      %v5629 = vadd.f32 %v5625, 0.2548296
      %v5630 = vadd.f32 %v5626, 0.2548296
      %v5631 = vadd.f32 %v5627, 0.2548296
      %v5632 = vadd.f32 %v5628, 0.2548296
      %v5633 = vmul.f32 %v5629, %v5594
      %v5634 = vmul.f32 %v5630, %v5596
      %v5635 = vmul.f32 %v5631, %v5598
      %v5636 = vmul.f32 %v5632, %v5600
      %v5637 = vsub.f32 0.0, %v5581
      %v5638 = vsub.f32 0.0, %v5582
      %v5639 = vsub.f32 0.0, %v5583
      %v5640 = vsub.f32 0.0, %v5584
      %v5641 = vmul.f32 %v5637, %v5581
      %v5642 = vmul.f32 %v5638, %v5582
      %v5643 = vmul.f32 %v5639, %v5583
      %v5644 = vmul.f32 %v5640, %v5584
      %v5645 = vmul.f32 %v5641, 1.442695
      %v5646 = vpow.pop %v5645
      %v5647 = vmul.f32 %v5642, 1.442695
      %v5648 = vpow.pop %v5647
      %v5649 = vmul.f32 %v5643, 1.442695
      %v5650 = vpow.pop %v5649
      %v5651 = vmul.f32 %v5644, 1.442695
      %v5652 = vpow.pop %v5651
      %v5653 = vmul.f32 %v5633, %v5646
      %v5654 = vmul.f32 %v5634, %v5648
      %v5655 = vmul.f32 %v5635, %v5650
      %v5656 = vmul.f32 %v5636, %v5652
      %v5657 = vsub.f32 1.0, %v5653
      %v5658 = vsub.f32 1.0, %v5654
      %v5659 = vsub.f32 1.0, %v5655
      %v5660 = vsub.f32 1.0, %v5656
      %v5661 = vmul.f32 %v5577, %v5657
      %v5662 = vmul.f32 %v5578, %v5658
      %v5663 = vmul.f32 %v5579, %v5659
      %v5664 = vmul.f32 %v5580, %v5660
      %v5665 = vadd.f32 %v5661, 1.0
      %v5666 = vadd.f32 %v5662, 1.0
      %v5667 = vadd.f32 %v5663, 1.0
      %v5668 = vadd.f32 %v5664, 1.0
      %v5669 = vmul.f32 %v5565, %v5665
      %v5670 = vmul.f32 %v5566, %v5666
      %v5671 = vmul.f32 %v5567, %v5667
      %v5672 = vmul.f32 %v5568, %v5668
      %v5673 = vpack.c.bf16 %v5670, %v5669
      %v5674 = vpack.c.bf16 %v5672, %v5671
      %v5675 = vlaneseq
      %v5676 = vshrl.u32 %v5675, 7
      %v5677 = vsub.s32 3, %v5676
      %v5678 = vrot.slane %v3219, %v5677
      %v5695 = vunpack.c.l.b16 %v5460
      %v5696 = vunpack.c.l.b16 %v5461
      %v5697 = vunpack.c.l.b16 %v5462
      %v5698 = vunpack.c.l.b16 %v5463
      %v5699 = vunpack.c.l.b16 %v5464
      %v5700 = vunpack.c.l.b16 %v5465
      %v5701 = vunpack.c.l.b16 %v5466
      %v5702 = vunpack.c.l.b16 %v5467
      %v5703 = vunpack.c.l.b16 %v5468
      %v5704 = vunpack.c.l.b16 %v5469
      %v5705 = vunpack.c.l.b16 %v5470
      %v5706 = vunpack.c.l.b16 %v5471
      %v5707 = vunpack.c.l.b16 %v5472
      %v5708 = vunpack.c.l.b16 %v5473
      %v5709 = vunpack.c.l.b16 %v5474
      %v5710 = vunpack.c.l.b16 %v5475
      %v5711 = vpack.c.b16 %v5696, %v5695
      %v5712 = vpack.c.b16 %v5698, %v5697
      %v5713 = vpack.c.b16 %v5700, %v5699
      %v5714 = vpack.c.b16 %v5702, %v5701
      %v5715 = vpack.c.b16 %v5704, %v5703
      %v5716 = vpack.c.b16 %v5706, %v5705
      %v5717 = vpack.c.b16 %v5708, %v5707
      %v5718 = vpack.c.b16 %v5710, %v5709
      %5727 = vmatprep.subr.bf16.mxu0 0
      %5728 = vmatpush1.bf16.msra.mxu0 %v5711
      %5729 = vmatprep.subr.bf16.mxu0 0
      %5730 = vmatpush1.bf16.msra.mxu0 %v5712
      %5731 = vmatprep.subr.bf16.mxu0 0
      %5732 = vmatpush1.bf16.msra.mxu0 %v5713
      %5733 = vmatprep.subr.bf16.mxu0 0
      %5734 = vmatpush1.bf16.msra.mxu0 %v5714
      %5735 = vmatprep.subr.bf16.mxu0 0
      %5736 = vmatpush1.bf16.msra.mxu0 %v5715
      %5737 = vmatprep.subr.bf16.mxu0 0
      %5738 = vmatpush1.bf16.msra.mxu0 %v5716
      %5739 = vmatprep.subr.bf16.mxu0 0
      %5740 = vmatpush1.bf16.msra.mxu0 %v5717
      %5741 = vmatprep.subr.bf16.mxu0 0
      %5742 = vmatpush1.bf16.msra.mxu0 %v5718
      %5743 = vmatprep.subr.bf16.mxu0 0
      %5744 = vmatpush1.bf16.msra.mxu0 0
      %5745 = vmatprep.subr.bf16.mxu0 0
      %5746 = vmatpush1.bf16.msra.mxu0 0
      %5747 = vmatprep.subr.bf16.mxu0 0
      %5748 = vmatpush1.bf16.msra.mxu0 0
      %5749 = vmatprep.subr.bf16.mxu0 0
      %5750 = vmatpush1.bf16.msra.mxu0 0
      %5751 = vmatprep.subr.bf16.mxu0 0
      %5752 = vmatpush1.bf16.msra.mxu0 0
      %5753 = vmatprep.subr.bf16.mxu0 0
      %5754 = vmatpush1.bf16.msra.mxu0 0
      %5755 = vmatprep.subr.bf16.mxu0 0
      %5756 = vmatpush1.bf16.msra.mxu0 0
      %5757 = vmatprep.subr.bf16.mxu0 0
      %5758 = vmatpush1.bf16.msra.mxu0 0
      %5759 = vmatprep.mubr.bf16.mxu0 0
      %5760 = vmatmul.mubr.bf16.gmra.mrb[0].mxu0 %v5673
      %v5761 = vpop.f32.mrb[0].mxu0
      %v5762 = vadd.f32 %v5678, %v5761
      %v5763 = vpop.f32.mrb[0].mxu0
      %v5764 = vpop.f32.mrb[0].mxu0
      %v5765 = vadd.f32 %v5678, %v5764
      %v5766 = vpop.f32.mrb[0].mxu0
      %5767 = vmatprep.mubr.bf16.mxu0 0
      %5768 = vmatmul.mubr.bf16.gmra.mrb[0].mxu0 %v5674
      %v5769 = vpop.f32.mrb[0].mxu0
      %v5770 = vadd.f32 %v5678, %v5769
      %v5771 = vpop.f32.mrb[0].mxu0
      %v5772 = vpop.f32.mrb[0].mxu0
      %v5773 = vadd.f32 %v5678, %v5772
      %v5774 = vpop.f32.mrb[0].mxu0
      %5775 = vdwg.mxu0
      %v5776 = vadd.f32 %v5446, %v5762
      %v5777 = vadd.f32 %v5447, %v5765
      %v5778 = vadd.f32 %v5448, %v5770
      %v5779 = vadd.f32 %v5449, %v5773
      %v5780 = vsel %vm627, %v5776, 0.0
      %5781 = vadd.xlane.f32.xlu0 %v5780
      %v5782 = vpop.xlane.xlu0 %5781
      %v5783 = vsel %vm627, %v5777, 0.0
      %5784 = vadd.xlane.f32.xlu0 %v5783
      %v5785 = vpop.xlane.xlu0 %5784
      %v5786 = vsel %vm627, %v5778, 0.0
      %5787 = vadd.xlane.f32.xlu0 %v5786
      %v5788 = vpop.xlane.xlu0 %5787
      %v5789 = vsel %vm627, %v5779, 0.0
      %5790 = vadd.xlane.f32.xlu0 %v5789
      %v5791 = vpop.xlane.xlu0 %5790
      %v5792 = vmul.f32 %v5782, %v2748
      %v5793 = vmul.f32 %v5785, %v2748
      %v5794 = vmul.f32 %v5788, %v2748
      %v5795 = vmul.f32 %v5791, %v2748
      %v5796 = vsub.f32 %v5776, %v5792
      %v5797 = vsub.f32 %v5777, %v5793
      %v5798 = vsub.f32 %v5778, %v5794
      %v5799 = vsub.f32 %v5779, %v5795
      %v5800 = vmul.f32 %v5796, %v5796
      %v5801 = vmul.f32 %v5797, %v5797
      %v5802 = vmul.f32 %v5798, %v5798
      %v5803 = vmul.f32 %v5799, %v5799
      %v5804 = vsel %vm627, %v5800, 0.0
      %5805 = vadd.xlane.f32.xlu0 %v5804
      %v5806 = vpop.xlane.xlu0 %5805
      %v5807 = vsel %vm627, %v5801, 0.0
      %5808 = vadd.xlane.f32.xlu0 %v5807
      %v5809 = vpop.xlane.xlu0 %5808
      %v5810 = vsel %vm627, %v5802, 0.0
      %5811 = vadd.xlane.f32.xlu0 %v5810
      %v5812 = vpop.xlane.xlu0 %5811
      %v5813 = vsel %vm627, %v5803, 0.0
      %5814 = vadd.xlane.f32.xlu0 %v5813
      %v5815 = vpop.xlane.xlu0 %5814
      %v5816 = vmul.f32 %v5806, %v2748
      %v5817 = vmul.f32 %v5809, %v2748
      %v5818 = vmul.f32 %v5812, %v2748
      %v5819 = vmul.f32 %v5815, %v2748
      %v5820 = vadd.f32 %v5816, 1e-05
      %v5821 = vadd.f32 %v5817, 1e-05
      %v5822 = vadd.f32 %v5818, 1e-05
      %v5823 = vadd.f32 %v5819, 1e-05
      %v5824 = vrsqrt.pop %v5820
      %v5825 = vrsqrt.pop %v5821
      %v5826 = vrsqrt.pop %v5822
      %v5827 = vrsqrt.pop %v5823
      %v5828 = vmul.f32 %v5796, %v5824
      %v5829 = vmul.f32 %v5797, %v5825
      %v5830 = vmul.f32 %v5798, %v5826
      %v5831 = vmul.f32 %v5799, %v5827
      %v5832 = vlaneseq
      %v5833 = vshrl.u32 %v5832, 7
      %v5834 = vsub.s32 4, %v5833
      %v5835 = vrot.slane %v3219, %v5834
      %v5836 = vmul.f32 %v5828, %v5835
      %v5837 = vmul.f32 %v5829, %v5835
      %v5838 = vmul.f32 %v5830, %v5835
      %v5839 = vmul.f32 %v5831, %v5835
      %v5840 = vlaneseq
      %v5841 = vshrl.u32 %v5840, 7
      %v5842 = vsub.s32 5, %v5841
      %v5843 = vrot.slane %v3219, %v5842
      %v5844 = vadd.f32 %v5836, %v5843
      %v5845 = vadd.f32 %v5837, %v5843
      %v5846 = vadd.f32 %v5838, %v5843
      %v5847 = vadd.f32 %v5839, %v5843
      %v5848 = vld [vmem:[%s10] sm:$0x3]
      %v5849 = vsel %vm627, %v5844, 0.0
      %5850 = vadd.xlane.f32.xlu0 %v5849
      %v5851 = vpop.xlane.xlu0 %5850
      %v5852 = vsel %vm627, %v5845, 0.0
      %5853 = vadd.xlane.f32.xlu0 %v5852
      %v5854 = vpop.xlane.xlu0 %5853
      %v5855 = vsel %vm627, %v5846, 0.0
      %5856 = vadd.xlane.f32.xlu0 %v5855
      %v5857 = vpop.xlane.xlu0 %5856
      %v5858 = vsel %vm627, %v5847, 0.0
      %5859 = vadd.xlane.f32.xlu0 %v5858
      %v5860 = vpop.xlane.xlu0 %5859
      %v5861 = vmul.f32 %v5851, %v2748
      %v5862 = vmul.f32 %v5854, %v2748
      %v5863 = vmul.f32 %v5857, %v2748
      %v5864 = vmul.f32 %v5860, %v2748
      %v5865 = vsub.f32 %v5844, %v5861
      %v5866 = vsub.f32 %v5845, %v5862
      %v5867 = vsub.f32 %v5846, %v5863
      %v5868 = vsub.f32 %v5847, %v5864
      %v5869 = vmul.f32 %v5865, %v5865
      %v5870 = vmul.f32 %v5866, %v5866
      %v5871 = vmul.f32 %v5867, %v5867
      %v5872 = vmul.f32 %v5868, %v5868
      %v5873 = vsel %vm627, %v5869, 0.0
      %5874 = vadd.xlane.f32.xlu0 %v5873
      %v5875 = vpop.xlane.xlu0 %5874
      %v5876 = vsel %vm627, %v5870, 0.0
      %5877 = vadd.xlane.f32.xlu0 %v5876
      %v5878 = vpop.xlane.xlu0 %5877
      %v5879 = vsel %vm627, %v5871, 0.0
      %5880 = vadd.xlane.f32.xlu0 %v5879
      %v5881 = vpop.xlane.xlu0 %5880
      %v5882 = vsel %vm627, %v5872, 0.0
      %5883 = vadd.xlane.f32.xlu0 %v5882
      %v5884 = vpop.xlane.xlu0 %5883
      %v5885 = vmul.f32 %v5875, %v2748
      %v5886 = vmul.f32 %v5878, %v2748
      %v5887 = vmul.f32 %v5881, %v2748
      %v5888 = vmul.f32 %v5884, %v2748
      %v5889 = vadd.f32 %v5885, 1e-05
      %v5890 = vadd.f32 %v5886, 1e-05
      %v5891 = vadd.f32 %v5887, 1e-05
      %v5892 = vadd.f32 %v5888, 1e-05
      %v5893 = vrsqrt.pop %v5889
      %v5894 = vrsqrt.pop %v5890
      %v5895 = vrsqrt.pop %v5891
      %v5896 = vrsqrt.pop %v5892
      %v5897 = vmul.f32 %v5865, %v5893
      %v5898 = vmul.f32 %v5866, %v5894
      %v5899 = vmul.f32 %v5867, %v5895
      %v5900 = vmul.f32 %v5868, %v5896
      %v5901 = vlaneseq
      %v5902 = vshrl.u32 %v5901, 7
      %v5903 = vsub.s32 0, %v5902
      %v5904 = vrot.slane %v5848, %v5903
      %v5905 = vmul.f32 %v5897, %v5904
      %v5906 = vmul.f32 %v5898, %v5904
      %v5907 = vmul.f32 %v5899, %v5904
      %v5908 = vmul.f32 %v5900, %v5904
      %v5909 = vlaneseq
      %v5910 = vshrl.u32 %v5909, 7
      %v5911 = vsub.s32 1, %v5910
      %v5912 = vrot.slane %v5848, %v5911
      %v5913 = vadd.f32 %v5905, %v5912
      %v5914 = vadd.f32 %v5906, %v5912
      %v5915 = vadd.f32 %v5907, %v5912
      %v5916 = vadd.f32 %v5908, %v5912
      %5917 = vxpose.xlu0.b32.start [1/16] %v5913, 128
      %5918 = vxpose.xlu0.b32.cont [2/16] 0.0, 128
      %5919 = vxpose.xlu0.b32.cont [3/16] 0.0, 128
      %5920 = vxpose.xlu0.b32.cont [4/16] 0.0, 128
      %5921 = vxpose.xlu0.b32.cont [5/16] 0.0, 128
      %5922 = vxpose.xlu0.b32.cont [6/16] 0.0, 128
      %5923 = vxpose.xlu0.b32.cont [7/16] 0.0, 128
      %5924 = vxpose.xlu0.b32.cont [8/16] 0.0, 128
      %5925 = vxpose.xlu0.b32.cont [9/16] 0.0, 128
      %5926 = vxpose.xlu0.b32.cont [10/16] 0.0, 128
      %5927 = vxpose.xlu0.b32.cont [11/16] 0.0, 128
      %5928 = vxpose.xlu0.b32.cont [12/16] 0.0, 128
      %5929 = vxpose.xlu0.b32.cont [13/16] 0.0, 128
      %5930 = vxpose.xlu0.b32.cont [14/16] 0.0, 128
      %5931 = vxpose.xlu0.b32.cont [15/16] 0.0, 128
      %5932 = vxpose.xlu0.b32.end [16/16] 0.0, 128
      %v5933 = vpop.trf.xlu0
      %v5934 = vpop.trf.xlu0
      %v5935 = vpop.trf.xlu0
      %v5936 = vpop.trf.xlu0
      %v5937 = vpop.trf.xlu0
      %v5938 = vpop.trf.xlu0
      %v5939 = vpop.trf.xlu0
      %v5940 = vpop.trf.xlu0
      %v5941 = vpop.trf.xlu0
      %v5942 = vpop.trf.xlu0
      %v5943 = vpop.trf.xlu0
      %v5944 = vpop.trf.xlu0
      %v5945 = vpop.trf.xlu0
      %v5946 = vpop.trf.xlu0
      %v5947 = vpop.trf.xlu0
      %v5948 = vpop.trf.xlu0
      %5949 = vxpose.xlu0.b32.start [1/16] %v5914, 128
      %5950 = vxpose.xlu0.b32.cont [2/16] 0.0, 128
      %5951 = vxpose.xlu0.b32.cont [3/16] 0.0, 128
      %5952 = vxpose.xlu0.b32.cont [4/16] 0.0, 128
      %5953 = vxpose.xlu0.b32.cont [5/16] 0.0, 128
      %5954 = vxpose.xlu0.b32.cont [6/16] 0.0, 128
      %5955 = vxpose.xlu0.b32.cont [7/16] 0.0, 128
      %5956 = vxpose.xlu0.b32.cont [8/16] 0.0, 128
      %5957 = vxpose.xlu0.b32.cont [9/16] 0.0, 128
      %5958 = vxpose.xlu0.b32.cont [10/16] 0.0, 128
      %5959 = vxpose.xlu0.b32.cont [11/16] 0.0, 128
      %5960 = vxpose.xlu0.b32.cont [12/16] 0.0, 128
      %5961 = vxpose.xlu0.b32.cont [13/16] 0.0, 128
      %5962 = vxpose.xlu0.b32.cont [14/16] 0.0, 128
      %5963 = vxpose.xlu0.b32.cont [15/16] 0.0, 128
      %5964 = vxpose.xlu0.b32.end [16/16] 0.0, 128
      %v5965 = vpop.trf.xlu0
      %v5966 = vpop.trf.xlu0
      %v5967 = vpop.trf.xlu0
      %v5968 = vpop.trf.xlu0
      %v5969 = vpop.trf.xlu0
      %v5970 = vpop.trf.xlu0
      %v5971 = vpop.trf.xlu0
      %v5972 = vpop.trf.xlu0
      %v5973 = vpop.trf.xlu0
      %v5974 = vpop.trf.xlu0
      %v5975 = vpop.trf.xlu0
      %v5976 = vpop.trf.xlu0
      %v5977 = vpop.trf.xlu0
      %v5978 = vpop.trf.xlu0
      %v5979 = vpop.trf.xlu0
      %v5980 = vpop.trf.xlu0
      %5981 = vxpose.xlu0.b32.start [1/16] %v5915, 128
      %5982 = vxpose.xlu0.b32.cont [2/16] 0.0, 128
      %5983 = vxpose.xlu0.b32.cont [3/16] 0.0, 128
      %5984 = vxpose.xlu0.b32.cont [4/16] 0.0, 128
      %5985 = vxpose.xlu0.b32.cont [5/16] 0.0, 128
      %5986 = vxpose.xlu0.b32.cont [6/16] 0.0, 128
      %5987 = vxpose.xlu0.b32.cont [7/16] 0.0, 128
      %5988 = vxpose.xlu0.b32.cont [8/16] 0.0, 128
      %5989 = vxpose.xlu0.b32.cont [9/16] 0.0, 128
      %5990 = vxpose.xlu0.b32.cont [10/16] 0.0, 128
      %5991 = vxpose.xlu0.b32.cont [11/16] 0.0, 128
      %5992 = vxpose.xlu0.b32.cont [12/16] 0.0, 128
      %5993 = vxpose.xlu0.b32.cont [13/16] 0.0, 128
      %5994 = vxpose.xlu0.b32.cont [14/16] 0.0, 128
      %5995 = vxpose.xlu0.b32.cont [15/16] 0.0, 128
      %5996 = vxpose.xlu0.b32.end [16/16] 0.0, 128
      %v5997 = vpop.trf.xlu0
      %v5998 = vpop.trf.xlu0
      %v5999 = vpop.trf.xlu0
      %v6000 = vpop.trf.xlu0
      %v6001 = vpop.trf.xlu0
      %v6002 = vpop.trf.xlu0
      %v6003 = vpop.trf.xlu0
      %v6004 = vpop.trf.xlu0
      %v6005 = vpop.trf.xlu0
      %v6006 = vpop.trf.xlu0
      %v6007 = vpop.trf.xlu0
      %v6008 = vpop.trf.xlu0
      %v6009 = vpop.trf.xlu0
      %v6010 = vpop.trf.xlu0
      %v6011 = vpop.trf.xlu0
      %v6012 = vpop.trf.xlu0
      %6013 = vxpose.xlu0.b32.start [1/16] %v5916, 128
      %6014 = vxpose.xlu0.b32.cont [2/16] 0.0, 128
      %6015 = vxpose.xlu0.b32.cont [3/16] 0.0, 128
      %6016 = vxpose.xlu0.b32.cont [4/16] 0.0, 128
      %6017 = vxpose.xlu0.b32.cont [5/16] 0.0, 128
      %6018 = vxpose.xlu0.b32.cont [6/16] 0.0, 128
      %6019 = vxpose.xlu0.b32.cont [7/16] 0.0, 128
      %6020 = vxpose.xlu0.b32.cont [8/16] 0.0, 128
      %6021 = vxpose.xlu0.b32.cont [9/16] 0.0, 128
      %6022 = vxpose.xlu0.b32.cont [10/16] 0.0, 128
      %6023 = vxpose.xlu0.b32.cont [11/16] 0.0, 128
      %6024 = vxpose.xlu0.b32.cont [12/16] 0.0, 128
      %6025 = vxpose.xlu0.b32.cont [13/16] 0.0, 128
      %6026 = vxpose.xlu0.b32.cont [14/16] 0.0, 128
      %6027 = vxpose.xlu0.b32.cont [15/16] 0.0, 128
      %6028 = vxpose.xlu0.b32.end [16/16] 0.0, 128
      %v6029 = vpop.trf.xlu0
      %v6030 = vpop.trf.xlu0
      %v6031 = vpop.trf.xlu0
      %v6032 = vpop.trf.xlu0
      %v6033 = vpop.trf.xlu0
      %v6034 = vpop.trf.xlu0
      %v6035 = vpop.trf.xlu0
      %v6036 = vpop.trf.xlu0
      %v6037 = vpop.trf.xlu0
      %v6038 = vpop.trf.xlu0
      %v6039 = vpop.trf.xlu0
      %v6040 = vpop.trf.xlu0
      %v6041 = vpop.trf.xlu0
      %v6042 = vpop.trf.xlu0
      %v6043 = vpop.trf.xlu0
      %v6044 = vpop.trf.xlu0
      %v6045 = vcombine.high %v5933, 0.0
      %v6047 = vunpack.c.l.s4 1983009808
      %v6048 = vunpack.c.0.s8 %v6047
      %v6049 = vlaneseq
      %v6050 = vshrl.u32 %v6049, 7
      %v6051 = vsub.s32 %v6048, %v6050
      %v6052 = vrot.slane %v5933, %v6051
      %v6054 = vunpack.c.l.s4 1983009808
      %v6055 = vunpack.c.0.s8 %v6054
      %v6056 = vlaneseq
      %v6057 = vshrl.u32 %v6056, 7
      %v6058 = vsub.s32 %v6055, %v6057
      %v6059 = vrot.slane %v6045, %v6058
      %v6060 = vcombine.high %v6052, 0.0
      %v6062 = vunpack.c.l.s4 1934713408
      %v6063 = vunpack.c.0.s8 %v6062
      %v6064 = vlaneseq
      %v6065 = vshrl.u32 %v6064, 7
      %v6066 = vsub.s32 %v6063, %v6065
      %v6067 = vrot.slane %v6052, %v6066
      %v6069 = vunpack.c.l.s4 1934713408
      %v6070 = vunpack.c.0.s8 %v6069
      %v6071 = vlaneseq
      %v6072 = vshrl.u32 %v6071, 7
      %v6073 = vsub.s32 %v6070, %v6072
      %v6074 = vrot.slane %v6060, %v6073
      %v6075 = vcombine.high %v6059, 0.0
      %v6077 = vunpack.c.l.s4 1934713408
      %v6078 = vunpack.c.0.s8 %v6077
      %v6079 = vlaneseq
      %v6080 = vshrl.u32 %v6079, 7
      %v6081 = vsub.s32 %v6078, %v6080
      %v6082 = vrot.slane %v6059, %v6081
      %v6084 = vunpack.c.l.s4 1934713408
      %v6085 = vunpack.c.0.s8 %v6084
      %v6086 = vlaneseq
      %v6087 = vshrl.u32 %v6086, 7
      %v6088 = vsub.s32 %v6085, %v6087
      %v6089 = vrot.slane %v6075, %v6088
      %v6090 = vcombine.high %v6067, 0.0
      %v6091 = vcombine.high %v6074, 0.0
      %v6092 = vcombine.high %v6082, 0.0
      %v6093 = vcombine.high %v6089, 0.0
      %v6094 = vcombine.high %v5934, 0.0
      %v6096 = vunpack.c.l.s4 1983009808
      %v6097 = vunpack.c.0.s8 %v6096
      %v6098 = vlaneseq
      %v6099 = vshrl.u32 %v6098, 7
      %v6100 = vsub.s32 %v6097, %v6099
      %v6101 = vrot.slane %v5934, %v6100
      %v6103 = vunpack.c.l.s4 1983009808
      %v6104 = vunpack.c.0.s8 %v6103
      %v6105 = vlaneseq
      %v6106 = vshrl.u32 %v6105, 7
      %v6107 = vsub.s32 %v6104, %v6106
      %v6108 = vrot.slane %v6094, %v6107
      %v6109 = vcombine.high %v6101, 0.0
      %v6111 = vunpack.c.l.s4 1934713408
      %v6112 = vunpack.c.0.s8 %v6111
      %v6113 = vlaneseq
      %v6114 = vshrl.u32 %v6113, 7
      %v6115 = vsub.s32 %v6112, %v6114
      %v6116 = vrot.slane %v6101, %v6115
      %v6118 = vunpack.c.l.s4 1934713408
      %v6119 = vunpack.c.0.s8 %v6118
      %v6120 = vlaneseq
      %v6121 = vshrl.u32 %v6120, 7
      %v6122 = vsub.s32 %v6119, %v6121
      %v6123 = vrot.slane %v6109, %v6122
      %v6124 = vcombine.high %v6108, 0.0
      %v6126 = vunpack.c.l.s4 1934713408
      %v6127 = vunpack.c.0.s8 %v6126
      %v6128 = vlaneseq
      %v6129 = vshrl.u32 %v6128, 7
      %v6130 = vsub.s32 %v6127, %v6129
      %v6131 = vrot.slane %v6108, %v6130
      %v6133 = vunpack.c.l.s4 1934713408
      %v6134 = vunpack.c.0.s8 %v6133
      %v6135 = vlaneseq
      %v6136 = vshrl.u32 %v6135, 7
      %v6137 = vsub.s32 %v6134, %v6136
      %v6138 = vrot.slane %v6124, %v6137
      %v6139 = vcombine.high %v6116, 0.0
      %v6140 = vcombine.high %v6123, 0.0
      %v6141 = vcombine.high %v6131, 0.0
      %v6142 = vcombine.high %v6138, 0.0
      %v6143 = vcombine.high %v5935, 0.0
      %v6145 = vunpack.c.l.s4 1983009808
      %v6146 = vunpack.c.0.s8 %v6145
      %v6147 = vlaneseq
      %v6148 = vshrl.u32 %v6147, 7
      %v6149 = vsub.s32 %v6146, %v6148
      %v6150 = vrot.slane %v5935, %v6149
      %v6152 = vunpack.c.l.s4 1983009808
      %v6153 = vunpack.c.0.s8 %v6152
      %v6154 = vlaneseq
      %v6155 = vshrl.u32 %v6154, 7
      %v6156 = vsub.s32 %v6153, %v6155
      %v6157 = vrot.slane %v6143, %v6156
      %v6158 = vcombine.high %v6150, 0.0
      %v6160 = vunpack.c.l.s4 1934713408
      %v6161 = vunpack.c.0.s8 %v6160
      %v6162 = vlaneseq
      %v6163 = vshrl.u32 %v6162, 7
      %v6164 = vsub.s32 %v6161, %v6163
      %v6165 = vrot.slane %v6150, %v6164
      %v6167 = vunpack.c.l.s4 1934713408
      %v6168 = vunpack.c.0.s8 %v6167
      %v6169 = vlaneseq
      %v6170 = vshrl.u32 %v6169, 7
      %v6171 = vsub.s32 %v6168, %v6170
      %v6172 = vrot.slane %v6158, %v6171
      %v6173 = vcombine.high %v6157, 0.0
      %v6175 = vunpack.c.l.s4 1934713408
      %v6176 = vunpack.c.0.s8 %v6175
      %v6177 = vlaneseq
      %v6178 = vshrl.u32 %v6177, 7
      %v6179 = vsub.s32 %v6176, %v6178
      %v6180 = vrot.slane %v6157, %v6179
      %v6182 = vunpack.c.l.s4 1934713408
      %v6183 = vunpack.c.0.s8 %v6182
      %v6184 = vlaneseq
      %v6185 = vshrl.u32 %v6184, 7
      %v6186 = vsub.s32 %v6183, %v6185
      %v6187 = vrot.slane %v6173, %v6186
      %v6188 = vcombine.high %v6165, 0.0
      %v6189 = vcombine.high %v6172, 0.0
      %v6190 = vcombine.high %v6180, 0.0
      %v6191 = vcombine.high %v6187, 0.0
      %v6192 = vcombine.high %v5936, 0.0
      %v6194 = vunpack.c.l.s4 1983009808
      %v6195 = vunpack.c.0.s8 %v6194
      %v6196 = vlaneseq
      %v6197 = vshrl.u32 %v6196, 7
      %v6198 = vsub.s32 %v6195, %v6197
      %v6199 = vrot.slane %v5936, %v6198
      %v6201 = vunpack.c.l.s4 1983009808
      %v6202 = vunpack.c.0.s8 %v6201
      %v6203 = vlaneseq
      %v6204 = vshrl.u32 %v6203, 7
      %v6205 = vsub.s32 %v6202, %v6204
      %v6206 = vrot.slane %v6192, %v6205
      %v6207 = vcombine.high %v6199, 0.0
      %v6209 = vunpack.c.l.s4 1934713408
      %v6210 = vunpack.c.0.s8 %v6209
      %v6211 = vlaneseq
      %v6212 = vshrl.u32 %v6211, 7
      %v6213 = vsub.s32 %v6210, %v6212
      %v6214 = vrot.slane %v6199, %v6213
      %v6216 = vunpack.c.l.s4 1934713408
      %v6217 = vunpack.c.0.s8 %v6216
      %v6218 = vlaneseq
      %v6219 = vshrl.u32 %v6218, 7
      %v6220 = vsub.s32 %v6217, %v6219
      %v6221 = vrot.slane %v6207, %v6220
      %v6222 = vcombine.high %v6206, 0.0
      %v6224 = vunpack.c.l.s4 1934713408
      %v6225 = vunpack.c.0.s8 %v6224
      %v6226 = vlaneseq
      %v6227 = vshrl.u32 %v6226, 7
      %v6228 = vsub.s32 %v6225, %v6227
      %v6229 = vrot.slane %v6206, %v6228
      %v6231 = vunpack.c.l.s4 1934713408
      %v6232 = vunpack.c.0.s8 %v6231
      %v6233 = vlaneseq
      %v6234 = vshrl.u32 %v6233, 7
      %v6235 = vsub.s32 %v6232, %v6234
      %v6236 = vrot.slane %v6222, %v6235
      %v6237 = vcombine.high %v6214, 0.0
      %v6238 = vcombine.high %v6221, 0.0
      %v6239 = vcombine.high %v6229, 0.0
      %v6240 = vcombine.high %v6236, 0.0
      %v6241 = vcombine.high %v5937, 0.0
      %v6243 = vunpack.c.l.s4 1983009808
      %v6244 = vunpack.c.0.s8 %v6243
      %v6245 = vlaneseq
      %v6246 = vshrl.u32 %v6245, 7
      %v6247 = vsub.s32 %v6244, %v6246
      %v6248 = vrot.slane %v5937, %v6247
      %v6250 = vunpack.c.l.s4 1983009808
      %v6251 = vunpack.c.0.s8 %v6250
      %v6252 = vlaneseq
      %v6253 = vshrl.u32 %v6252, 7
      %v6254 = vsub.s32 %v6251, %v6253
      %v6255 = vrot.slane %v6241, %v6254
      %v6256 = vcombine.high %v6248, 0.0
      %v6258 = vunpack.c.l.s4 1934713408
      %v6259 = vunpack.c.0.s8 %v6258
      %v6260 = vlaneseq
      %v6261 = vshrl.u32 %v6260, 7
      %v6262 = vsub.s32 %v6259, %v6261
      %v6263 = vrot.slane %v6248, %v6262
      %v6265 = vunpack.c.l.s4 1934713408
      %v6266 = vunpack.c.0.s8 %v6265
      %v6267 = vlaneseq
      %v6268 = vshrl.u32 %v6267, 7
      %v6269 = vsub.s32 %v6266, %v6268
      %v6270 = vrot.slane %v6256, %v6269
      %v6271 = vcombine.high %v6255, 0.0
      %v6273 = vunpack.c.l.s4 1934713408
      %v6274 = vunpack.c.0.s8 %v6273
      %v6275 = vlaneseq
      %v6276 = vshrl.u32 %v6275, 7
      %v6277 = vsub.s32 %v6274, %v6276
      %v6278 = vrot.slane %v6255, %v6277
      %v6280 = vunpack.c.l.s4 1934713408
      %v6281 = vunpack.c.0.s8 %v6280
      %v6282 = vlaneseq
      %v6283 = vshrl.u32 %v6282, 7
      %v6284 = vsub.s32 %v6281, %v6283
      %v6285 = vrot.slane %v6271, %v6284
      %v6286 = vcombine.high %v6263, 0.0
      %v6287 = vcombine.high %v6270, 0.0
      %v6288 = vcombine.high %v6278, 0.0
      %v6289 = vcombine.high %v6285, 0.0
      %v6290 = vcombine.high %v5938, 0.0
      %v6292 = vunpack.c.l.s4 1983009808
      %v6293 = vunpack.c.0.s8 %v6292
      %v6294 = vlaneseq
      %v6295 = vshrl.u32 %v6294, 7
      %v6296 = vsub.s32 %v6293, %v6295
      %v6297 = vrot.slane %v5938, %v6296
      %v6299 = vunpack.c.l.s4 1983009808
      %v6300 = vunpack.c.0.s8 %v6299
      %v6301 = vlaneseq
      %v6302 = vshrl.u32 %v6301, 7
      %v6303 = vsub.s32 %v6300, %v6302
      %v6304 = vrot.slane %v6290, %v6303
      %v6305 = vcombine.high %v6297, 0.0
      %v6307 = vunpack.c.l.s4 1934713408
      %v6308 = vunpack.c.0.s8 %v6307
      %v6309 = vlaneseq
      %v6310 = vshrl.u32 %v6309, 7
      %v6311 = vsub.s32 %v6308, %v6310
      %v6312 = vrot.slane %v6297, %v6311
      %v6314 = vunpack.c.l.s4 1934713408
      %v6315 = vunpack.c.0.s8 %v6314
      %v6316 = vlaneseq
      %v6317 = vshrl.u32 %v6316, 7
      %v6318 = vsub.s32 %v6315, %v6317
      %v6319 = vrot.slane %v6305, %v6318
      %v6320 = vcombine.high %v6304, 0.0
      %v6322 = vunpack.c.l.s4 1934713408
      %v6323 = vunpack.c.0.s8 %v6322
      %v6324 = vlaneseq
      %v6325 = vshrl.u32 %v6324, 7
      %v6326 = vsub.s32 %v6323, %v6325
      %v6327 = vrot.slane %v6304, %v6326
      %v6329 = vunpack.c.l.s4 1934713408
      %v6330 = vunpack.c.0.s8 %v6329
      %v6331 = vlaneseq
      %v6332 = vshrl.u32 %v6331, 7
      %v6333 = vsub.s32 %v6330, %v6332
      %v6334 = vrot.slane %v6320, %v6333
      %v6335 = vcombine.high %v6312, 0.0
      %v6336 = vcombine.high %v6319, 0.0
      %v6337 = vcombine.high %v6327, 0.0
      %v6338 = vcombine.high %v6334, 0.0
      %v6339 = vcombine.high %v5939, 0.0
      %v6341 = vunpack.c.l.s4 1983009808
      %v6342 = vunpack.c.0.s8 %v6341
      %v6343 = vlaneseq
      %v6344 = vshrl.u32 %v6343, 7
      %v6345 = vsub.s32 %v6342, %v6344
      %v6346 = vrot.slane %v5939, %v6345
      %v6348 = vunpack.c.l.s4 1983009808
      %v6349 = vunpack.c.0.s8 %v6348
      %v6350 = vlaneseq
      %v6351 = vshrl.u32 %v6350, 7
      %v6352 = vsub.s32 %v6349, %v6351
      %v6353 = vrot.slane %v6339, %v6352
      %v6354 = vcombine.high %v6346, 0.0
      %v6356 = vunpack.c.l.s4 1934713408
      %v6357 = vunpack.c.0.s8 %v6356
      %v6358 = vlaneseq
      %v6359 = vshrl.u32 %v6358, 7
      %v6360 = vsub.s32 %v6357, %v6359
      %v6361 = vrot.slane %v6346, %v6360
      %v6363 = vunpack.c.l.s4 1934713408
      %v6364 = vunpack.c.0.s8 %v6363
      %v6365 = vlaneseq
      %v6366 = vshrl.u32 %v6365, 7
      %v6367 = vsub.s32 %v6364, %v6366
      %v6368 = vrot.slane %v6354, %v6367
      %v6369 = vcombine.high %v6353, 0.0
      %v6371 = vunpack.c.l.s4 1934713408
      %v6372 = vunpack.c.0.s8 %v6371
      %v6373 = vlaneseq
      %v6374 = vshrl.u32 %v6373, 7
      %v6375 = vsub.s32 %v6372, %v6374
      %v6376 = vrot.slane %v6353, %v6375
      %v6378 = vunpack.c.l.s4 1934713408
      %v6379 = vunpack.c.0.s8 %v6378
      %v6380 = vlaneseq
      %v6381 = vshrl.u32 %v6380, 7
      %v6382 = vsub.s32 %v6379, %v6381
      %v6383 = vrot.slane %v6369, %v6382
      %v6384 = vcombine.high %v6361, 0.0
      %v6385 = vcombine.high %v6368, 0.0
      %v6386 = vcombine.high %v6376, 0.0
      %v6387 = vcombine.high %v6383, 0.0
      %v6388 = vcombine.high %v5940, 0.0
      %v6390 = vunpack.c.l.s4 1983009808
      %v6391 = vunpack.c.0.s8 %v6390
      %v6392 = vlaneseq
      %v6393 = vshrl.u32 %v6392, 7
      %v6394 = vsub.s32 %v6391, %v6393
      %v6395 = vrot.slane %v5940, %v6394
      %v6397 = vunpack.c.l.s4 1983009808
      %v6398 = vunpack.c.0.s8 %v6397
      %v6399 = vlaneseq
      %v6400 = vshrl.u32 %v6399, 7
      %v6401 = vsub.s32 %v6398, %v6400
      %v6402 = vrot.slane %v6388, %v6401
      %v6403 = vcombine.high %v6395, 0.0
      %v6405 = vunpack.c.l.s4 1934713408
      %v6406 = vunpack.c.0.s8 %v6405
      %v6407 = vlaneseq
      %v6408 = vshrl.u32 %v6407, 7
      %v6409 = vsub.s32 %v6406, %v6408
      %v6410 = vrot.slane %v6395, %v6409
      %v6412 = vunpack.c.l.s4 1934713408
      %v6413 = vunpack.c.0.s8 %v6412
      %v6414 = vlaneseq
      %v6415 = vshrl.u32 %v6414, 7
      %v6416 = vsub.s32 %v6413, %v6415
      %v6417 = vrot.slane %v6403, %v6416
      %v6418 = vcombine.high %v6402, 0.0
      %v6420 = vunpack.c.l.s4 1934713408
      %v6421 = vunpack.c.0.s8 %v6420
      %v6422 = vlaneseq
      %v6423 = vshrl.u32 %v6422, 7
      %v6424 = vsub.s32 %v6421, %v6423
      %v6425 = vrot.slane %v6402, %v6424
      %v6427 = vunpack.c.l.s4 1934713408
      %v6428 = vunpack.c.0.s8 %v6427
      %v6429 = vlaneseq
      %v6430 = vshrl.u32 %v6429, 7
      %v6431 = vsub.s32 %v6428, %v6430
      %v6432 = vrot.slane %v6418, %v6431
      %v6433 = vcombine.high %v6410, 0.0
      %v6434 = vcombine.high %v6417, 0.0
      %v6435 = vcombine.high %v6425, 0.0
      %v6436 = vcombine.high %v6432, 0.0
      %v6437 = vcombine.high %v5965, 0.0
      %v6439 = vunpack.c.l.s4 1983009808
      %v6440 = vunpack.c.0.s8 %v6439
      %v6441 = vlaneseq
      %v6442 = vshrl.u32 %v6441, 7
      %v6443 = vsub.s32 %v6440, %v6442
      %v6444 = vrot.slane %v5965, %v6443
      %v6446 = vunpack.c.l.s4 1983009808
      %v6447 = vunpack.c.0.s8 %v6446
      %v6448 = vlaneseq
      %v6449 = vshrl.u32 %v6448, 7
      %v6450 = vsub.s32 %v6447, %v6449
      %v6451 = vrot.slane %v6437, %v6450
      %v6452 = vcombine.high %v6444, 0.0
      %v6454 = vunpack.c.l.s4 1934713408
      %v6455 = vunpack.c.0.s8 %v6454
      %v6456 = vlaneseq
      %v6457 = vshrl.u32 %v6456, 7
      %v6458 = vsub.s32 %v6455, %v6457
      %v6459 = vrot.slane %v6444, %v6458
      %v6461 = vunpack.c.l.s4 1934713408
      %v6462 = vunpack.c.0.s8 %v6461
      %v6463 = vlaneseq
      %v6464 = vshrl.u32 %v6463, 7
      %v6465 = vsub.s32 %v6462, %v6464
      %v6466 = vrot.slane %v6452, %v6465
      %v6467 = vcombine.high %v6451, 0.0
      %v6469 = vunpack.c.l.s4 1934713408
      %v6470 = vunpack.c.0.s8 %v6469
      %v6471 = vlaneseq
      %v6472 = vshrl.u32 %v6471, 7
      %v6473 = vsub.s32 %v6470, %v6472
      %v6474 = vrot.slane %v6451, %v6473
      %v6476 = vunpack.c.l.s4 1934713408
      %v6477 = vunpack.c.0.s8 %v6476
      %v6478 = vlaneseq
      %v6479 = vshrl.u32 %v6478, 7
      %v6480 = vsub.s32 %v6477, %v6479
      %v6481 = vrot.slane %v6467, %v6480
      %v6482 = vcombine.high %v6459, 0.0
      %v6483 = vcombine.high %v6466, 0.0
      %v6484 = vcombine.high %v6474, 0.0
      %v6485 = vcombine.high %v6481, 0.0
      %v6486 = vcombine.high %v5966, 0.0
      %v6488 = vunpack.c.l.s4 1983009808
      %v6489 = vunpack.c.0.s8 %v6488
      %v6490 = vlaneseq
      %v6491 = vshrl.u32 %v6490, 7
      %v6492 = vsub.s32 %v6489, %v6491
      %v6493 = vrot.slane %v5966, %v6492
      %v6495 = vunpack.c.l.s4 1983009808
      %v6496 = vunpack.c.0.s8 %v6495
      %v6497 = vlaneseq
      %v6498 = vshrl.u32 %v6497, 7
      %v6499 = vsub.s32 %v6496, %v6498
      %v6500 = vrot.slane %v6486, %v6499
      %v6501 = vcombine.high %v6493, 0.0
      %v6503 = vunpack.c.l.s4 1934713408
      %v6504 = vunpack.c.0.s8 %v6503
      %v6505 = vlaneseq
      %v6506 = vshrl.u32 %v6505, 7
      %v6507 = vsub.s32 %v6504, %v6506
      %v6508 = vrot.slane %v6493, %v6507
      %v6510 = vunpack.c.l.s4 1934713408
      %v6511 = vunpack.c.0.s8 %v6510
      %v6512 = vlaneseq
      %v6513 = vshrl.u32 %v6512, 7
      %v6514 = vsub.s32 %v6511, %v6513
      %v6515 = vrot.slane %v6501, %v6514
      %v6516 = vcombine.high %v6500, 0.0
      %v6518 = vunpack.c.l.s4 1934713408
      %v6519 = vunpack.c.0.s8 %v6518
      %v6520 = vlaneseq
      %v6521 = vshrl.u32 %v6520, 7
      %v6522 = vsub.s32 %v6519, %v6521
      %v6523 = vrot.slane %v6500, %v6522
      %v6525 = vunpack.c.l.s4 1934713408
      %v6526 = vunpack.c.0.s8 %v6525
      %v6527 = vlaneseq
      %v6528 = vshrl.u32 %v6527, 7
      %v6529 = vsub.s32 %v6526, %v6528
      %v6530 = vrot.slane %v6516, %v6529
      %v6531 = vcombine.high %v6508, 0.0
      %v6532 = vcombine.high %v6515, 0.0
      %v6533 = vcombine.high %v6523, 0.0
      %v6534 = vcombine.high %v6530, 0.0
      %v6535 = vcombine.high %v5967, 0.0
      %v6537 = vunpack.c.l.s4 1983009808
      %v6538 = vunpack.c.0.s8 %v6537
      %v6539 = vlaneseq
      %v6540 = vshrl.u32 %v6539, 7
      %v6541 = vsub.s32 %v6538, %v6540
      %v6542 = vrot.slane %v5967, %v6541
      %v6544 = vunpack.c.l.s4 1983009808
      %v6545 = vunpack.c.0.s8 %v6544
      %v6546 = vlaneseq
      %v6547 = vshrl.u32 %v6546, 7
      %v6548 = vsub.s32 %v6545, %v6547
      %v6549 = vrot.slane %v6535, %v6548
      %v6550 = vcombine.high %v6542, 0.0
      %v6552 = vunpack.c.l.s4 1934713408
      %v6553 = vunpack.c.0.s8 %v6552
      %v6554 = vlaneseq
      %v6555 = vshrl.u32 %v6554, 7
      %v6556 = vsub.s32 %v6553, %v6555
      %v6557 = vrot.slane %v6542, %v6556
      %v6559 = vunpack.c.l.s4 1934713408
      %v6560 = vunpack.c.0.s8 %v6559
      %v6561 = vlaneseq
      %v6562 = vshrl.u32 %v6561, 7
      %v6563 = vsub.s32 %v6560, %v6562
      %v6564 = vrot.slane %v6550, %v6563
      %v6565 = vcombine.high %v6549, 0.0
      %v6567 = vunpack.c.l.s4 1934713408
      %v6568 = vunpack.c.0.s8 %v6567
      %v6569 = vlaneseq
      %v6570 = vshrl.u32 %v6569, 7
      %v6571 = vsub.s32 %v6568, %v6570
      %v6572 = vrot.slane %v6549, %v6571
      %v6574 = vunpack.c.l.s4 1934713408
      %v6575 = vunpack.c.0.s8 %v6574
      %v6576 = vlaneseq
      %v6577 = vshrl.u32 %v6576, 7
      %v6578 = vsub.s32 %v6575, %v6577
      %v6579 = vrot.slane %v6565, %v6578
      %v6580 = vcombine.high %v6557, 0.0
      %v6581 = vcombine.high %v6564, 0.0
      %v6582 = vcombine.high %v6572, 0.0
      %v6583 = vcombine.high %v6579, 0.0
      %v6584 = vcombine.high %v5968, 0.0
      %v6586 = vunpack.c.l.s4 1983009808
      %v6587 = vunpack.c.0.s8 %v6586
      %v6588 = vlaneseq
      %v6589 = vshrl.u32 %v6588, 7
      %v6590 = vsub.s32 %v6587, %v6589
      %v6591 = vrot.slane %v5968, %v6590
      %v6593 = vunpack.c.l.s4 1983009808
      %v6594 = vunpack.c.0.s8 %v6593
      %v6595 = vlaneseq
      %v6596 = vshrl.u32 %v6595, 7
      %v6597 = vsub.s32 %v6594, %v6596
      %v6598 = vrot.slane %v6584, %v6597
      %v6599 = vcombine.high %v6591, 0.0
      %v6601 = vunpack.c.l.s4 1934713408
      %v6602 = vunpack.c.0.s8 %v6601
      %v6603 = vlaneseq
      %v6604 = vshrl.u32 %v6603, 7
      %v6605 = vsub.s32 %v6602, %v6604
      %v6606 = vrot.slane %v6591, %v6605
      %v6608 = vunpack.c.l.s4 1934713408
      %v6609 = vunpack.c.0.s8 %v6608
      %v6610 = vlaneseq
      %v6611 = vshrl.u32 %v6610, 7
      %v6612 = vsub.s32 %v6609, %v6611
      %v6613 = vrot.slane %v6599, %v6612
      %v6614 = vcombine.high %v6598, 0.0
      %v6616 = vunpack.c.l.s4 1934713408
      %v6617 = vunpack.c.0.s8 %v6616
      %v6618 = vlaneseq
      %v6619 = vshrl.u32 %v6618, 7
      %v6620 = vsub.s32 %v6617, %v6619
      %v6621 = vrot.slane %v6598, %v6620
      %v6623 = vunpack.c.l.s4 1934713408
      %v6624 = vunpack.c.0.s8 %v6623
      %v6625 = vlaneseq
      %v6626 = vshrl.u32 %v6625, 7
      %v6627 = vsub.s32 %v6624, %v6626
      %v6628 = vrot.slane %v6614, %v6627
      %v6629 = vcombine.high %v6606, 0.0
      %v6630 = vcombine.high %v6613, 0.0
      %v6631 = vcombine.high %v6621, 0.0
      %v6632 = vcombine.high %v6628, 0.0
      %v6633 = vcombine.high %v5969, 0.0
      %v6635 = vunpack.c.l.s4 1983009808
      %v6636 = vunpack.c.0.s8 %v6635
      %v6637 = vlaneseq
      %v6638 = vshrl.u32 %v6637, 7
      %v6639 = vsub.s32 %v6636, %v6638
      %v6640 = vrot.slane %v5969, %v6639
      %v6642 = vunpack.c.l.s4 1983009808
      %v6643 = vunpack.c.0.s8 %v6642
      %v6644 = vlaneseq
      %v6645 = vshrl.u32 %v6644, 7
      %v6646 = vsub.s32 %v6643, %v6645
      %v6647 = vrot.slane %v6633, %v6646
      %v6648 = vcombine.high %v6640, 0.0
      %v6650 = vunpack.c.l.s4 1934713408
      %v6651 = vunpack.c.0.s8 %v6650
      %v6652 = vlaneseq
      %v6653 = vshrl.u32 %v6652, 7
      %v6654 = vsub.s32 %v6651, %v6653
      %v6655 = vrot.slane %v6640, %v6654
      %v6657 = vunpack.c.l.s4 1934713408
      %v6658 = vunpack.c.0.s8 %v6657
      %v6659 = vlaneseq
      %v6660 = vshrl.u32 %v6659, 7
      %v6661 = vsub.s32 %v6658, %v6660
      %v6662 = vrot.slane %v6648, %v6661
      %v6663 = vcombine.high %v6647, 0.0
      %v6665 = vunpack.c.l.s4 1934713408
      %v6666 = vunpack.c.0.s8 %v6665
      %v6667 = vlaneseq
      %v6668 = vshrl.u32 %v6667, 7
      %v6669 = vsub.s32 %v6666, %v6668
      %v6670 = vrot.slane %v6647, %v6669
      %v6672 = vunpack.c.l.s4 1934713408
      %v6673 = vunpack.c.0.s8 %v6672
      %v6674 = vlaneseq
      %v6675 = vshrl.u32 %v6674, 7
      %v6676 = vsub.s32 %v6673, %v6675
      %v6677 = vrot.slane %v6663, %v6676
      %v6678 = vcombine.high %v6655, 0.0
      %v6679 = vcombine.high %v6662, 0.0
      %v6680 = vcombine.high %v6670, 0.0
      %v6681 = vcombine.high %v6677, 0.0
      %v6682 = vcombine.high %v5970, 0.0
      %v6684 = vunpack.c.l.s4 1983009808
      %v6685 = vunpack.c.0.s8 %v6684
      %v6686 = vlaneseq
      %v6687 = vshrl.u32 %v6686, 7
      %v6688 = vsub.s32 %v6685, %v6687
      %v6689 = vrot.slane %v5970, %v6688
      %v6691 = vunpack.c.l.s4 1983009808
      %v6692 = vunpack.c.0.s8 %v6691
      %v6693 = vlaneseq
      %v6694 = vshrl.u32 %v6693, 7
      %v6695 = vsub.s32 %v6692, %v6694
      %v6696 = vrot.slane %v6682, %v6695
      %v6697 = vcombine.high %v6689, 0.0
      %v6699 = vunpack.c.l.s4 1934713408
      %v6700 = vunpack.c.0.s8 %v6699
      %v6701 = vlaneseq
      %v6702 = vshrl.u32 %v6701, 7
      %v6703 = vsub.s32 %v6700, %v6702
      %v6704 = vrot.slane %v6689, %v6703
      %v6706 = vunpack.c.l.s4 1934713408
      %v6707 = vunpack.c.0.s8 %v6706
      %v6708 = vlaneseq
      %v6709 = vshrl.u32 %v6708, 7
      %v6710 = vsub.s32 %v6707, %v6709
      %v6711 = vrot.slane %v6697, %v6710
      %v6712 = vcombine.high %v6696, 0.0
      %v6714 = vunpack.c.l.s4 1934713408
      %v6715 = vunpack.c.0.s8 %v6714
      %v6716 = vlaneseq
      %v6717 = vshrl.u32 %v6716, 7
      %v6718 = vsub.s32 %v6715, %v6717
      %v6719 = vrot.slane %v6696, %v6718
      %v6721 = vunpack.c.l.s4 1934713408
      %v6722 = vunpack.c.0.s8 %v6721
      %v6723 = vlaneseq
      %v6724 = vshrl.u32 %v6723, 7
      %v6725 = vsub.s32 %v6722, %v6724
      %v6726 = vrot.slane %v6712, %v6725
      %v6727 = vcombine.high %v6704, 0.0
      %v6728 = vcombine.high %v6711, 0.0
      %v6729 = vcombine.high %v6719, 0.0
      %v6730 = vcombine.high %v6726, 0.0
      %v6731 = vcombine.high %v5971, 0.0
      %v6733 = vunpack.c.l.s4 1983009808
      %v6734 = vunpack.c.0.s8 %v6733
      %v6735 = vlaneseq
      %v6736 = vshrl.u32 %v6735, 7
      %v6737 = vsub.s32 %v6734, %v6736
      %v6738 = vrot.slane %v5971, %v6737
      %v6740 = vunpack.c.l.s4 1983009808
      %v6741 = vunpack.c.0.s8 %v6740
      %v6742 = vlaneseq
      %v6743 = vshrl.u32 %v6742, 7
      %v6744 = vsub.s32 %v6741, %v6743
      %v6745 = vrot.slane %v6731, %v6744
      %v6746 = vcombine.high %v6738, 0.0
      %v6748 = vunpack.c.l.s4 1934713408
      %v6749 = vunpack.c.0.s8 %v6748
      %v6750 = vlaneseq
      %v6751 = vshrl.u32 %v6750, 7
      %v6752 = vsub.s32 %v6749, %v6751
      %v6753 = vrot.slane %v6738, %v6752
      %v6755 = vunpack.c.l.s4 1934713408
      %v6756 = vunpack.c.0.s8 %v6755
      %v6757 = vlaneseq
      %v6758 = vshrl.u32 %v6757, 7
      %v6759 = vsub.s32 %v6756, %v6758
      %v6760 = vrot.slane %v6746, %v6759
      %v6761 = vcombine.high %v6745, 0.0
      %v6763 = vunpack.c.l.s4 1934713408
      %v6764 = vunpack.c.0.s8 %v6763
      %v6765 = vlaneseq
      %v6766 = vshrl.u32 %v6765, 7
      %v6767 = vsub.s32 %v6764, %v6766
      %v6768 = vrot.slane %v6745, %v6767
      %v6770 = vunpack.c.l.s4 1934713408
      %v6771 = vunpack.c.0.s8 %v6770
      %v6772 = vlaneseq
      %v6773 = vshrl.u32 %v6772, 7
      %v6774 = vsub.s32 %v6771, %v6773
      %v6775 = vrot.slane %v6761, %v6774
      %v6776 = vcombine.high %v6753, 0.0
      %v6777 = vcombine.high %v6760, 0.0
      %v6778 = vcombine.high %v6768, 0.0
      %v6779 = vcombine.high %v6775, 0.0
      %v6780 = vcombine.high %v5972, 0.0
      %v6782 = vunpack.c.l.s4 1983009808
      %v6783 = vunpack.c.0.s8 %v6782
      %v6784 = vlaneseq
      %v6785 = vshrl.u32 %v6784, 7
      %v6786 = vsub.s32 %v6783, %v6785
      %v6787 = vrot.slane %v5972, %v6786
      %v6789 = vunpack.c.l.s4 1983009808
      %v6790 = vunpack.c.0.s8 %v6789
      %v6791 = vlaneseq
      %v6792 = vshrl.u32 %v6791, 7
      %v6793 = vsub.s32 %v6790, %v6792
      %v6794 = vrot.slane %v6780, %v6793
      %v6795 = vcombine.high %v6787, 0.0
      %v6797 = vunpack.c.l.s4 1934713408
      %v6798 = vunpack.c.0.s8 %v6797
      %v6799 = vlaneseq
      %v6800 = vshrl.u32 %v6799, 7
      %v6801 = vsub.s32 %v6798, %v6800
      %v6802 = vrot.slane %v6787, %v6801
      %v6804 = vunpack.c.l.s4 1934713408
      %v6805 = vunpack.c.0.s8 %v6804
      %v6806 = vlaneseq
      %v6807 = vshrl.u32 %v6806, 7
      %v6808 = vsub.s32 %v6805, %v6807
      %v6809 = vrot.slane %v6795, %v6808
      %v6810 = vcombine.high %v6794, 0.0
      %v6812 = vunpack.c.l.s4 1934713408
      %v6813 = vunpack.c.0.s8 %v6812
      %v6814 = vlaneseq
      %v6815 = vshrl.u32 %v6814, 7
      %v6816 = vsub.s32 %v6813, %v6815
      %v6817 = vrot.slane %v6794, %v6816
      %v6819 = vunpack.c.l.s4 1934713408
      %v6820 = vunpack.c.0.s8 %v6819
      %v6821 = vlaneseq
      %v6822 = vshrl.u32 %v6821, 7
      %v6823 = vsub.s32 %v6820, %v6822
      %v6824 = vrot.slane %v6810, %v6823
      %v6825 = vcombine.high %v6802, 0.0
      %v6826 = vcombine.high %v6809, 0.0
      %v6827 = vcombine.high %v6817, 0.0
      %v6828 = vcombine.high %v6824, 0.0
      %v6829 = vcombine.high %v5997, 0.0
      %v6831 = vunpack.c.l.s4 1983009808
      %v6832 = vunpack.c.0.s8 %v6831
      %v6833 = vlaneseq
      %v6834 = vshrl.u32 %v6833, 7
      %v6835 = vsub.s32 %v6832, %v6834
      %v6836 = vrot.slane %v5997, %v6835
      %v6838 = vunpack.c.l.s4 1983009808
      %v6839 = vunpack.c.0.s8 %v6838
      %v6840 = vlaneseq
      %v6841 = vshrl.u32 %v6840, 7
      %v6842 = vsub.s32 %v6839, %v6841
      %v6843 = vrot.slane %v6829, %v6842
      %v6844 = vcombine.high %v6836, 0.0
      %v6846 = vunpack.c.l.s4 1934713408
      %v6847 = vunpack.c.0.s8 %v6846
      %v6848 = vlaneseq
      %v6849 = vshrl.u32 %v6848, 7
      %v6850 = vsub.s32 %v6847, %v6849
      %v6851 = vrot.slane %v6836, %v6850
      %v6853 = vunpack.c.l.s4 1934713408
      %v6854 = vunpack.c.0.s8 %v6853
      %v6855 = vlaneseq
      %v6856 = vshrl.u32 %v6855, 7
      %v6857 = vsub.s32 %v6854, %v6856
      %v6858 = vrot.slane %v6844, %v6857
      %v6859 = vcombine.high %v6843, 0.0
      %v6861 = vunpack.c.l.s4 1934713408
      %v6862 = vunpack.c.0.s8 %v6861
      %v6863 = vlaneseq
      %v6864 = vshrl.u32 %v6863, 7
      %v6865 = vsub.s32 %v6862, %v6864
      %v6866 = vrot.slane %v6843, %v6865
      %v6868 = vunpack.c.l.s4 1934713408
      %v6869 = vunpack.c.0.s8 %v6868
      %v6870 = vlaneseq
      %v6871 = vshrl.u32 %v6870, 7
      %v6872 = vsub.s32 %v6869, %v6871
      %v6873 = vrot.slane %v6859, %v6872
      %v6874 = vcombine.high %v6851, 0.0
      %v6875 = vcombine.high %v6858, 0.0
      %v6876 = vcombine.high %v6866, 0.0
      %v6877 = vcombine.high %v6873, 0.0
      %v6878 = vcombine.high %v5998, 0.0
      %v6880 = vunpack.c.l.s4 1983009808
      %v6881 = vunpack.c.0.s8 %v6880
      %v6882 = vlaneseq
      %v6883 = vshrl.u32 %v6882, 7
      %v6884 = vsub.s32 %v6881, %v6883
      %v6885 = vrot.slane %v5998, %v6884
      %v6887 = vunpack.c.l.s4 1983009808
      %v6888 = vunpack.c.0.s8 %v6887
      %v6889 = vlaneseq
      %v6890 = vshrl.u32 %v6889, 7
      %v6891 = vsub.s32 %v6888, %v6890
      %v6892 = vrot.slane %v6878, %v6891
      %v6893 = vcombine.high %v6885, 0.0
      %v6895 = vunpack.c.l.s4 1934713408
      %v6896 = vunpack.c.0.s8 %v6895
      %v6897 = vlaneseq
      %v6898 = vshrl.u32 %v6897, 7
      %v6899 = vsub.s32 %v6896, %v6898
      %v6900 = vrot.slane %v6885, %v6899
      %v6902 = vunpack.c.l.s4 1934713408
      %v6903 = vunpack.c.0.s8 %v6902
      %v6904 = vlaneseq
      %v6905 = vshrl.u32 %v6904, 7
      %v6906 = vsub.s32 %v6903, %v6905
      %v6907 = vrot.slane %v6893, %v6906
      %v6908 = vcombine.high %v6892, 0.0
      %v6910 = vunpack.c.l.s4 1934713408
      %v6911 = vunpack.c.0.s8 %v6910
      %v6912 = vlaneseq
      %v6913 = vshrl.u32 %v6912, 7
      %v6914 = vsub.s32 %v6911, %v6913
      %v6915 = vrot.slane %v6892, %v6914
      %v6917 = vunpack.c.l.s4 1934713408
      %v6918 = vunpack.c.0.s8 %v6917
      %v6919 = vlaneseq
      %v6920 = vshrl.u32 %v6919, 7
      %v6921 = vsub.s32 %v6918, %v6920
      %v6922 = vrot.slane %v6908, %v6921
      %v6923 = vcombine.high %v6900, 0.0
      %v6924 = vcombine.high %v6907, 0.0
      %v6925 = vcombine.high %v6915, 0.0
      %v6926 = vcombine.high %v6922, 0.0
      %v6927 = vcombine.high %v5999, 0.0
      %v6929 = vunpack.c.l.s4 1983009808
      %v6930 = vunpack.c.0.s8 %v6929
      %v6931 = vlaneseq
      %v6932 = vshrl.u32 %v6931, 7
      %v6933 = vsub.s32 %v6930, %v6932
      %v6934 = vrot.slane %v5999, %v6933
      %v6936 = vunpack.c.l.s4 1983009808
      %v6937 = vunpack.c.0.s8 %v6936
      %v6938 = vlaneseq
      %v6939 = vshrl.u32 %v6938, 7
      %v6940 = vsub.s32 %v6937, %v6939
      %v6941 = vrot.slane %v6927, %v6940
      %v6942 = vcombine.high %v6934, 0.0
      %v6944 = vunpack.c.l.s4 1934713408
      %v6945 = vunpack.c.0.s8 %v6944
      %v6946 = vlaneseq
      %v6947 = vshrl.u32 %v6946, 7
      %v6948 = vsub.s32 %v6945, %v6947
      %v6949 = vrot.slane %v6934, %v6948
      %v6951 = vunpack.c.l.s4 1934713408
      %v6952 = vunpack.c.0.s8 %v6951
      %v6953 = vlaneseq
      %v6954 = vshrl.u32 %v6953, 7
      %v6955 = vsub.s32 %v6952, %v6954
      %v6956 = vrot.slane %v6942, %v6955
      %v6957 = vcombine.high %v6941, 0.0
      %v6959 = vunpack.c.l.s4 1934713408
      %v6960 = vunpack.c.0.s8 %v6959
      %v6961 = vlaneseq
      %v6962 = vshrl.u32 %v6961, 7
      %v6963 = vsub.s32 %v6960, %v6962
      %v6964 = vrot.slane %v6941, %v6963
      %v6966 = vunpack.c.l.s4 1934713408
      %v6967 = vunpack.c.0.s8 %v6966
      %v6968 = vlaneseq
      %v6969 = vshrl.u32 %v6968, 7
      %v6970 = vsub.s32 %v6967, %v6969
      %v6971 = vrot.slane %v6957, %v6970
      %v6972 = vcombine.high %v6949, 0.0
      %v6973 = vcombine.high %v6956, 0.0
      %v6974 = vcombine.high %v6964, 0.0
      %v6975 = vcombine.high %v6971, 0.0
      %v6976 = vcombine.high %v6000, 0.0
      %v6978 = vunpack.c.l.s4 1983009808
      %v6979 = vunpack.c.0.s8 %v6978
      %v6980 = vlaneseq
      %v6981 = vshrl.u32 %v6980, 7
      %v6982 = vsub.s32 %v6979, %v6981
      %v6983 = vrot.slane %v6000, %v6982
      %v6985 = vunpack.c.l.s4 1983009808
      %v6986 = vunpack.c.0.s8 %v6985
      %v6987 = vlaneseq
      %v6988 = vshrl.u32 %v6987, 7
      %v6989 = vsub.s32 %v6986, %v6988
      %v6990 = vrot.slane %v6976, %v6989
      %v6991 = vcombine.high %v6983, 0.0
      %v6993 = vunpack.c.l.s4 1934713408
      %v6994 = vunpack.c.0.s8 %v6993
      %v6995 = vlaneseq
      %v6996 = vshrl.u32 %v6995, 7
      %v6997 = vsub.s32 %v6994, %v6996
      %v6998 = vrot.slane %v6983, %v6997
      %v7000 = vunpack.c.l.s4 1934713408
      %v7001 = vunpack.c.0.s8 %v7000
      %v7002 = vlaneseq
      %v7003 = vshrl.u32 %v7002, 7
      %v7004 = vsub.s32 %v7001, %v7003
      %v7005 = vrot.slane %v6991, %v7004
      %v7006 = vcombine.high %v6990, 0.0
      %v7008 = vunpack.c.l.s4 1934713408
      %v7009 = vunpack.c.0.s8 %v7008
      %v7010 = vlaneseq
      %v7011 = vshrl.u32 %v7010, 7
      %v7012 = vsub.s32 %v7009, %v7011
      %v7013 = vrot.slane %v6990, %v7012
      %v7015 = vunpack.c.l.s4 1934713408
      %v7016 = vunpack.c.0.s8 %v7015
      %v7017 = vlaneseq
      %v7018 = vshrl.u32 %v7017, 7
      %v7019 = vsub.s32 %v7016, %v7018
      %v7020 = vrot.slane %v7006, %v7019
      %v7021 = vcombine.high %v6998, 0.0
      %v7022 = vcombine.high %v7005, 0.0
      %v7023 = vcombine.high %v7013, 0.0
      %v7024 = vcombine.high %v7020, 0.0
      %v7025 = vcombine.high %v6001, 0.0
      %v7027 = vunpack.c.l.s4 1983009808
      %v7028 = vunpack.c.0.s8 %v7027
      %v7029 = vlaneseq
      %v7030 = vshrl.u32 %v7029, 7
      %v7031 = vsub.s32 %v7028, %v7030
      %v7032 = vrot.slane %v6001, %v7031
      %v7034 = vunpack.c.l.s4 1983009808
      %v7035 = vunpack.c.0.s8 %v7034
      %v7036 = vlaneseq
      %v7037 = vshrl.u32 %v7036, 7
      %v7038 = vsub.s32 %v7035, %v7037
      %v7039 = vrot.slane %v7025, %v7038
      %v7040 = vcombine.high %v7032, 0.0
      %v7042 = vunpack.c.l.s4 1934713408
      %v7043 = vunpack.c.0.s8 %v7042
      %v7044 = vlaneseq
      %v7045 = vshrl.u32 %v7044, 7
      %v7046 = vsub.s32 %v7043, %v7045
      %v7047 = vrot.slane %v7032, %v7046
      %v7049 = vunpack.c.l.s4 1934713408
      %v7050 = vunpack.c.0.s8 %v7049
      %v7051 = vlaneseq
      %v7052 = vshrl.u32 %v7051, 7
      %v7053 = vsub.s32 %v7050, %v7052
      %v7054 = vrot.slane %v7040, %v7053
      %v7055 = vcombine.high %v7039, 0.0
      %v7057 = vunpack.c.l.s4 1934713408
      %v7058 = vunpack.c.0.s8 %v7057
      %v7059 = vlaneseq
      %v7060 = vshrl.u32 %v7059, 7
      %v7061 = vsub.s32 %v7058, %v7060
      %v7062 = vrot.slane %v7039, %v7061
      %v7064 = vunpack.c.l.s4 1934713408
      %v7065 = vunpack.c.0.s8 %v7064
      %v7066 = vlaneseq
      %v7067 = vshrl.u32 %v7066, 7
      %v7068 = vsub.s32 %v7065, %v7067
      %v7069 = vrot.slane %v7055, %v7068
      %v7070 = vcombine.high %v7047, 0.0
      %v7071 = vcombine.high %v7054, 0.0
      %v7072 = vcombine.high %v7062, 0.0
      %v7073 = vcombine.high %v7069, 0.0
      %v7074 = vcombine.high %v6002, 0.0
      %v7076 = vunpack.c.l.s4 1983009808
      %v7077 = vunpack.c.0.s8 %v7076
      %v7078 = vlaneseq
      %v7079 = vshrl.u32 %v7078, 7
      %v7080 = vsub.s32 %v7077, %v7079
      %v7081 = vrot.slane %v6002, %v7080
      %v7083 = vunpack.c.l.s4 1983009808
      %v7084 = vunpack.c.0.s8 %v7083
      %v7085 = vlaneseq
      %v7086 = vshrl.u32 %v7085, 7
      %v7087 = vsub.s32 %v7084, %v7086
      %v7088 = vrot.slane %v7074, %v7087
      %v7089 = vcombine.high %v7081, 0.0
      %v7091 = vunpack.c.l.s4 1934713408
      %v7092 = vunpack.c.0.s8 %v7091
      %v7093 = vlaneseq
      %v7094 = vshrl.u32 %v7093, 7
      %v7095 = vsub.s32 %v7092, %v7094
      %v7096 = vrot.slane %v7081, %v7095
      %v7098 = vunpack.c.l.s4 1934713408
      %v7099 = vunpack.c.0.s8 %v7098
      %v7100 = vlaneseq
      %v7101 = vshrl.u32 %v7100, 7
      %v7102 = vsub.s32 %v7099, %v7101
      %v7103 = vrot.slane %v7089, %v7102
      %v7104 = vcombine.high %v7088, 0.0
      %v7106 = vunpack.c.l.s4 1934713408
      %v7107 = vunpack.c.0.s8 %v7106
      %v7108 = vlaneseq
      %v7109 = vshrl.u32 %v7108, 7
      %v7110 = vsub.s32 %v7107, %v7109
      %v7111 = vrot.slane %v7088, %v7110
      %v7113 = vunpack.c.l.s4 1934713408
      %v7114 = vunpack.c.0.s8 %v7113
      %v7115 = vlaneseq
      %v7116 = vshrl.u32 %v7115, 7
      %v7117 = vsub.s32 %v7114, %v7116
      %v7118 = vrot.slane %v7104, %v7117
      %v7119 = vcombine.high %v7096, 0.0
      %v7120 = vcombine.high %v7103, 0.0
      %v7121 = vcombine.high %v7111, 0.0
      %v7122 = vcombine.high %v7118, 0.0
      %v7123 = vcombine.high %v6003, 0.0
      %v7125 = vunpack.c.l.s4 1983009808
      %v7126 = vunpack.c.0.s8 %v7125
      %v7127 = vlaneseq
      %v7128 = vshrl.u32 %v7127, 7
      %v7129 = vsub.s32 %v7126, %v7128
      %v7130 = vrot.slane %v6003, %v7129
      %v7132 = vunpack.c.l.s4 1983009808
      %v7133 = vunpack.c.0.s8 %v7132
      %v7134 = vlaneseq
      %v7135 = vshrl.u32 %v7134, 7
      %v7136 = vsub.s32 %v7133, %v7135
      %v7137 = vrot.slane %v7123, %v7136
      %v7138 = vcombine.high %v7130, 0.0
      %v7140 = vunpack.c.l.s4 1934713408
      %v7141 = vunpack.c.0.s8 %v7140
      %v7142 = vlaneseq
      %v7143 = vshrl.u32 %v7142, 7
      %v7144 = vsub.s32 %v7141, %v7143
      %v7145 = vrot.slane %v7130, %v7144
      %v7147 = vunpack.c.l.s4 1934713408
      %v7148 = vunpack.c.0.s8 %v7147
      %v7149 = vlaneseq
      %v7150 = vshrl.u32 %v7149, 7
      %v7151 = vsub.s32 %v7148, %v7150
      %v7152 = vrot.slane %v7138, %v7151
      %v7153 = vcombine.high %v7137, 0.0
      %v7155 = vunpack.c.l.s4 1934713408
      %v7156 = vunpack.c.0.s8 %v7155
      %v7157 = vlaneseq
      %v7158 = vshrl.u32 %v7157, 7
      %v7159 = vsub.s32 %v7156, %v7158
      %v7160 = vrot.slane %v7137, %v7159
      %v7162 = vunpack.c.l.s4 1934713408
      %v7163 = vunpack.c.0.s8 %v7162
      %v7164 = vlaneseq
      %v7165 = vshrl.u32 %v7164, 7
      %v7166 = vsub.s32 %v7163, %v7165
      %v7167 = vrot.slane %v7153, %v7166
      %v7168 = vcombine.high %v7145, 0.0
      %v7169 = vcombine.high %v7152, 0.0
      %v7170 = vcombine.high %v7160, 0.0
      %v7171 = vcombine.high %v7167, 0.0
      %v7172 = vcombine.high %v6004, 0.0
      %v7174 = vunpack.c.l.s4 1983009808
      %v7175 = vunpack.c.0.s8 %v7174
      %v7176 = vlaneseq
      %v7177 = vshrl.u32 %v7176, 7
      %v7178 = vsub.s32 %v7175, %v7177
      %v7179 = vrot.slane %v6004, %v7178
      %v7181 = vunpack.c.l.s4 1983009808
      %v7182 = vunpack.c.0.s8 %v7181
      %v7183 = vlaneseq
      %v7184 = vshrl.u32 %v7183, 7
      %v7185 = vsub.s32 %v7182, %v7184
      %v7186 = vrot.slane %v7172, %v7185
      %v7187 = vcombine.high %v7179, 0.0
      %v7189 = vunpack.c.l.s4 1934713408
      %v7190 = vunpack.c.0.s8 %v7189
      %v7191 = vlaneseq
      %v7192 = vshrl.u32 %v7191, 7
      %v7193 = vsub.s32 %v7190, %v7192
      %v7194 = vrot.slane %v7179, %v7193
      %v7196 = vunpack.c.l.s4 1934713408
      %v7197 = vunpack.c.0.s8 %v7196
      %v7198 = vlaneseq
      %v7199 = vshrl.u32 %v7198, 7
      %v7200 = vsub.s32 %v7197, %v7199
      %v7201 = vrot.slane %v7187, %v7200
      %v7202 = vcombine.high %v7186, 0.0
      %v7204 = vunpack.c.l.s4 1934713408
      %v7205 = vunpack.c.0.s8 %v7204
      %v7206 = vlaneseq
      %v7207 = vshrl.u32 %v7206, 7
      %v7208 = vsub.s32 %v7205, %v7207
      %v7209 = vrot.slane %v7186, %v7208
      %v7211 = vunpack.c.l.s4 1934713408
      %v7212 = vunpack.c.0.s8 %v7211
      %v7213 = vlaneseq
      %v7214 = vshrl.u32 %v7213, 7
      %v7215 = vsub.s32 %v7212, %v7214
      %v7216 = vrot.slane %v7202, %v7215
      %v7217 = vcombine.high %v7194, 0.0
      %v7218 = vcombine.high %v7201, 0.0
      %v7219 = vcombine.high %v7209, 0.0
      %v7220 = vcombine.high %v7216, 0.0
      %v7221 = vcombine.high %v6029, 0.0
      %v7223 = vunpack.c.l.s4 1983009808
      %v7224 = vunpack.c.0.s8 %v7223
      %v7225 = vlaneseq
      %v7226 = vshrl.u32 %v7225, 7
      %v7227 = vsub.s32 %v7224, %v7226
      %v7228 = vrot.slane %v6029, %v7227
      %v7230 = vunpack.c.l.s4 1983009808
      %v7231 = vunpack.c.0.s8 %v7230
      %v7232 = vlaneseq
      %v7233 = vshrl.u32 %v7232, 7
      %v7234 = vsub.s32 %v7231, %v7233
      %v7235 = vrot.slane %v7221, %v7234
      %v7236 = vcombine.high %v7228, 0.0
      %v7238 = vunpack.c.l.s4 1934713408
      %v7239 = vunpack.c.0.s8 %v7238
      %v7240 = vlaneseq
      %v7241 = vshrl.u32 %v7240, 7
      %v7242 = vsub.s32 %v7239, %v7241
      %v7243 = vrot.slane %v7228, %v7242
      %v7245 = vunpack.c.l.s4 1934713408
      %v7246 = vunpack.c.0.s8 %v7245
      %v7247 = vlaneseq
      %v7248 = vshrl.u32 %v7247, 7
      %v7249 = vsub.s32 %v7246, %v7248
      %v7250 = vrot.slane %v7236, %v7249
      %v7251 = vcombine.high %v7235, 0.0
      %v7253 = vunpack.c.l.s4 1934713408
      %v7254 = vunpack.c.0.s8 %v7253
      %v7255 = vlaneseq
      %v7256 = vshrl.u32 %v7255, 7
      %v7257 = vsub.s32 %v7254, %v7256
      %v7258 = vrot.slane %v7235, %v7257
      %v7260 = vunpack.c.l.s4 1934713408
      %v7261 = vunpack.c.0.s8 %v7260
      %v7262 = vlaneseq
      %v7263 = vshrl.u32 %v7262, 7
      %v7264 = vsub.s32 %v7261, %v7263
      %v7265 = vrot.slane %v7251, %v7264
      %v7266 = vcombine.high %v7243, 0.0
      %v7267 = vcombine.high %v7250, 0.0
      %v7268 = vcombine.high %v7258, 0.0
      %v7269 = vcombine.high %v7265, 0.0
      %v7270 = vcombine.high %v6030, 0.0
      %v7272 = vunpack.c.l.s4 1983009808
      %v7273 = vunpack.c.0.s8 %v7272
      %v7274 = vlaneseq
      %v7275 = vshrl.u32 %v7274, 7
      %v7276 = vsub.s32 %v7273, %v7275
      %v7277 = vrot.slane %v6030, %v7276
      %v7279 = vunpack.c.l.s4 1983009808
      %v7280 = vunpack.c.0.s8 %v7279
      %v7281 = vlaneseq
      %v7282 = vshrl.u32 %v7281, 7
      %v7283 = vsub.s32 %v7280, %v7282
      %v7284 = vrot.slane %v7270, %v7283
      %v7285 = vcombine.high %v7277, 0.0
      %v7287 = vunpack.c.l.s4 1934713408
      %v7288 = vunpack.c.0.s8 %v7287
      %v7289 = vlaneseq
      %v7290 = vshrl.u32 %v7289, 7
      %v7291 = vsub.s32 %v7288, %v7290
      %v7292 = vrot.slane %v7277, %v7291
      %v7294 = vunpack.c.l.s4 1934713408
      %v7295 = vunpack.c.0.s8 %v7294
      %v7296 = vlaneseq
      %v7297 = vshrl.u32 %v7296, 7
      %v7298 = vsub.s32 %v7295, %v7297
      %v7299 = vrot.slane %v7285, %v7298
      %v7300 = vcombine.high %v7284, 0.0
      %v7302 = vunpack.c.l.s4 1934713408
      %v7303 = vunpack.c.0.s8 %v7302
      %v7304 = vlaneseq
      %v7305 = vshrl.u32 %v7304, 7
      %v7306 = vsub.s32 %v7303, %v7305
      %v7307 = vrot.slane %v7284, %v7306
      %v7309 = vunpack.c.l.s4 1934713408
      %v7310 = vunpack.c.0.s8 %v7309
      %v7311 = vlaneseq
      %v7312 = vshrl.u32 %v7311, 7
      %v7313 = vsub.s32 %v7310, %v7312
      %v7314 = vrot.slane %v7300, %v7313
      %v7315 = vcombine.high %v7292, 0.0
      %v7316 = vcombine.high %v7299, 0.0
      %v7317 = vcombine.high %v7307, 0.0
      %v7318 = vcombine.high %v7314, 0.0
      %v7319 = vcombine.high %v6031, 0.0
      %v7321 = vunpack.c.l.s4 1983009808
      %v7322 = vunpack.c.0.s8 %v7321
      %v7323 = vlaneseq
      %v7324 = vshrl.u32 %v7323, 7
      %v7325 = vsub.s32 %v7322, %v7324
      %v7326 = vrot.slane %v6031, %v7325
      %v7328 = vunpack.c.l.s4 1983009808
      %v7329 = vunpack.c.0.s8 %v7328
      %v7330 = vlaneseq
      %v7331 = vshrl.u32 %v7330, 7
      %v7332 = vsub.s32 %v7329, %v7331
      %v7333 = vrot.slane %v7319, %v7332
      %v7334 = vcombine.high %v7326, 0.0
      %v7336 = vunpack.c.l.s4 1934713408
      %v7337 = vunpack.c.0.s8 %v7336
      %v7338 = vlaneseq
      %v7339 = vshrl.u32 %v7338, 7
      %v7340 = vsub.s32 %v7337, %v7339
      %v7341 = vrot.slane %v7326, %v7340
      %v7343 = vunpack.c.l.s4 1934713408
      %v7344 = vunpack.c.0.s8 %v7343
      %v7345 = vlaneseq
      %v7346 = vshrl.u32 %v7345, 7
      %v7347 = vsub.s32 %v7344, %v7346
      %v7348 = vrot.slane %v7334, %v7347
      %v7349 = vcombine.high %v7333, 0.0
      %v7351 = vunpack.c.l.s4 1934713408
      %v7352 = vunpack.c.0.s8 %v7351
      %v7353 = vlaneseq
      %v7354 = vshrl.u32 %v7353, 7
      %v7355 = vsub.s32 %v7352, %v7354
      %v7356 = vrot.slane %v7333, %v7355
      %v7358 = vunpack.c.l.s4 1934713408
      %v7359 = vunpack.c.0.s8 %v7358
      %v7360 = vlaneseq
      %v7361 = vshrl.u32 %v7360, 7
      %v7362 = vsub.s32 %v7359, %v7361
      %v7363 = vrot.slane %v7349, %v7362
      %v7364 = vcombine.high %v7341, 0.0
      %v7365 = vcombine.high %v7348, 0.0
      %v7366 = vcombine.high %v7356, 0.0
      %v7367 = vcombine.high %v7363, 0.0
      %v7368 = vcombine.high %v6032, 0.0
      %v7370 = vunpack.c.l.s4 1983009808
      %v7371 = vunpack.c.0.s8 %v7370
      %v7372 = vlaneseq
      %v7373 = vshrl.u32 %v7372, 7
      %v7374 = vsub.s32 %v7371, %v7373
      %v7375 = vrot.slane %v6032, %v7374
      %v7377 = vunpack.c.l.s4 1983009808
      %v7378 = vunpack.c.0.s8 %v7377
      %v7379 = vlaneseq
      %v7380 = vshrl.u32 %v7379, 7
      %v7381 = vsub.s32 %v7378, %v7380
      %v7382 = vrot.slane %v7368, %v7381
      %v7383 = vcombine.high %v7375, 0.0
      %v7385 = vunpack.c.l.s4 1934713408
      %v7386 = vunpack.c.0.s8 %v7385
      %v7387 = vlaneseq
      %v7388 = vshrl.u32 %v7387, 7
      %v7389 = vsub.s32 %v7386, %v7388
      %v7390 = vrot.slane %v7375, %v7389
      %v7392 = vunpack.c.l.s4 1934713408
      %v7393 = vunpack.c.0.s8 %v7392
      %v7394 = vlaneseq
      %v7395 = vshrl.u32 %v7394, 7
      %v7396 = vsub.s32 %v7393, %v7395
      %v7397 = vrot.slane %v7383, %v7396
      %v7398 = vcombine.high %v7382, 0.0
      %v7400 = vunpack.c.l.s4 1934713408
      %v7401 = vunpack.c.0.s8 %v7400
      %v7402 = vlaneseq
      %v7403 = vshrl.u32 %v7402, 7
      %v7404 = vsub.s32 %v7401, %v7403
      %v7405 = vrot.slane %v7382, %v7404
      %v7407 = vunpack.c.l.s4 1934713408
      %v7408 = vunpack.c.0.s8 %v7407
      %v7409 = vlaneseq
      %v7410 = vshrl.u32 %v7409, 7
      %v7411 = vsub.s32 %v7408, %v7410
      %v7412 = vrot.slane %v7398, %v7411
      %v7413 = vcombine.high %v7390, 0.0
      %v7414 = vcombine.high %v7397, 0.0
      %v7415 = vcombine.high %v7405, 0.0
      %v7416 = vcombine.high %v7412, 0.0
      %v7417 = vcombine.high %v6033, 0.0
      %v7419 = vunpack.c.l.s4 1983009808
      %v7420 = vunpack.c.0.s8 %v7419
      %v7421 = vlaneseq
      %v7422 = vshrl.u32 %v7421, 7
      %v7423 = vsub.s32 %v7420, %v7422
      %v7424 = vrot.slane %v6033, %v7423
      %v7426 = vunpack.c.l.s4 1983009808
      %v7427 = vunpack.c.0.s8 %v7426
      %v7428 = vlaneseq
      %v7429 = vshrl.u32 %v7428, 7
      %v7430 = vsub.s32 %v7427, %v7429
      %v7431 = vrot.slane %v7417, %v7430
      %v7432 = vcombine.high %v7424, 0.0
      %v7434 = vunpack.c.l.s4 1934713408
      %v7435 = vunpack.c.0.s8 %v7434
      %v7436 = vlaneseq
      %v7437 = vshrl.u32 %v7436, 7
      %v7438 = vsub.s32 %v7435, %v7437
      %v7439 = vrot.slane %v7424, %v7438
      %v7441 = vunpack.c.l.s4 1934713408
      %v7442 = vunpack.c.0.s8 %v7441
      %v7443 = vlaneseq
      %v7444 = vshrl.u32 %v7443, 7
      %v7445 = vsub.s32 %v7442, %v7444
      %v7446 = vrot.slane %v7432, %v7445
      %v7447 = vcombine.high %v7431, 0.0
      %v7449 = vunpack.c.l.s4 1934713408
      %v7450 = vunpack.c.0.s8 %v7449
      %v7451 = vlaneseq
      %v7452 = vshrl.u32 %v7451, 7
      %v7453 = vsub.s32 %v7450, %v7452
      %v7454 = vrot.slane %v7431, %v7453
      %v7456 = vunpack.c.l.s4 1934713408
      %v7457 = vunpack.c.0.s8 %v7456
      %v7458 = vlaneseq
      %v7459 = vshrl.u32 %v7458, 7
      %v7460 = vsub.s32 %v7457, %v7459
      %v7461 = vrot.slane %v7447, %v7460
      %v7462 = vcombine.high %v7439, 0.0
      %v7463 = vcombine.high %v7446, 0.0
      %v7464 = vcombine.high %v7454, 0.0
      %v7465 = vcombine.high %v7461, 0.0
      %v7466 = vcombine.high %v6034, 0.0
      %v7468 = vunpack.c.l.s4 1983009808
      %v7469 = vunpack.c.0.s8 %v7468
      %v7470 = vlaneseq
      %v7471 = vshrl.u32 %v7470, 7
      %v7472 = vsub.s32 %v7469, %v7471
      %v7473 = vrot.slane %v6034, %v7472
      %v7475 = vunpack.c.l.s4 1983009808
      %v7476 = vunpack.c.0.s8 %v7475
      %v7477 = vlaneseq
      %v7478 = vshrl.u32 %v7477, 7
      %v7479 = vsub.s32 %v7476, %v7478
      %v7480 = vrot.slane %v7466, %v7479
      %v7481 = vcombine.high %v7473, 0.0
      %v7483 = vunpack.c.l.s4 1934713408
      %v7484 = vunpack.c.0.s8 %v7483
      %v7485 = vlaneseq
      %v7486 = vshrl.u32 %v7485, 7
      %v7487 = vsub.s32 %v7484, %v7486
      %v7488 = vrot.slane %v7473, %v7487
      %v7490 = vunpack.c.l.s4 1934713408
      %v7491 = vunpack.c.0.s8 %v7490
      %v7492 = vlaneseq
      %v7493 = vshrl.u32 %v7492, 7
      %v7494 = vsub.s32 %v7491, %v7493
      %v7495 = vrot.slane %v7481, %v7494
      %v7496 = vcombine.high %v7480, 0.0
      %v7498 = vunpack.c.l.s4 1934713408
      %v7499 = vunpack.c.0.s8 %v7498
      %v7500 = vlaneseq
      %v7501 = vshrl.u32 %v7500, 7
      %v7502 = vsub.s32 %v7499, %v7501
      %v7503 = vrot.slane %v7480, %v7502
      %v7505 = vunpack.c.l.s4 1934713408
      %v7506 = vunpack.c.0.s8 %v7505
      %v7507 = vlaneseq
      %v7508 = vshrl.u32 %v7507, 7
      %v7509 = vsub.s32 %v7506, %v7508
      %v7510 = vrot.slane %v7496, %v7509
      %v7511 = vcombine.high %v7488, 0.0
      %v7512 = vcombine.high %v7495, 0.0
      %v7513 = vcombine.high %v7503, 0.0
      %v7514 = vcombine.high %v7510, 0.0
      %v7515 = vcombine.high %v6035, 0.0
      %v7517 = vunpack.c.l.s4 1983009808
      %v7518 = vunpack.c.0.s8 %v7517
      %v7519 = vlaneseq
      %v7520 = vshrl.u32 %v7519, 7
      %v7521 = vsub.s32 %v7518, %v7520
      %v7522 = vrot.slane %v6035, %v7521
      %v7524 = vunpack.c.l.s4 1983009808
      %v7525 = vunpack.c.0.s8 %v7524
      %v7526 = vlaneseq
      %v7527 = vshrl.u32 %v7526, 7
      %v7528 = vsub.s32 %v7525, %v7527
      %v7529 = vrot.slane %v7515, %v7528
      %v7530 = vcombine.high %v7522, 0.0
      %v7532 = vunpack.c.l.s4 1934713408
      %v7533 = vunpack.c.0.s8 %v7532
      %v7534 = vlaneseq
      %v7535 = vshrl.u32 %v7534, 7
      %v7536 = vsub.s32 %v7533, %v7535
      %v7537 = vrot.slane %v7522, %v7536
      %v7539 = vunpack.c.l.s4 1934713408
      %v7540 = vunpack.c.0.s8 %v7539
      %v7541 = vlaneseq
      %v7542 = vshrl.u32 %v7541, 7
      %v7543 = vsub.s32 %v7540, %v7542
      %v7544 = vrot.slane %v7530, %v7543
      %v7545 = vcombine.high %v7529, 0.0
      %v7547 = vunpack.c.l.s4 1934713408
      %v7548 = vunpack.c.0.s8 %v7547
      %v7549 = vlaneseq
      %v7550 = vshrl.u32 %v7549, 7
      %v7551 = vsub.s32 %v7548, %v7550
      %v7552 = vrot.slane %v7529, %v7551
      %v7554 = vunpack.c.l.s4 1934713408
      %v7555 = vunpack.c.0.s8 %v7554
      %v7556 = vlaneseq
      %v7557 = vshrl.u32 %v7556, 7
      %v7558 = vsub.s32 %v7555, %v7557
      %v7559 = vrot.slane %v7545, %v7558
      %v7560 = vcombine.high %v7537, 0.0
      %v7561 = vcombine.high %v7544, 0.0
      %v7562 = vcombine.high %v7552, 0.0
      %v7563 = vcombine.high %v7559, 0.0
      %v7564 = vcombine.high %v6036, 0.0
      %v7566 = vunpack.c.l.s4 1983009808
      %v7567 = vunpack.c.0.s8 %v7566
      %v7568 = vlaneseq
      %v7569 = vshrl.u32 %v7568, 7
      %v7570 = vsub.s32 %v7567, %v7569
      %v7571 = vrot.slane %v6036, %v7570
      %v7573 = vunpack.c.l.s4 1983009808
      %v7574 = vunpack.c.0.s8 %v7573
      %v7575 = vlaneseq
      %v7576 = vshrl.u32 %v7575, 7
      %v7577 = vsub.s32 %v7574, %v7576
      %v7578 = vrot.slane %v7564, %v7577
      %v7579 = vcombine.high %v7571, 0.0
      %v7581 = vunpack.c.l.s4 1934713408
      %v7582 = vunpack.c.0.s8 %v7581
      %v7583 = vlaneseq
      %v7584 = vshrl.u32 %v7583, 7
      %v7585 = vsub.s32 %v7582, %v7584
      %v7586 = vrot.slane %v7571, %v7585
      %v7588 = vunpack.c.l.s4 1934713408
      %v7589 = vunpack.c.0.s8 %v7588
      %v7590 = vlaneseq
      %v7591 = vshrl.u32 %v7590, 7
      %v7592 = vsub.s32 %v7589, %v7591
      %v7593 = vrot.slane %v7579, %v7592
      %v7594 = vcombine.high %v7578, 0.0
      %v7596 = vunpack.c.l.s4 1934713408
      %v7597 = vunpack.c.0.s8 %v7596
      %v7598 = vlaneseq
      %v7599 = vshrl.u32 %v7598, 7
      %v7600 = vsub.s32 %v7597, %v7599
      %v7601 = vrot.slane %v7578, %v7600
      %v7603 = vunpack.c.l.s4 1934713408
      %v7604 = vunpack.c.0.s8 %v7603
      %v7605 = vlaneseq
      %v7606 = vshrl.u32 %v7605, 7
      %v7607 = vsub.s32 %v7604, %v7606
      %v7608 = vrot.slane %v7594, %v7607
      %v7609 = vcombine.high %v7586, 0.0
      %v7610 = vcombine.high %v7593, 0.0
      %v7611 = vcombine.high %v7601, 0.0
      %v7612 = vcombine.high %v7608, 0.0
      %7617 = vrot.lane.b32.xlu0 %v6090, 8
      %v7618 = vpop.permute.xlu0 %7617
      %7619 = vrot.lane.b32.xlu0 %v6482, 8
      %v7620 = vpop.permute.xlu0 %7619
      %7621 = vrot.lane.b32.xlu0 %v6874, 8
      %v7622 = vpop.permute.xlu0 %7621
      %7623 = vrot.lane.b32.xlu0 %v7266, 8
      %v7624 = vpop.permute.xlu0 %7623
      %7633 = vrot.lane.b32.xlu0 %v6074, 16
      %v7634 = vpop.permute.xlu0 %7633
      %7635 = vrot.lane.b32.xlu0 %v6466, 16
      %v7636 = vpop.permute.xlu0 %7635
      %7637 = vrot.lane.b32.xlu0 %v6858, 16
      %v7638 = vpop.permute.xlu0 %7637
      %7639 = vrot.lane.b32.xlu0 %v7250, 16
      %v7640 = vpop.permute.xlu0 %7639
      %7649 = vrot.lane.b32.xlu0 %v6091, 24
      %v7650 = vpop.permute.xlu0 %7649
      %7651 = vrot.lane.b32.xlu0 %v6483, 24
      %v7652 = vpop.permute.xlu0 %7651
      %7653 = vrot.lane.b32.xlu0 %v6875, 24
      %v7654 = vpop.permute.xlu0 %7653
      %7655 = vrot.lane.b32.xlu0 %v7267, 24
      %v7656 = vpop.permute.xlu0 %7655
      %7665 = vrot.lane.b32.xlu0 %v6082, 32
      %v7666 = vpop.permute.xlu0 %7665
      %7667 = vrot.lane.b32.xlu0 %v6474, 32
      %v7668 = vpop.permute.xlu0 %7667
      %7669 = vrot.lane.b32.xlu0 %v6866, 32
      %v7670 = vpop.permute.xlu0 %7669
      %7671 = vrot.lane.b32.xlu0 %v7258, 32
      %v7672 = vpop.permute.xlu0 %7671
      %7681 = vrot.lane.b32.xlu0 %v6092, 40
      %v7682 = vpop.permute.xlu0 %7681
      %7683 = vrot.lane.b32.xlu0 %v6484, 40
      %v7684 = vpop.permute.xlu0 %7683
      %7685 = vrot.lane.b32.xlu0 %v6876, 40
      %v7686 = vpop.permute.xlu0 %7685
      %7687 = vrot.lane.b32.xlu0 %v7268, 40
      %v7688 = vpop.permute.xlu0 %7687
      %7697 = vrot.lane.b32.xlu0 %v6089, 48
      %v7698 = vpop.permute.xlu0 %7697
      %7699 = vrot.lane.b32.xlu0 %v6481, 48
      %v7700 = vpop.permute.xlu0 %7699
      %7701 = vrot.lane.b32.xlu0 %v6873, 48
      %v7702 = vpop.permute.xlu0 %7701
      %7703 = vrot.lane.b32.xlu0 %v7265, 48
      %v7704 = vpop.permute.xlu0 %7703
      %7713 = vrot.lane.b32.xlu0 %v6093, 56
      %v7714 = vpop.permute.xlu0 %7713
      %7715 = vrot.lane.b32.xlu0 %v6485, 56
      %v7716 = vpop.permute.xlu0 %7715
      %7717 = vrot.lane.b32.xlu0 %v6877, 56
      %v7718 = vpop.permute.xlu0 %7717
      %7719 = vrot.lane.b32.xlu0 %v7269, 56
      %v7720 = vpop.permute.xlu0 %7719
      %7729 = vrot.lane.b32.xlu0 %v6116, 64
      %v7730 = vpop.permute.xlu0 %7729
      %7731 = vrot.lane.b32.xlu0 %v6508, 64
      %v7732 = vpop.permute.xlu0 %7731
      %7733 = vrot.lane.b32.xlu0 %v6900, 64
      %v7734 = vpop.permute.xlu0 %7733
      %7735 = vrot.lane.b32.xlu0 %v7292, 64
      %v7736 = vpop.permute.xlu0 %7735
      %7745 = vrot.lane.b32.xlu0 %v6139, 72
      %v7746 = vpop.permute.xlu0 %7745
      %7747 = vrot.lane.b32.xlu0 %v6531, 72
      %v7748 = vpop.permute.xlu0 %7747
      %7749 = vrot.lane.b32.xlu0 %v6923, 72
      %v7750 = vpop.permute.xlu0 %7749
      %7751 = vrot.lane.b32.xlu0 %v7315, 72
      %v7752 = vpop.permute.xlu0 %7751
      %7761 = vrot.lane.b32.xlu0 %v6123, 80
      %v7762 = vpop.permute.xlu0 %7761
      %7763 = vrot.lane.b32.xlu0 %v6515, 80
      %v7764 = vpop.permute.xlu0 %7763
      %7765 = vrot.lane.b32.xlu0 %v6907, 80
      %v7766 = vpop.permute.xlu0 %7765
      %7767 = vrot.lane.b32.xlu0 %v7299, 80
      %v7768 = vpop.permute.xlu0 %7767
      %7777 = vrot.lane.b32.xlu0 %v6140, 88
      %v7778 = vpop.permute.xlu0 %7777
      %7779 = vrot.lane.b32.xlu0 %v6532, 88
      %v7780 = vpop.permute.xlu0 %7779
      %7781 = vrot.lane.b32.xlu0 %v6924, 88
      %v7782 = vpop.permute.xlu0 %7781
      %7783 = vrot.lane.b32.xlu0 %v7316, 88
      %v7784 = vpop.permute.xlu0 %7783
      %7793 = vrot.lane.b32.xlu0 %v6131, 96
      %v7794 = vpop.permute.xlu0 %7793
      %7795 = vrot.lane.b32.xlu0 %v6523, 96
      %v7796 = vpop.permute.xlu0 %7795
      %7797 = vrot.lane.b32.xlu0 %v6915, 96
      %v7798 = vpop.permute.xlu0 %7797
      %7799 = vrot.lane.b32.xlu0 %v7307, 96
      %v7800 = vpop.permute.xlu0 %7799
      %7809 = vrot.lane.b32.xlu0 %v6141, 104
      %v7810 = vpop.permute.xlu0 %7809
      %7811 = vrot.lane.b32.xlu0 %v6533, 104
      %v7812 = vpop.permute.xlu0 %7811
      %7813 = vrot.lane.b32.xlu0 %v6925, 104
      %v7814 = vpop.permute.xlu0 %7813
      %7815 = vrot.lane.b32.xlu0 %v7317, 104
      %v7816 = vpop.permute.xlu0 %7815
      %7825 = vrot.lane.b32.xlu0 %v6138, 112
      %v7826 = vpop.permute.xlu0 %7825
      %7827 = vrot.lane.b32.xlu0 %v6530, 112
      %v7828 = vpop.permute.xlu0 %7827
      %7829 = vrot.lane.b32.xlu0 %v6922, 112
      %v7830 = vpop.permute.xlu0 %7829
      %7831 = vrot.lane.b32.xlu0 %v7314, 112
      %v7832 = vpop.permute.xlu0 %7831
      %7841 = vrot.lane.b32.xlu0 %v6142, 120
      %v7842 = vpop.permute.xlu0 %7841
      %7843 = vrot.lane.b32.xlu0 %v6534, 120
      %v7844 = vpop.permute.xlu0 %7843
      %7845 = vrot.lane.b32.xlu0 %v6926, 120
      %v7846 = vpop.permute.xlu0 %7845
      %7847 = vrot.lane.b32.xlu0 %v7318, 120
      %v7848 = vpop.permute.xlu0 %7847
      %7857 = vrot.lane.b32.xlu0 %v6188, 8
      %v7858 = vpop.permute.xlu0 %7857
      %7859 = vrot.lane.b32.xlu0 %v6580, 8
      %v7860 = vpop.permute.xlu0 %7859
      %7861 = vrot.lane.b32.xlu0 %v6972, 8
      %v7862 = vpop.permute.xlu0 %7861
      %7863 = vrot.lane.b32.xlu0 %v7364, 8
      %v7864 = vpop.permute.xlu0 %7863
      %7873 = vrot.lane.b32.xlu0 %v6172, 16
      %v7874 = vpop.permute.xlu0 %7873
      %7875 = vrot.lane.b32.xlu0 %v6564, 16
      %v7876 = vpop.permute.xlu0 %7875
      %7877 = vrot.lane.b32.xlu0 %v6956, 16
      %v7878 = vpop.permute.xlu0 %7877
      %7879 = vrot.lane.b32.xlu0 %v7348, 16
      %v7880 = vpop.permute.xlu0 %7879
      %7889 = vrot.lane.b32.xlu0 %v6189, 24
      %v7890 = vpop.permute.xlu0 %7889
      %7891 = vrot.lane.b32.xlu0 %v6581, 24
      %v7892 = vpop.permute.xlu0 %7891
      %7893 = vrot.lane.b32.xlu0 %v6973, 24
      %v7894 = vpop.permute.xlu0 %7893
      %7895 = vrot.lane.b32.xlu0 %v7365, 24
      %v7896 = vpop.permute.xlu0 %7895
      %7905 = vrot.lane.b32.xlu0 %v6180, 32
      %v7906 = vpop.permute.xlu0 %7905
      %7907 = vrot.lane.b32.xlu0 %v6572, 32
      %v7908 = vpop.permute.xlu0 %7907
      %7909 = vrot.lane.b32.xlu0 %v6964, 32
      %v7910 = vpop.permute.xlu0 %7909
      %7911 = vrot.lane.b32.xlu0 %v7356, 32
      %v7912 = vpop.permute.xlu0 %7911
      %7921 = vrot.lane.b32.xlu0 %v6190, 40
      %v7922 = vpop.permute.xlu0 %7921
      %7923 = vrot.lane.b32.xlu0 %v6582, 40
      %v7924 = vpop.permute.xlu0 %7923
      %7925 = vrot.lane.b32.xlu0 %v6974, 40
      %v7926 = vpop.permute.xlu0 %7925
      %7927 = vrot.lane.b32.xlu0 %v7366, 40
      %v7928 = vpop.permute.xlu0 %7927
      %7937 = vrot.lane.b32.xlu0 %v6187, 48
      %v7938 = vpop.permute.xlu0 %7937
      %7939 = vrot.lane.b32.xlu0 %v6579, 48
      %v7940 = vpop.permute.xlu0 %7939
      %7941 = vrot.lane.b32.xlu0 %v6971, 48
      %v7942 = vpop.permute.xlu0 %7941
      %7943 = vrot.lane.b32.xlu0 %v7363, 48
      %v7944 = vpop.permute.xlu0 %7943
      %7953 = vrot.lane.b32.xlu0 %v6191, 56
      %v7954 = vpop.permute.xlu0 %7953
      %7955 = vrot.lane.b32.xlu0 %v6583, 56
      %v7956 = vpop.permute.xlu0 %7955
      %7957 = vrot.lane.b32.xlu0 %v6975, 56
      %v7958 = vpop.permute.xlu0 %7957
      %7959 = vrot.lane.b32.xlu0 %v7367, 56
      %v7960 = vpop.permute.xlu0 %7959
      %7969 = vrot.lane.b32.xlu0 %v6214, 64
      %v7970 = vpop.permute.xlu0 %7969
      %7971 = vrot.lane.b32.xlu0 %v6606, 64
      %v7972 = vpop.permute.xlu0 %7971
      %7973 = vrot.lane.b32.xlu0 %v6998, 64
      %v7974 = vpop.permute.xlu0 %7973
      %7975 = vrot.lane.b32.xlu0 %v7390, 64
      %v7976 = vpop.permute.xlu0 %7975
      %7985 = vrot.lane.b32.xlu0 %v6237, 72
      %v7986 = vpop.permute.xlu0 %7985
      %7987 = vrot.lane.b32.xlu0 %v6629, 72
      %v7988 = vpop.permute.xlu0 %7987
      %7989 = vrot.lane.b32.xlu0 %v7021, 72
      %v7990 = vpop.permute.xlu0 %7989
      %7991 = vrot.lane.b32.xlu0 %v7413, 72
      %v7992 = vpop.permute.xlu0 %7991
      %8001 = vrot.lane.b32.xlu0 %v6221, 80
      %v8002 = vpop.permute.xlu0 %8001
      %8003 = vrot.lane.b32.xlu0 %v6613, 80
      %v8004 = vpop.permute.xlu0 %8003
      %8005 = vrot.lane.b32.xlu0 %v7005, 80
      %v8006 = vpop.permute.xlu0 %8005
      %8007 = vrot.lane.b32.xlu0 %v7397, 80
      %v8008 = vpop.permute.xlu0 %8007
      %8017 = vrot.lane.b32.xlu0 %v6238, 88
      %v8018 = vpop.permute.xlu0 %8017
      %8019 = vrot.lane.b32.xlu0 %v6630, 88
      %v8020 = vpop.permute.xlu0 %8019
      %8021 = vrot.lane.b32.xlu0 %v7022, 88
      %v8022 = vpop.permute.xlu0 %8021
      %8023 = vrot.lane.b32.xlu0 %v7414, 88
      %v8024 = vpop.permute.xlu0 %8023
      %8033 = vrot.lane.b32.xlu0 %v6229, 96
      %v8034 = vpop.permute.xlu0 %8033
      %8035 = vrot.lane.b32.xlu0 %v6621, 96
      %v8036 = vpop.permute.xlu0 %8035
      %8037 = vrot.lane.b32.xlu0 %v7013, 96
      %v8038 = vpop.permute.xlu0 %8037
      %8039 = vrot.lane.b32.xlu0 %v7405, 96
      %v8040 = vpop.permute.xlu0 %8039
      %8049 = vrot.lane.b32.xlu0 %v6239, 104
      %v8050 = vpop.permute.xlu0 %8049
      %8051 = vrot.lane.b32.xlu0 %v6631, 104
      %v8052 = vpop.permute.xlu0 %8051
      %8053 = vrot.lane.b32.xlu0 %v7023, 104
      %v8054 = vpop.permute.xlu0 %8053
      %8055 = vrot.lane.b32.xlu0 %v7415, 104
      %v8056 = vpop.permute.xlu0 %8055
      %8065 = vrot.lane.b32.xlu0 %v6236, 112
      %v8066 = vpop.permute.xlu0 %8065
      %8067 = vrot.lane.b32.xlu0 %v6628, 112
      %v8068 = vpop.permute.xlu0 %8067
      %8069 = vrot.lane.b32.xlu0 %v7020, 112
      %v8070 = vpop.permute.xlu0 %8069
      %8071 = vrot.lane.b32.xlu0 %v7412, 112
      %v8072 = vpop.permute.xlu0 %8071
      %8081 = vrot.lane.b32.xlu0 %v6240, 120
      %v8082 = vpop.permute.xlu0 %8081
      %8083 = vrot.lane.b32.xlu0 %v6632, 120
      %v8084 = vpop.permute.xlu0 %8083
      %8085 = vrot.lane.b32.xlu0 %v7024, 120
      %v8086 = vpop.permute.xlu0 %8085
      %8087 = vrot.lane.b32.xlu0 %v7416, 120
      %v8088 = vpop.permute.xlu0 %8087
      %8097 = vrot.lane.b32.xlu0 %v6286, 8
      %v8098 = vpop.permute.xlu0 %8097
      %8099 = vrot.lane.b32.xlu0 %v6678, 8
      %v8100 = vpop.permute.xlu0 %8099
      %8101 = vrot.lane.b32.xlu0 %v7070, 8
      %v8102 = vpop.permute.xlu0 %8101
      %8103 = vrot.lane.b32.xlu0 %v7462, 8
      %v8104 = vpop.permute.xlu0 %8103
      %8113 = vrot.lane.b32.xlu0 %v6270, 16
      %v8114 = vpop.permute.xlu0 %8113
      %8115 = vrot.lane.b32.xlu0 %v6662, 16
      %v8116 = vpop.permute.xlu0 %8115
      %8117 = vrot.lane.b32.xlu0 %v7054, 16
      %v8118 = vpop.permute.xlu0 %8117
      %8119 = vrot.lane.b32.xlu0 %v7446, 16
      %v8120 = vpop.permute.xlu0 %8119
      %8129 = vrot.lane.b32.xlu0 %v6287, 24
      %v8130 = vpop.permute.xlu0 %8129
      %8131 = vrot.lane.b32.xlu0 %v6679, 24
      %v8132 = vpop.permute.xlu0 %8131
      %8133 = vrot.lane.b32.xlu0 %v7071, 24
      %v8134 = vpop.permute.xlu0 %8133
      %8135 = vrot.lane.b32.xlu0 %v7463, 24
      %v8136 = vpop.permute.xlu0 %8135
      %8145 = vrot.lane.b32.xlu0 %v6278, 32
      %v8146 = vpop.permute.xlu0 %8145
      %8147 = vrot.lane.b32.xlu0 %v6670, 32
      %v8148 = vpop.permute.xlu0 %8147
      %8149 = vrot.lane.b32.xlu0 %v7062, 32
      %v8150 = vpop.permute.xlu0 %8149
      %8151 = vrot.lane.b32.xlu0 %v7454, 32
      %v8152 = vpop.permute.xlu0 %8151
      %8161 = vrot.lane.b32.xlu0 %v6288, 40
      %v8162 = vpop.permute.xlu0 %8161
      %8163 = vrot.lane.b32.xlu0 %v6680, 40
      %v8164 = vpop.permute.xlu0 %8163
      %8165 = vrot.lane.b32.xlu0 %v7072, 40
      %v8166 = vpop.permute.xlu0 %8165
      %8167 = vrot.lane.b32.xlu0 %v7464, 40
      %v8168 = vpop.permute.xlu0 %8167
      %8177 = vrot.lane.b32.xlu0 %v6285, 48
      %v8178 = vpop.permute.xlu0 %8177
      %8179 = vrot.lane.b32.xlu0 %v6677, 48
      %v8180 = vpop.permute.xlu0 %8179
      %8181 = vrot.lane.b32.xlu0 %v7069, 48
      %v8182 = vpop.permute.xlu0 %8181
      %8183 = vrot.lane.b32.xlu0 %v7461, 48
      %v8184 = vpop.permute.xlu0 %8183
      %8193 = vrot.lane.b32.xlu0 %v6289, 56
      %v8194 = vpop.permute.xlu0 %8193
      %8195 = vrot.lane.b32.xlu0 %v6681, 56
      %v8196 = vpop.permute.xlu0 %8195
      %8197 = vrot.lane.b32.xlu0 %v7073, 56
      %v8198 = vpop.permute.xlu0 %8197
      %8199 = vrot.lane.b32.xlu0 %v7465, 56
      %v8200 = vpop.permute.xlu0 %8199
      %8209 = vrot.lane.b32.xlu0 %v6312, 64
      %v8210 = vpop.permute.xlu0 %8209
      %8211 = vrot.lane.b32.xlu0 %v6704, 64
      %v8212 = vpop.permute.xlu0 %8211
      %8213 = vrot.lane.b32.xlu0 %v7096, 64
      %v8214 = vpop.permute.xlu0 %8213
      %8215 = vrot.lane.b32.xlu0 %v7488, 64
      %v8216 = vpop.permute.xlu0 %8215
      %8225 = vrot.lane.b32.xlu0 %v6335, 72
      %v8226 = vpop.permute.xlu0 %8225
      %8227 = vrot.lane.b32.xlu0 %v6727, 72
      %v8228 = vpop.permute.xlu0 %8227
      %8229 = vrot.lane.b32.xlu0 %v7119, 72
      %v8230 = vpop.permute.xlu0 %8229
      %8231 = vrot.lane.b32.xlu0 %v7511, 72
      %v8232 = vpop.permute.xlu0 %8231
      %8241 = vrot.lane.b32.xlu0 %v6319, 80
      %v8242 = vpop.permute.xlu0 %8241
      %8243 = vrot.lane.b32.xlu0 %v6711, 80
      %v8244 = vpop.permute.xlu0 %8243
      %8245 = vrot.lane.b32.xlu0 %v7103, 80
      %v8246 = vpop.permute.xlu0 %8245
      %8247 = vrot.lane.b32.xlu0 %v7495, 80
      %v8248 = vpop.permute.xlu0 %8247
      %8257 = vrot.lane.b32.xlu0 %v6336, 88
      %v8258 = vpop.permute.xlu0 %8257
      %8259 = vrot.lane.b32.xlu0 %v6728, 88
      %v8260 = vpop.permute.xlu0 %8259
      %8261 = vrot.lane.b32.xlu0 %v7120, 88
      %v8262 = vpop.permute.xlu0 %8261
      %8263 = vrot.lane.b32.xlu0 %v7512, 88
      %v8264 = vpop.permute.xlu0 %8263
      %8273 = vrot.lane.b32.xlu0 %v6327, 96
      %v8274 = vpop.permute.xlu0 %8273
      %8275 = vrot.lane.b32.xlu0 %v6719, 96
      %v8276 = vpop.permute.xlu0 %8275
      %8277 = vrot.lane.b32.xlu0 %v7111, 96
      %v8278 = vpop.permute.xlu0 %8277
      %8279 = vrot.lane.b32.xlu0 %v7503, 96
      %v8280 = vpop.permute.xlu0 %8279
      %8289 = vrot.lane.b32.xlu0 %v6337, 104
      %v8290 = vpop.permute.xlu0 %8289
      %8291 = vrot.lane.b32.xlu0 %v6729, 104
      %v8292 = vpop.permute.xlu0 %8291
      %8293 = vrot.lane.b32.xlu0 %v7121, 104
      %v8294 = vpop.permute.xlu0 %8293
      %8295 = vrot.lane.b32.xlu0 %v7513, 104
      %v8296 = vpop.permute.xlu0 %8295
      %8305 = vrot.lane.b32.xlu0 %v6334, 112
      %v8306 = vpop.permute.xlu0 %8305
      %8307 = vrot.lane.b32.xlu0 %v6726, 112
      %v8308 = vpop.permute.xlu0 %8307
      %8309 = vrot.lane.b32.xlu0 %v7118, 112
      %v8310 = vpop.permute.xlu0 %8309
      %8311 = vrot.lane.b32.xlu0 %v7510, 112
      %v8312 = vpop.permute.xlu0 %8311
      %8321 = vrot.lane.b32.xlu0 %v6338, 120
      %v8322 = vpop.permute.xlu0 %8321
      %8323 = vrot.lane.b32.xlu0 %v6730, 120
      %v8324 = vpop.permute.xlu0 %8323
      %8325 = vrot.lane.b32.xlu0 %v7122, 120
      %v8326 = vpop.permute.xlu0 %8325
      %8327 = vrot.lane.b32.xlu0 %v7514, 120
      %v8328 = vpop.permute.xlu0 %8327
      %8337 = vrot.lane.b32.xlu0 %v6384, 8
      %v8338 = vpop.permute.xlu0 %8337
      %8339 = vrot.lane.b32.xlu0 %v6776, 8
      %v8340 = vpop.permute.xlu0 %8339
      %8341 = vrot.lane.b32.xlu0 %v7168, 8
      %v8342 = vpop.permute.xlu0 %8341
      %8343 = vrot.lane.b32.xlu0 %v7560, 8
      %v8344 = vpop.permute.xlu0 %8343
      %8353 = vrot.lane.b32.xlu0 %v6368, 16
      %v8354 = vpop.permute.xlu0 %8353
      %8355 = vrot.lane.b32.xlu0 %v6760, 16
      %v8356 = vpop.permute.xlu0 %8355
      %8357 = vrot.lane.b32.xlu0 %v7152, 16
      %v8358 = vpop.permute.xlu0 %8357
      %8359 = vrot.lane.b32.xlu0 %v7544, 16
      %v8360 = vpop.permute.xlu0 %8359
      %8369 = vrot.lane.b32.xlu0 %v6385, 24
      %v8370 = vpop.permute.xlu0 %8369
      %8371 = vrot.lane.b32.xlu0 %v6777, 24
      %v8372 = vpop.permute.xlu0 %8371
      %8373 = vrot.lane.b32.xlu0 %v7169, 24
      %v8374 = vpop.permute.xlu0 %8373
      %8375 = vrot.lane.b32.xlu0 %v7561, 24
      %v8376 = vpop.permute.xlu0 %8375
      %8385 = vrot.lane.b32.xlu0 %v6376, 32
      %v8386 = vpop.permute.xlu0 %8385
      %8387 = vrot.lane.b32.xlu0 %v6768, 32
      %v8388 = vpop.permute.xlu0 %8387
      %8389 = vrot.lane.b32.xlu0 %v7160, 32
      %v8390 = vpop.permute.xlu0 %8389
      %8391 = vrot.lane.b32.xlu0 %v7552, 32
      %v8392 = vpop.permute.xlu0 %8391
      %8401 = vrot.lane.b32.xlu0 %v6386, 40
      %v8402 = vpop.permute.xlu0 %8401
      %8403 = vrot.lane.b32.xlu0 %v6778, 40
      %v8404 = vpop.permute.xlu0 %8403
      %8405 = vrot.lane.b32.xlu0 %v7170, 40
      %v8406 = vpop.permute.xlu0 %8405
      %8407 = vrot.lane.b32.xlu0 %v7562, 40
      %v8408 = vpop.permute.xlu0 %8407
      %8417 = vrot.lane.b32.xlu0 %v6383, 48
      %v8418 = vpop.permute.xlu0 %8417
      %8419 = vrot.lane.b32.xlu0 %v6775, 48
      %v8420 = vpop.permute.xlu0 %8419
      %8421 = vrot.lane.b32.xlu0 %v7167, 48
      %v8422 = vpop.permute.xlu0 %8421
      %8423 = vrot.lane.b32.xlu0 %v7559, 48
      %v8424 = vpop.permute.xlu0 %8423
      %8433 = vrot.lane.b32.xlu0 %v6387, 56
      %v8434 = vpop.permute.xlu0 %8433
      %8435 = vrot.lane.b32.xlu0 %v6779, 56
      %v8436 = vpop.permute.xlu0 %8435
      %8437 = vrot.lane.b32.xlu0 %v7171, 56
      %v8438 = vpop.permute.xlu0 %8437
      %8439 = vrot.lane.b32.xlu0 %v7563, 56
      %v8440 = vpop.permute.xlu0 %8439
      %8449 = vrot.lane.b32.xlu0 %v6410, 64
      %v8450 = vpop.permute.xlu0 %8449
      %8451 = vrot.lane.b32.xlu0 %v6802, 64
      %v8452 = vpop.permute.xlu0 %8451
      %8453 = vrot.lane.b32.xlu0 %v7194, 64
      %v8454 = vpop.permute.xlu0 %8453
      %8455 = vrot.lane.b32.xlu0 %v7586, 64
      %v8456 = vpop.permute.xlu0 %8455
      %8465 = vrot.lane.b32.xlu0 %v6433, 72
      %v8466 = vpop.permute.xlu0 %8465
      %8467 = vrot.lane.b32.xlu0 %v6825, 72
      %v8468 = vpop.permute.xlu0 %8467
      %8469 = vrot.lane.b32.xlu0 %v7217, 72
      %v8470 = vpop.permute.xlu0 %8469
      %8471 = vrot.lane.b32.xlu0 %v7609, 72
      %v8472 = vpop.permute.xlu0 %8471
      %8481 = vrot.lane.b32.xlu0 %v6417, 80
      %v8482 = vpop.permute.xlu0 %8481
      %8483 = vrot.lane.b32.xlu0 %v6809, 80
      %v8484 = vpop.permute.xlu0 %8483
      %8485 = vrot.lane.b32.xlu0 %v7201, 80
      %v8486 = vpop.permute.xlu0 %8485
      %8487 = vrot.lane.b32.xlu0 %v7593, 80
      %v8488 = vpop.permute.xlu0 %8487
      %8497 = vrot.lane.b32.xlu0 %v6434, 88
      %v8498 = vpop.permute.xlu0 %8497
      %8499 = vrot.lane.b32.xlu0 %v6826, 88
      %v8500 = vpop.permute.xlu0 %8499
      %8501 = vrot.lane.b32.xlu0 %v7218, 88
      %v8502 = vpop.permute.xlu0 %8501
      %8503 = vrot.lane.b32.xlu0 %v7610, 88
      %v8504 = vpop.permute.xlu0 %8503
      %8513 = vrot.lane.b32.xlu0 %v6425, 96
      %v8514 = vpop.permute.xlu0 %8513
      %8515 = vrot.lane.b32.xlu0 %v6817, 96
      %v8516 = vpop.permute.xlu0 %8515
      %8517 = vrot.lane.b32.xlu0 %v7209, 96
      %v8518 = vpop.permute.xlu0 %8517
      %8519 = vrot.lane.b32.xlu0 %v7601, 96
      %v8520 = vpop.permute.xlu0 %8519
      %8529 = vrot.lane.b32.xlu0 %v6435, 104
      %v8530 = vpop.permute.xlu0 %8529
      %8531 = vrot.lane.b32.xlu0 %v6827, 104
      %v8532 = vpop.permute.xlu0 %8531
      %8533 = vrot.lane.b32.xlu0 %v7219, 104
      %v8534 = vpop.permute.xlu0 %8533
      %8535 = vrot.lane.b32.xlu0 %v7611, 104
      %v8536 = vpop.permute.xlu0 %8535
      %8545 = vrot.lane.b32.xlu0 %v6432, 112
      %v8546 = vpop.permute.xlu0 %8545
      %8547 = vrot.lane.b32.xlu0 %v6824, 112
      %v8548 = vpop.permute.xlu0 %8547
      %8549 = vrot.lane.b32.xlu0 %v7216, 112
      %v8550 = vpop.permute.xlu0 %8549
      %8551 = vrot.lane.b32.xlu0 %v7608, 112
      %v8552 = vpop.permute.xlu0 %8551
      %8561 = vrot.lane.b32.xlu0 %v6436, 120
      %v8562 = vpop.permute.xlu0 %8561
      %8563 = vrot.lane.b32.xlu0 %v6828, 120
      %v8564 = vpop.permute.xlu0 %8563
      %8565 = vrot.lane.b32.xlu0 %v7220, 120
      %v8566 = vpop.permute.xlu0 %8565
      %8567 = vrot.lane.b32.xlu0 %v7612, 120
      %v8568 = vpop.permute.xlu0 %8567
      %v8573 = vsel %vm433, %v6067, %v7618
      %v8574 = vsel %vm433, %v6459, %v7620
      %v8575 = vsel %vm433, %v6851, %v7622
      %v8576 = vsel %vm433, %v7243, %v7624
      %v8577 = vsel %vm694, %v8573, %v7634
      %v8578 = vsel %vm694, %v8574, %v7636
      %v8579 = vsel %vm694, %v8575, %v7638
      %v8580 = vsel %vm694, %v8576, %v7640
      %vm8581 = vcmask 195584
      %v8582 = vsel %vm8581, %v8577, %v7650
      %v8583 = vsel %vm8581, %v8578, %v7652
      %v8584 = vsel %vm8581, %v8579, %v7654
      %v8585 = vsel %vm8581, %v8580, %v7656
      %vm8586 = vcmask 261120
      %v8587 = vsel %vm8586, %v8582, %v7666
      %v8588 = vsel %vm8586, %v8583, %v7668
      %v8589 = vsel %vm8586, %v8584, %v7670
      %v8590 = vsel %vm8586, %v8585, %v7672
      %vm8591 = vcmask 326656
      %v8592 = vsel %vm8591, %v8587, %v7682
      %v8593 = vsel %vm8591, %v8588, %v7684
      %v8594 = vsel %vm8591, %v8589, %v7686
      %v8595 = vsel %vm8591, %v8590, %v7688
      %vm8596 = vcmask 392192
      %v8597 = vsel %vm8596, %v8592, %v7698
      %v8598 = vsel %vm8596, %v8593, %v7700
      %v8599 = vsel %vm8596, %v8594, %v7702
      %v8600 = vsel %vm8596, %v8595, %v7704
      %vm8601 = vcmask 457728
      %v8602 = vsel %vm8601, %v8597, %v7714
      %v8603 = vsel %vm8601, %v8598, %v7716
      %v8604 = vsel %vm8601, %v8599, %v7718
      %v8605 = vsel %vm8601, %v8600, %v7720
      %v8606 = vsel %vm627, %v8602, %v7730
      %v8607 = vsel %vm627, %v8603, %v7732
      %v8608 = vsel %vm627, %v8604, %v7734
      %v8609 = vsel %vm627, %v8605, %v7736
      %vm8610 = vcmask 588800
      %v8611 = vsel %vm8610, %v8606, %v7746
      %v8612 = vsel %vm8610, %v8607, %v7748
      %v8613 = vsel %vm8610, %v8608, %v7750
      %v8614 = vsel %vm8610, %v8609, %v7752
      %vm8615 = vcmask 654336
      %v8616 = vsel %vm8615, %v8611, %v7762
      %v8617 = vsel %vm8615, %v8612, %v7764
      %v8618 = vsel %vm8615, %v8613, %v7766
      %v8619 = vsel %vm8615, %v8614, %v7768
      %vm8620 = vcmask 719872
      %v8621 = vsel %vm8620, %v8616, %v7778
      %v8622 = vsel %vm8620, %v8617, %v7780
      %v8623 = vsel %vm8620, %v8618, %v7782
      %v8624 = vsel %vm8620, %v8619, %v7784
      %vm8625 = vcmask 785408
      %v8626 = vsel %vm8625, %v8621, %v7794
      %v8627 = vsel %vm8625, %v8622, %v7796
      %v8628 = vsel %vm8625, %v8623, %v7798
      %v8629 = vsel %vm8625, %v8624, %v7800
      %vm8630 = vcmask 850944
      %v8631 = vsel %vm8630, %v8626, %v7810
      %v8632 = vsel %vm8630, %v8627, %v7812
      %v8633 = vsel %vm8630, %v8628, %v7814
      %v8634 = vsel %vm8630, %v8629, %v7816
      %vm8635 = vcmask 916480
      %v8636 = vsel %vm8635, %v8631, %v7826
      %v8637 = vsel %vm8635, %v8632, %v7828
      %v8638 = vsel %vm8635, %v8633, %v7830
      %v8639 = vsel %vm8635, %v8634, %v7832
      %vm8640 = vcmask 982016
      %v8641 = vsel %vm8640, %v8636, %v7842
      %v8642 = vsel %vm8640, %v8637, %v7844
      %v8643 = vsel %vm8640, %v8638, %v7846
      %v8644 = vsel %vm8640, %v8639, %v7848
      %v8645 = vsel %vm433, %v6165, %v7858
      %v8646 = vsel %vm433, %v6557, %v7860
      %v8647 = vsel %vm433, %v6949, %v7862
      %v8648 = vsel %vm433, %v7341, %v7864
      %v8649 = vsel %vm694, %v8645, %v7874
      %v8650 = vsel %vm694, %v8646, %v7876
      %v8651 = vsel %vm694, %v8647, %v7878
      %v8652 = vsel %vm694, %v8648, %v7880
      %v8653 = vsel %vm8581, %v8649, %v7890
      %v8654 = vsel %vm8581, %v8650, %v7892
      %v8655 = vsel %vm8581, %v8651, %v7894
      %v8656 = vsel %vm8581, %v8652, %v7896
      %v8657 = vsel %vm8586, %v8653, %v7906
      %v8658 = vsel %vm8586, %v8654, %v7908
      %v8659 = vsel %vm8586, %v8655, %v7910
      %v8660 = vsel %vm8586, %v8656, %v7912
      %v8661 = vsel %vm8591, %v8657, %v7922
      %v8662 = vsel %vm8591, %v8658, %v7924
      %v8663 = vsel %vm8591, %v8659, %v7926
      %v8664 = vsel %vm8591, %v8660, %v7928
      %v8665 = vsel %vm8596, %v8661, %v7938
      %v8666 = vsel %vm8596, %v8662, %v7940
      %v8667 = vsel %vm8596, %v8663, %v7942
      %v8668 = vsel %vm8596, %v8664, %v7944
      %v8669 = vsel %vm8601, %v8665, %v7954
      %v8670 = vsel %vm8601, %v8666, %v7956
      %v8671 = vsel %vm8601, %v8667, %v7958
      %v8672 = vsel %vm8601, %v8668, %v7960
      %v8673 = vsel %vm627, %v8669, %v7970
      %v8674 = vsel %vm627, %v8670, %v7972
      %v8675 = vsel %vm627, %v8671, %v7974
      %v8676 = vsel %vm627, %v8672, %v7976
      %v8677 = vsel %vm8610, %v8673, %v7986
      %v8678 = vsel %vm8610, %v8674, %v7988
      %v8679 = vsel %vm8610, %v8675, %v7990
      %v8680 = vsel %vm8610, %v8676, %v7992
      %v8681 = vsel %vm8615, %v8677, %v8002
      %v8682 = vsel %vm8615, %v8678, %v8004
      %v8683 = vsel %vm8615, %v8679, %v8006
      %v8684 = vsel %vm8615, %v8680, %v8008
      %v8685 = vsel %vm8620, %v8681, %v8018
      %v8686 = vsel %vm8620, %v8682, %v8020
      %v8687 = vsel %vm8620, %v8683, %v8022
      %v8688 = vsel %vm8620, %v8684, %v8024
      %v8689 = vsel %vm8625, %v8685, %v8034
      %v8690 = vsel %vm8625, %v8686, %v8036
      %v8691 = vsel %vm8625, %v8687, %v8038
      %v8692 = vsel %vm8625, %v8688, %v8040
      %v8693 = vsel %vm8630, %v8689, %v8050
      %v8694 = vsel %vm8630, %v8690, %v8052
      %v8695 = vsel %vm8630, %v8691, %v8054
      %v8696 = vsel %vm8630, %v8692, %v8056
      %v8697 = vsel %vm8635, %v8693, %v8066
      %v8698 = vsel %vm8635, %v8694, %v8068
      %v8699 = vsel %vm8635, %v8695, %v8070
      %v8700 = vsel %vm8635, %v8696, %v8072
      %v8701 = vsel %vm8640, %v8697, %v8082
      %v8702 = vsel %vm8640, %v8698, %v8084
      %v8703 = vsel %vm8640, %v8699, %v8086
      %v8704 = vsel %vm8640, %v8700, %v8088
      %v8705 = vsel %vm433, %v6263, %v8098
      %v8706 = vsel %vm433, %v6655, %v8100
      %v8707 = vsel %vm433, %v7047, %v8102
      %v8708 = vsel %vm433, %v7439, %v8104
      %v8709 = vsel %vm694, %v8705, %v8114
      %v8710 = vsel %vm694, %v8706, %v8116
      %v8711 = vsel %vm694, %v8707, %v8118
      %v8712 = vsel %vm694, %v8708, %v8120
      %v8713 = vsel %vm8581, %v8709, %v8130
      %v8714 = vsel %vm8581, %v8710, %v8132
      %v8715 = vsel %vm8581, %v8711, %v8134
      %v8716 = vsel %vm8581, %v8712, %v8136
      %v8717 = vsel %vm8586, %v8713, %v8146
      %v8718 = vsel %vm8586, %v8714, %v8148
      %v8719 = vsel %vm8586, %v8715, %v8150
      %v8720 = vsel %vm8586, %v8716, %v8152
      %v8721 = vsel %vm8591, %v8717, %v8162
      %v8722 = vsel %vm8591, %v8718, %v8164
      %v8723 = vsel %vm8591, %v8719, %v8166
      %v8724 = vsel %vm8591, %v8720, %v8168
      %v8725 = vsel %vm8596, %v8721, %v8178
      %v8726 = vsel %vm8596, %v8722, %v8180
      %v8727 = vsel %vm8596, %v8723, %v8182
      %v8728 = vsel %vm8596, %v8724, %v8184
      %v8729 = vsel %vm8601, %v8725, %v8194
      %v8730 = vsel %vm8601, %v8726, %v8196
      %v8731 = vsel %vm8601, %v8727, %v8198
      %v8732 = vsel %vm8601, %v8728, %v8200
      %v8733 = vsel %vm627, %v8729, %v8210
      %v8734 = vsel %vm627, %v8730, %v8212
      %v8735 = vsel %vm627, %v8731, %v8214
      %v8736 = vsel %vm627, %v8732, %v8216
      %v8737 = vsel %vm8610, %v8733, %v8226
      %v8738 = vsel %vm8610, %v8734, %v8228
      %v8739 = vsel %vm8610, %v8735, %v8230
      %v8740 = vsel %vm8610, %v8736, %v8232
      %v8741 = vsel %vm8615, %v8737, %v8242
      %v8742 = vsel %vm8615, %v8738, %v8244
      %v8743 = vsel %vm8615, %v8739, %v8246
      %v8744 = vsel %vm8615, %v8740, %v8248
      %v8745 = vsel %vm8620, %v8741, %v8258
      %v8746 = vsel %vm8620, %v8742, %v8260
      %v8747 = vsel %vm8620, %v8743, %v8262
      %v8748 = vsel %vm8620, %v8744, %v8264
      %v8749 = vsel %vm8625, %v8745, %v8274
      %v8750 = vsel %vm8625, %v8746, %v8276
      %v8751 = vsel %vm8625, %v8747, %v8278
      %v8752 = vsel %vm8625, %v8748, %v8280
      %v8753 = vsel %vm8630, %v8749, %v8290
      %v8754 = vsel %vm8630, %v8750, %v8292
      %v8755 = vsel %vm8630, %v8751, %v8294
      %v8756 = vsel %vm8630, %v8752, %v8296
      %v8757 = vsel %vm8635, %v8753, %v8306
      %v8758 = vsel %vm8635, %v8754, %v8308
      %v8759 = vsel %vm8635, %v8755, %v8310
      %v8760 = vsel %vm8635, %v8756, %v8312
      %v8761 = vsel %vm8640, %v8757, %v8322
      %v8762 = vsel %vm8640, %v8758, %v8324
      %v8763 = vsel %vm8640, %v8759, %v8326
      %v8764 = vsel %vm8640, %v8760, %v8328
      %v8765 = vsel %vm433, %v6361, %v8338
      %v8766 = vsel %vm433, %v6753, %v8340
      %v8767 = vsel %vm433, %v7145, %v8342
      %v8768 = vsel %vm433, %v7537, %v8344
      %v8769 = vsel %vm694, %v8765, %v8354
      %v8770 = vsel %vm694, %v8766, %v8356
      %v8771 = vsel %vm694, %v8767, %v8358
      %v8772 = vsel %vm694, %v8768, %v8360
      %v8773 = vsel %vm8581, %v8769, %v8370
      %v8774 = vsel %vm8581, %v8770, %v8372
      %v8775 = vsel %vm8581, %v8771, %v8374
      %v8776 = vsel %vm8581, %v8772, %v8376
      %v8777 = vsel %vm8586, %v8773, %v8386
      %v8778 = vsel %vm8586, %v8774, %v8388
      %v8779 = vsel %vm8586, %v8775, %v8390
      %v8780 = vsel %vm8586, %v8776, %v8392
      %v8781 = vsel %vm8591, %v8777, %v8402
      %v8782 = vsel %vm8591, %v8778, %v8404
      %v8783 = vsel %vm8591, %v8779, %v8406
      %v8784 = vsel %vm8591, %v8780, %v8408
      %v8785 = vsel %vm8596, %v8781, %v8418
      %v8786 = vsel %vm8596, %v8782, %v8420
      %v8787 = vsel %vm8596, %v8783, %v8422
      %v8788 = vsel %vm8596, %v8784, %v8424
      %v8789 = vsel %vm8601, %v8785, %v8434
      %v8790 = vsel %vm8601, %v8786, %v8436
      %v8791 = vsel %vm8601, %v8787, %v8438
      %v8792 = vsel %vm8601, %v8788, %v8440
      %v8793 = vsel %vm627, %v8789, %v8450
      %v8794 = vsel %vm627, %v8790, %v8452
      %v8795 = vsel %vm627, %v8791, %v8454
      %v8796 = vsel %vm627, %v8792, %v8456
      %v8797 = vsel %vm8610, %v8793, %v8466
      %v8798 = vsel %vm8610, %v8794, %v8468
      %v8799 = vsel %vm8610, %v8795, %v8470
      %v8800 = vsel %vm8610, %v8796, %v8472
      %v8801 = vsel %vm8615, %v8797, %v8482
      %v8802 = vsel %vm8615, %v8798, %v8484
      %v8803 = vsel %vm8615, %v8799, %v8486
      %v8804 = vsel %vm8615, %v8800, %v8488
      %v8805 = vsel %vm8620, %v8801, %v8498
      %v8806 = vsel %vm8620, %v8802, %v8500
      %v8807 = vsel %vm8620, %v8803, %v8502
      %v8808 = vsel %vm8620, %v8804, %v8504
      %v8809 = vsel %vm8625, %v8805, %v8514
      %v8810 = vsel %vm8625, %v8806, %v8516
      %v8811 = vsel %vm8625, %v8807, %v8518
      %v8812 = vsel %vm8625, %v8808, %v8520
      %v8813 = vsel %vm8630, %v8809, %v8530
      %v8814 = vsel %vm8630, %v8810, %v8532
      %v8815 = vsel %vm8630, %v8811, %v8534
      %v8816 = vsel %vm8630, %v8812, %v8536
      %v8817 = vsel %vm8635, %v8813, %v8546
      %v8818 = vsel %vm8635, %v8814, %v8548
      %v8819 = vsel %vm8635, %v8815, %v8550
      %v8820 = vsel %vm8635, %v8816, %v8552
      %v8821 = vsel %vm8640, %v8817, %v8562
      %v8822 = vsel %vm8640, %v8818, %v8564
      %v8823 = vsel %vm8640, %v8819, %v8566
      %v8824 = vsel %vm8640, %v8820, %v8568
      %v8841 = vcombine.low %v8641, %v8701
      %v8842 = vcombine.low %v8761, %v8821
      %v8844 = vunpack.c.l.s4 1966171168
      %v8845 = vunpack.c.0.s8 %v8844
      %v8846 = vlaneseq
      %v8847 = vshrl.u32 %v8846, 7
      %v8848 = vsub.s32 %v8845, %v8847
      %v8849 = vrot.slane %v8841, %v8848
      %v8851 = vunpack.c.l.s4 1966171168
      %v8852 = vunpack.c.0.s8 %v8851
      %v8853 = vlaneseq
      %v8854 = vshrl.u32 %v8853, 7
      %v8855 = vsub.s32 %v8852, %v8854
      %v8856 = vrot.slane %v8842, %v8855
      %v8857 = vcombine.low %v8849, %v8856
      %v8859 = vunpack.c.l.s4 1966171168
      %v8860 = vunpack.c.0.s8 %v8859
      %v8861 = vlaneseq
      %v8862 = vshrl.u32 %v8861, 7
      %v8863 = vsub.s32 %v8860, %v8862
      %v8864 = vrot.slane %v8857, %v8863
      %v8865 = vcombine.low %v8642, %v8702
      %v8866 = vcombine.low %v8762, %v8822
      %v8868 = vunpack.c.l.s4 1966171168
      %v8869 = vunpack.c.0.s8 %v8868
      %v8870 = vlaneseq
      %v8871 = vshrl.u32 %v8870, 7
      %v8872 = vsub.s32 %v8869, %v8871
      %v8873 = vrot.slane %v8865, %v8872
      %v8875 = vunpack.c.l.s4 1966171168
      %v8876 = vunpack.c.0.s8 %v8875
      %v8877 = vlaneseq
      %v8878 = vshrl.u32 %v8877, 7
      %v8879 = vsub.s32 %v8876, %v8878
      %v8880 = vrot.slane %v8866, %v8879
      %v8881 = vcombine.low %v8873, %v8880
      %v8883 = vunpack.c.l.s4 1966171168
      %v8884 = vunpack.c.0.s8 %v8883
      %v8885 = vlaneseq
      %v8886 = vshrl.u32 %v8885, 7
      %v8887 = vsub.s32 %v8884, %v8886
      %v8888 = vrot.slane %v8881, %v8887
      %v8889 = vcombine.low %v8643, %v8703
      %v8890 = vcombine.low %v8763, %v8823
      %v8892 = vunpack.c.l.s4 1966171168
      %v8893 = vunpack.c.0.s8 %v8892
      %v8894 = vlaneseq
      %v8895 = vshrl.u32 %v8894, 7
      %v8896 = vsub.s32 %v8893, %v8895
      %v8897 = vrot.slane %v8889, %v8896
      %v8899 = vunpack.c.l.s4 1966171168
      %v8900 = vunpack.c.0.s8 %v8899
      %v8901 = vlaneseq
      %v8902 = vshrl.u32 %v8901, 7
      %v8903 = vsub.s32 %v8900, %v8902
      %v8904 = vrot.slane %v8890, %v8903
      %v8905 = vcombine.low %v8897, %v8904
      %v8907 = vunpack.c.l.s4 1966171168
      %v8908 = vunpack.c.0.s8 %v8907
      %v8909 = vlaneseq
      %v8910 = vshrl.u32 %v8909, 7
      %v8911 = vsub.s32 %v8908, %v8910
      %v8912 = vrot.slane %v8905, %v8911
      %v8913 = vcombine.low %v8644, %v8704
      %v8914 = vcombine.low %v8764, %v8824
      %v8916 = vunpack.c.l.s4 1966171168
      %v8917 = vunpack.c.0.s8 %v8916
      %v8918 = vlaneseq
      %v8919 = vshrl.u32 %v8918, 7
      %v8920 = vsub.s32 %v8917, %v8919
      %v8921 = vrot.slane %v8913, %v8920
      %v8923 = vunpack.c.l.s4 1966171168
      %v8924 = vunpack.c.0.s8 %v8923
      %v8925 = vlaneseq
      %v8926 = vshrl.u32 %v8925, 7
      %v8927 = vsub.s32 %v8924, %v8926
      %v8928 = vrot.slane %v8914, %v8927
      %v8929 = vcombine.low %v8921, %v8928
      %v8931 = vunpack.c.l.s4 1966171168
      %v8932 = vunpack.c.0.s8 %v8931
      %v8933 = vlaneseq
      %v8934 = vshrl.u32 %v8933, 7
      %v8935 = vsub.s32 %v8932, %v8934
      %v8936 = vrot.slane %v8929, %v8935
      %v8941 = vlaneseq
      %vm8942 = vcmp.ge.s32.totalorder %v8941, 0
      %vm8943 = vcmp.lt.s32.totalorder %v8941, 512
      %vm8944 = vmand %vm8942, %vm8943
      %8945 = vst.msk [vmem:[%s391] sm:$0xf] %vm8944, %v8864
      %8946 = vst.msk [vmem:[%s391 + $0x4] sm:$0xf] %vm8944, %v8888
      %8947 = vst.msk [vmem:[%s391 + $0x8] sm:$0xf] %vm8944, %v8912
      %8948 = vst.msk [vmem:[%s391 + $0xc] sm:$0xf] %vm8944, %v8936
      %s8949 = smul.u32 4, %s22
      %p8950 = scmp.lt.s32.totalorder %s8949, 7
      %s8951 = scalar_select %p8950, %s8949, 7
      %s8952 = smul.addr %s8951, 4
      %s8953 = scalar_lea.vmem %s11, %s8952
      // Predicated region
      $region65: #{_lambda_.1} parent=63 // pred_check
        %p8954 = pneg %p276
      $region66: #{_lambda_.1} parent=63 // pred_check_branch
        %8956 = sbr.rel (%p8954) target = $region68
      $region67: #{_lambda_.1} parent=63 // pred_region
        %s8957 = smul.u32 4, %s22
      $region68: #{_lambda_.1} parent=63 // pred_fallthru
        _
    $region64: #{_lambda_.1} parent=5 // pred_fallthru
      _
    %p8958 = scmp.le.s32.totalorder 2, %s17
    // Predicated region
    $region69: #{_lambda_.1} parent=5 // pred_check
      %p8959 = pneg %p8958
    $region70: #{_lambda_.1} parent=5 // pred_check_branch
      %8961 = sbr.rel (%p8959) target = $region72
    $region71: #{_lambda_.1} parent=5 // pred_region
      %s8962 = ssub.s32 %s17, 2
      // Predicated region
      $region73: #{_lambda_.1} parent=71 // pred_check
        %p8963 = pneg %p282
      $region74: #{_lambda_.1} parent=71 // pred_check_branch
        %8965 = sbr.rel (%p8963) target = $region76
      $region75: #{_lambda_.1} parent=71 // pred_region
        %s8966 = smul.u32 4, %s23
        %p8967 = scmp.lt.s32.totalorder %s8966, 7
        %s8968 = scalar_select %p8967, %s8966, 7
        %s8969 = smul.addr %s8968, 4
        %s8970 = scalar_lea.vmem %s11, %s8969
      $region76: #{_lambda_.1} parent=71 // pred_fallthru
        _
    $region72: #{_lambda_.1} parent=5 // pred_fallthru
      _
  $region6: #{_lambda_.1} parent=0 // loop_footer
    %s21 = sadd.s32 1, %s17
  $region7: #{_lambda_.1} parent=0 // loop_footer_branch
    %16 = sbr.rel target = $region3
  $region8: #{_lambda_.1} parent=0 // loop_exit
    _

</llo_original>
